<compile_context>
chip_gen: v7x
topology: tpu7x:2x2x1
jax: 0.10.0
libtpu: 0.0.40
codegen_flags: <defaults>
</compile_context>

<pallas_src>
import functools
import math

import numpy as np
import jax
import jax.numpy as jnp
from jax.experimental import pallas as pl
from jax.experimental.pallas import tpu as pltpu

BN_EPS = 1e-5
N_CLASS = 21


def _relu6(v):
    return jnp.minimum(jnp.maximum(v, 0.0), 6.0)


# --------------------------- constant matrices -------------------------------

def _build_selection(bt, h_in, w_in, stride):
    """0/1 tap-selection matrix for a 3x3 depthwise conv (pad=1).

    Folds zero padding, the stride and the batch-tile block-diagonal structure.
    Rows are tap-major; each tap's row block is padded to a multiple of 8 so
    in-kernel tap slices stay sublane-aligned.  Exact in bf16.
    """
    h_out = (h_in - 1) // stride + 1
    w_out = (w_in - 1) // stride + 1
    p_out = h_out * w_out
    s_in = h_in * w_in
    tap_rows = ((bt * p_out + 7) // 8) * 8
    sel = np.zeros((9 * tap_rows, bt * s_in), np.float32)
    k = 0
    for di in (-1, 0, 1):
        for dj in (-1, 0, 1):
            for b in range(bt):
                for r in range(h_out):
                    ii = stride * r + di
                    if not (0 <= ii < h_in):
                        continue
                    for c in range(w_out):
                        jj = stride * c + dj
                        if 0 <= jj < w_in:
                            sel[k * tap_rows + b * p_out + r * w_out + c,
                                b * s_in + ii * w_in + jj] = 1.0
            k += 1
    return jnp.asarray(sel, jnp.bfloat16), tap_rows, h_out, w_out


def _build_pool(bt, p_out):
    """Per-image spatial-mean matrix, block diagonal over the batch tile."""
    pool = np.zeros((bt, bt * p_out), np.float32)
    for b in range(bt):
        pool[b, b * p_out:(b + 1) * p_out] = 1.0 / p_out
    return jnp.asarray(pool, jnp.float32)


def _pick_batch_tile(n, requested=None):
    if requested is not None:
        assert n % requested == 0
        return requested
    # Stack images per grid step to raise matmul M, but keep >= 2 "parallel"
    # grid steps so both v7x TensorCores stay busy.
    for cand in (8, 4, 2):
        if n % cand == 0 and n // cand >= 2:
            return cand
    return 1


# ----------------------------- fused kernel ----------------------------------

def _fused_forward_kernel(
    x_ref, sel0_ref, sel1_ref, pool_ref,
    we0_ref, be0_ref, wd0_ref, bd0_ref, wp0_ref, bp0_ref,
    we1_ref, be1_ref, wd1_ref, bd1_ref, wp1_ref, bp1_ref,
    we2_ref, be2_ref, wd2_ref, bd2_ref, wp2_ref, bp2_ref,
    wl_ref, bl_ref, wc_ref, bc_ref,
    o_ref,
    *, n_valid, tap_rows0, tap_rows1):
    """Whole Mobilenetv2_Backbone2 forward for one batch tile, all-VMEM."""

    def pconv(act, w_ref, b_ref):
        # 1x1 conv as bf16 MXU matmul + folded-BN bias (f32 epilogue).
        return jnp.dot(act.astype(jnp.bfloat16), w_ref[...],
                       preferred_element_type=jnp.float32) + b_ref[...]

    def depthwise(act_f32, sel_ref, wd_ref, bd_ref, tap_rows):
        # Depthwise 3x3 via one constant tap-selection matmul (taps stacked in
        # M; padding / stride / batch block-diagonal all folded into sel),
        # then a 9-term per-channel multiply-accumulate + bias + ReLU6.
        taps = jnp.dot(sel_ref[...], act_f32.astype(jnp.bfloat16),
                       preferred_element_type=jnp.float32)
        wk = wd_ref[...]                                  # (9, C) f32, BN folded
        acc = taps[0:n_valid] * wk[0:1, :]
        for k in range(1, 9):
            off = k * tap_rows                            # multiple of 8
            acc = acc + taps[off:off + n_valid] * wk[k:k + 1, :]
        return _relu6(acc + bd_ref[...])

    x = x_ref[0]                                          # (bt*H*W, 96) bf16

    # ---- block 0: expand -> depthwise (stride 2 folded into sel0) -> project
    e = _relu6(pconv(x, we0_ref, be0_ref))                # (bt*100, 576) f32
    d = depthwise(e, sel0_ref, wd0_ref, bd0_ref, tap_rows0)   # (bt*25, 576)
    y = pconv(d, wp0_ref, bp0_ref)                        # (bt*25, 160), linear

    # ---- blocks 1 & 2: stride 1, residual add ------------------------------
    for (we_ref, be_ref, wd_ref, bd_ref, wp_ref, bp_ref) in (
            (we1_ref, be1_ref, wd1_ref, bd1_ref, wp1_ref, bp1_ref),
            (we2_ref, be2_ref, wd2_ref, bd2_ref, wp2_ref, bp2_ref)):
        e = _relu6(pconv(y, we_ref, be_ref))              # (bt*25, 960)
        d = depthwise(e, sel1_ref, wd_ref, bd_ref, tap_rows1)
        y = pconv(d, wp_ref, bp_ref) + y                  # residual (f32)

    # ---- conv_1x1_bn(160,160)+ReLU6, per-image mean, classifier ------------
    z = _relu6(pconv(y, wl_ref, bl_ref))                  # (bt*25, 160)
    pooled = jnp.dot(pool_ref[...], z,
                     preferred_element_type=jnp.float32)  # (bt, 160)
    # TODO(synk): Dropout implemented as eval-mode identity.
    logits = jnp.dot(pooled, wc_ref[...],
                     preferred_element_type=jnp.float32) + bc_ref[...]
    o_ref[0] = logits                                     # (bt, 21)


# ------------------------------ parameters -----------------------------------

def init_params(key):
    def normal(k, shape, std):
        return std * jax.random.normal(k, shape, jnp.float32)

    def bn_scale(c):
        # Eval-mode BatchNorm fold with default running stats (mean=0, var=1,
        # gamma=1, beta=0) -> per-channel scale, zero bias.
        # TODO(synk): trained running stats / affine params must be folded the
        # same way; train-mode batch statistics are not modelled.
        return jnp.full((c,), 1.0 / math.sqrt(1.0 + BN_EPS), jnp.float32)

    keys = iter(jax.random.split(key, 16))
    # InvertedResidual setting [[6, 160, 3, 2]] starting from 96 channels
    cfg = [(96, 576, 160), (160, 960, 160), (160, 960, 160)]
    blocks = []
    for (cin, hidden, cout) in cfg:
        # PyTorch init: normal(0, sqrt(2 / (kh*kw*out_channels)))
        w_exp = normal(next(keys), (cin, hidden), math.sqrt(2.0 / hidden))
        w_dw = normal(next(keys), (9, hidden), math.sqrt(2.0 / (9 * hidden)))
        w_proj = normal(next(keys), (hidden, cout), math.sqrt(2.0 / cout))
        s_h, s_o = bn_scale(hidden), bn_scale(cout)
        blocks.append(dict(
            we=(w_exp * s_h[None, :]).astype(jnp.bfloat16),
            be=jnp.zeros((1, hidden), jnp.float32),
            wd=(w_dw * s_h[None, :]).astype(jnp.float32),
            bd=jnp.zeros((1, hidden), jnp.float32),
            wp=(w_proj * s_o[None, :]).astype(jnp.bfloat16),
            bp=jnp.zeros((1, cout), jnp.float32),
        ))
    w_last = normal(next(keys), (160, 160), math.sqrt(2.0 / 160))
    return dict(
        blocks=blocks,
        wl=(w_last * bn_scale(160)[None, :]).astype(jnp.bfloat16),
        bl=jnp.zeros((1, 160), jnp.float32),
        wc=normal(next(keys), (160, N_CLASS), 0.01),
        bc=jnp.zeros((1, N_CLASS), jnp.float32),
    )


# -------------------------------- forward ------------------------------------

def forward(params, x_nchw, batch_tile=None):
    n, cin, h, w = x_nchw.shape
    bt = _pick_batch_tile(n, batch_tile)
    n_tiles = n // bt

    sel0, tap0, ho, wo = _build_selection(bt, h, w, stride=2)
    sel1, tap1, _, _ = _build_selection(bt, ho, wo, stride=1)
    p_out = ho * wo
    pool = _build_pool(bt, p_out)

    # NCHW -> (tiles, bt*H*W, C) bf16 once, outside the kernel.
    x = jnp.transpose(x_nchw, (0, 2, 3, 1)).reshape(n, h * w, cin)
    x = x.astype(jnp.bfloat16).reshape(n_tiles, bt * h * w, cin)

    b0, b1, b2 = params["blocks"]
    operands = [x, sel0, sel1, pool]
    for b in (b0, b1, b2):
        operands += [b["we"], b["be"], b["wd"], b["bd"], b["wp"], b["bp"]]
    operands += [params["wl"], params["bl"], params["wc"], params["bc"]]

    def const_spec(a):
        return pl.BlockSpec(a.shape, lambda i, _nd=a.ndim: (0,) * _nd)

    kernel = functools.partial(
        _fused_forward_kernel,
        n_valid=bt * p_out, tap_rows0=tap0, tap_rows1=tap1)

    out = pl.pallas_call(
        kernel,
        out_shape=jax.ShapeDtypeStruct((n_tiles, bt, N_CLASS), jnp.float32),
        grid=(n_tiles,),
        in_specs=([pl.BlockSpec((1, bt * h * w, cin), lambda i: (i, 0, 0))]
                  + [const_spec(a) for a in operands[1:]]),
        out_specs=pl.BlockSpec((1, bt, N_CLASS), lambda i: (i, 0, 0)),
        compiler_params=pltpu.CompilerParams(
            dimension_semantics=("parallel",),
            vmem_limit_bytes=32 * 1024 * 1024,
        ),
    )(*operands)
    return out.reshape(n, N_CLASS)


# ------------------------- pure-JAX f32 reference ----------------------------

def reference_forward(params, x_nchw):
    """Same folded weights, f32 math, standard convolutions (for tolerance)."""
    f32 = jnp.float32
    x = jnp.transpose(x_nchw, (0, 2, 3, 1)).astype(f32)

    def pw(a, wgt, b):
        return jnp.einsum("nhwc,cd->nhwd", a, wgt.astype(f32)) + b.reshape(1, 1, 1, -1)

    def dw(a, w9, b, stride):
        c = a.shape[-1]
        k = w9.reshape(3, 3, 1, c).astype(f32)
        out = jax.lax.conv_general_dilated(
            a, k, window_strides=(stride, stride), padding=((1, 1), (1, 1)),
            dimension_numbers=("NHWC", "HWIO", "NHWC"), feature_group_count=c)
        return jnp.clip(out + b.reshape(1, 1, 1, -1), 0.0, 6.0)

    y = x
    for idx, blk in enumerate(params["blocks"]):
        stride = 2 if idx == 0 else 1
        e = jnp.clip(pw(y, blk["we"], blk["be"]), 0.0, 6.0)
        d = dw(e, blk["wd"], blk["bd"], stride)
        p = pw(d, blk["wp"], blk["bp"])
        y = p if idx == 0 else p + y
    z = jnp.clip(pw(y, params["wl"], params["bl"]), 0.0, 6.0)
    pooled = z.mean(axis=(1, 2))
    return pooled @ params["wc"] + params["bc"]


# ---------------------------------- main --------------------------------------

if __name__ == "__main__":
    root = jax.random.PRNGKey(0)
    pkey, xkey, xkey4 = jax.random.split(root, 3)
    params = init_params(pkey)

    # NCHW input consistent with the module: 96 in-channels, input_size=10.
    x = jax.random.normal(xkey, (2, 96, 10, 10), jnp.float32)
    fwd = jax.jit(forward)
    ref = jax.jit(reference_forward)

    out = fwd(params, x)
    jax.block_until_ready(out)
    assert out.shape == (2, N_CLASS), out.shape
    assert bool(jnp.all(jnp.isfinite(out))), "non-finite output"

    # Tolerance check vs f32 reference.  With the faithful PyTorch init the
    # logits are ~1e-3 in magnitude, so validate with the same weights scaled
    # up (x4, exact in bf16) to make the comparison numerically meaningful.
    params_chk = jax.tree_util.tree_map(lambda a: (a * 4.0).astype(a.dtype), params)

    out_chk = fwd(params_chk, x)                       # batch 2, B_tile = 1
    ref_chk = ref(params_chk, x)
    np.testing.assert_allclose(np.asarray(out_chk), np.asarray(ref_chk),
                               rtol=0.1, atol=0.07)

    x4 = jax.random.normal(xkey4, (4, 96, 10, 10), jnp.float32)
    out4 = fwd(params_chk, x4)                         # batch 4, B_tile = 2
    ref4 = ref(params_chk, x4)
    assert out4.shape == (4, N_CLASS)
    np.testing.assert_allclose(np.asarray(out4), np.asarray(ref4),
                               rtol=0.1, atol=0.07)

    print("KERNEL_OK")
</pallas_src>

<mosaic_0001>
module attributes {stable_mosaic.version = 11 : i64} {
  func.func @_fused_forward_kernel(%arg0: i32, %arg1: memref<1x100x96xbf16, #tpu.memory_space<vmem>>, %arg2: memref<288x100xbf16, #tpu.memory_space<vmem>>, %arg3: memref<288x25xbf16, #tpu.memory_space<vmem>>, %arg4: memref<1x25xf32, #tpu.memory_space<vmem>>, %arg5: memref<96x576xbf16, #tpu.memory_space<vmem>>, %arg6: memref<1x576xf32, #tpu.memory_space<vmem>>, %arg7: memref<9x576xf32, #tpu.memory_space<vmem>>, %arg8: memref<1x576xf32, #tpu.memory_space<vmem>>, %arg9: memref<576x160xbf16, #tpu.memory_space<vmem>>, %arg10: memref<1x160xf32, #tpu.memory_space<vmem>>, %arg11: memref<160x960xbf16, #tpu.memory_space<vmem>>, %arg12: memref<1x960xf32, #tpu.memory_space<vmem>>, %arg13: memref<9x960xf32, #tpu.memory_space<vmem>>, %arg14: memref<1x960xf32, #tpu.memory_space<vmem>>, %arg15: memref<960x160xbf16, #tpu.memory_space<vmem>>, %arg16: memref<1x160xf32, #tpu.memory_space<vmem>>, %arg17: memref<160x960xbf16, #tpu.memory_space<vmem>>, %arg18: memref<1x960xf32, #tpu.memory_space<vmem>>, %arg19: memref<9x960xf32, #tpu.memory_space<vmem>>, %arg20: memref<1x960xf32, #tpu.memory_space<vmem>>, %arg21: memref<960x160xbf16, #tpu.memory_space<vmem>>, %arg22: memref<1x160xf32, #tpu.memory_space<vmem>>, %arg23: memref<160x160xbf16, #tpu.memory_space<vmem>>, %arg24: memref<1x160xf32, #tpu.memory_space<vmem>>, %arg25: memref<160x21xf32, #tpu.memory_space<vmem>>, %arg26: memref<1x21xf32, #tpu.memory_space<vmem>>, %arg27: memref<1x1x21xf32, #tpu.memory_space<vmem>>) attributes {dimension_semantics = [#tpu.dimension_semantics<parallel>], iteration_bounds = array<i64: 2>, scalar_prefetch = 0 : i64, scratch_operands = 0 : i64, tpu.core_type = #tpu.core_type<tc>, window_params = [{transform_indices = @transform_0, window_bounds = array<i64: 1, 100, 96>}, {pipeline_mode = #tpu.pipeline_mode<synchronous>, transform_indices = @transform_1, window_bounds = array<i64: 288, 100>}, {pipeline_mode = #tpu.pipeline_mode<synchronous>, transform_indices = @transform_2, window_bounds = array<i64: 288, 25>}, {pipeline_mode = #tpu.pipeline_mode<synchronous>, transform_indices = @transform_3, window_bounds = array<i64: 1, 25>}, {pipeline_mode = #tpu.pipeline_mode<synchronous>, transform_indices = @transform_4, window_bounds = array<i64: 96, 576>}, {pipeline_mode = #tpu.pipeline_mode<synchronous>, transform_indices = @transform_5, window_bounds = array<i64: 1, 576>}, {pipeline_mode = #tpu.pipeline_mode<synchronous>, transform_indices = @transform_6, window_bounds = array<i64: 9, 576>}, {pipeline_mode = #tpu.pipeline_mode<synchronous>, transform_indices = @transform_7, window_bounds = array<i64: 1, 576>}, {pipeline_mode = #tpu.pipeline_mode<synchronous>, transform_indices = @transform_8, window_bounds = array<i64: 576, 160>}, {pipeline_mode = #tpu.pipeline_mode<synchronous>, transform_indices = @transform_9, window_bounds = array<i64: 1, 160>}, {pipeline_mode = #tpu.pipeline_mode<synchronous>, transform_indices = @transform_10, window_bounds = array<i64: 160, 960>}, {pipeline_mode = #tpu.pipeline_mode<synchronous>, transform_indices = @transform_11, window_bounds = array<i64: 1, 960>}, {pipeline_mode = #tpu.pipeline_mode<synchronous>, transform_indices = @transform_12, window_bounds = array<i64: 9, 960>}, {pipeline_mode = #tpu.pipeline_mode<synchronous>, transform_indices = @transform_13, window_bounds = array<i64: 1, 960>}, {pipeline_mode = #tpu.pipeline_mode<synchronous>, transform_indices = @transform_14, window_bounds = array<i64: 960, 160>}, {pipeline_mode = #tpu.pipeline_mode<synchronous>, transform_indices = @transform_15, window_bounds = array<i64: 1, 160>}, {pipeline_mode = #tpu.pipeline_mode<synchronous>, transform_indices = @transform_16, window_bounds = array<i64: 160, 960>}, {pipeline_mode = #tpu.pipeline_mode<synchronous>, transform_indices = @transform_17, window_bounds = array<i64: 1, 960>}, {pipeline_mode = #tpu.pipeline_mode<synchronous>, transform_indices = @transform_18, window_bounds = array<i64: 9, 960>}, {pipeline_mode = #tpu.pipeline_mode<synchronous>, transform_indices = @transform_19, window_bounds = array<i64: 1, 960>}, {pipeline_mode = #tpu.pipeline_mode<synchronous>, transform_indices = @transform_20, window_bounds = array<i64: 960, 160>}, {pipeline_mode = #tpu.pipeline_mode<synchronous>, transform_indices = @transform_21, window_bounds = array<i64: 1, 160>}, {pipeline_mode = #tpu.pipeline_mode<synchronous>, transform_indices = @transform_22, window_bounds = array<i64: 160, 160>}, {pipeline_mode = #tpu.pipeline_mode<synchronous>, transform_indices = @transform_23, window_bounds = array<i64: 1, 160>}, {pipeline_mode = #tpu.pipeline_mode<synchronous>, transform_indices = @transform_24, window_bounds = array<i64: 160, 21>}, {pipeline_mode = #tpu.pipeline_mode<synchronous>, transform_indices = @transform_25, window_bounds = array<i64: 1, 21>}, {transform_indices = @transform_26, window_bounds = array<i64: 1, 1, 21>}]} {
    %c0 = arith.constant 0 : index
    %c0_0 = arith.constant 0 : index
    %c0_1 = arith.constant 0 : index
    %0 = vector.load %arg1[%c0, %c0_0, %c0_1] : memref<1x100x96xbf16, #tpu.memory_space<vmem>>, vector<1x100x96xbf16>
    %1 = vector.shape_cast %0 : vector<1x100x96xbf16> to vector<100x96xbf16>
    %c0_2 = arith.constant 0 : index
    %c0_3 = arith.constant 0 : index
    %2 = vector.load %arg5[%c0_2, %c0_3] : memref<96x576xbf16, #tpu.memory_space<vmem>>, vector<96x576xbf16>
    %cst = arith.constant dense<0.000000e+00> : vector<100x576xf32>
    %3 = tpu.matmul %1, %2, %cst {dimension_numbers = #tpu.dot_dimension_numbers<[1], [0], [0], [1], [0, 0, 1, 1], [], []>} : vector<100x96xbf16>, vector<96x576xbf16>, vector<100x576xf32> -> vector<100x576xf32>
    %c0_4 = arith.constant 0 : index
    %c0_5 = arith.constant 0 : index
    %4 = vector.load %arg6[%c0_4, %c0_5] : memref<1x576xf32, #tpu.memory_space<vmem>>, vector<1x576xf32>
    %5 = vector.broadcast %4 : vector<1x576xf32> to vector<100x576xf32>
    %6 = arith.addf %3, %5 : vector<100x576xf32>
    %cst_6 = arith.constant 0.000000e+00 : f32
    %7 = vector.broadcast %cst_6 : f32 to vector<100x576xf32>
    %8 = arith.maximumf %6, %7 : vector<100x576xf32>
    %cst_7 = arith.constant 6.000000e+00 : f32
    %9 = vector.broadcast %cst_7 : f32 to vector<100x576xf32>
    %10 = arith.minimumf %8, %9 : vector<100x576xf32>
    %c0_8 = arith.constant 0 : index
    %c0_9 = arith.constant 0 : index
    %11 = vector.load %arg2[%c0_8, %c0_9] : memref<288x100xbf16, #tpu.memory_space<vmem>>, vector<288x100xbf16>
    %12 = arith.truncf %10 : vector<100x576xf32> to vector<100x576xbf16>
    %cst_10 = arith.constant dense<0.000000e+00> : vector<288x576xf32>
    %13 = tpu.matmul %11, %12, %cst_10 {dimension_numbers = #tpu.dot_dimension_numbers<[1], [0], [0], [1], [0, 0, 1, 1], [], []>} : vector<288x100xbf16>, vector<100x576xbf16>, vector<288x576xf32> -> vector<288x576xf32>
    %c0_11 = arith.constant 0 : index
    %c0_12 = arith.constant 0 : index
    %14 = vector.load %arg7[%c0_11, %c0_12] : memref<9x576xf32, #tpu.memory_space<vmem>>, vector<9x576xf32>
    %15 = vector.extract_strided_slice %13 {offsets = [0, 0], sizes = [25, 576], strides = [1, 1]} : vector<288x576xf32> to vector<25x576xf32>
    %16 = vector.extract_strided_slice %14 {offsets = [0, 0], sizes = [1, 576], strides = [1, 1]} : vector<9x576xf32> to vector<1x576xf32>
    %17 = vector.broadcast %16 : vector<1x576xf32> to vector<25x576xf32>
    %18 = arith.mulf %15, %17 : vector<25x576xf32>
    %19 = vector.extract_strided_slice %13 {offsets = [32, 0], sizes = [25, 576], strides = [1, 1]} : vector<288x576xf32> to vector<25x576xf32>
    %20 = vector.extract_strided_slice %14 {offsets = [1, 0], sizes = [1, 576], strides = [1, 1]} : vector<9x576xf32> to vector<1x576xf32>
    %21 = vector.broadcast %20 : vector<1x576xf32> to vector<25x576xf32>
    %22 = arith.mulf %19, %21 : vector<25x576xf32>
    %23 = arith.addf %18, %22 : vector<25x576xf32>
    %24 = vector.extract_strided_slice %13 {offsets = [64, 0], sizes = [25, 576], strides = [1, 1]} : vector<288x576xf32> to vector<25x576xf32>
    %25 = vector.extract_strided_slice %14 {offsets = [2, 0], sizes = [1, 576], strides = [1, 1]} : vector<9x576xf32> to vector<1x576xf32>
    %26 = vector.broadcast %25 : vector<1x576xf32> to vector<25x576xf32>
    %27 = arith.mulf %24, %26 : vector<25x576xf32>
    %28 = arith.addf %23, %27 : vector<25x576xf32>
    %29 = vector.extract_strided_slice %13 {offsets = [96, 0], sizes = [25, 576], strides = [1, 1]} : vector<288x576xf32> to vector<25x576xf32>
    %30 = vector.extract_strided_slice %14 {offsets = [3, 0], sizes = [1, 576], strides = [1, 1]} : vector<9x576xf32> to vector<1x576xf32>
    %31 = vector.broadcast %30 : vector<1x576xf32> to vector<25x576xf32>
    %32 = arith.mulf %29, %31 : vector<25x576xf32>
    %33 = arith.addf %28, %32 : vector<25x576xf32>
    %34 = vector.extract_strided_slice %13 {offsets = [128, 0], sizes = [25, 576], strides = [1, 1]} : vector<288x576xf32> to vector<25x576xf32>
    %35 = vector.extract_strided_slice %14 {offsets = [4, 0], sizes = [1, 576], strides = [1, 1]} : vector<9x576xf32> to vector<1x576xf32>
    %36 = vector.broadcast %35 : vector<1x576xf32> to vector<25x576xf32>
    %37 = arith.mulf %34, %36 : vector<25x576xf32>
    %38 = arith.addf %33, %37 : vector<25x576xf32>
    %39 = vector.extract_strided_slice %13 {offsets = [160, 0], sizes = [25, 576], strides = [1, 1]} : vector<288x576xf32> to vector<25x576xf32>
    %40 = vector.extract_strided_slice %14 {offsets = [5, 0], sizes = [1, 576], strides = [1, 1]} : vector<9x576xf32> to vector<1x576xf32>
    %41 = vector.broadcast %40 : vector<1x576xf32> to vector<25x576xf32>
    %42 = arith.mulf %39, %41 : vector<25x576xf32>
    %43 = arith.addf %38, %42 : vector<25x576xf32>
    %44 = vector.extract_strided_slice %13 {offsets = [192, 0], sizes = [25, 576], strides = [1, 1]} : vector<288x576xf32> to vector<25x576xf32>
    %45 = vector.extract_strided_slice %14 {offsets = [6, 0], sizes = [1, 576], strides = [1, 1]} : vector<9x576xf32> to vector<1x576xf32>
    %46 = vector.broadcast %45 : vector<1x576xf32> to vector<25x576xf32>
    %47 = arith.mulf %44, %46 : vector<25x576xf32>
    %48 = arith.addf %43, %47 : vector<25x576xf32>
    %49 = vector.extract_strided_slice %13 {offsets = [224, 0], sizes = [25, 576], strides = [1, 1]} : vector<288x576xf32> to vector<25x576xf32>
    %50 = vector.extract_strided_slice %14 {offsets = [7, 0], sizes = [1, 576], strides = [1, 1]} : vector<9x576xf32> to vector<1x576xf32>
    %51 = vector.broadcast %50 : vector<1x576xf32> to vector<25x576xf32>
    %52 = arith.mulf %49, %51 : vector<25x576xf32>
    %53 = arith.addf %48, %52 : vector<25x576xf32>
    %54 = vector.extract_strided_slice %13 {offsets = [256, 0], sizes = [25, 576], strides = [1, 1]} : vector<288x576xf32> to vector<25x576xf32>
    %55 = vector.extract_strided_slice %14 {offsets = [8, 0], sizes = [1, 576], strides = [1, 1]} : vector<9x576xf32> to vector<1x576xf32>
    %56 = vector.broadcast %55 : vector<1x576xf32> to vector<25x576xf32>
    %57 = arith.mulf %54, %56 : vector<25x576xf32>
    %58 = arith.addf %53, %57 : vector<25x576xf32>
    %c0_13 = arith.constant 0 : index
    %c0_14 = arith.constant 0 : index
    %59 = vector.load %arg8[%c0_13, %c0_14] : memref<1x576xf32, #tpu.memory_space<vmem>>, vector<1x576xf32>
    %60 = vector.broadcast %59 : vector<1x576xf32> to vector<25x576xf32>
    %61 = arith.addf %58, %60 : vector<25x576xf32>
    %cst_15 = arith.constant 0.000000e+00 : f32
    %62 = vector.broadcast %cst_15 : f32 to vector<25x576xf32>
    %63 = arith.maximumf %61, %62 : vector<25x576xf32>
    %cst_16 = arith.constant 6.000000e+00 : f32
    %64 = vector.broadcast %cst_16 : f32 to vector<25x576xf32>
    %65 = arith.minimumf %63, %64 : vector<25x576xf32>
    %66 = arith.truncf %65 : vector<25x576xf32> to vector<25x576xbf16>
    %c0_17 = arith.constant 0 : index
    %c0_18 = arith.constant 0 : index
    %67 = vector.load %arg9[%c0_17, %c0_18] : memref<576x160xbf16, #tpu.memory_space<vmem>>, vector<576x160xbf16>
    %cst_19 = arith.constant dense<0.000000e+00> : vector<25x160xf32>
    %68 = tpu.matmul %66, %67, %cst_19 {dimension_numbers = #tpu.dot_dimension_numbers<[1], [0], [0], [1], [0, 0, 1, 1], [], []>} : vector<25x576xbf16>, vector<576x160xbf16>, vector<25x160xf32> -> vector<25x160xf32>
    %c0_20 = arith.constant 0 : index
    %c0_21 = arith.constant 0 : index
    %69 = vector.load %arg10[%c0_20, %c0_21] : memref<1x160xf32, #tpu.memory_space<vmem>>, vector<1x160xf32>
    %70 = vector.broadcast %69 : vector<1x160xf32> to vector<25x160xf32>
    %71 = arith.addf %68, %70 : vector<25x160xf32>
    %72 = arith.truncf %71 : vector<25x160xf32> to vector<25x160xbf16>
    %c0_22 = arith.constant 0 : index
    %c0_23 = arith.constant 0 : index
    %73 = vector.load %arg11[%c0_22, %c0_23] : memref<160x960xbf16, #tpu.memory_space<vmem>>, vector<160x960xbf16>
    %cst_24 = arith.constant dense<0.000000e+00> : vector<25x960xf32>
    %74 = tpu.matmul %72, %73, %cst_24 {dimension_numbers = #tpu.dot_dimension_numbers<[1], [0], [0], [1], [0, 0, 1, 1], [], []>} : vector<25x160xbf16>, vector<160x960xbf16>, vector<25x960xf32> -> vector<25x960xf32>
    %c0_25 = arith.constant 0 : index
    %c0_26 = arith.constant 0 : index
    %75 = vector.load %arg12[%c0_25, %c0_26] : memref<1x960xf32, #tpu.memory_space<vmem>>, vector<1x960xf32>
    %76 = vector.broadcast %75 : vector<1x960xf32> to vector<25x960xf32>
    %77 = arith.addf %74, %76 : vector<25x960xf32>
    %cst_27 = arith.constant 0.000000e+00 : f32
    %78 = vector.broadcast %cst_27 : f32 to vector<25x960xf32>
    %79 = arith.maximumf %77, %78 : vector<25x960xf32>
    %cst_28 = arith.constant 6.000000e+00 : f32
    %80 = vector.broadcast %cst_28 : f32 to vector<25x960xf32>
    %81 = arith.minimumf %79, %80 : vector<25x960xf32>
    %c0_29 = arith.constant 0 : index
    %c0_30 = arith.constant 0 : index
    %82 = vector.load %arg3[%c0_29, %c0_30] : memref<288x25xbf16, #tpu.memory_space<vmem>>, vector<288x25xbf16>
    %83 = arith.truncf %81 : vector<25x960xf32> to vector<25x960xbf16>
    %cst_31 = arith.constant dense<0.000000e+00> : vector<288x960xf32>
    %84 = tpu.matmul %82, %83, %cst_31 {dimension_numbers = #tpu.dot_dimension_numbers<[1], [0], [0], [1], [0, 0, 1, 1], [], []>} : vector<288x25xbf16>, vector<25x960xbf16>, vector<288x960xf32> -> vector<288x960xf32>
    %c0_32 = arith.constant 0 : index
    %c0_33 = arith.constant 0 : index
    %85 = vector.load %arg13[%c0_32, %c0_33] : memref<9x960xf32, #tpu.memory_space<vmem>>, vector<9x960xf32>
    %86 = vector.extract_strided_slice %84 {offsets = [0, 0], sizes = [25, 960], strides = [1, 1]} : vector<288x960xf32> to vector<25x960xf32>
    %87 = vector.extract_strided_slice %85 {offsets = [0, 0], sizes = [1, 960], strides = [1, 1]} : vector<9x960xf32> to vector<1x960xf32>
    %88 = vector.broadcast %87 : vector<1x960xf32> to vector<25x960xf32>
    %89 = arith.mulf %86, %88 : vector<25x960xf32>
    %90 = vector.extract_strided_slice %84 {offsets = [32, 0], sizes = [25, 960], strides = [1, 1]} : vector<288x960xf32> to vector<25x960xf32>
    %91 = vector.extract_strided_slice %85 {offsets = [1, 0], sizes = [1, 960], strides = [1, 1]} : vector<9x960xf32> to vector<1x960xf32>
    %92 = vector.broadcast %91 : vector<1x960xf32> to vector<25x960xf32>
    %93 = arith.mulf %90, %92 : vector<25x960xf32>
    %94 = arith.addf %89, %93 : vector<25x960xf32>
    %95 = vector.extract_strided_slice %84 {offsets = [64, 0], sizes = [25, 960], strides = [1, 1]} : vector<288x960xf32> to vector<25x960xf32>
    %96 = vector.extract_strided_slice %85 {offsets = [2, 0], sizes = [1, 960], strides = [1, 1]} : vector<9x960xf32> to vector<1x960xf32>
    %97 = vector.broadcast %96 : vector<1x960xf32> to vector<25x960xf32>
    %98 = arith.mulf %95, %97 : vector<25x960xf32>
    %99 = arith.addf %94, %98 : vector<25x960xf32>
    %100 = vector.extract_strided_slice %84 {offsets = [96, 0], sizes = [25, 960], strides = [1, 1]} : vector<288x960xf32> to vector<25x960xf32>
    %101 = vector.extract_strided_slice %85 {offsets = [3, 0], sizes = [1, 960], strides = [1, 1]} : vector<9x960xf32> to vector<1x960xf32>
    %102 = vector.broadcast %101 : vector<1x960xf32> to vector<25x960xf32>
    %103 = arith.mulf %100, %102 : vector<25x960xf32>
    %104 = arith.addf %99, %103 : vector<25x960xf32>
    %105 = vector.extract_strided_slice %84 {offsets = [128, 0], sizes = [25, 960], strides = [1, 1]} : vector<288x960xf32> to vector<25x960xf32>
    %106 = vector.extract_strided_slice %85 {offsets = [4, 0], sizes = [1, 960], strides = [1, 1]} : vector<9x960xf32> to vector<1x960xf32>
    %107 = vector.broadcast %106 : vector<1x960xf32> to vector<25x960xf32>
    %108 = arith.mulf %105, %107 : vector<25x960xf32>
    %109 = arith.addf %104, %108 : vector<25x960xf32>
    %110 = vector.extract_strided_slice %84 {offsets = [160, 0], sizes = [25, 960], strides = [1, 1]} : vector<288x960xf32> to vector<25x960xf32>
    %111 = vector.extract_strided_slice %85 {offsets = [5, 0], sizes = [1, 960], strides = [1, 1]} : vector<9x960xf32> to vector<1x960xf32>
    %112 = vector.broadcast %111 : vector<1x960xf32> to vector<25x960xf32>
    %113 = arith.mulf %110, %112 : vector<25x960xf32>
    %114 = arith.addf %109, %113 : vector<25x960xf32>
    %115 = vector.extract_strided_slice %84 {offsets = [192, 0], sizes = [25, 960], strides = [1, 1]} : vector<288x960xf32> to vector<25x960xf32>
    %116 = vector.extract_strided_slice %85 {offsets = [6, 0], sizes = [1, 960], strides = [1, 1]} : vector<9x960xf32> to vector<1x960xf32>
    %117 = vector.broadcast %116 : vector<1x960xf32> to vector<25x960xf32>
    %118 = arith.mulf %115, %117 : vector<25x960xf32>
    %119 = arith.addf %114, %118 : vector<25x960xf32>
    %120 = vector.extract_strided_slice %84 {offsets = [224, 0], sizes = [25, 960], strides = [1, 1]} : vector<288x960xf32> to vector<25x960xf32>
    %121 = vector.extract_strided_slice %85 {offsets = [7, 0], sizes = [1, 960], strides = [1, 1]} : vector<9x960xf32> to vector<1x960xf32>
    %122 = vector.broadcast %121 : vector<1x960xf32> to vector<25x960xf32>
    %123 = arith.mulf %120, %122 : vector<25x960xf32>
    %124 = arith.addf %119, %123 : vector<25x960xf32>
    %125 = vector.extract_strided_slice %84 {offsets = [256, 0], sizes = [25, 960], strides = [1, 1]} : vector<288x960xf32> to vector<25x960xf32>
    %126 = vector.extract_strided_slice %85 {offsets = [8, 0], sizes = [1, 960], strides = [1, 1]} : vector<9x960xf32> to vector<1x960xf32>
    %127 = vector.broadcast %126 : vector<1x960xf32> to vector<25x960xf32>
    %128 = arith.mulf %125, %127 : vector<25x960xf32>
    %129 = arith.addf %124, %128 : vector<25x960xf32>
    %c0_34 = arith.constant 0 : index
    %c0_35 = arith.constant 0 : index
    %130 = vector.load %arg14[%c0_34, %c0_35] : memref<1x960xf32, #tpu.memory_space<vmem>>, vector<1x960xf32>
    %131 = vector.broadcast %130 : vector<1x960xf32> to vector<25x960xf32>
    %132 = arith.addf %129, %131 : vector<25x960xf32>
    %cst_36 = arith.constant 0.000000e+00 : f32
    %133 = vector.broadcast %cst_36 : f32 to vector<25x960xf32>
    %134 = arith.maximumf %132, %133 : vector<25x960xf32>
    %cst_37 = arith.constant 6.000000e+00 : f32
    %135 = vector.broadcast %cst_37 : f32 to vector<25x960xf32>
    %136 = arith.minimumf %134, %135 : vector<25x960xf32>
    %137 = arith.truncf %136 : vector<25x960xf32> to vector<25x960xbf16>
    %c0_38 = arith.constant 0 : index
    %c0_39 = arith.constant 0 : index
    %138 = vector.load %arg15[%c0_38, %c0_39] : memref<960x160xbf16, #tpu.memory_space<vmem>>, vector<960x160xbf16>
    %cst_40 = arith.constant dense<0.000000e+00> : vector<25x160xf32>
    %139 = tpu.matmul %137, %138, %cst_40 {dimension_numbers = #tpu.dot_dimension_numbers<[1], [0], [0], [1], [0, 0, 1, 1], [], []>} : vector<25x960xbf16>, vector<960x160xbf16>, vector<25x160xf32> -> vector<25x160xf32>
    %c0_41 = arith.constant 0 : index
    %c0_42 = arith.constant 0 : index
    %140 = vector.load %arg16[%c0_41, %c0_42] : memref<1x160xf32, #tpu.memory_space<vmem>>, vector<1x160xf32>
    %141 = vector.broadcast %140 : vector<1x160xf32> to vector<25x160xf32>
    %142 = arith.addf %139, %141 : vector<25x160xf32>
    %143 = arith.addf %142, %71 : vector<25x160xf32>
    %144 = arith.truncf %143 : vector<25x160xf32> to vector<25x160xbf16>
    %c0_43 = arith.constant 0 : index
    %c0_44 = arith.constant 0 : index
    %145 = vector.load %arg17[%c0_43, %c0_44] : memref<160x960xbf16, #tpu.memory_space<vmem>>, vector<160x960xbf16>
    %cst_45 = arith.constant dense<0.000000e+00> : vector<25x960xf32>
    %146 = tpu.matmul %144, %145, %cst_45 {dimension_numbers = #tpu.dot_dimension_numbers<[1], [0], [0], [1], [0, 0, 1, 1], [], []>} : vector<25x160xbf16>, vector<160x960xbf16>, vector<25x960xf32> -> vector<25x960xf32>
    %c0_46 = arith.constant 0 : index
    %c0_47 = arith.constant 0 : index
    %147 = vector.load %arg18[%c0_46, %c0_47] : memref<1x960xf32, #tpu.memory_space<vmem>>, vector<1x960xf32>
    %148 = vector.broadcast %147 : vector<1x960xf32> to vector<25x960xf32>
    %149 = arith.addf %146, %148 : vector<25x960xf32>
    %cst_48 = arith.constant 0.000000e+00 : f32
    %150 = vector.broadcast %cst_48 : f32 to vector<25x960xf32>
    %151 = arith.maximumf %149, %150 : vector<25x960xf32>
    %cst_49 = arith.constant 6.000000e+00 : f32
    %152 = vector.broadcast %cst_49 : f32 to vector<25x960xf32>
    %153 = arith.minimumf %151, %152 : vector<25x960xf32>
    %c0_50 = arith.constant 0 : index
    %c0_51 = arith.constant 0 : index
    %154 = vector.load %arg3[%c0_50, %c0_51] : memref<288x25xbf16, #tpu.memory_space<vmem>>, vector<288x25xbf16>
    %155 = arith.truncf %153 : vector<25x960xf32> to vector<25x960xbf16>
    %cst_52 = arith.constant dense<0.000000e+00> : vector<288x960xf32>
    %156 = tpu.matmul %154, %155, %cst_52 {dimension_numbers = #tpu.dot_dimension_numbers<[1], [0], [0], [1], [0, 0, 1, 1], [], []>} : vector<288x25xbf16>, vector<25x960xbf16>, vector<288x960xf32> -> vector<288x960xf32>
    %c0_53 = arith.constant 0 : index
    %c0_54 = arith.constant 0 : index
    %157 = vector.load %arg19[%c0_53, %c0_54] : memref<9x960xf32, #tpu.memory_space<vmem>>, vector<9x960xf32>
    %158 = vector.extract_strided_slice %156 {offsets = [0, 0], sizes = [25, 960], strides = [1, 1]} : vector<288x960xf32> to vector<25x960xf32>
    %159 = vector.extract_strided_slice %157 {offsets = [0, 0], sizes = [1, 960], strides = [1, 1]} : vector<9x960xf32> to vector<1x960xf32>
    %160 = vector.broadcast %159 : vector<1x960xf32> to vector<25x960xf32>
    %161 = arith.mulf %158, %160 : vector<25x960xf32>
    %162 = vector.extract_strided_slice %156 {offsets = [32, 0], sizes = [25, 960], strides = [1, 1]} : vector<288x960xf32> to vector<25x960xf32>
    %163 = vector.extract_strided_slice %157 {offsets = [1, 0], sizes = [1, 960], strides = [1, 1]} : vector<9x960xf32> to vector<1x960xf32>
    %164 = vector.broadcast %163 : vector<1x960xf32> to vector<25x960xf32>
    %165 = arith.mulf %162, %164 : vector<25x960xf32>
    %166 = arith.addf %161, %165 : vector<25x960xf32>
    %167 = vector.extract_strided_slice %156 {offsets = [64, 0], sizes = [25, 960], strides = [1, 1]} : vector<288x960xf32> to vector<25x960xf32>
    %168 = vector.extract_strided_slice %157 {offsets = [2, 0], sizes = [1, 960], strides = [1, 1]} : vector<9x960xf32> to vector<1x960xf32>
    %169 = vector.broadcast %168 : vector<1x960xf32> to vector<25x960xf32>
    %170 = arith.mulf %167, %169 : vector<25x960xf32>
    %171 = arith.addf %166, %170 : vector<25x960xf32>
    %172 = vector.extract_strided_slice %156 {offsets = [96, 0], sizes = [25, 960], strides = [1, 1]} : vector<288x960xf32> to vector<25x960xf32>
    %173 = vector.extract_strided_slice %157 {offsets = [3, 0], sizes = [1, 960], strides = [1, 1]} : vector<9x960xf32> to vector<1x960xf32>
    %174 = vector.broadcast %173 : vector<1x960xf32> to vector<25x960xf32>
    %175 = arith.mulf %172, %174 : vector<25x960xf32>
    %176 = arith.addf %171, %175 : vector<25x960xf32>
    %177 = vector.extract_strided_slice %156 {offsets = [128, 0], sizes = [25, 960], strides = [1, 1]} : vector<288x960xf32> to vector<25x960xf32>
    %178 = vector.extract_strided_slice %157 {offsets = [4, 0], sizes = [1, 960], strides = [1, 1]} : vector<9x960xf32> to vector<1x960xf32>
    %179 = vector.broadcast %178 : vector<1x960xf32> to vector<25x960xf32>
    %180 = arith.mulf %177, %179 : vector<25x960xf32>
    %181 = arith.addf %176, %180 : vector<25x960xf32>
    %182 = vector.extract_strided_slice %156 {offsets = [160, 0], sizes = [25, 960], strides = [1, 1]} : vector<288x960xf32> to vector<25x960xf32>
    %183 = vector.extract_strided_slice %157 {offsets = [5, 0], sizes = [1, 960], strides = [1, 1]} : vector<9x960xf32> to vector<1x960xf32>
    %184 = vector.broadcast %183 : vector<1x960xf32> to vector<25x960xf32>
    %185 = arith.mulf %182, %184 : vector<25x960xf32>
    %186 = arith.addf %181, %185 : vector<25x960xf32>
    %187 = vector.extract_strided_slice %156 {offsets = [192, 0], sizes = [25, 960], strides = [1, 1]} : vector<288x960xf32> to vector<25x960xf32>
    %188 = vector.extract_strided_slice %157 {offsets = [6, 0], sizes = [1, 960], strides = [1, 1]} : vector<9x960xf32> to vector<1x960xf32>
    %189 = vector.broadcast %188 : vector<1x960xf32> to vector<25x960xf32>
    %190 = arith.mulf %187, %189 : vector<25x960xf32>
    %191 = arith.addf %186, %190 : vector<25x960xf32>
    %192 = vector.extract_strided_slice %156 {offsets = [224, 0], sizes = [25, 960], strides = [1, 1]} : vector<288x960xf32> to vector<25x960xf32>
    %193 = vector.extract_strided_slice %157 {offsets = [7, 0], sizes = [1, 960], strides = [1, 1]} : vector<9x960xf32> to vector<1x960xf32>
    %194 = vector.broadcast %193 : vector<1x960xf32> to vector<25x960xf32>
    %195 = arith.mulf %192, %194 : vector<25x960xf32>
    %196 = arith.addf %191, %195 : vector<25x960xf32>
    %197 = vector.extract_strided_slice %156 {offsets = [256, 0], sizes = [25, 960], strides = [1, 1]} : vector<288x960xf32> to vector<25x960xf32>
    %198 = vector.extract_strided_slice %157 {offsets = [8, 0], sizes = [1, 960], strides = [1, 1]} : vector<9x960xf32> to vector<1x960xf32>
    %199 = vector.broadcast %198 : vector<1x960xf32> to vector<25x960xf32>
    %200 = arith.mulf %197, %199 : vector<25x960xf32>
    %201 = arith.addf %196, %200 : vector<25x960xf32>
    %c0_55 = arith.constant 0 : index
    %c0_56 = arith.constant 0 : index
    %202 = vector.load %arg20[%c0_55, %c0_56] : memref<1x960xf32, #tpu.memory_space<vmem>>, vector<1x960xf32>
    %203 = vector.broadcast %202 : vector<1x960xf32> to vector<25x960xf32>
    %204 = arith.addf %201, %203 : vector<25x960xf32>
    %cst_57 = arith.constant 0.000000e+00 : f32
    %205 = vector.broadcast %cst_57 : f32 to vector<25x960xf32>
    %206 = arith.maximumf %204, %205 : vector<25x960xf32>
    %cst_58 = arith.constant 6.000000e+00 : f32
    %207 = vector.broadcast %cst_58 : f32 to vector<25x960xf32>
    %208 = arith.minimumf %206, %207 : vector<25x960xf32>
    %209 = arith.truncf %208 : vector<25x960xf32> to vector<25x960xbf16>
    %c0_59 = arith.constant 0 : index
    %c0_60 = arith.constant 0 : index
    %210 = vector.load %arg21[%c0_59, %c0_60] : memref<960x160xbf16, #tpu.memory_space<vmem>>, vector<960x160xbf16>
    %cst_61 = arith.constant dense<0.000000e+00> : vector<25x160xf32>
    %211 = tpu.matmul %209, %210, %cst_61 {dimension_numbers = #tpu.dot_dimension_numbers<[1], [0], [0], [1], [0, 0, 1, 1], [], []>} : vector<25x960xbf16>, vector<960x160xbf16>, vector<25x160xf32> -> vector<25x160xf32>
    %c0_62 = arith.constant 0 : index
    %c0_63 = arith.constant 0 : index
    %212 = vector.load %arg22[%c0_62, %c0_63] : memref<1x160xf32, #tpu.memory_space<vmem>>, vector<1x160xf32>
    %213 = vector.broadcast %212 : vector<1x160xf32> to vector<25x160xf32>
    %214 = arith.addf %211, %213 : vector<25x160xf32>
    %215 = arith.addf %214, %143 : vector<25x160xf32>
    %216 = arith.truncf %215 : vector<25x160xf32> to vector<25x160xbf16>
    %c0_64 = arith.constant 0 : index
    %c0_65 = arith.constant 0 : index
    %217 = vector.load %arg23[%c0_64, %c0_65] : memref<160x160xbf16, #tpu.memory_space<vmem>>, vector<160x160xbf16>
    %cst_66 = arith.constant dense<0.000000e+00> : vector<25x160xf32>
    %218 = tpu.matmul %216, %217, %cst_66 {dimension_numbers = #tpu.dot_dimension_numbers<[1], [0], [0], [1], [0, 0, 1, 1], [], []>} : vector<25x160xbf16>, vector<160x160xbf16>, vector<25x160xf32> -> vector<25x160xf32>
    %c0_67 = arith.constant 0 : index
    %c0_68 = arith.constant 0 : index
    %219 = vector.load %arg24[%c0_67, %c0_68] : memref<1x160xf32, #tpu.memory_space<vmem>>, vector<1x160xf32>
    %220 = vector.broadcast %219 : vector<1x160xf32> to vector<25x160xf32>
    %221 = arith.addf %218, %220 : vector<25x160xf32>
    %cst_69 = arith.constant 0.000000e+00 : f32
    %222 = vector.broadcast %cst_69 : f32 to vector<25x160xf32>
    %223 = arith.maximumf %221, %222 : vector<25x160xf32>
    %cst_70 = arith.constant 6.000000e+00 : f32
    %224 = vector.broadcast %cst_70 : f32 to vector<25x160xf32>
    %225 = arith.minimumf %223, %224 : vector<25x160xf32>
    %c0_71 = arith.constant 0 : index
    %c0_72 = arith.constant 0 : index
    %226 = vector.load %arg4[%c0_71, %c0_72] : memref<1x25xf32, #tpu.memory_space<vmem>>, vector<1x25xf32>
    %cst_73 = arith.constant dense<0.000000e+00> : vector<1x160xf32>
    %227 = tpu.matmul %226, %225, %cst_73 {dimension_numbers = #tpu.dot_dimension_numbers<[1], [0], [0], [1], [0, 0, 1, 1], [], []>} : vector<1x25xf32>, vector<25x160xf32>, vector<1x160xf32> -> vector<1x160xf32>
    %c0_74 = arith.constant 0 : index
    %c0_75 = arith.constant 0 : index
    %228 = vector.load %arg25[%c0_74, %c0_75] : memref<160x21xf32, #tpu.memory_space<vmem>>, vector<160x21xf32>
    %cst_76 = arith.constant dense<0.000000e+00> : vector<1x21xf32>
    %229 = tpu.matmul %227, %228, %cst_76 {dimension_numbers = #tpu.dot_dimension_numbers<[1], [0], [0], [1], [0, 0, 1, 1], [], []>} : vector<1x160xf32>, vector<160x21xf32>, vector<1x21xf32> -> vector<1x21xf32>
    %c0_77 = arith.constant 0 : index
    %c0_78 = arith.constant 0 : index
    %230 = vector.load %arg26[%c0_77, %c0_78] : memref<1x21xf32, #tpu.memory_space<vmem>>, vector<1x21xf32>
    %231 = arith.addf %229, %230 : vector<1x21xf32>
    %c0_79 = arith.constant 0 : index
    %c0_80 = arith.constant 0 : index
    %c0_81 = arith.constant 0 : index
    %232 = vector.load %arg27[%c0_79, %c0_80, %c0_81] : memref<1x1x21xf32, #tpu.memory_space<vmem>>, vector<1x1x21xf32>
    %233 = vector.shape_cast %232 : vector<1x1x21xf32> to vector<1x21xf32>
    %234 = vector.shape_cast %231 : vector<1x21xf32> to vector<1x1x21xf32>
    tpu.vector_store %arg27[%c0_79, %c0_80, %c0_81], %234 {strides = array<i32>} : memref<1x1x21xf32, #tpu.memory_space<vmem>>, vector<1x1x21xf32>,
    return
  }
  func.func @transform_0(%arg0: i32) -> (i32, i32, i32) {
    %c0_i32 = arith.constant 0 : i32
    %c0_i32_0 = arith.constant 0 : i32
    %c0_i32_1 = arith.constant 0 : i32
    return %arg0, %c0_i32, %c0_i32_0 : i32, i32, i32
  }
  func.func @transform_1(%arg0: i32) -> (i32, i32) {
    %c0_i32 = arith.constant 0 : i32
    %c0_i32_0 = arith.constant 0 : i32
    %c0_i32_1 = arith.constant 0 : i32
    return %c0_i32, %c0_i32_0 : i32, i32
  }
  func.func @transform_2(%arg0: i32) -> (i32, i32) {
    %c0_i32 = arith.constant 0 : i32
    %c0_i32_0 = arith.constant 0 : i32
    %c0_i32_1 = arith.constant 0 : i32
    return %c0_i32, %c0_i32_0 : i32, i32
  }
  func.func @transform_3(%arg0: i32) -> (i32, i32) {
    %c0_i32 = arith.constant 0 : i32
    %c0_i32_0 = arith.constant 0 : i32
    %c0_i32_1 = arith.constant 0 : i32
    return %c0_i32, %c0_i32_0 : i32, i32
  }
  func.func @transform_4(%arg0: i32) -> (i32, i32) {
    %c0_i32 = arith.constant 0 : i32
    %c0_i32_0 = arith.constant 0 : i32
    %c0_i32_1 = arith.constant 0 : i32
    return %c0_i32, %c0_i32_0 : i32, i32
  }
  func.func @transform_5(%arg0: i32) -> (i32, i32) {
    %c0_i32 = arith.constant 0 : i32
    %c0_i32_0 = arith.constant 0 : i32
    %c0_i32_1 = arith.constant 0 : i32
    return %c0_i32, %c0_i32_0 : i32, i32
  }
  func.func @transform_6(%arg0: i32) -> (i32, i32) {
    %c0_i32 = arith.constant 0 : i32
    %c0_i32_0 = arith.constant 0 : i32
    %c0_i32_1 = arith.constant 0 : i32
    return %c0_i32, %c0_i32_0 : i32, i32
  }
  func.func @transform_7(%arg0: i32) -> (i32, i32) {
    %c0_i32 = arith.constant 0 : i32
    %c0_i32_0 = arith.constant 0 : i32
    %c0_i32_1 = arith.constant 0 : i32
    return %c0_i32, %c0_i32_0 : i32, i32
  }
  func.func @transform_8(%arg0: i32) -> (i32, i32) {
    %c0_i32 = arith.constant 0 : i32
    %c0_i32_0 = arith.constant 0 : i32
    %c0_i32_1 = arith.constant 0 : i32
    return %c0_i32, %c0_i32_0 : i32, i32
  }
  func.func @transform_9(%arg0: i32) -> (i32, i32) {
    %c0_i32 = arith.constant 0 : i32
    %c0_i32_0 = arith.constant 0 : i32
    %c0_i32_1 = arith.constant 0 : i32
    return %c0_i32, %c0_i32_0 : i32, i32
  }
  func.func @transform_10(%arg0: i32) -> (i32, i32) {
    %c0_i32 = arith.constant 0 : i32
    %c0_i32_0 = arith.constant 0 : i32
    %c0_i32_1 = arith.constant 0 : i32
    return %c0_i32, %c0_i32_0 : i32, i32
  }
  func.func @transform_11(%arg0: i32) -> (i32, i32) {
    %c0_i32 = arith.constant 0 : i32
    %c0_i32_0 = arith.constant 0 : i32
    %c0_i32_1 = arith.constant 0 : i32
    return %c0_i32, %c0_i32_0 : i32, i32
  }
  func.func @transform_12(%arg0: i32) -> (i32, i32) {
    %c0_i32 = arith.constant 0 : i32
    %c0_i32_0 = arith.constant 0 : i32
    %c0_i32_1 = arith.constant 0 : i32
    return %c0_i32, %c0_i32_0 : i32, i32
  }
  func.func @transform_13(%arg0: i32) -> (i32, i32) {
    %c0_i32 = arith.constant 0 : i32
    %c0_i32_0 = arith.constant 0 : i32
    %c0_i32_1 = arith.constant 0 : i32
    return %c0_i32, %c0_i32_0 : i32, i32
  }
  func.func @transform_14(%arg0: i32) -> (i32, i32) {
    %c0_i32 = arith.constant 0 : i32
    %c0_i32_0 = arith.constant 0 : i32
    %c0_i32_1 = arith.constant 0 : i32
    return %c0_i32, %c0_i32_0 : i32, i32
  }
  func.func @transform_15(%arg0: i32) -> (i32, i32) {
    %c0_i32 = arith.constant 0 : i32
    %c0_i32_0 = arith.constant 0 : i32
    %c0_i32_1 = arith.constant 0 : i32
    return %c0_i32, %c0_i32_0 : i32, i32
  }
  func.func @transform_16(%arg0: i32) -> (i32, i32) {
    %c0_i32 = arith.constant 0 : i32
    %c0_i32_0 = arith.constant 0 : i32
    %c0_i32_1 = arith.constant 0 : i32
    return %c0_i32, %c0_i32_0 : i32, i32
  }
  func.func @transform_17(%arg0: i32) -> (i32, i32) {
    %c0_i32 = arith.constant 0 : i32
    %c0_i32_0 = arith.constant 0 : i32
    %c0_i32_1 = arith.constant 0 : i32
    return %c0_i32, %c0_i32_0 : i32, i32
  }
  func.func @transform_18(%arg0: i32) -> (i32, i32) {
    %c0_i32 = arith.constant 0 : i32
    %c0_i32_0 = arith.constant 0 : i32
    %c0_i32_1 = arith.constant 0 : i32
    return %c0_i32, %c0_i32_0 : i32, i32
  }
  func.func @transform_19(%arg0: i32) -> (i32, i32) {
    %c0_i32 = arith.constant 0 : i32
    %c0_i32_0 = arith.constant 0 : i32
    %c0_i32_1 = arith.constant 0 : i32
    return %c0_i32, %c0_i32_0 : i32, i32
  }
  func.func @transform_20(%arg0: i32) -> (i32, i32) {
    %c0_i32 = arith.constant 0 : i32
    %c0_i32_0 = arith.constant 0 : i32
    %c0_i32_1 = arith.constant 0 : i32
    return %c0_i32, %c0_i32_0 : i32, i32
  }
  func.func @transform_21(%arg0: i32) -> (i32, i32) {
    %c0_i32 = arith.constant 0 : i32
    %c0_i32_0 = arith.constant 0 : i32
    %c0_i32_1 = arith.constant 0 : i32
    return %c0_i32, %c0_i32_0 : i32, i32
  }
  func.func @transform_22(%arg0: i32) -> (i32, i32) {
    %c0_i32 = arith.constant 0 : i32
    %c0_i32_0 = arith.constant 0 : i32
    %c0_i32_1 = arith.constant 0 : i32
    return %c0_i32, %c0_i32_0 : i32, i32
  }
  func.func @transform_23(%arg0: i32) -> (i32, i32) {
    %c0_i32 = arith.constant 0 : i32
    %c0_i32_0 = arith.constant 0 : i32
    %c0_i32_1 = arith.constant 0 : i32
    return %c0_i32, %c0_i32_0 : i32, i32
  }
  func.func @transform_24(%arg0: i32) -> (i32, i32) {
    %c0_i32 = arith.constant 0 : i32
    %c0_i32_0 = arith.constant 0 : i32
    %c0_i32_1 = arith.constant 0 : i32
    return %c0_i32, %c0_i32_0 : i32, i32
  }
  func.func @transform_25(%arg0: i32) -> (i32, i32) {
    %c0_i32 = arith.constant 0 : i32
    %c0_i32_0 = arith.constant 0 : i32
    %c0_i32_1 = arith.constant 0 : i32
    return %c0_i32, %c0_i32_0 : i32, i32
  }
  func.func @transform_26(%arg0: i32) -> (i32, i32, i32) {
    %c0_i32 = arith.constant 0 : i32
    %c0_i32_0 = arith.constant 0 : i32
    %c0_i32_1 = arith.constant 0 : i32
    return %arg0, %c0_i32, %c0_i32_0 : i32, i32, i32
  }
}

</mosaic_0001>

<llo_original>
// kernel: forward.1
$region0: #{forward.1}
  #allocation0 [shape = 'u32[]', space=smem, size = 0x4, offset = 0x4, fixed_abs, tag = 'smem constant byte address 0x4 - core index']
  #allocation1 [shape = 'u32[144,128]{1,0:T(1,128)}', space=vmem, size = 0x12000, scoped, tag = 'internal scratch']
  %s0 = inlined_call_operand.vmem [shape: bf16[2,100,96], index: 0, kind: input, shape index: {}]
  %s1 = inlined_call_operand.vmem [shape: bf16[288,100], index: 1, kind: input, shape index: {}]
  %s2 = inlined_call_operand.vmem [shape: bf16[288,25], index: 2, kind: input, shape index: {}]
  %s3 = inlined_call_operand.vmem [shape: f32[1,25], index: 3, kind: input, shape index: {}]
  %s4 = inlined_call_operand.vmem [shape: bf16[96,576], index: 4, kind: input, shape index: {}]
  %s5 = inlined_call_operand.vmem [shape: f32[1,576], index: 5, kind: input, shape index: {}]
  %s6 = inlined_call_operand.vmem [shape: f32[9,576], index: 6, kind: input, shape index: {}]
  %s7 = inlined_call_operand.vmem [shape: f32[1,576], index: 7, kind: input, shape index: {}]
  %s8 = inlined_call_operand.vmem [shape: bf16[576,160], index: 8, kind: input, shape index: {}]
  %s9 = inlined_call_operand.vmem [shape: f32[1,160], index: 9, kind: input, shape index: {}]
  %s10 = inlined_call_operand.vmem [shape: bf16[160,960], index: 10, kind: input, shape index: {}]
  %s11 = inlined_call_operand.vmem [shape: f32[1,960], index: 11, kind: input, shape index: {}]
  %s12 = inlined_call_operand.vmem [shape: f32[9,960], index: 12, kind: input, shape index: {}]
  %s13 = inlined_call_operand.vmem [shape: f32[1,960], index: 13, kind: input, shape index: {}]
  %s14 = inlined_call_operand.vmem [shape: bf16[960,160], index: 14, kind: input, shape index: {}]
  %s15 = inlined_call_operand.vmem [shape: f32[1,160], index: 15, kind: input, shape index: {}]
  %s16 = inlined_call_operand.vmem [shape: bf16[160,960], index: 16, kind: input, shape index: {}]
  %s17 = inlined_call_operand.vmem [shape: f32[1,960], index: 17, kind: input, shape index: {}]
  %s18 = inlined_call_operand.vmem [shape: f32[9,960], index: 18, kind: input, shape index: {}]
  %s19 = inlined_call_operand.vmem [shape: f32[1,960], index: 19, kind: input, shape index: {}]
  %s20 = inlined_call_operand.vmem [shape: bf16[960,160], index: 20, kind: input, shape index: {}]
  %s21 = inlined_call_operand.vmem [shape: f32[1,160], index: 21, kind: input, shape index: {}]
  %s22 = inlined_call_operand.vmem [shape: bf16[160,160], index: 22, kind: input, shape index: {}]
  %s23 = inlined_call_operand.vmem [shape: f32[1,160], index: 23, kind: input, shape index: {}]
  %s24 = inlined_call_operand.vmem [shape: f32[160,21], index: 24, kind: input, shape index: {}]
  %s25 = inlined_call_operand.vmem [shape: f32[1,21], index: 25, kind: input, shape index: {}]
  %s26 = inlined_call_operand.hbm [shape: f32[2,1,21], index: 26, kind: output, shape index: {}]
  %s27 = sld [smem:[#allocation0]]
  $region137: #{forward.1} parent=0
    _
  %s29 = ssub.s32 1, %s27
  %s30 = scalar_select 0, %s29, %s27
  $region1: #{forward.1} parent=0
    #allocation2 [shape = 'u8[1024]{0}', space=vmem, size = 0x400, scoped, tag = 'output window, operand 0']
    #allocation3 [shape = 's32[2]{0}', space=sflag, size = 0x8, scoped, tag = 'scoped memory for forward.1']
    %31 = vsyncpa [#allocation3], 0
    %s32 = scalar_lea.sflag [#allocation3], 1
    %33 = vsyncpa %s32, 0
    loop: start=0, step=1, limit=4
    $region2: #{forward.1} parent=1 // loop_pre_header
      _
    $region3: #{forward.1} parent=1 // loop_header
      %s35 = sphi 0, %s39
      %p36 = scmp.ge.s32.totalorder %s35, 4
      %s45 = sphi 0, %s47
      %s48 = sphi 0, %s45
      %s49 = sphi 0, %s48
      %s65 = sphi 0, %s49
      %s69 = sphi 0, %s69
      %s71 = sphi 0, %s69
      %s72 = sphi 0, %s71
      %s86 = sphi 0, %s72
      %s90 = sphi 0, %s90
      %s92 = sphi 0, %s90
      %s93 = sphi 0, %s92
      %s107 = sphi 0, %s93
      %s111 = sphi 0, %s111
      %s113 = sphi 0, %s111
      %s114 = sphi 0, %s113
      %s128 = sphi 0, %s114
      %s132 = sphi 0, %s132
      %s134 = sphi 0, %s132
      %s135 = sphi 0, %s134
      %s149 = sphi 0, %s135
      %s153 = sphi 0, %s153
      %s155 = sphi 0, %s153
      %s156 = sphi 0, %s155
      %s170 = sphi 0, %s156
      %s174 = sphi 0, %s174
      %s176 = sphi 0, %s174
      %s177 = sphi 0, %s176
      %s191 = sphi 0, %s177
      %s195 = sphi 0, %s195
      %s197 = sphi 0, %s195
      %s198 = sphi 0, %s197
      %s212 = sphi 0, %s198
      %s216 = sphi 0, %s216
      %s218 = sphi 0, %s216
      %s219 = sphi 0, %s218
      %s233 = sphi 0, %s219
      %s237 = sphi 0, %s237
      %s239 = sphi 0, %s237
      %s240 = sphi 0, %s239
      %s254 = sphi 0, %s240
      %s258 = sphi 0, %s258
      %s260 = sphi 0, %s258
      %s261 = sphi 0, %s260
      %s275 = sphi 0, %s261
      %s279 = sphi 0, %s279
      %s281 = sphi 0, %s279
      %s282 = sphi 0, %s281
      %s296 = sphi 0, %s282
      %s300 = sphi 0, %s300
      %s302 = sphi 0, %s300
      %s303 = sphi 0, %s302
      %s317 = sphi 0, %s303
      %s321 = sphi 0, %s321
      %s323 = sphi 0, %s321
      %s324 = sphi 0, %s323
      %s338 = sphi 0, %s324
      %s342 = sphi 0, %s342
      %s344 = sphi 0, %s342
      %s345 = sphi 0, %s344
      %s359 = sphi 0, %s345
      %s363 = sphi 0, %s363
      %s365 = sphi 0, %s363
      %s366 = sphi 0, %s365
      %s380 = sphi 0, %s366
      %s384 = sphi 0, %s384
      %s386 = sphi 0, %s384
      %s387 = sphi 0, %s386
      %s401 = sphi 0, %s387
      %s405 = sphi 0, %s405
      %s407 = sphi 0, %s405
      %s408 = sphi 0, %s407
      %s422 = sphi 0, %s408
      %s426 = sphi 0, %s426
      %s428 = sphi 0, %s426
      %s429 = sphi 0, %s428
      %s443 = sphi 0, %s429
      %s447 = sphi 0, %s447
      %s449 = sphi 0, %s447
      %s450 = sphi 0, %s449
      %s464 = sphi 0, %s450
      %s468 = sphi 0, %s468
      %s470 = sphi 0, %s468
      %s471 = sphi 0, %s470
      %s485 = sphi 0, %s471
      %s489 = sphi 0, %s489
      %s491 = sphi 0, %s489
      %s492 = sphi 0, %s491
      %s506 = sphi 0, %s492
      %s510 = sphi 0, %s510
      %s512 = sphi 0, %s510
      %s513 = sphi 0, %s512
      %s527 = sphi 0, %s513
      %s531 = sphi 0, %s531
      %s533 = sphi 0, %s531
      %s534 = sphi 0, %s533
      %s548 = sphi 0, %s534
      %s552 = sphi 0, %s552
      %s554 = sphi 0, %s552
      %s555 = sphi 0, %s554
      %s569 = sphi 0, %s555
      %s573 = sphi 0, %s573
      %s575 = sphi 0, %s573
      %s576 = sphi 0, %s575
      %s590 = sphi 0, %s576
      %s596 = sphi 0, %s598
      %s599 = sphi 0, %s596
      %s600 = sphi 0, %s599
      %s616 = sphi 0, %s600
    $region4: #{forward.1} parent=1 // loop_header_branch
      %38 = sbr.rel (%p36) target = $region8
    $region5: #{forward.1} parent=1 // loop_body
      %s40 = ssub.s32 %s35, 1
      %s41 = ssub.s32 %s35, 2
      %s42 = sadd.s32 %s35, 1
      %s43 = ssub.s32 %s35, %s42
      %p44 = scmp.eq.s32.totalorder %s43, 0
      %s46 = sadd.s32 %s45, 1
      %s47 = scalar_select %p44, %s45, %s46
      %p50 = pneg %p44
      %p51 = scmp.eq.s32.totalorder %s35, 1
      %p52 = por %p50, %p51
      %p53 = scmp.ne.s32.totalorder %s45, %s48
      %p54 = scmp.eq.s32.totalorder %s35, 0
      %p55 = por %p53, %p54
      %p56 = scmp.ne.s32.totalorder %s45, %s48
      %p57 = scmp.eq.s32.totalorder %s40, 1
      %p58 = por %p56, %p57
      %p59 = scmp.ne.s32.totalorder %s48, %s49
      %p60 = scmp.eq.s32.totalorder %s40, 0
      %p61 = por %p59, %p60
      %p62 = scmp.ne.s32.totalorder %s48, %s49
      %p63 = scmp.eq.s32.totalorder %s41, 1
      %p64 = por %p62, %p63
      %p66 = scmp.ne.s32.totalorder %s49, %s65
      %p67 = scmp.eq.s32.totalorder %s41, 0
      %p68 = por %p66, %p67
      %s70 = sadd.s32 %s69, 1
      %p73 = scmp.eq.s32.totalorder %s35, 1
      %p74 = scmp.ne.s32.totalorder %s69, %s71
      %p75 = scmp.eq.s32.totalorder %s35, 0
      %p76 = por %p74, %p75
      %p77 = scmp.ne.s32.totalorder %s69, %s71
      %p78 = scmp.eq.s32.totalorder %s40, 1
      %p79 = por %p77, %p78
      %p80 = scmp.ne.s32.totalorder %s71, %s72
      %p81 = scmp.eq.s32.totalorder %s40, 0
      %p82 = por %p80, %p81
      %p83 = scmp.ne.s32.totalorder %s71, %s72
      %p84 = scmp.eq.s32.totalorder %s41, 1
      %p85 = por %p83, %p84
      %p87 = scmp.ne.s32.totalorder %s72, %s86
      %p88 = scmp.eq.s32.totalorder %s41, 0
      %p89 = por %p87, %p88
      %s91 = sadd.s32 %s90, 1
      %p94 = scmp.eq.s32.totalorder %s35, 1
      %p95 = scmp.ne.s32.totalorder %s90, %s92
      %p96 = scmp.eq.s32.totalorder %s35, 0
      %p97 = por %p95, %p96
      %p98 = scmp.ne.s32.totalorder %s90, %s92
      %p99 = scmp.eq.s32.totalorder %s40, 1
      %p100 = por %p98, %p99
      %p101 = scmp.ne.s32.totalorder %s92, %s93
      %p102 = scmp.eq.s32.totalorder %s40, 0
      %p103 = por %p101, %p102
      %p104 = scmp.ne.s32.totalorder %s92, %s93
      %p105 = scmp.eq.s32.totalorder %s41, 1
      %p106 = por %p104, %p105
      %p108 = scmp.ne.s32.totalorder %s93, %s107
      %p109 = scmp.eq.s32.totalorder %s41, 0
      %p110 = por %p108, %p109
      %s112 = sadd.s32 %s111, 1
      %p115 = scmp.eq.s32.totalorder %s35, 1
      %p116 = scmp.ne.s32.totalorder %s111, %s113
      %p117 = scmp.eq.s32.totalorder %s35, 0
      %p118 = por %p116, %p117
      %p119 = scmp.ne.s32.totalorder %s111, %s113
      %p120 = scmp.eq.s32.totalorder %s40, 1
      %p121 = por %p119, %p120
      %p122 = scmp.ne.s32.totalorder %s113, %s114
      %p123 = scmp.eq.s32.totalorder %s40, 0
      %p124 = por %p122, %p123
      %p125 = scmp.ne.s32.totalorder %s113, %s114
      %p126 = scmp.eq.s32.totalorder %s41, 1
      %p127 = por %p125, %p126
      %p129 = scmp.ne.s32.totalorder %s114, %s128
      %p130 = scmp.eq.s32.totalorder %s41, 0
      %p131 = por %p129, %p130
      %s133 = sadd.s32 %s132, 1
      %p136 = scmp.eq.s32.totalorder %s35, 1
      %p137 = scmp.ne.s32.totalorder %s132, %s134
      %p138 = scmp.eq.s32.totalorder %s35, 0
      %p139 = por %p137, %p138
      %p140 = scmp.ne.s32.totalorder %s132, %s134
      %p141 = scmp.eq.s32.totalorder %s40, 1
      %p142 = por %p140, %p141
      %p143 = scmp.ne.s32.totalorder %s134, %s135
      %p144 = scmp.eq.s32.totalorder %s40, 0
      %p145 = por %p143, %p144
      %p146 = scmp.ne.s32.totalorder %s134, %s135
      %p147 = scmp.eq.s32.totalorder %s41, 1
      %p148 = por %p146, %p147
      %p150 = scmp.ne.s32.totalorder %s135, %s149
      %p151 = scmp.eq.s32.totalorder %s41, 0
      %p152 = por %p150, %p151
      %s154 = sadd.s32 %s153, 1
      %p157 = scmp.eq.s32.totalorder %s35, 1
      %p158 = scmp.ne.s32.totalorder %s153, %s155
      %p159 = scmp.eq.s32.totalorder %s35, 0
      %p160 = por %p158, %p159
      %p161 = scmp.ne.s32.totalorder %s153, %s155
      %p162 = scmp.eq.s32.totalorder %s40, 1
      %p163 = por %p161, %p162
      %p164 = scmp.ne.s32.totalorder %s155, %s156
      %p165 = scmp.eq.s32.totalorder %s40, 0
      %p166 = por %p164, %p165
      %p167 = scmp.ne.s32.totalorder %s155, %s156
      %p168 = scmp.eq.s32.totalorder %s41, 1
      %p169 = por %p167, %p168
      %p171 = scmp.ne.s32.totalorder %s156, %s170
      %p172 = scmp.eq.s32.totalorder %s41, 0
      %p173 = por %p171, %p172
      %s175 = sadd.s32 %s174, 1
      %p178 = scmp.eq.s32.totalorder %s35, 1
      %p179 = scmp.ne.s32.totalorder %s174, %s176
      %p180 = scmp.eq.s32.totalorder %s35, 0
      %p181 = por %p179, %p180
      %p182 = scmp.ne.s32.totalorder %s174, %s176
      %p183 = scmp.eq.s32.totalorder %s40, 1
      %p184 = por %p182, %p183
      %p185 = scmp.ne.s32.totalorder %s176, %s177
      %p186 = scmp.eq.s32.totalorder %s40, 0
      %p187 = por %p185, %p186
      %p188 = scmp.ne.s32.totalorder %s176, %s177
      %p189 = scmp.eq.s32.totalorder %s41, 1
      %p190 = por %p188, %p189
      %p192 = scmp.ne.s32.totalorder %s177, %s191
      %p193 = scmp.eq.s32.totalorder %s41, 0
      %p194 = por %p192, %p193
      %s196 = sadd.s32 %s195, 1
      %p199 = scmp.eq.s32.totalorder %s35, 1
      %p200 = scmp.ne.s32.totalorder %s195, %s197
      %p201 = scmp.eq.s32.totalorder %s35, 0
      %p202 = por %p200, %p201
      %p203 = scmp.ne.s32.totalorder %s195, %s197
      %p204 = scmp.eq.s32.totalorder %s40, 1
      %p205 = por %p203, %p204
      %p206 = scmp.ne.s32.totalorder %s197, %s198
      %p207 = scmp.eq.s32.totalorder %s40, 0
      %p208 = por %p206, %p207
      %p209 = scmp.ne.s32.totalorder %s197, %s198
      %p210 = scmp.eq.s32.totalorder %s41, 1
      %p211 = por %p209, %p210
      %p213 = scmp.ne.s32.totalorder %s198, %s212
      %p214 = scmp.eq.s32.totalorder %s41, 0
      %p215 = por %p213, %p214
      %s217 = sadd.s32 %s216, 1
      %p220 = scmp.eq.s32.totalorder %s35, 1
      %p221 = scmp.ne.s32.totalorder %s216, %s218
      %p222 = scmp.eq.s32.totalorder %s35, 0
      %p223 = por %p221, %p222
      %p224 = scmp.ne.s32.totalorder %s216, %s218
      %p225 = scmp.eq.s32.totalorder %s40, 1
      %p226 = por %p224, %p225
      %p227 = scmp.ne.s32.totalorder %s218, %s219
      %p228 = scmp.eq.s32.totalorder %s40, 0
      %p229 = por %p227, %p228
      %p230 = scmp.ne.s32.totalorder %s218, %s219
      %p231 = scmp.eq.s32.totalorder %s41, 1
      %p232 = por %p230, %p231
      %p234 = scmp.ne.s32.totalorder %s219, %s233
      %p235 = scmp.eq.s32.totalorder %s41, 0
      %p236 = por %p234, %p235
      %s238 = sadd.s32 %s237, 1
      %p241 = scmp.eq.s32.totalorder %s35, 1
      %p242 = scmp.ne.s32.totalorder %s237, %s239
      %p243 = scmp.eq.s32.totalorder %s35, 0
      %p244 = por %p242, %p243
      %p245 = scmp.ne.s32.totalorder %s237, %s239
      %p246 = scmp.eq.s32.totalorder %s40, 1
      %p247 = por %p245, %p246
      %p248 = scmp.ne.s32.totalorder %s239, %s240
      %p249 = scmp.eq.s32.totalorder %s40, 0
      %p250 = por %p248, %p249
      %p251 = scmp.ne.s32.totalorder %s239, %s240
      %p252 = scmp.eq.s32.totalorder %s41, 1
      %p253 = por %p251, %p252
      %p255 = scmp.ne.s32.totalorder %s240, %s254
      %p256 = scmp.eq.s32.totalorder %s41, 0
      %p257 = por %p255, %p256
      %s259 = sadd.s32 %s258, 1
      %p262 = scmp.eq.s32.totalorder %s35, 1
      %p263 = scmp.ne.s32.totalorder %s258, %s260
      %p264 = scmp.eq.s32.totalorder %s35, 0
      %p265 = por %p263, %p264
      %p266 = scmp.ne.s32.totalorder %s258, %s260
      %p267 = scmp.eq.s32.totalorder %s40, 1
      %p268 = por %p266, %p267
      %p269 = scmp.ne.s32.totalorder %s260, %s261
      %p270 = scmp.eq.s32.totalorder %s40, 0
      %p271 = por %p269, %p270
      %p272 = scmp.ne.s32.totalorder %s260, %s261
      %p273 = scmp.eq.s32.totalorder %s41, 1
      %p274 = por %p272, %p273
      %p276 = scmp.ne.s32.totalorder %s261, %s275
      %p277 = scmp.eq.s32.totalorder %s41, 0
      %p278 = por %p276, %p277
      %s280 = sadd.s32 %s279, 1
      %p283 = scmp.eq.s32.totalorder %s35, 1
      %p284 = scmp.ne.s32.totalorder %s279, %s281
      %p285 = scmp.eq.s32.totalorder %s35, 0
      %p286 = por %p284, %p285
      %p287 = scmp.ne.s32.totalorder %s279, %s281
      %p288 = scmp.eq.s32.totalorder %s40, 1
      %p289 = por %p287, %p288
      %p290 = scmp.ne.s32.totalorder %s281, %s282
      %p291 = scmp.eq.s32.totalorder %s40, 0
      %p292 = por %p290, %p291
      %p293 = scmp.ne.s32.totalorder %s281, %s282
      %p294 = scmp.eq.s32.totalorder %s41, 1
      %p295 = por %p293, %p294
      %p297 = scmp.ne.s32.totalorder %s282, %s296
      %p298 = scmp.eq.s32.totalorder %s41, 0
      %p299 = por %p297, %p298
      %s301 = sadd.s32 %s300, 1
      %p304 = scmp.eq.s32.totalorder %s35, 1
      %p305 = scmp.ne.s32.totalorder %s300, %s302
      %p306 = scmp.eq.s32.totalorder %s35, 0
      %p307 = por %p305, %p306
      %p308 = scmp.ne.s32.totalorder %s300, %s302
      %p309 = scmp.eq.s32.totalorder %s40, 1
      %p310 = por %p308, %p309
      %p311 = scmp.ne.s32.totalorder %s302, %s303
      %p312 = scmp.eq.s32.totalorder %s40, 0
      %p313 = por %p311, %p312
      %p314 = scmp.ne.s32.totalorder %s302, %s303
      %p315 = scmp.eq.s32.totalorder %s41, 1
      %p316 = por %p314, %p315
      %p318 = scmp.ne.s32.totalorder %s303, %s317
      %p319 = scmp.eq.s32.totalorder %s41, 0
      %p320 = por %p318, %p319
      %s322 = sadd.s32 %s321, 1
      %p325 = scmp.eq.s32.totalorder %s35, 1
      %p326 = scmp.ne.s32.totalorder %s321, %s323
      %p327 = scmp.eq.s32.totalorder %s35, 0
      %p328 = por %p326, %p327
      %p329 = scmp.ne.s32.totalorder %s321, %s323
      %p330 = scmp.eq.s32.totalorder %s40, 1
      %p331 = por %p329, %p330
      %p332 = scmp.ne.s32.totalorder %s323, %s324
      %p333 = scmp.eq.s32.totalorder %s40, 0
      %p334 = por %p332, %p333
      %p335 = scmp.ne.s32.totalorder %s323, %s324
      %p336 = scmp.eq.s32.totalorder %s41, 1
      %p337 = por %p335, %p336
      %p339 = scmp.ne.s32.totalorder %s324, %s338
      %p340 = scmp.eq.s32.totalorder %s41, 0
      %p341 = por %p339, %p340
      %s343 = sadd.s32 %s342, 1
      %p346 = scmp.eq.s32.totalorder %s35, 1
      %p347 = scmp.ne.s32.totalorder %s342, %s344
      %p348 = scmp.eq.s32.totalorder %s35, 0
      %p349 = por %p347, %p348
      %p350 = scmp.ne.s32.totalorder %s342, %s344
      %p351 = scmp.eq.s32.totalorder %s40, 1
      %p352 = por %p350, %p351
      %p353 = scmp.ne.s32.totalorder %s344, %s345
      %p354 = scmp.eq.s32.totalorder %s40, 0
      %p355 = por %p353, %p354
      %p356 = scmp.ne.s32.totalorder %s344, %s345
      %p357 = scmp.eq.s32.totalorder %s41, 1
      %p358 = por %p356, %p357
      %p360 = scmp.ne.s32.totalorder %s345, %s359
      %p361 = scmp.eq.s32.totalorder %s41, 0
      %p362 = por %p360, %p361
      %s364 = sadd.s32 %s363, 1
      %p367 = scmp.eq.s32.totalorder %s35, 1
      %p368 = scmp.ne.s32.totalorder %s363, %s365
      %p369 = scmp.eq.s32.totalorder %s35, 0
      %p370 = por %p368, %p369
      %p371 = scmp.ne.s32.totalorder %s363, %s365
      %p372 = scmp.eq.s32.totalorder %s40, 1
      %p373 = por %p371, %p372
      %p374 = scmp.ne.s32.totalorder %s365, %s366
      %p375 = scmp.eq.s32.totalorder %s40, 0
      %p376 = por %p374, %p375
      %p377 = scmp.ne.s32.totalorder %s365, %s366
      %p378 = scmp.eq.s32.totalorder %s41, 1
      %p379 = por %p377, %p378
      %p381 = scmp.ne.s32.totalorder %s366, %s380
      %p382 = scmp.eq.s32.totalorder %s41, 0
      %p383 = por %p381, %p382
      %s385 = sadd.s32 %s384, 1
      %p388 = scmp.eq.s32.totalorder %s35, 1
      %p389 = scmp.ne.s32.totalorder %s384, %s386
      %p390 = scmp.eq.s32.totalorder %s35, 0
      %p391 = por %p389, %p390
      %p392 = scmp.ne.s32.totalorder %s384, %s386
      %p393 = scmp.eq.s32.totalorder %s40, 1
      %p394 = por %p392, %p393
      %p395 = scmp.ne.s32.totalorder %s386, %s387
      %p396 = scmp.eq.s32.totalorder %s40, 0
      %p397 = por %p395, %p396
      %p398 = scmp.ne.s32.totalorder %s386, %s387
      %p399 = scmp.eq.s32.totalorder %s41, 1
      %p400 = por %p398, %p399
      %p402 = scmp.ne.s32.totalorder %s387, %s401
      %p403 = scmp.eq.s32.totalorder %s41, 0
      %p404 = por %p402, %p403
      %s406 = sadd.s32 %s405, 1
      %p409 = scmp.eq.s32.totalorder %s35, 1
      %p410 = scmp.ne.s32.totalorder %s405, %s407
      %p411 = scmp.eq.s32.totalorder %s35, 0
      %p412 = por %p410, %p411
      %p413 = scmp.ne.s32.totalorder %s405, %s407
      %p414 = scmp.eq.s32.totalorder %s40, 1
      %p415 = por %p413, %p414
      %p416 = scmp.ne.s32.totalorder %s407, %s408
      %p417 = scmp.eq.s32.totalorder %s40, 0
      %p418 = por %p416, %p417
      %p419 = scmp.ne.s32.totalorder %s407, %s408
      %p420 = scmp.eq.s32.totalorder %s41, 1
      %p421 = por %p419, %p420
      %p423 = scmp.ne.s32.totalorder %s408, %s422
      %p424 = scmp.eq.s32.totalorder %s41, 0
      %p425 = por %p423, %p424
      %s427 = sadd.s32 %s426, 1
      %p430 = scmp.eq.s32.totalorder %s35, 1
      %p431 = scmp.ne.s32.totalorder %s426, %s428
      %p432 = scmp.eq.s32.totalorder %s35, 0
      %p433 = por %p431, %p432
      %p434 = scmp.ne.s32.totalorder %s426, %s428
      %p435 = scmp.eq.s32.totalorder %s40, 1
      %p436 = por %p434, %p435
      %p437 = scmp.ne.s32.totalorder %s428, %s429
      %p438 = scmp.eq.s32.totalorder %s40, 0
      %p439 = por %p437, %p438
      %p440 = scmp.ne.s32.totalorder %s428, %s429
      %p441 = scmp.eq.s32.totalorder %s41, 1
      %p442 = por %p440, %p441
      %p444 = scmp.ne.s32.totalorder %s429, %s443
      %p445 = scmp.eq.s32.totalorder %s41, 0
      %p446 = por %p444, %p445
      %s448 = sadd.s32 %s447, 1
      %p451 = scmp.eq.s32.totalorder %s35, 1
      %p452 = scmp.ne.s32.totalorder %s447, %s449
      %p453 = scmp.eq.s32.totalorder %s35, 0
      %p454 = por %p452, %p453
      %p455 = scmp.ne.s32.totalorder %s447, %s449
      %p456 = scmp.eq.s32.totalorder %s40, 1
      %p457 = por %p455, %p456
      %p458 = scmp.ne.s32.totalorder %s449, %s450
      %p459 = scmp.eq.s32.totalorder %s40, 0
      %p460 = por %p458, %p459
      %p461 = scmp.ne.s32.totalorder %s449, %s450
      %p462 = scmp.eq.s32.totalorder %s41, 1
      %p463 = por %p461, %p462
      %p465 = scmp.ne.s32.totalorder %s450, %s464
      %p466 = scmp.eq.s32.totalorder %s41, 0
      %p467 = por %p465, %p466
      %s469 = sadd.s32 %s468, 1
      %p472 = scmp.eq.s32.totalorder %s35, 1
      %p473 = scmp.ne.s32.totalorder %s468, %s470
      %p474 = scmp.eq.s32.totalorder %s35, 0
      %p475 = por %p473, %p474
      %p476 = scmp.ne.s32.totalorder %s468, %s470
      %p477 = scmp.eq.s32.totalorder %s40, 1
      %p478 = por %p476, %p477
      %p479 = scmp.ne.s32.totalorder %s470, %s471
      %p480 = scmp.eq.s32.totalorder %s40, 0
      %p481 = por %p479, %p480
      %p482 = scmp.ne.s32.totalorder %s470, %s471
      %p483 = scmp.eq.s32.totalorder %s41, 1
      %p484 = por %p482, %p483
      %p486 = scmp.ne.s32.totalorder %s471, %s485
      %p487 = scmp.eq.s32.totalorder %s41, 0
      %p488 = por %p486, %p487
      %s490 = sadd.s32 %s489, 1
      %p493 = scmp.eq.s32.totalorder %s35, 1
      %p494 = scmp.ne.s32.totalorder %s489, %s491
      %p495 = scmp.eq.s32.totalorder %s35, 0
      %p496 = por %p494, %p495
      %p497 = scmp.ne.s32.totalorder %s489, %s491
      %p498 = scmp.eq.s32.totalorder %s40, 1
      %p499 = por %p497, %p498
      %p500 = scmp.ne.s32.totalorder %s491, %s492
      %p501 = scmp.eq.s32.totalorder %s40, 0
      %p502 = por %p500, %p501
      %p503 = scmp.ne.s32.totalorder %s491, %s492
      %p504 = scmp.eq.s32.totalorder %s41, 1
      %p505 = por %p503, %p504
      %p507 = scmp.ne.s32.totalorder %s492, %s506
      %p508 = scmp.eq.s32.totalorder %s41, 0
      %p509 = por %p507, %p508
      %s511 = sadd.s32 %s510, 1
      %p514 = scmp.eq.s32.totalorder %s35, 1
      %p515 = scmp.ne.s32.totalorder %s510, %s512
      %p516 = scmp.eq.s32.totalorder %s35, 0
      %p517 = por %p515, %p516
      %p518 = scmp.ne.s32.totalorder %s510, %s512
      %p519 = scmp.eq.s32.totalorder %s40, 1
      %p520 = por %p518, %p519
      %p521 = scmp.ne.s32.totalorder %s512, %s513
      %p522 = scmp.eq.s32.totalorder %s40, 0
      %p523 = por %p521, %p522
      %p524 = scmp.ne.s32.totalorder %s512, %s513
      %p525 = scmp.eq.s32.totalorder %s41, 1
      %p526 = por %p524, %p525
      %p528 = scmp.ne.s32.totalorder %s513, %s527
      %p529 = scmp.eq.s32.totalorder %s41, 0
      %p530 = por %p528, %p529
      %s532 = sadd.s32 %s531, 1
      %p535 = scmp.eq.s32.totalorder %s35, 1
      %p536 = scmp.ne.s32.totalorder %s531, %s533
      %p537 = scmp.eq.s32.totalorder %s35, 0
      %p538 = por %p536, %p537
      %p539 = scmp.ne.s32.totalorder %s531, %s533
      %p540 = scmp.eq.s32.totalorder %s40, 1
      %p541 = por %p539, %p540
      %p542 = scmp.ne.s32.totalorder %s533, %s534
      %p543 = scmp.eq.s32.totalorder %s40, 0
      %p544 = por %p542, %p543
      %p545 = scmp.ne.s32.totalorder %s533, %s534
      %p546 = scmp.eq.s32.totalorder %s41, 1
      %p547 = por %p545, %p546
      %p549 = scmp.ne.s32.totalorder %s534, %s548
      %p550 = scmp.eq.s32.totalorder %s41, 0
      %p551 = por %p549, %p550
      %s553 = sadd.s32 %s552, 1
      %p556 = scmp.eq.s32.totalorder %s35, 1
      %p557 = scmp.ne.s32.totalorder %s552, %s554
      %p558 = scmp.eq.s32.totalorder %s35, 0
      %p559 = por %p557, %p558
      %p560 = scmp.ne.s32.totalorder %s552, %s554
      %p561 = scmp.eq.s32.totalorder %s40, 1
      %p562 = por %p560, %p561
      %p563 = scmp.ne.s32.totalorder %s554, %s555
      %p564 = scmp.eq.s32.totalorder %s40, 0
      %p565 = por %p563, %p564
      %p566 = scmp.ne.s32.totalorder %s554, %s555
      %p567 = scmp.eq.s32.totalorder %s41, 1
      %p568 = por %p566, %p567
      %p570 = scmp.ne.s32.totalorder %s555, %s569
      %p571 = scmp.eq.s32.totalorder %s41, 0
      %p572 = por %p570, %p571
      %s574 = sadd.s32 %s573, 1
      %p577 = scmp.eq.s32.totalorder %s35, 1
      %p578 = scmp.ne.s32.totalorder %s573, %s575
      %p579 = scmp.eq.s32.totalorder %s35, 0
      %p580 = por %p578, %p579
      %p581 = scmp.ne.s32.totalorder %s573, %s575
      %p582 = scmp.eq.s32.totalorder %s40, 1
      %p583 = por %p581, %p582
      %p584 = scmp.ne.s32.totalorder %s575, %s576
      %p585 = scmp.eq.s32.totalorder %s40, 0
      %p586 = por %p584, %p585
      %p587 = scmp.ne.s32.totalorder %s575, %s576
      %p588 = scmp.eq.s32.totalorder %s41, 1
      %p589 = por %p587, %p588
      %p591 = scmp.ne.s32.totalorder %s576, %s590
      %p592 = scmp.eq.s32.totalorder %s41, 0
      %p593 = por %p591, %p592
      %s594 = ssub.s32 %s35, %s42
      %p595 = scmp.eq.s32.totalorder %s594, 0
      %s597 = sadd.s32 %s596, 1
      %s598 = scalar_select %p595, %s596, %s597
      %p601 = pneg %p595
      %p602 = scmp.eq.s32.totalorder %s35, 1
      %p603 = por %p601, %p602
      %p604 = scmp.ne.s32.totalorder %s596, %s599
      %p605 = scmp.eq.s32.totalorder %s35, 0
      %p606 = por %p604, %p605
      %p607 = scmp.ne.s32.totalorder %s596, %s599
      %p608 = scmp.eq.s32.totalorder %s40, 1
      %p609 = por %p607, %p608
      %p610 = scmp.ne.s32.totalorder %s599, %s600
      %p611 = scmp.eq.s32.totalorder %s40, 0
      %p612 = por %p610, %p611
      %p613 = scmp.ne.s32.totalorder %s599, %s600
      %p614 = scmp.eq.s32.totalorder %s41, 1
      %p615 = por %p613, %p614
      %p617 = scmp.ne.s32.totalorder %s600, %s616
      %p618 = scmp.eq.s32.totalorder %s41, 0
      %p619 = por %p617, %p618
      %p620 = scmp.le.s32.totalorder 1, %s35
      %p621 = scmp.lt.s32.totalorder %s35, 3
      %p622 = pnand %p620, %p621
      %p623 = pneg %p622
      // Predicated region
      $region9: #{forward.1} parent=5 // pred_check
        _
      $region10: #{forward.1} parent=5 // pred_check_branch
        %625 = sbr.rel (%p622) target = $region12
      $region11: #{forward.1} parent=5 // pred_region
        %s626 = ssub.s32 %s35, 1
        // Predicated region
        $region13: #{forward.1} parent=11 // pred_check
          %p627 = pneg %p82
        $region14: #{forward.1} parent=11 // pred_check_branch
          %629 = sbr.rel (%p627) target = $region16
        $region15: #{forward.1} parent=11 // pred_region
          _
        $region16: #{forward.1} parent=11 // pred_fallthru
          _
        // Predicated region
        $region17: #{forward.1} parent=11 // pred_check
          %p630 = pneg %p103
        $region18: #{forward.1} parent=11 // pred_check_branch
          %632 = sbr.rel (%p630) target = $region20
        $region19: #{forward.1} parent=11 // pred_region
          _
        $region20: #{forward.1} parent=11 // pred_fallthru
          _
        // Predicated region
        $region21: #{forward.1} parent=11 // pred_check
          %p633 = pneg %p124
        $region22: #{forward.1} parent=11 // pred_check_branch
          %635 = sbr.rel (%p633) target = $region24
        $region23: #{forward.1} parent=11 // pred_region
          _
        $region24: #{forward.1} parent=11 // pred_fallthru
          _
        // Predicated region
        $region25: #{forward.1} parent=11 // pred_check
          %p636 = pneg %p145
        $region26: #{forward.1} parent=11 // pred_check_branch
          %638 = sbr.rel (%p636) target = $region28
        $region27: #{forward.1} parent=11 // pred_region
          _
        $region28: #{forward.1} parent=11 // pred_fallthru
          _
        // Predicated region
        $region29: #{forward.1} parent=11 // pred_check
          %p639 = pneg %p166
        $region30: #{forward.1} parent=11 // pred_check_branch
          %641 = sbr.rel (%p639) target = $region32
        $region31: #{forward.1} parent=11 // pred_region
          _
        $region32: #{forward.1} parent=11 // pred_fallthru
          _
        // Predicated region
        $region33: #{forward.1} parent=11 // pred_check
          %p642 = pneg %p187
        $region34: #{forward.1} parent=11 // pred_check_branch
          %644 = sbr.rel (%p642) target = $region36
        $region35: #{forward.1} parent=11 // pred_region
          _
        $region36: #{forward.1} parent=11 // pred_fallthru
          _
        // Predicated region
        $region37: #{forward.1} parent=11 // pred_check
          %p645 = pneg %p208
        $region38: #{forward.1} parent=11 // pred_check_branch
          %647 = sbr.rel (%p645) target = $region40
        $region39: #{forward.1} parent=11 // pred_region
          _
        $region40: #{forward.1} parent=11 // pred_fallthru
          _
        // Predicated region
        $region41: #{forward.1} parent=11 // pred_check
          %p648 = pneg %p229
        $region42: #{forward.1} parent=11 // pred_check_branch
          %650 = sbr.rel (%p648) target = $region44
        $region43: #{forward.1} parent=11 // pred_region
          _
        $region44: #{forward.1} parent=11 // pred_fallthru
          _
        // Predicated region
        $region45: #{forward.1} parent=11 // pred_check
          %p651 = pneg %p250
        $region46: #{forward.1} parent=11 // pred_check_branch
          %653 = sbr.rel (%p651) target = $region48
        $region47: #{forward.1} parent=11 // pred_region
          _
        $region48: #{forward.1} parent=11 // pred_fallthru
          _
        // Predicated region
        $region49: #{forward.1} parent=11 // pred_check
          %p654 = pneg %p271
        $region50: #{forward.1} parent=11 // pred_check_branch
          %656 = sbr.rel (%p654) target = $region52
        $region51: #{forward.1} parent=11 // pred_region
          _
        $region52: #{forward.1} parent=11 // pred_fallthru
          _
        // Predicated region
        $region53: #{forward.1} parent=11 // pred_check
          %p657 = pneg %p292
        $region54: #{forward.1} parent=11 // pred_check_branch
          %659 = sbr.rel (%p657) target = $region56
        $region55: #{forward.1} parent=11 // pred_region
          _
        $region56: #{forward.1} parent=11 // pred_fallthru
          _
        // Predicated region
        $region57: #{forward.1} parent=11 // pred_check
          %p660 = pneg %p313
        $region58: #{forward.1} parent=11 // pred_check_branch
          %662 = sbr.rel (%p660) target = $region60
        $region59: #{forward.1} parent=11 // pred_region
          _
        $region60: #{forward.1} parent=11 // pred_fallthru
          _
        // Predicated region
        $region61: #{forward.1} parent=11 // pred_check
          %p663 = pneg %p334
        $region62: #{forward.1} parent=11 // pred_check_branch
          %665 = sbr.rel (%p663) target = $region64
        $region63: #{forward.1} parent=11 // pred_region
          _
        $region64: #{forward.1} parent=11 // pred_fallthru
          _
        // Predicated region
        $region65: #{forward.1} parent=11 // pred_check
          %p666 = pneg %p355
        $region66: #{forward.1} parent=11 // pred_check_branch
          %668 = sbr.rel (%p666) target = $region68
        $region67: #{forward.1} parent=11 // pred_region
          _
        $region68: #{forward.1} parent=11 // pred_fallthru
          _
        // Predicated region
        $region69: #{forward.1} parent=11 // pred_check
          %p669 = pneg %p376
        $region70: #{forward.1} parent=11 // pred_check_branch
          %671 = sbr.rel (%p669) target = $region72
        $region71: #{forward.1} parent=11 // pred_region
          _
        $region72: #{forward.1} parent=11 // pred_fallthru
          _
        // Predicated region
        $region73: #{forward.1} parent=11 // pred_check
          %p672 = pneg %p397
        $region74: #{forward.1} parent=11 // pred_check_branch
          %674 = sbr.rel (%p672) target = $region76
        $region75: #{forward.1} parent=11 // pred_region
          _
        $region76: #{forward.1} parent=11 // pred_fallthru
          _
        // Predicated region
        $region77: #{forward.1} parent=11 // pred_check
          %p675 = pneg %p418
        $region78: #{forward.1} parent=11 // pred_check_branch
          %677 = sbr.rel (%p675) target = $region80
        $region79: #{forward.1} parent=11 // pred_region
          _
        $region80: #{forward.1} parent=11 // pred_fallthru
          _
        // Predicated region
        $region81: #{forward.1} parent=11 // pred_check
          %p678 = pneg %p439
        $region82: #{forward.1} parent=11 // pred_check_branch
          %680 = sbr.rel (%p678) target = $region84
        $region83: #{forward.1} parent=11 // pred_region
          _
        $region84: #{forward.1} parent=11 // pred_fallthru
          _
        // Predicated region
        $region85: #{forward.1} parent=11 // pred_check
          %p681 = pneg %p460
        $region86: #{forward.1} parent=11 // pred_check_branch
          %683 = sbr.rel (%p681) target = $region88
        $region87: #{forward.1} parent=11 // pred_region
          _
        $region88: #{forward.1} parent=11 // pred_fallthru
          _
        // Predicated region
        $region89: #{forward.1} parent=11 // pred_check
          %p684 = pneg %p481
        $region90: #{forward.1} parent=11 // pred_check_branch
          %686 = sbr.rel (%p684) target = $region92
        $region91: #{forward.1} parent=11 // pred_region
          _
        $region92: #{forward.1} parent=11 // pred_fallthru
          _
        // Predicated region
        $region93: #{forward.1} parent=11 // pred_check
          %p687 = pneg %p502
        $region94: #{forward.1} parent=11 // pred_check_branch
          %689 = sbr.rel (%p687) target = $region96
        $region95: #{forward.1} parent=11 // pred_region
          _
        $region96: #{forward.1} parent=11 // pred_fallthru
          _
        // Predicated region
        $region97: #{forward.1} parent=11 // pred_check
          %p690 = pneg %p523
        $region98: #{forward.1} parent=11 // pred_check_branch
          %692 = sbr.rel (%p690) target = $region100
        $region99: #{forward.1} parent=11 // pred_region
          _
        $region100: #{forward.1} parent=11 // pred_fallthru
          _
        // Predicated region
        $region101: #{forward.1} parent=11 // pred_check
          %p693 = pneg %p544
        $region102: #{forward.1} parent=11 // pred_check_branch
          %695 = sbr.rel (%p693) target = $region104
        $region103: #{forward.1} parent=11 // pred_region
          _
        $region104: #{forward.1} parent=11 // pred_fallthru
          _
        // Predicated region
        $region105: #{forward.1} parent=11 // pred_check
          %p696 = pneg %p565
        $region106: #{forward.1} parent=11 // pred_check_branch
          %698 = sbr.rel (%p696) target = $region108
        $region107: #{forward.1} parent=11 // pred_region
          _
        $region108: #{forward.1} parent=11 // pred_fallthru
          _
        // Predicated region
        $region109: #{forward.1} parent=11 // pred_check
          %p699 = pneg %p586
        $region110: #{forward.1} parent=11 // pred_check_branch
          %701 = sbr.rel (%p699) target = $region112
        $region111: #{forward.1} parent=11 // pred_region
          _
        $region112: #{forward.1} parent=11 // pred_fallthru
          _
      $region12: #{forward.1} parent=5 // pred_fallthru
        _
      %p702 = scmp.lt.s32.totalorder %s35, 2
      // Predicated region
      $region113: #{forward.1} parent=5 // pred_check
        %p703 = pneg %p702
      $region114: #{forward.1} parent=5 // pred_check_branch
        %705 = sbr.rel (%p703) target = $region116
      $region115: #{forward.1} parent=5 // pred_region
        // Predicated region
        $region117: #{forward.1} parent=115 // pred_check
          %p706 = pneg %p55
        $region118: #{forward.1} parent=115 // pred_check_branch
          %708 = sbr.rel (%p706) target = $region120
        $region119: #{forward.1} parent=115 // pred_region
          %p709 = scmp.lt.s32.totalorder %s35, 1
          %s710 = scalar_select %p709, %s35, 1
          %s711 = smul.addr %s710, 13
          %s712 = smul.addr %s711, 4
          %s713 = scalar_lea.vmem %s0, %s712
        $region120: #{forward.1} parent=115 // pred_fallthru
          _
      $region116: #{forward.1} parent=5 // pred_fallthru
        _
      %p714 = scmp.le.s32.totalorder 1, %s35
      %p715 = scmp.lt.s32.totalorder %s35, 3
      %p716 = pnand %p714, %p715
      %p717 = pneg %p716
      // Predicated region
      $region121: #{forward.1} parent=5 // pred_check
        _
      $region122: #{forward.1} parent=5 // pred_check_branch
        %719 = sbr.rel (%p716) target = $region124
      $region123: #{forward.1} parent=5 // pred_region
        %s720 = ssub.s32 %s35, 1
        %p721 = scmp.lt.s32.totalorder %s40, 1
        %s722 = scalar_select %p721, %s40, 1
        %s723 = smul.addr %s722, 13
        %s724 = smul.addr %s723, 4
        %s725 = scalar_lea.vmem %s0, %s724
        %p726 = pneg %p61
        %p727 = pneg %p58
        %p728 = pneg %p82
        %p729 = pneg %p79
        %p730 = pneg %p103
        %p731 = pneg %p100
        %p732 = pneg %p124
        %p733 = pneg %p121
        %p734 = pneg %p145
        %p735 = pneg %p142
        %p736 = pneg %p166
        %p737 = pneg %p163
        %p738 = pneg %p187
        %p739 = pneg %p184
        %p740 = pneg %p208
        %p741 = pneg %p205
        %p742 = pneg %p229
        %p743 = pneg %p226
        %p744 = pneg %p250
        %p745 = pneg %p247
        %p746 = pneg %p271
        %p747 = pneg %p268
        %p748 = pneg %p292
        %p749 = pneg %p289
        %p750 = pneg %p313
        %p751 = pneg %p310
        %p752 = pneg %p334
        %p753 = pneg %p331
        %p754 = pneg %p355
        %p755 = pneg %p352
        %p756 = pneg %p376
        %p757 = pneg %p373
        %p758 = pneg %p397
        %p759 = pneg %p394
        %p760 = pneg %p418
        %p761 = pneg %p415
        %p762 = pneg %p439
        %p763 = pneg %p436
        %p764 = pneg %p460
        %p765 = pneg %p457
        %p766 = pneg %p481
        %p767 = pneg %p478
        %p768 = pneg %p502
        %p769 = pneg %p499
        %p770 = pneg %p523
        %p771 = pneg %p520
        %p772 = pneg %p544
        %p773 = pneg %p541
        %p774 = pneg %p565
        %p775 = pneg %p562
        %p776 = pneg %p586
        %p777 = pneg %p583
        %p778 = pneg %p612
        %p779 = pneg %p609
        %s780 = sand.u32 %s599, 1
        %s781 = scalar_lea.sflag [#allocation3], %s780
        %s782 = sand.u32 %s599, 1
        %s783 = scalar_lea.vmem [#allocation2], %s782
        %p784 = scmp.lt.s32.totalorder %s40, 1
        %s785 = scalar_select %p784, %s40, 1
        %s786 = smul.addr %s785, 13
        %s787 = smul.addr %s786, 4
        %s788 = scalar_lea.vmem %s0, %s787
        %v790 = vld [vmem:[%s788] sm:$0xf]
        %v791 = vld [vmem:[%s788 + $0x4] sm:$0xf]
        %v792 = vld [vmem:[%s788 + $0x8] sm:$0xf]
        %v793 = vld [vmem:[%s788 + $0xc] sm:$0xf]
        %v794 = vld [vmem:[%s788 + $0x10] sm:$0xf]
        %v795 = vld [vmem:[%s788 + $0x14] sm:$0xf]
        %v796 = vld [vmem:[%s788 + $0x18] sm:$0xf]
        %v797 = vld [vmem:[%s788 + $0x1c] sm:$0xf]
        %v798 = vld [vmem:[%s788 + $0x20] sm:$0xf]
        %v799 = vld [vmem:[%s788 + $0x24] sm:$0xf]
        %v800 = vld [vmem:[%s788 + $0x28] sm:$0xf]
        %v801 = vld [vmem:[%s788 + $0x2c] sm:$0xf]
        %v802 = vld [vmem:[%s788 + $0x30] sm:$0x3]
        %v803 = vld [vmem:[%s4] sm:$0xff]
        %v804 = vld [vmem:[%s4 + $0x8] sm:$0xff]
        %v805 = vld [vmem:[%s4 + $0x10] sm:$0xf]
        %v806 = vld [vmem:[%s4 + $0x14] sm:$0xff]
        %v807 = vld [vmem:[%s4 + $0x1c] sm:$0xff]
        %v808 = vld [vmem:[%s4 + $0x24] sm:$0xf]
        %v809 = vld [vmem:[%s4 + $0x28] sm:$0xff]
        %v810 = vld [vmem:[%s4 + $0x30] sm:$0xff]
        %v811 = vld [vmem:[%s4 + $0x38] sm:$0xf]
        %v812 = vld [vmem:[%s4 + $0x3c] sm:$0xff]
        %v813 = vld [vmem:[%s4 + $0x44] sm:$0xff]
        %v814 = vld [vmem:[%s4 + $0x4c] sm:$0xf]
        %v815 = vld [vmem:[%s4 + $0x50] sm:$0xff]
        %v816 = vld [vmem:[%s4 + $0x58] sm:$0xff]
        %v817 = vld [vmem:[%s4 + $0x60] sm:$0xf]
        %v818 = vld [vmem:[%s4 + $0x64] sm:$0xff]
        %v819 = vld [vmem:[%s4 + $0x6c] sm:$0xff]
        %v820 = vld [vmem:[%s4 + $0x74] sm:$0xf]
        %v821 = vld [vmem:[%s4 + $0x78] sm:$0xff]
        %v822 = vld [vmem:[%s4 + $0x80] sm:$0xff]
        %v823 = vld [vmem:[%s4 + $0x88] sm:$0xf]
        %v824 = vld [vmem:[%s4 + $0x8c] sm:$0xff]
        %v825 = vld [vmem:[%s4 + $0x94] sm:$0xff]
        %v826 = vld [vmem:[%s4 + $0x9c] sm:$0xf]
        %v827 = vld [vmem:[%s4 + $0xa0] sm:$0xff]
        %v828 = vld [vmem:[%s4 + $0xa8] sm:$0xff]
        %v829 = vld [vmem:[%s4 + $0xb0] sm:$0xf]
        %v830 = vld [vmem:[%s4 + $0xb4] sm:$0xff]
        %v831 = vld [vmem:[%s4 + $0xbc] sm:$0xff]
        %v832 = vld [vmem:[%s4 + $0xc4] sm:$0xf]
        %v833 = vld [vmem:[%s4 + $0xc8] sm:$0xff]
        %v834 = vld [vmem:[%s4 + $0xd0] sm:$0xff]
        %v835 = vld [vmem:[%s4 + $0xd8] sm:$0xf]
        %v836 = vld [vmem:[%s4 + $0xdc] sm:$0xff]
        %v837 = vld [vmem:[%s4 + $0xe4] sm:$0xff]
        %v838 = vld [vmem:[%s4 + $0xec] sm:$0xf]
        %v839 = vld [vmem:[%s5] sm:$0x1f]
        %v841 = vlaneseq
        %v842 = vshrl.u32 %v841, 7
        %v843 = vsub.s32 0, %v842
        %v844 = vrot.slane %v839, %v843
        %v845 = vlaneseq
        %v846 = vshrl.u32 %v845, 7
        %v847 = vsub.s32 1, %v846
        %v848 = vrot.slane %v839, %v847
        %v849 = vlaneseq
        %v850 = vshrl.u32 %v849, 7
        %v851 = vsub.s32 2, %v850
        %v852 = vrot.slane %v839, %v851
        %v853 = vlaneseq
        %v854 = vshrl.u32 %v853, 7
        %v855 = vsub.s32 3, %v854
        %v856 = vrot.slane %v839, %v855
        %v857 = vlaneseq
        %v858 = vshrl.u32 %v857, 7
        %v859 = vsub.s32 4, %v858
        %v860 = vrot.slane %v839, %v859
        %v879 = vunpack.c.l.b16 %v790
        %v880 = vunpack.c.l.b16 %v791
        %v881 = vunpack.c.l.b16 %v792
        %v882 = vunpack.c.l.b16 %v793
        %v883 = vunpack.c.l.b16 %v794
        %v884 = vunpack.c.l.b16 %v795
        %v885 = vunpack.c.l.b16 %v796
        %v886 = vunpack.c.l.b16 %v797
        %v887 = vunpack.c.l.b16 %v798
        %v888 = vunpack.c.l.b16 %v799
        %v889 = vunpack.c.l.b16 %v800
        %v890 = vunpack.c.l.b16 %v801
        %v891 = vunpack.c.l.b16 %v802
        %v892 = vpack.c.b16 %v880, %v879
        %v893 = vpack.c.b16 %v882, %v881
        %v894 = vpack.c.b16 %v884, %v883
        %v895 = vpack.c.b16 %v886, %v885
        %v896 = vpack.c.b16 %v888, %v887
        %v897 = vpack.c.b16 %v890, %v889
        %v898 = vpack.c.b16 %v891, %v891
        %v935 = vunpack.c.l.b16 %v803
        %v936 = vunpack.c.h.b16 %v803
        %v937 = vunpack.c.l.b16 %v804
        %v938 = vunpack.c.h.b16 %v804
        %v939 = vunpack.c.l.b16 %v805
        %v940 = vunpack.c.l.b16 %v806
        %v941 = vunpack.c.h.b16 %v806
        %v942 = vunpack.c.l.b16 %v807
        %v943 = vunpack.c.h.b16 %v807
        %v944 = vunpack.c.l.b16 %v808
        %v945 = vunpack.c.l.b16 %v809
        %v946 = vunpack.c.h.b16 %v809
        %v947 = vunpack.c.l.b16 %v810
        %v948 = vunpack.c.h.b16 %v810
        %v949 = vunpack.c.l.b16 %v811
        %v950 = vunpack.c.l.b16 %v812
        %v951 = vunpack.c.h.b16 %v812
        %v952 = vunpack.c.l.b16 %v813
        %v953 = vunpack.c.h.b16 %v813
        %v954 = vunpack.c.l.b16 %v814
        %v955 = vunpack.c.l.b16 %v815
        %v956 = vunpack.c.h.b16 %v815
        %v957 = vunpack.c.l.b16 %v816
        %v958 = vunpack.c.h.b16 %v816
        %v959 = vunpack.c.l.b16 %v817
        %v960 = vunpack.c.l.b16 %v818
        %v961 = vunpack.c.h.b16 %v818
        %v962 = vunpack.c.l.b16 %v819
        %v963 = vunpack.c.h.b16 %v819
        %v964 = vunpack.c.l.b16 %v820
        %v965 = vunpack.c.l.b16 %v821
        %v966 = vunpack.c.h.b16 %v821
        %v967 = vunpack.c.l.b16 %v822
        %v968 = vunpack.c.h.b16 %v822
        %v969 = vunpack.c.l.b16 %v823
        %v970 = vunpack.c.l.b16 %v824
        %v971 = vunpack.c.h.b16 %v824
        %v972 = vunpack.c.l.b16 %v825
        %v973 = vunpack.c.h.b16 %v825
        %v974 = vunpack.c.l.b16 %v826
        %v975 = vunpack.c.l.b16 %v827
        %v976 = vunpack.c.h.b16 %v827
        %v977 = vunpack.c.l.b16 %v828
        %v978 = vunpack.c.h.b16 %v828
        %v979 = vunpack.c.l.b16 %v829
        %v980 = vunpack.c.l.b16 %v830
        %v981 = vunpack.c.h.b16 %v830
        %v982 = vunpack.c.l.b16 %v831
        %v983 = vunpack.c.h.b16 %v831
        %v984 = vunpack.c.l.b16 %v832
        %v985 = vunpack.c.l.b16 %v833
        %v986 = vunpack.c.h.b16 %v833
        %v987 = vunpack.c.l.b16 %v834
        %v988 = vunpack.c.h.b16 %v834
        %v989 = vunpack.c.l.b16 %v835
        %v990 = vunpack.c.l.b16 %v836
        %v991 = vunpack.c.h.b16 %v836
        %v992 = vunpack.c.l.b16 %v837
        %v993 = vunpack.c.h.b16 %v837
        %v994 = vunpack.c.l.b16 %v838
        %v995 = vpack.c.b16 %v940, %v935
        %v996 = vpack.c.b16 %v941, %v936
        %v997 = vpack.c.b16 %v942, %v937
        %v998 = vpack.c.b16 %v943, %v938
        %v999 = vpack.c.b16 %v944, %v939
        %v1000 = vpack.c.b16 %v950, %v945
        %v1001 = vpack.c.b16 %v951, %v946
        %v1002 = vpack.c.b16 %v952, %v947
        %v1003 = vpack.c.b16 %v953, %v948
        %v1004 = vpack.c.b16 %v954, %v949
        %v1005 = vpack.c.b16 %v960, %v955
        %v1006 = vpack.c.b16 %v961, %v956
        %v1007 = vpack.c.b16 %v962, %v957
        %v1008 = vpack.c.b16 %v963, %v958
        %v1009 = vpack.c.b16 %v964, %v959
        %v1010 = vpack.c.b16 %v970, %v965
        %v1011 = vpack.c.b16 %v971, %v966
        %v1012 = vpack.c.b16 %v972, %v967
        %v1013 = vpack.c.b16 %v973, %v968
        %v1014 = vpack.c.b16 %v974, %v969
        %v1015 = vpack.c.b16 %v980, %v975
        %v1016 = vpack.c.b16 %v981, %v976
        %v1017 = vpack.c.b16 %v982, %v977
        %v1018 = vpack.c.b16 %v983, %v978
        %v1019 = vpack.c.b16 %v984, %v979
        %v1020 = vpack.c.b16 %v990, %v985
        %v1021 = vpack.c.b16 %v991, %v986
        %v1022 = vpack.c.b16 %v992, %v987
        %v1023 = vpack.c.b16 %v993, %v988
        %v1024 = vpack.c.b16 %v994, %v989
        %vm1055 = vcmask 785408
        %v1057 = vsel %vm1055, %v892, 0
        %v1060 = vsel %vm1055, %v893, 0
        %v1063 = vsel %vm1055, %v894, 0
        %v1066 = vsel %vm1055, %v895, 0
        %v1069 = vsel %vm1055, %v896, 0
        %v1072 = vsel %vm1055, %v897, 0
        %v1075 = vsel %vm1055, %v898, 0
        %1077 = vmatprep.subr.bf16.mxu0 %v996
        %1078 = vmatpush1.bf16.msra.mxu0 %v995
        %1079 = vmatprep.subr.bf16.mxu0 %v1001
        %1080 = vmatpush1.bf16.msra.mxu0 %v1000
        %1081 = vmatprep.subr.bf16.mxu0 %v1006
        %1082 = vmatpush1.bf16.msra.mxu0 %v1005
        %1083 = vmatprep.subr.bf16.mxu0 %v1011
        %1084 = vmatpush1.bf16.msra.mxu0 %v1010
        %1085 = vmatprep.subr.bf16.mxu0 %v1016
        %1086 = vmatpush1.bf16.msra.mxu0 %v1015
        %1087 = vmatprep.subr.bf16.mxu0 %v1021
        %1088 = vmatpush1.bf16.msra.mxu0 %v1020
        %1089 = vmatprep.subr.bf16.mxu0 0
        %1090 = vmatpush1.bf16.msra.mxu0 0
        %1091 = vmatprep.subr.bf16.mxu0 0
        %1092 = vmatpush1.bf16.msra.mxu0 0
        %1093 = vmatprep.subr.bf16.mxu0 0
        %1094 = vmatpush1.bf16.msra.mxu0 0
        %1095 = vmatprep.subr.bf16.mxu0 0
        %1096 = vmatpush1.bf16.msra.mxu0 0
        %1097 = vmatprep.subr.bf16.mxu0 0
        %1098 = vmatpush1.bf16.msra.mxu0 0
        %1099 = vmatprep.subr.bf16.mxu0 0
        %1100 = vmatpush1.bf16.msra.mxu0 0
        %1101 = vmatprep.subr.bf16.mxu0 0
        %1102 = vmatpush1.bf16.msra.mxu0 0
        %1103 = vmatprep.subr.bf16.mxu0 0
        %1104 = vmatpush1.bf16.msra.mxu0 0
        %1105 = vmatprep.subr.bf16.mxu0 0
        %1106 = vmatpush1.bf16.msra.mxu0 0
        %1107 = vmatprep.subr.bf16.mxu0 0
        %1108 = vmatpush1.bf16.msra.mxu0 0
        %1109 = vmatprep.mubr.bf16.mxu0 0
        %1110 = vmatmul.mubr.bf16.gmra.mrb[0].mxu0 %v1057
        %v1111 = vpop.f32.mrb[0].mxu0
        %v1112 = vadd.f32 %v844, %v1111
        %v1113 = vpop.f32.mrb[0].mxu0
        %v1114 = vadd.f32 %v848, %v1113
        %v1115 = vpop.f32.mrb[0].mxu0
        %v1116 = vadd.f32 %v844, %v1115
        %v1117 = vpop.f32.mrb[0].mxu0
        %v1118 = vadd.f32 %v848, %v1117
        %1119 = vmatprep.mubr.bf16.mxu0 0
        %1120 = vmatmul.mubr.bf16.gmra.mrb[0].mxu0 %v1060
        %v1121 = vpop.f32.mrb[0].mxu0
        %v1122 = vadd.f32 %v844, %v1121
        %v1123 = vpop.f32.mrb[0].mxu0
        %v1124 = vadd.f32 %v848, %v1123
        %v1125 = vpop.f32.mrb[0].mxu0
        %v1126 = vadd.f32 %v844, %v1125
        %v1127 = vpop.f32.mrb[0].mxu0
        %v1128 = vadd.f32 %v848, %v1127
        %1129 = vmatprep.mubr.bf16.mxu0 0
        %1130 = vmatmul.mubr.bf16.gmra.mrb[0].mxu0 %v1063
        %v1131 = vpop.f32.mrb[0].mxu0
        %v1132 = vadd.f32 %v844, %v1131
        %v1133 = vpop.f32.mrb[0].mxu0
        %v1134 = vadd.f32 %v848, %v1133
        %v1135 = vpop.f32.mrb[0].mxu0
        %v1136 = vadd.f32 %v844, %v1135
        %v1137 = vpop.f32.mrb[0].mxu0
        %v1138 = vadd.f32 %v848, %v1137
        %1139 = vmatprep.mubr.bf16.mxu0 0
        %1140 = vmatmul.mubr.bf16.gmra.mrb[0].mxu0 %v1066
        %v1141 = vpop.f32.mrb[0].mxu0
        %v1142 = vadd.f32 %v844, %v1141
        %v1143 = vpop.f32.mrb[0].mxu0
        %v1144 = vadd.f32 %v848, %v1143
        %v1145 = vpop.f32.mrb[0].mxu0
        %v1146 = vadd.f32 %v844, %v1145
        %v1147 = vpop.f32.mrb[0].mxu0
        %v1148 = vadd.f32 %v848, %v1147
        %1149 = vmatprep.mubr.bf16.mxu0 0
        %1150 = vmatmul.mubr.bf16.gmra.mrb[0].mxu0 %v1069
        %v1151 = vpop.f32.mrb[0].mxu0
        %v1152 = vadd.f32 %v844, %v1151
        %v1153 = vpop.f32.mrb[0].mxu0
        %v1154 = vadd.f32 %v848, %v1153
        %v1155 = vpop.f32.mrb[0].mxu0
        %v1156 = vadd.f32 %v844, %v1155
        %v1157 = vpop.f32.mrb[0].mxu0
        %v1158 = vadd.f32 %v848, %v1157
        %1159 = vmatprep.mubr.bf16.mxu0 0
        %1160 = vmatmul.mubr.bf16.gmra.mrb[0].mxu0 %v1072
        %v1161 = vpop.f32.mrb[0].mxu0
        %v1162 = vadd.f32 %v844, %v1161
        %v1163 = vpop.f32.mrb[0].mxu0
        %v1164 = vadd.f32 %v848, %v1163
        %v1165 = vpop.f32.mrb[0].mxu0
        %v1166 = vadd.f32 %v844, %v1165
        %v1167 = vpop.f32.mrb[0].mxu0
        %v1168 = vadd.f32 %v848, %v1167
        %1169 = vmatprep.mubr.bf16.mxu0 0
        %1170 = vmatmul.mubr.bf16.gmra.mrb[0].mxu0 %v1075
        %v1171 = vpop.f32.mrb[0].mxu0
        %v1172 = vadd.f32 %v844, %v1171
        %v1173 = vpop.f32.mrb[0].mxu0
        %v1174 = vadd.f32 %v848, %v1173
        %v1175 = vpop.f32.mrb[0].mxu0
        %v1176 = vpop.f32.mrb[0].mxu0
        %1177 = vdwg.mxu0
        %1178 = vmatprep.subr.bf16.mxu0 %v998
        %1179 = vmatpush1.bf16.msra.mxu0 %v997
        %1180 = vmatprep.subr.bf16.mxu0 %v1003
        %1181 = vmatpush1.bf16.msra.mxu0 %v1002
        %1182 = vmatprep.subr.bf16.mxu0 %v1008
        %1183 = vmatpush1.bf16.msra.mxu0 %v1007
        %1184 = vmatprep.subr.bf16.mxu0 %v1013
        %1185 = vmatpush1.bf16.msra.mxu0 %v1012
        %1186 = vmatprep.subr.bf16.mxu0 %v1018
        %1187 = vmatpush1.bf16.msra.mxu0 %v1017
        %1188 = vmatprep.subr.bf16.mxu0 %v1023
        %1189 = vmatpush1.bf16.msra.mxu0 %v1022
        %1190 = vmatprep.subr.bf16.mxu0 0
        %1191 = vmatpush1.bf16.msra.mxu0 0
        %1192 = vmatprep.subr.bf16.mxu0 0
        %1193 = vmatpush1.bf16.msra.mxu0 0
        %1194 = vmatprep.subr.bf16.mxu0 0
        %1195 = vmatpush1.bf16.msra.mxu0 0
        %1196 = vmatprep.subr.bf16.mxu0 0
        %1197 = vmatpush1.bf16.msra.mxu0 0
        %1198 = vmatprep.subr.bf16.mxu0 0
        %1199 = vmatpush1.bf16.msra.mxu0 0
        %1200 = vmatprep.subr.bf16.mxu0 0
        %1201 = vmatpush1.bf16.msra.mxu0 0
        %1202 = vmatprep.subr.bf16.mxu0 0
        %1203 = vmatpush1.bf16.msra.mxu0 0
        %1204 = vmatprep.subr.bf16.mxu0 0
        %1205 = vmatpush1.bf16.msra.mxu0 0
        %1206 = vmatprep.subr.bf16.mxu0 0
        %1207 = vmatpush1.bf16.msra.mxu0 0
        %1208 = vmatprep.subr.bf16.mxu0 0
        %1209 = vmatpush1.bf16.msra.mxu0 0
        %1210 = vmatprep.mubr.bf16.mxu0 0
        %1211 = vmatmul.mubr.bf16.gmra.mrb[0].mxu0 %v1057
        %v1212 = vpop.f32.mrb[0].mxu0
        %v1213 = vadd.f32 %v852, %v1212
        %v1214 = vpop.f32.mrb[0].mxu0
        %v1215 = vadd.f32 %v856, %v1214
        %v1216 = vpop.f32.mrb[0].mxu0
        %v1217 = vadd.f32 %v852, %v1216
        %v1218 = vpop.f32.mrb[0].mxu0
        %v1219 = vadd.f32 %v856, %v1218
        %1220 = vmatprep.mubr.bf16.mxu0 0
        %1221 = vmatmul.mubr.bf16.gmra.mrb[0].mxu0 %v1060
        %v1222 = vpop.f32.mrb[0].mxu0
        %v1223 = vadd.f32 %v852, %v1222
        %v1224 = vpop.f32.mrb[0].mxu0
        %v1225 = vadd.f32 %v856, %v1224
        %v1226 = vpop.f32.mrb[0].mxu0
        %v1227 = vadd.f32 %v852, %v1226
        %v1228 = vpop.f32.mrb[0].mxu0
        %v1229 = vadd.f32 %v856, %v1228
        %1230 = vmatprep.mubr.bf16.mxu0 0
        %1231 = vmatmul.mubr.bf16.gmra.mrb[0].mxu0 %v1063
        %v1232 = vpop.f32.mrb[0].mxu0
        %v1233 = vadd.f32 %v852, %v1232
        %v1234 = vpop.f32.mrb[0].mxu0
        %v1235 = vadd.f32 %v856, %v1234
        %v1236 = vpop.f32.mrb[0].mxu0
        %v1237 = vadd.f32 %v852, %v1236
        %v1238 = vpop.f32.mrb[0].mxu0
        %v1239 = vadd.f32 %v856, %v1238
        %1240 = vmatprep.mubr.bf16.mxu0 0
        %1241 = vmatmul.mubr.bf16.gmra.mrb[0].mxu0 %v1066
        %v1242 = vpop.f32.mrb[0].mxu0
        %v1243 = vadd.f32 %v852, %v1242
        %v1244 = vpop.f32.mrb[0].mxu0
        %v1245 = vadd.f32 %v856, %v1244
        %v1246 = vpop.f32.mrb[0].mxu0
        %v1247 = vadd.f32 %v852, %v1246
        %v1248 = vpop.f32.mrb[0].mxu0
        %v1249 = vadd.f32 %v856, %v1248
        %1250 = vmatprep.mubr.bf16.mxu0 0
        %1251 = vmatmul.mubr.bf16.gmra.mrb[0].mxu0 %v1069
        %v1252 = vpop.f32.mrb[0].mxu0
        %v1253 = vadd.f32 %v852, %v1252
        %v1254 = vpop.f32.mrb[0].mxu0
        %v1255 = vadd.f32 %v856, %v1254
        %v1256 = vpop.f32.mrb[0].mxu0
        %v1257 = vadd.f32 %v852, %v1256
        %v1258 = vpop.f32.mrb[0].mxu0
        %v1259 = vadd.f32 %v856, %v1258
        %1260 = vmatprep.mubr.bf16.mxu0 0
        %1261 = vmatmul.mubr.bf16.gmra.mrb[0].mxu0 %v1072
        %v1262 = vpop.f32.mrb[0].mxu0
        %v1263 = vadd.f32 %v852, %v1262
        %v1264 = vpop.f32.mrb[0].mxu0
        %v1265 = vadd.f32 %v856, %v1264
        %v1266 = vpop.f32.mrb[0].mxu0
        %v1267 = vadd.f32 %v852, %v1266
        %v1268 = vpop.f32.mrb[0].mxu0
        %v1269 = vadd.f32 %v856, %v1268
        %1270 = vmatprep.mubr.bf16.mxu0 0
        %1271 = vmatmul.mubr.bf16.gmra.mrb[0].mxu0 %v1075
        %v1272 = vpop.f32.mrb[0].mxu0
        %v1273 = vadd.f32 %v852, %v1272
        %v1274 = vpop.f32.mrb[0].mxu0
        %v1275 = vadd.f32 %v856, %v1274
        %v1276 = vpop.f32.mrb[0].mxu0
        %v1277 = vpop.f32.mrb[0].mxu0
        %1278 = vdwg.mxu0
        %1279 = vmatprep.subr.bf16.mxu0 0
        %1280 = vmatpush1.bf16.msra.mxu0 %v999
        %1281 = vmatprep.subr.bf16.mxu0 0
        %1282 = vmatpush1.bf16.msra.mxu0 %v1004
        %1283 = vmatprep.subr.bf16.mxu0 0
        %1284 = vmatpush1.bf16.msra.mxu0 %v1009
        %1285 = vmatprep.subr.bf16.mxu0 0
        %1286 = vmatpush1.bf16.msra.mxu0 %v1014
        %1287 = vmatprep.subr.bf16.mxu0 0
        %1288 = vmatpush1.bf16.msra.mxu0 %v1019
        %1289 = vmatprep.subr.bf16.mxu0 0
        %1290 = vmatpush1.bf16.msra.mxu0 %v1024
        %1291 = vmatprep.subr.bf16.mxu0 0
        %1292 = vmatpush1.bf16.msra.mxu0 0
        %1293 = vmatprep.subr.bf16.mxu0 0
        %1294 = vmatpush1.bf16.msra.mxu0 0
        %1295 = vmatprep.subr.bf16.mxu0 0
        %1296 = vmatpush1.bf16.msra.mxu0 0
        %1297 = vmatprep.subr.bf16.mxu0 0
        %1298 = vmatpush1.bf16.msra.mxu0 0
        %1299 = vmatprep.subr.bf16.mxu0 0
        %1300 = vmatpush1.bf16.msra.mxu0 0
        %1301 = vmatprep.subr.bf16.mxu0 0
        %1302 = vmatpush1.bf16.msra.mxu0 0
        %1303 = vmatprep.subr.bf16.mxu0 0
        %1304 = vmatpush1.bf16.msra.mxu0 0
        %1305 = vmatprep.subr.bf16.mxu0 0
        %1306 = vmatpush1.bf16.msra.mxu0 0
        %1307 = vmatprep.subr.bf16.mxu0 0
        %1308 = vmatpush1.bf16.msra.mxu0 0
        %1309 = vmatprep.subr.bf16.mxu0 0
        %1310 = vmatpush1.bf16.msra.mxu0 0
        %1311 = vmatprep.mubr.bf16.mxu0 0
        %1312 = vmatmul.mubr.bf16.gmra.mrb[0].mxu0 %v1057
        %v1313 = vpop.f32.mrb[0].mxu0
        %v1314 = vadd.f32 %v860, %v1313
        %v1315 = vpop.f32.mrb[0].mxu0
        %v1316 = vpop.f32.mrb[0].mxu0
        %v1317 = vadd.f32 %v860, %v1316
        %v1318 = vpop.f32.mrb[0].mxu0
        %1319 = vmatprep.mubr.bf16.mxu0 0
        %1320 = vmatmul.mubr.bf16.gmra.mrb[0].mxu0 %v1060
        %v1321 = vpop.f32.mrb[0].mxu0
        %v1322 = vadd.f32 %v860, %v1321
        %v1323 = vpop.f32.mrb[0].mxu0
        %v1324 = vpop.f32.mrb[0].mxu0
        %v1325 = vadd.f32 %v860, %v1324
        %v1326 = vpop.f32.mrb[0].mxu0
        %1327 = vmatprep.mubr.bf16.mxu0 0
        %1328 = vmatmul.mubr.bf16.gmra.mrb[0].mxu0 %v1063
        %v1329 = vpop.f32.mrb[0].mxu0
        %v1330 = vadd.f32 %v860, %v1329
        %v1331 = vpop.f32.mrb[0].mxu0
        %v1332 = vpop.f32.mrb[0].mxu0
        %v1333 = vadd.f32 %v860, %v1332
        %v1334 = vpop.f32.mrb[0].mxu0
        %1335 = vmatprep.mubr.bf16.mxu0 0
        %1336 = vmatmul.mubr.bf16.gmra.mrb[0].mxu0 %v1066
        %v1337 = vpop.f32.mrb[0].mxu0
        %v1338 = vadd.f32 %v860, %v1337
        %v1339 = vpop.f32.mrb[0].mxu0
        %v1340 = vpop.f32.mrb[0].mxu0
        %v1341 = vadd.f32 %v860, %v1340
        %v1342 = vpop.f32.mrb[0].mxu0
        %1343 = vmatprep.mubr.bf16.mxu0 0
        %1344 = vmatmul.mubr.bf16.gmra.mrb[0].mxu0 %v1069
        %v1345 = vpop.f32.mrb[0].mxu0
        %v1346 = vadd.f32 %v860, %v1345
        %v1347 = vpop.f32.mrb[0].mxu0
        %v1348 = vpop.f32.mrb[0].mxu0
        %v1349 = vadd.f32 %v860, %v1348
        %v1350 = vpop.f32.mrb[0].mxu0
        %1351 = vmatprep.mubr.bf16.mxu0 0
        %1352 = vmatmul.mubr.bf16.gmra.mrb[0].mxu0 %v1072
        %v1353 = vpop.f32.mrb[0].mxu0
        %v1354 = vadd.f32 %v860, %v1353
        %v1355 = vpop.f32.mrb[0].mxu0
        %v1356 = vpop.f32.mrb[0].mxu0
        %v1357 = vadd.f32 %v860, %v1356
        %v1358 = vpop.f32.mrb[0].mxu0
        %1359 = vmatprep.mubr.bf16.mxu0 0
        %1360 = vmatmul.mubr.bf16.gmra.mrb[0].mxu0 %v1075
        %v1361 = vpop.f32.mrb[0].mxu0
        %v1362 = vadd.f32 %v860, %v1361
        %v1363 = vpop.f32.mrb[0].mxu0
        %v1364 = vpop.f32.mrb[0].mxu0
        %v1365 = vpop.f32.mrb[0].mxu0
        %1366 = vdwg.mxu0
        %v1367 = vmax.f32 %v1112, 0.0
        %v1368 = vmax.f32 %v1114, 0.0
        %v1369 = vmax.f32 %v1213, 0.0
        %v1370 = vmax.f32 %v1215, 0.0
        %v1371 = vmax.f32 %v1314, 0.0
        %v1372 = vmax.f32 %v1116, 0.0
        %v1373 = vmax.f32 %v1118, 0.0
        %v1374 = vmax.f32 %v1217, 0.0
        %v1375 = vmax.f32 %v1219, 0.0
        %v1376 = vmax.f32 %v1317, 0.0
        %v1377 = vmax.f32 %v1122, 0.0
        %v1378 = vmax.f32 %v1124, 0.0
        %v1379 = vmax.f32 %v1223, 0.0
        %v1380 = vmax.f32 %v1225, 0.0
        %v1381 = vmax.f32 %v1322, 0.0
        %v1382 = vmax.f32 %v1126, 0.0
        %v1383 = vmax.f32 %v1128, 0.0
        %v1384 = vmax.f32 %v1227, 0.0
        %v1385 = vmax.f32 %v1229, 0.0
        %v1386 = vmax.f32 %v1325, 0.0
        %v1387 = vmax.f32 %v1132, 0.0
        %v1388 = vmax.f32 %v1134, 0.0
        %v1389 = vmax.f32 %v1233, 0.0
        %v1390 = vmax.f32 %v1235, 0.0
        %v1391 = vmax.f32 %v1330, 0.0
        %v1392 = vmax.f32 %v1136, 0.0
        %v1393 = vmax.f32 %v1138, 0.0
        %v1394 = vmax.f32 %v1237, 0.0
        %v1395 = vmax.f32 %v1239, 0.0
        %v1396 = vmax.f32 %v1333, 0.0
        %v1397 = vmax.f32 %v1142, 0.0
        %v1398 = vmax.f32 %v1144, 0.0
        %v1399 = vmax.f32 %v1243, 0.0
        %v1400 = vmax.f32 %v1245, 0.0
        %v1401 = vmax.f32 %v1338, 0.0
        %v1402 = vmax.f32 %v1146, 0.0
        %v1403 = vmax.f32 %v1148, 0.0
        %v1404 = vmax.f32 %v1247, 0.0
        %v1405 = vmax.f32 %v1249, 0.0
        %v1406 = vmax.f32 %v1341, 0.0
        %v1407 = vmax.f32 %v1152, 0.0
        %v1408 = vmax.f32 %v1154, 0.0
        %v1409 = vmax.f32 %v1253, 0.0
        %v1410 = vmax.f32 %v1255, 0.0
        %v1411 = vmax.f32 %v1346, 0.0
        %v1412 = vmax.f32 %v1156, 0.0
        %v1413 = vmax.f32 %v1158, 0.0
        %v1414 = vmax.f32 %v1257, 0.0
        %v1415 = vmax.f32 %v1259, 0.0
        %v1416 = vmax.f32 %v1349, 0.0
        %v1417 = vmax.f32 %v1162, 0.0
        %v1418 = vmax.f32 %v1164, 0.0
        %v1419 = vmax.f32 %v1263, 0.0
        %v1420 = vmax.f32 %v1265, 0.0
        %v1421 = vmax.f32 %v1354, 0.0
        %v1422 = vmax.f32 %v1166, 0.0
        %v1423 = vmax.f32 %v1168, 0.0
        %v1424 = vmax.f32 %v1267, 0.0
        %v1425 = vmax.f32 %v1269, 0.0
        %v1426 = vmax.f32 %v1357, 0.0
        %v1427 = vmax.f32 %v1172, 0.0
        %v1428 = vmax.f32 %v1174, 0.0
        %v1429 = vmax.f32 %v1273, 0.0
        %v1430 = vmax.f32 %v1275, 0.0
        %v1431 = vmax.f32 %v1362, 0.0
        %v1432 = vmin.f32 %v1367, 6.0
        %v1433 = vmin.f32 %v1368, 6.0
        %v1434 = vmin.f32 %v1369, 6.0
        %v1435 = vmin.f32 %v1370, 6.0
        %v1436 = vmin.f32 %v1371, 6.0
        %v1437 = vmin.f32 %v1372, 6.0
        %v1438 = vmin.f32 %v1373, 6.0
        %v1439 = vmin.f32 %v1374, 6.0
        %v1440 = vmin.f32 %v1375, 6.0
        %v1441 = vmin.f32 %v1376, 6.0
        %v1442 = vmin.f32 %v1377, 6.0
        %v1443 = vmin.f32 %v1378, 6.0
        %v1444 = vmin.f32 %v1379, 6.0
        %v1445 = vmin.f32 %v1380, 6.0
        %v1446 = vmin.f32 %v1381, 6.0
        %v1447 = vmin.f32 %v1382, 6.0
        %v1448 = vmin.f32 %v1383, 6.0
        %v1449 = vmin.f32 %v1384, 6.0
        %v1450 = vmin.f32 %v1385, 6.0
        %v1451 = vmin.f32 %v1386, 6.0
        %v1452 = vmin.f32 %v1387, 6.0
        %v1453 = vmin.f32 %v1388, 6.0
        %v1454 = vmin.f32 %v1389, 6.0
        %v1455 = vmin.f32 %v1390, 6.0
        %v1456 = vmin.f32 %v1391, 6.0
        %v1457 = vmin.f32 %v1392, 6.0
        %v1458 = vmin.f32 %v1393, 6.0
        %v1459 = vmin.f32 %v1394, 6.0
        %v1460 = vmin.f32 %v1395, 6.0
        %v1461 = vmin.f32 %v1396, 6.0
        %v1462 = vmin.f32 %v1397, 6.0
        %v1463 = vmin.f32 %v1398, 6.0
        %v1464 = vmin.f32 %v1399, 6.0
        %v1465 = vmin.f32 %v1400, 6.0
        %v1466 = vmin.f32 %v1401, 6.0
        %v1467 = vmin.f32 %v1402, 6.0
        %v1468 = vmin.f32 %v1403, 6.0
        %v1469 = vmin.f32 %v1404, 6.0
        %v1470 = vmin.f32 %v1405, 6.0
        %v1471 = vmin.f32 %v1406, 6.0
        %v1472 = vmin.f32 %v1407, 6.0
        %v1473 = vmin.f32 %v1408, 6.0
        %v1474 = vmin.f32 %v1409, 6.0
        %v1475 = vmin.f32 %v1410, 6.0
        %v1476 = vmin.f32 %v1411, 6.0
        %v1477 = vmin.f32 %v1412, 6.0
        %v1478 = vmin.f32 %v1413, 6.0
        %v1479 = vmin.f32 %v1414, 6.0
        %v1480 = vmin.f32 %v1415, 6.0
        %v1481 = vmin.f32 %v1416, 6.0
        %v1482 = vmin.f32 %v1417, 6.0
        %v1483 = vmin.f32 %v1418, 6.0
        %v1484 = vmin.f32 %v1419, 6.0
        %v1485 = vmin.f32 %v1420, 6.0
        %v1486 = vmin.f32 %v1421, 6.0
        %v1487 = vmin.f32 %v1422, 6.0
        %v1488 = vmin.f32 %v1423, 6.0
        %v1489 = vmin.f32 %v1424, 6.0
        %v1490 = vmin.f32 %v1425, 6.0
        %v1491 = vmin.f32 %v1426, 6.0
        %v1492 = vmin.f32 %v1427, 6.0
        %v1493 = vmin.f32 %v1428, 6.0
        %v1494 = vmin.f32 %v1429, 6.0
        %v1495 = vmin.f32 %v1430, 6.0
        %v1496 = vmin.f32 %v1431, 6.0
        %v1497 = vld [vmem:[%s1] sm:$0xf]
        %v1498 = vld [vmem:[%s1 + $0x4] sm:$0xf]
        %v1499 = vld [vmem:[%s1 + $0x8] sm:$0xf]
        %v1500 = vld [vmem:[%s1 + $0xc] sm:$0xf]
        %v1501 = vld [vmem:[%s1 + $0x10] sm:$0xf]
        %v1502 = vld [vmem:[%s1 + $0x14] sm:$0xf]
        %v1503 = vld [vmem:[%s1 + $0x18] sm:$0xf]
        %v1504 = vld [vmem:[%s1 + $0x1c] sm:$0xf]
        %v1505 = vld [vmem:[%s1 + $0x20] sm:$0xf]
        %v1506 = vld [vmem:[%s1 + $0x24] sm:$0xf]
        %v1507 = vld [vmem:[%s1 + $0x28] sm:$0xf]
        %v1508 = vld [vmem:[%s1 + $0x2c] sm:$0xf]
        %v1509 = vld [vmem:[%s1 + $0x30] sm:$0xf]
        %v1510 = vld [vmem:[%s1 + $0x34] sm:$0xf]
        %v1511 = vld [vmem:[%s1 + $0x38] sm:$0xf]
        %v1512 = vld [vmem:[%s1 + $0x3c] sm:$0xf]
        %v1513 = vld [vmem:[%s1 + $0x40] sm:$0xf]
        %v1514 = vld [vmem:[%s1 + $0x44] sm:$0xf]
        %v1515 = vld [vmem:[%s1 + $0x48] sm:$0xf]
        %v1516 = vld [vmem:[%s1 + $0x4c] sm:$0xf]
        %v1517 = vld [vmem:[%s1 + $0x50] sm:$0xf]
        %v1518 = vld [vmem:[%s1 + $0x54] sm:$0xf]
        %v1519 = vld [vmem:[%s1 + $0x58] sm:$0xf]
        %v1520 = vld [vmem:[%s1 + $0x5c] sm:$0xf]
        %v1521 = vld [vmem:[%s1 + $0x60] sm:$0xf]
        %v1522 = vld [vmem:[%s1 + $0x64] sm:$0xf]
        %v1523 = vld [vmem:[%s1 + $0x68] sm:$0xf]
        %v1524 = vld [vmem:[%s1 + $0x6c] sm:$0xf]
        %v1525 = vld [vmem:[%s1 + $0x70] sm:$0xf]
        %v1526 = vld [vmem:[%s1 + $0x74] sm:$0xf]
        %v1527 = vld [vmem:[%s1 + $0x78] sm:$0xf]
        %v1528 = vld [vmem:[%s1 + $0x7c] sm:$0xf]
        %v1529 = vld [vmem:[%s1 + $0x80] sm:$0xf]
        %v1530 = vld [vmem:[%s1 + $0x84] sm:$0xf]
        %v1531 = vld [vmem:[%s1 + $0x88] sm:$0xf]
        %v1532 = vld [vmem:[%s1 + $0x8c] sm:$0xf]
        %v1533 = vpack.c.bf16 %v1437, %v1432
        %v1534 = vpack.c.bf16 %v1438, %v1433
        %v1535 = vpack.c.bf16 %v1439, %v1434
        %v1536 = vpack.c.bf16 %v1440, %v1435
        %v1537 = vpack.c.bf16 %v1441, %v1436
        %v1538 = vpack.c.bf16 %v1447, %v1442
        %v1539 = vpack.c.bf16 %v1448, %v1443
        %v1540 = vpack.c.bf16 %v1449, %v1444
        %v1541 = vpack.c.bf16 %v1450, %v1445
        %v1542 = vpack.c.bf16 %v1451, %v1446
        %v1543 = vpack.c.bf16 %v1457, %v1452
        %v1544 = vpack.c.bf16 %v1458, %v1453
        %v1545 = vpack.c.bf16 %v1459, %v1454
        %v1546 = vpack.c.bf16 %v1460, %v1455
        %v1547 = vpack.c.bf16 %v1461, %v1456
        %v1548 = vpack.c.bf16 %v1467, %v1462
        %v1549 = vpack.c.bf16 %v1468, %v1463
        %v1550 = vpack.c.bf16 %v1469, %v1464
        %v1551 = vpack.c.bf16 %v1470, %v1465
        %v1552 = vpack.c.bf16 %v1471, %v1466
        %v1553 = vpack.c.bf16 %v1477, %v1472
        %v1554 = vpack.c.bf16 %v1478, %v1473
        %v1555 = vpack.c.bf16 %v1479, %v1474
        %v1556 = vpack.c.bf16 %v1480, %v1475
        %v1557 = vpack.c.bf16 %v1481, %v1476
        %v1558 = vpack.c.bf16 %v1487, %v1482
        %v1559 = vpack.c.bf16 %v1488, %v1483
        %v1560 = vpack.c.bf16 %v1489, %v1484
        %v1561 = vpack.c.bf16 %v1490, %v1485
        %v1562 = vpack.c.bf16 %v1491, %v1486
        %v1563 = vpack.c.bf16 %v1492, %v1492
        %v1564 = vpack.c.bf16 %v1493, %v1493
        %v1565 = vpack.c.bf16 %v1494, %v1494
        %v1566 = vpack.c.bf16 %v1495, %v1495
        %v1567 = vpack.c.bf16 %v1496, %v1496
        %v1604 = vunpack.c.l.b16 %v1497
        %v1605 = vunpack.c.l.b16 %v1498
        %v1606 = vunpack.c.l.b16 %v1499
        %v1607 = vunpack.c.l.b16 %v1500
        %v1608 = vunpack.c.l.b16 %v1501
        %v1609 = vunpack.c.l.b16 %v1502
        %v1610 = vunpack.c.l.b16 %v1503
        %v1611 = vunpack.c.l.b16 %v1504
        %v1612 = vunpack.c.l.b16 %v1505
        %v1613 = vunpack.c.l.b16 %v1506
        %v1614 = vunpack.c.l.b16 %v1507
        %v1615 = vunpack.c.l.b16 %v1508
        %v1616 = vunpack.c.l.b16 %v1509
        %v1617 = vunpack.c.l.b16 %v1510
        %v1618 = vunpack.c.l.b16 %v1511
        %v1619 = vunpack.c.l.b16 %v1512
        %v1620 = vunpack.c.l.b16 %v1513
        %v1621 = vunpack.c.l.b16 %v1514
        %v1622 = vunpack.c.l.b16 %v1515
        %v1623 = vunpack.c.l.b16 %v1516
        %v1624 = vunpack.c.l.b16 %v1517
        %v1625 = vunpack.c.l.b16 %v1518
        %v1626 = vunpack.c.l.b16 %v1519
        %v1627 = vunpack.c.l.b16 %v1520
        %v1628 = vunpack.c.l.b16 %v1521
        %v1629 = vunpack.c.l.b16 %v1522
        %v1630 = vunpack.c.l.b16 %v1523
        %v1631 = vunpack.c.l.b16 %v1524
        %v1632 = vunpack.c.l.b16 %v1525
        %v1633 = vunpack.c.l.b16 %v1526
        %v1634 = vunpack.c.l.b16 %v1527
        %v1635 = vunpack.c.l.b16 %v1528
        %v1636 = vunpack.c.l.b16 %v1529
        %v1637 = vunpack.c.l.b16 %v1530
        %v1638 = vunpack.c.l.b16 %v1531
        %v1639 = vunpack.c.l.b16 %v1532
        %v1640 = vpack.c.b16 %v1605, %v1604
        %v1641 = vpack.c.b16 %v1607, %v1606
        %v1642 = vpack.c.b16 %v1609, %v1608
        %v1643 = vpack.c.b16 %v1611, %v1610
        %v1644 = vpack.c.b16 %v1613, %v1612
        %v1645 = vpack.c.b16 %v1615, %v1614
        %v1646 = vpack.c.b16 %v1617, %v1616
        %v1647 = vpack.c.b16 %v1619, %v1618
        %v1648 = vpack.c.b16 %v1621, %v1620
        %v1649 = vpack.c.b16 %v1623, %v1622
        %v1650 = vpack.c.b16 %v1625, %v1624
        %v1651 = vpack.c.b16 %v1627, %v1626
        %v1652 = vpack.c.b16 %v1629, %v1628
        %v1653 = vpack.c.b16 %v1631, %v1630
        %v1654 = vpack.c.b16 %v1633, %v1632
        %v1655 = vpack.c.b16 %v1635, %v1634
        %v1656 = vpack.c.b16 %v1637, %v1636
        %v1657 = vpack.c.b16 %v1639, %v1638
        %vm1658 = vcmask 818176
        %v1660 = vsel %vm1658, %v1640, 0
        %v1663 = vsel %vm1658, %v1641, 0
        %v1666 = vsel %vm1658, %v1642, 0
        %v1669 = vsel %vm1658, %v1643, 0
        %v1672 = vsel %vm1658, %v1644, 0
        %v1675 = vsel %vm1658, %v1645, 0
        %v1678 = vsel %vm1658, %v1646, 0
        %v1681 = vsel %vm1658, %v1647, 0
        %v1684 = vsel %vm1658, %v1648, 0
        %v1687 = vsel %vm1658, %v1649, 0
        %v1690 = vsel %vm1658, %v1650, 0
        %v1693 = vsel %vm1658, %v1651, 0
        %v1696 = vsel %vm1658, %v1652, 0
        %v1699 = vsel %vm1658, %v1653, 0
        %v1702 = vsel %vm1658, %v1654, 0
        %v1705 = vsel %vm1658, %v1655, 0
        %v1708 = vsel %vm1658, %v1656, 0
        %v1711 = vsel %vm1658, %v1657, 0
        %vm1713 = vcmask 1041408
        %v1715 = vsel %vm1713, %v1563, 0
        %v1718 = vsel %vm1713, %v1564, 0
        %v1721 = vsel %vm1713, %v1565, 0
        %v1724 = vsel %vm1713, %v1566, 0
        %v1727 = vsel %vm1713, %v1567, 0
        %1729 = vmatprep.subr.bf16.mxu0 %v1534
        %1730 = vmatpush1.bf16.msra.mxu0 %v1533
        %1731 = vmatprep.subr.bf16.mxu0 %v1539
        %1732 = vmatpush1.bf16.msra.mxu0 %v1538
        %1733 = vmatprep.subr.bf16.mxu0 %v1544
        %1734 = vmatpush1.bf16.msra.mxu0 %v1543
        %1735 = vmatprep.subr.bf16.mxu0 %v1549
        %1736 = vmatpush1.bf16.msra.mxu0 %v1548
        %1737 = vmatprep.subr.bf16.mxu0 %v1554
        %1738 = vmatpush1.bf16.msra.mxu0 %v1553
        %1739 = vmatprep.subr.bf16.mxu0 %v1559
        %1740 = vmatpush1.bf16.msra.mxu0 %v1558
        %1741 = vmatprep.subr.bf16.mxu0 %v1718
        %1742 = vmatpush1.bf16.msra.mxu0 %v1715
        %1743 = vmatprep.subr.bf16.mxu0 0
        %1744 = vmatpush1.bf16.msra.mxu0 0
        %1745 = vmatprep.subr.bf16.mxu0 0
        %1746 = vmatpush1.bf16.msra.mxu0 0
        %1747 = vmatprep.subr.bf16.mxu0 0
        %1748 = vmatpush1.bf16.msra.mxu0 0
        %1749 = vmatprep.subr.bf16.mxu0 0
        %1750 = vmatpush1.bf16.msra.mxu0 0
        %1751 = vmatprep.subr.bf16.mxu0 0
        %1752 = vmatpush1.bf16.msra.mxu0 0
        %1753 = vmatprep.subr.bf16.mxu0 0
        %1754 = vmatpush1.bf16.msra.mxu0 0
        %1755 = vmatprep.subr.bf16.mxu0 0
        %1756 = vmatpush1.bf16.msra.mxu0 0
        %1757 = vmatprep.subr.bf16.mxu0 0
        %1758 = vmatpush1.bf16.msra.mxu0 0
        %1759 = vmatprep.subr.bf16.mxu0 0
        %1760 = vmatpush1.bf16.msra.mxu0 0
        %1761 = vmatprep.mubr.bf16.mxu0 0
        %1762 = vmatmul.mubr.bf16.gmra.mrb[0].mxu0 %v1660
        %v1763 = vpop.f32.mrb[0].mxu0
        %v1764 = vadd.f32 0.0, %v1763
        %v1765 = vpop.f32.mrb[0].mxu0
        %v1766 = vadd.f32 0.0, %v1765
        %v1767 = vpop.f32.mrb[0].mxu0
        %v1768 = vadd.f32 0.0, %v1767
        %v1769 = vpop.f32.mrb[0].mxu0
        %v1770 = vadd.f32 0.0, %v1769
        %1771 = vmatprep.mubr.bf16.mxu0 0
        %1772 = vmatmul.mubr.bf16.gmra.mrb[0].mxu0 %v1663
        %v1773 = vpop.f32.mrb[0].mxu0
        %v1774 = vadd.f32 0.0, %v1773
        %v1775 = vpop.f32.mrb[0].mxu0
        %v1776 = vadd.f32 0.0, %v1775
        %v1777 = vpop.f32.mrb[0].mxu0
        %v1778 = vadd.f32 0.0, %v1777
        %v1779 = vpop.f32.mrb[0].mxu0
        %v1780 = vadd.f32 0.0, %v1779
        %1781 = vmatprep.mubr.bf16.mxu0 0
        %1782 = vmatmul.mubr.bf16.gmra.mrb[0].mxu0 %v1666
        %v1783 = vpop.f32.mrb[0].mxu0
        %v1784 = vadd.f32 0.0, %v1783
        %v1785 = vpop.f32.mrb[0].mxu0
        %v1786 = vadd.f32 0.0, %v1785
        %v1787 = vpop.f32.mrb[0].mxu0
        %v1788 = vadd.f32 0.0, %v1787
        %v1789 = vpop.f32.mrb[0].mxu0
        %v1790 = vadd.f32 0.0, %v1789
        %1791 = vmatprep.mubr.bf16.mxu0 0
        %1792 = vmatmul.mubr.bf16.gmra.mrb[0].mxu0 %v1669
        %v1793 = vpop.f32.mrb[0].mxu0
        %v1794 = vadd.f32 0.0, %v1793
        %v1795 = vpop.f32.mrb[0].mxu0
        %v1796 = vadd.f32 0.0, %v1795
        %v1797 = vpop.f32.mrb[0].mxu0
        %v1798 = vadd.f32 0.0, %v1797
        %v1799 = vpop.f32.mrb[0].mxu0
        %v1800 = vadd.f32 0.0, %v1799
        %1801 = vmatprep.mubr.bf16.mxu0 0
        %1802 = vmatmul.mubr.bf16.gmra.mrb[0].mxu0 %v1672
        %v1803 = vpop.f32.mrb[0].mxu0
        %v1804 = vadd.f32 0.0, %v1803
        %v1805 = vpop.f32.mrb[0].mxu0
        %v1806 = vadd.f32 0.0, %v1805
        %v1807 = vpop.f32.mrb[0].mxu0
        %v1808 = vadd.f32 0.0, %v1807
        %v1809 = vpop.f32.mrb[0].mxu0
        %v1810 = vadd.f32 0.0, %v1809
        %1811 = vmatprep.mubr.bf16.mxu0 0
        %1812 = vmatmul.mubr.bf16.gmra.mrb[0].mxu0 %v1675
        %v1813 = vpop.f32.mrb[0].mxu0
        %v1814 = vadd.f32 0.0, %v1813
        %v1815 = vpop.f32.mrb[0].mxu0
        %v1816 = vadd.f32 0.0, %v1815
        %v1817 = vpop.f32.mrb[0].mxu0
        %v1818 = vadd.f32 0.0, %v1817
        %v1819 = vpop.f32.mrb[0].mxu0
        %v1820 = vadd.f32 0.0, %v1819
        %1821 = vmatprep.mubr.bf16.mxu0 0
        %1822 = vmatmul.mubr.bf16.gmra.mrb[0].mxu0 %v1678
        %v1823 = vpop.f32.mrb[0].mxu0
        %v1824 = vadd.f32 0.0, %v1823
        %v1825 = vpop.f32.mrb[0].mxu0
        %v1826 = vadd.f32 0.0, %v1825
        %v1827 = vpop.f32.mrb[0].mxu0
        %v1828 = vadd.f32 0.0, %v1827
        %v1829 = vpop.f32.mrb[0].mxu0
        %v1830 = vadd.f32 0.0, %v1829
        %1831 = vmatprep.mubr.bf16.mxu0 0
        %1832 = vmatmul.mubr.bf16.gmra.mrb[0].mxu0 %v1681
        %v1833 = vpop.f32.mrb[0].mxu0
        %v1834 = vadd.f32 0.0, %v1833
        %v1835 = vpop.f32.mrb[0].mxu0
        %v1836 = vadd.f32 0.0, %v1835
        %v1837 = vpop.f32.mrb[0].mxu0
        %v1838 = vadd.f32 0.0, %v1837
        %v1839 = vpop.f32.mrb[0].mxu0
        %v1840 = vadd.f32 0.0, %v1839
        %1841 = vmatprep.mubr.bf16.mxu0 0
        %1842 = vmatmul.mubr.bf16.gmra.mrb[0].mxu0 %v1684
        %v1843 = vpop.f32.mrb[0].mxu0
        %v1844 = vadd.f32 0.0, %v1843
        %v1845 = vpop.f32.mrb[0].mxu0
        %v1846 = vadd.f32 0.0, %v1845
        %v1847 = vpop.f32.mrb[0].mxu0
        %v1848 = vadd.f32 0.0, %v1847
        %v1849 = vpop.f32.mrb[0].mxu0
        %v1850 = vadd.f32 0.0, %v1849
        %1851 = vmatprep.mubr.bf16.mxu0 0
        %1852 = vmatmul.mubr.bf16.gmra.mrb[0].mxu0 %v1687
        %v1853 = vpop.f32.mrb[0].mxu0
        %v1854 = vadd.f32 0.0, %v1853
        %v1855 = vpop.f32.mrb[0].mxu0
        %v1856 = vadd.f32 0.0, %v1855
        %v1857 = vpop.f32.mrb[0].mxu0
        %v1858 = vadd.f32 0.0, %v1857
        %v1859 = vpop.f32.mrb[0].mxu0
        %v1860 = vadd.f32 0.0, %v1859
        %1861 = vmatprep.mubr.bf16.mxu0 0
        %1862 = vmatmul.mubr.bf16.gmra.mrb[0].mxu0 %v1690
        %v1863 = vpop.f32.mrb[0].mxu0
        %v1864 = vadd.f32 0.0, %v1863
        %v1865 = vpop.f32.mrb[0].mxu0
        %v1866 = vadd.f32 0.0, %v1865
        %v1867 = vpop.f32.mrb[0].mxu0
        %v1868 = vadd.f32 0.0, %v1867
        %v1869 = vpop.f32.mrb[0].mxu0
        %v1870 = vadd.f32 0.0, %v1869
        %1871 = vmatprep.mubr.bf16.mxu0 0
        %1872 = vmatmul.mubr.bf16.gmra.mrb[0].mxu0 %v1693
        %v1873 = vpop.f32.mrb[0].mxu0
        %v1874 = vadd.f32 0.0, %v1873
        %v1875 = vpop.f32.mrb[0].mxu0
        %v1876 = vadd.f32 0.0, %v1875
        %v1877 = vpop.f32.mrb[0].mxu0
        %v1878 = vadd.f32 0.0, %v1877
        %v1879 = vpop.f32.mrb[0].mxu0
        %v1880 = vadd.f32 0.0, %v1879
        %1881 = vmatprep.mubr.bf16.mxu0 0
        %1882 = vmatmul.mubr.bf16.gmra.mrb[0].mxu0 %v1696
        %v1883 = vpop.f32.mrb[0].mxu0
        %v1884 = vadd.f32 0.0, %v1883
        %v1885 = vpop.f32.mrb[0].mxu0
        %v1886 = vadd.f32 0.0, %v1885
        %v1887 = vpop.f32.mrb[0].mxu0
        %v1888 = vadd.f32 0.0, %v1887
        %v1889 = vpop.f32.mrb[0].mxu0
        %v1890 = vadd.f32 0.0, %v1889
        %1891 = vmatprep.mubr.bf16.mxu0 0
        %1892 = vmatmul.mubr.bf16.gmra.mrb[0].mxu0 %v1699
        %v1893 = vpop.f32.mrb[0].mxu0
        %v1894 = vadd.f32 0.0, %v1893
        %v1895 = vpop.f32.mrb[0].mxu0
        %v1896 = vadd.f32 0.0, %v1895
        %v1897 = vpop.f32.mrb[0].mxu0
        %v1898 = vadd.f32 0.0, %v1897
        %v1899 = vpop.f32.mrb[0].mxu0
        %v1900 = vadd.f32 0.0, %v1899
        %1901 = vmatprep.mubr.bf16.mxu0 0
        %1902 = vmatmul.mubr.bf16.gmra.mrb[0].mxu0 %v1702
        %v1903 = vpop.f32.mrb[0].mxu0
        %v1904 = vadd.f32 0.0, %v1903
        %v1905 = vpop.f32.mrb[0].mxu0
        %v1906 = vadd.f32 0.0, %v1905
        %v1907 = vpop.f32.mrb[0].mxu0
        %v1908 = vadd.f32 0.0, %v1907
        %v1909 = vpop.f32.mrb[0].mxu0
        %v1910 = vadd.f32 0.0, %v1909
        %1911 = vmatprep.mubr.bf16.mxu0 0
        %1912 = vmatmul.mubr.bf16.gmra.mrb[0].mxu0 %v1705
        %v1913 = vpop.f32.mrb[0].mxu0
        %v1914 = vadd.f32 0.0, %v1913
        %v1915 = vpop.f32.mrb[0].mxu0
        %v1916 = vadd.f32 0.0, %v1915
        %v1917 = vpop.f32.mrb[0].mxu0
        %v1918 = vadd.f32 0.0, %v1917
        %v1919 = vpop.f32.mrb[0].mxu0
        %v1920 = vadd.f32 0.0, %v1919
        %1921 = vmatprep.mubr.bf16.mxu0 0
        %1922 = vmatmul.mubr.bf16.gmra.mrb[0].mxu0 %v1708
        %v1923 = vpop.f32.mrb[0].mxu0
        %v1924 = vadd.f32 0.0, %v1923
        %v1925 = vpop.f32.mrb[0].mxu0
        %v1926 = vadd.f32 0.0, %v1925
        %v1927 = vpop.f32.mrb[0].mxu0
        %v1928 = vadd.f32 0.0, %v1927
        %v1929 = vpop.f32.mrb[0].mxu0
        %v1930 = vadd.f32 0.0, %v1929
        %1931 = vmatprep.mubr.bf16.mxu0 0
        %1932 = vmatmul.mubr.bf16.gmra.mrb[0].mxu0 %v1711
        %v1933 = vpop.f32.mrb[0].mxu0
        %v1934 = vadd.f32 0.0, %v1933
        %v1935 = vpop.f32.mrb[0].mxu0
        %v1936 = vadd.f32 0.0, %v1935
        %v1937 = vpop.f32.mrb[0].mxu0
        %v1938 = vadd.f32 0.0, %v1937
        %v1939 = vpop.f32.mrb[0].mxu0
        %v1940 = vadd.f32 0.0, %v1939
        %1941 = vdwg.mxu0
        %1942 = vmatprep.subr.bf16.mxu0 %v1536
        %1943 = vmatpush1.bf16.msra.mxu0 %v1535
        %1944 = vmatprep.subr.bf16.mxu0 %v1541
        %1945 = vmatpush1.bf16.msra.mxu0 %v1540
        %1946 = vmatprep.subr.bf16.mxu0 %v1546
        %1947 = vmatpush1.bf16.msra.mxu0 %v1545
        %1948 = vmatprep.subr.bf16.mxu0 %v1551
        %1949 = vmatpush1.bf16.msra.mxu0 %v1550
        %1950 = vmatprep.subr.bf16.mxu0 %v1556
        %1951 = vmatpush1.bf16.msra.mxu0 %v1555
        %1952 = vmatprep.subr.bf16.mxu0 %v1561
        %1953 = vmatpush1.bf16.msra.mxu0 %v1560
        %1954 = vmatprep.subr.bf16.mxu0 %v1724
        %1955 = vmatpush1.bf16.msra.mxu0 %v1721
        %1956 = vmatprep.subr.bf16.mxu0 0
        %1957 = vmatpush1.bf16.msra.mxu0 0
        %1958 = vmatprep.subr.bf16.mxu0 0
        %1959 = vmatpush1.bf16.msra.mxu0 0
        %1960 = vmatprep.subr.bf16.mxu0 0
        %1961 = vmatpush1.bf16.msra.mxu0 0
        %1962 = vmatprep.subr.bf16.mxu0 0
        %1963 = vmatpush1.bf16.msra.mxu0 0
        %1964 = vmatprep.subr.bf16.mxu0 0
        %1965 = vmatpush1.bf16.msra.mxu0 0
        %1966 = vmatprep.subr.bf16.mxu0 0
        %1967 = vmatpush1.bf16.msra.mxu0 0
        %1968 = vmatprep.subr.bf16.mxu0 0
        %1969 = vmatpush1.bf16.msra.mxu0 0
        %1970 = vmatprep.subr.bf16.mxu0 0
        %1971 = vmatpush1.bf16.msra.mxu0 0
        %1972 = vmatprep.subr.bf16.mxu0 0
        %1973 = vmatpush1.bf16.msra.mxu0 0
        %1974 = vmatprep.mubr.bf16.mxu0 0
        %1975 = vmatmul.mubr.bf16.gmra.mrb[0].mxu0 %v1660
        %v1976 = vpop.f32.mrb[0].mxu0
        %v1977 = vadd.f32 0.0, %v1976
        %v1978 = vpop.f32.mrb[0].mxu0
        %v1979 = vadd.f32 0.0, %v1978
        %v1980 = vpop.f32.mrb[0].mxu0
        %v1981 = vadd.f32 0.0, %v1980
        %v1982 = vpop.f32.mrb[0].mxu0
        %v1983 = vadd.f32 0.0, %v1982
        %1984 = vmatprep.mubr.bf16.mxu0 0
        %1985 = vmatmul.mubr.bf16.gmra.mrb[0].mxu0 %v1663
        %v1986 = vpop.f32.mrb[0].mxu0
        %v1987 = vadd.f32 0.0, %v1986
        %v1988 = vpop.f32.mrb[0].mxu0
        %v1989 = vadd.f32 0.0, %v1988
        %v1990 = vpop.f32.mrb[0].mxu0
        %v1991 = vadd.f32 0.0, %v1990
        %v1992 = vpop.f32.mrb[0].mxu0
        %v1993 = vadd.f32 0.0, %v1992
        %1994 = vmatprep.mubr.bf16.mxu0 0
        %1995 = vmatmul.mubr.bf16.gmra.mrb[0].mxu0 %v1666
        %v1996 = vpop.f32.mrb[0].mxu0
        %v1997 = vadd.f32 0.0, %v1996
        %v1998 = vpop.f32.mrb[0].mxu0
        %v1999 = vadd.f32 0.0, %v1998
        %v2000 = vpop.f32.mrb[0].mxu0
        %v2001 = vadd.f32 0.0, %v2000
        %v2002 = vpop.f32.mrb[0].mxu0
        %v2003 = vadd.f32 0.0, %v2002
        %2004 = vmatprep.mubr.bf16.mxu0 0
        %2005 = vmatmul.mubr.bf16.gmra.mrb[0].mxu0 %v1669
        %v2006 = vpop.f32.mrb[0].mxu0
        %v2007 = vadd.f32 0.0, %v2006
        %v2008 = vpop.f32.mrb[0].mxu0
        %v2009 = vadd.f32 0.0, %v2008
        %v2010 = vpop.f32.mrb[0].mxu0
        %v2011 = vadd.f32 0.0, %v2010
        %v2012 = vpop.f32.mrb[0].mxu0
        %v2013 = vadd.f32 0.0, %v2012
        %2014 = vmatprep.mubr.bf16.mxu0 0
        %2015 = vmatmul.mubr.bf16.gmra.mrb[0].mxu0 %v1672
        %v2016 = vpop.f32.mrb[0].mxu0
        %v2017 = vadd.f32 0.0, %v2016
        %v2018 = vpop.f32.mrb[0].mxu0
        %v2019 = vadd.f32 0.0, %v2018
        %v2020 = vpop.f32.mrb[0].mxu0
        %v2021 = vadd.f32 0.0, %v2020
        %v2022 = vpop.f32.mrb[0].mxu0
        %v2023 = vadd.f32 0.0, %v2022
        %2024 = vmatprep.mubr.bf16.mxu0 0
        %2025 = vmatmul.mubr.bf16.gmra.mrb[0].mxu0 %v1675
        %v2026 = vpop.f32.mrb[0].mxu0
        %v2027 = vadd.f32 0.0, %v2026
        %v2028 = vpop.f32.mrb[0].mxu0
        %v2029 = vadd.f32 0.0, %v2028
        %v2030 = vpop.f32.mrb[0].mxu0
        %v2031 = vadd.f32 0.0, %v2030
        %v2032 = vpop.f32.mrb[0].mxu0
        %v2033 = vadd.f32 0.0, %v2032
        %2034 = vmatprep.mubr.bf16.mxu0 0
        %2035 = vmatmul.mubr.bf16.gmra.mrb[0].mxu0 %v1678
        %v2036 = vpop.f32.mrb[0].mxu0
        %v2037 = vadd.f32 0.0, %v2036
        %v2038 = vpop.f32.mrb[0].mxu0
        %v2039 = vadd.f32 0.0, %v2038
        %v2040 = vpop.f32.mrb[0].mxu0
        %v2041 = vadd.f32 0.0, %v2040
        %v2042 = vpop.f32.mrb[0].mxu0
        %v2043 = vadd.f32 0.0, %v2042
        %2044 = vmatprep.mubr.bf16.mxu0 0
        %2045 = vmatmul.mubr.bf16.gmra.mrb[0].mxu0 %v1681
        %v2046 = vpop.f32.mrb[0].mxu0
        %v2047 = vadd.f32 0.0, %v2046
        %v2048 = vpop.f32.mrb[0].mxu0
        %v2049 = vadd.f32 0.0, %v2048
        %v2050 = vpop.f32.mrb[0].mxu0
        %v2051 = vadd.f32 0.0, %v2050
        %v2052 = vpop.f32.mrb[0].mxu0
        %v2053 = vadd.f32 0.0, %v2052
        %2054 = vmatprep.mubr.bf16.mxu0 0
        %2055 = vmatmul.mubr.bf16.gmra.mrb[0].mxu0 %v1684
        %v2056 = vpop.f32.mrb[0].mxu0
        %v2057 = vadd.f32 0.0, %v2056
        %v2058 = vpop.f32.mrb[0].mxu0
        %v2059 = vadd.f32 0.0, %v2058
        %v2060 = vpop.f32.mrb[0].mxu0
        %v2061 = vadd.f32 0.0, %v2060
        %v2062 = vpop.f32.mrb[0].mxu0
        %v2063 = vadd.f32 0.0, %v2062
        %2064 = vmatprep.mubr.bf16.mxu0 0
        %2065 = vmatmul.mubr.bf16.gmra.mrb[0].mxu0 %v1687
        %v2066 = vpop.f32.mrb[0].mxu0
        %v2067 = vadd.f32 0.0, %v2066
        %v2068 = vpop.f32.mrb[0].mxu0
        %v2069 = vadd.f32 0.0, %v2068
        %v2070 = vpop.f32.mrb[0].mxu0
        %v2071 = vadd.f32 0.0, %v2070
        %v2072 = vpop.f32.mrb[0].mxu0
        %v2073 = vadd.f32 0.0, %v2072
        %2074 = vmatprep.mubr.bf16.mxu0 0
        %2075 = vmatmul.mubr.bf16.gmra.mrb[0].mxu0 %v1690
        %v2076 = vpop.f32.mrb[0].mxu0
        %v2077 = vadd.f32 0.0, %v2076
        %v2078 = vpop.f32.mrb[0].mxu0
        %v2079 = vadd.f32 0.0, %v2078
        %v2080 = vpop.f32.mrb[0].mxu0
        %v2081 = vadd.f32 0.0, %v2080
        %v2082 = vpop.f32.mrb[0].mxu0
        %v2083 = vadd.f32 0.0, %v2082
        %2084 = vmatprep.mubr.bf16.mxu0 0
        %2085 = vmatmul.mubr.bf16.gmra.mrb[0].mxu0 %v1693
        %v2086 = vpop.f32.mrb[0].mxu0
        %v2087 = vadd.f32 0.0, %v2086
        %v2088 = vpop.f32.mrb[0].mxu0
        %v2089 = vadd.f32 0.0, %v2088
        %v2090 = vpop.f32.mrb[0].mxu0
        %v2091 = vadd.f32 0.0, %v2090
        %v2092 = vpop.f32.mrb[0].mxu0
        %v2093 = vadd.f32 0.0, %v2092
        %2094 = vmatprep.mubr.bf16.mxu0 0
        %2095 = vmatmul.mubr.bf16.gmra.mrb[0].mxu0 %v1696
        %v2096 = vpop.f32.mrb[0].mxu0
        %v2097 = vadd.f32 0.0, %v2096
        %v2098 = vpop.f32.mrb[0].mxu0
        %v2099 = vadd.f32 0.0, %v2098
        %v2100 = vpop.f32.mrb[0].mxu0
        %v2101 = vadd.f32 0.0, %v2100
        %v2102 = vpop.f32.mrb[0].mxu0
        %v2103 = vadd.f32 0.0, %v2102
        %2104 = vmatprep.mubr.bf16.mxu0 0
        %2105 = vmatmul.mubr.bf16.gmra.mrb[0].mxu0 %v1699
        %v2106 = vpop.f32.mrb[0].mxu0
        %v2107 = vadd.f32 0.0, %v2106
        %v2108 = vpop.f32.mrb[0].mxu0
        %v2109 = vadd.f32 0.0, %v2108
        %v2110 = vpop.f32.mrb[0].mxu0
        %v2111 = vadd.f32 0.0, %v2110
        %v2112 = vpop.f32.mrb[0].mxu0
        %v2113 = vadd.f32 0.0, %v2112
        %2114 = vmatprep.mubr.bf16.mxu0 0
        %2115 = vmatmul.mubr.bf16.gmra.mrb[0].mxu0 %v1702
        %v2116 = vpop.f32.mrb[0].mxu0
        %v2117 = vadd.f32 0.0, %v2116
        %v2118 = vpop.f32.mrb[0].mxu0
        %v2119 = vadd.f32 0.0, %v2118
        %v2120 = vpop.f32.mrb[0].mxu0
        %v2121 = vadd.f32 0.0, %v2120
        %v2122 = vpop.f32.mrb[0].mxu0
        %v2123 = vadd.f32 0.0, %v2122
        %2124 = vmatprep.mubr.bf16.mxu0 0
        %2125 = vmatmul.mubr.bf16.gmra.mrb[0].mxu0 %v1705
        %v2126 = vpop.f32.mrb[0].mxu0
        %v2127 = vadd.f32 0.0, %v2126
        %v2128 = vpop.f32.mrb[0].mxu0
        %v2129 = vadd.f32 0.0, %v2128
        %v2130 = vpop.f32.mrb[0].mxu0
        %v2131 = vadd.f32 0.0, %v2130
        %v2132 = vpop.f32.mrb[0].mxu0
        %v2133 = vadd.f32 0.0, %v2132
        %2134 = vmatprep.mubr.bf16.mxu0 0
        %2135 = vmatmul.mubr.bf16.gmra.mrb[0].mxu0 %v1708
        %v2136 = vpop.f32.mrb[0].mxu0
        %v2137 = vadd.f32 0.0, %v2136
        %v2138 = vpop.f32.mrb[0].mxu0
        %v2139 = vadd.f32 0.0, %v2138
        %v2140 = vpop.f32.mrb[0].mxu0
        %v2141 = vadd.f32 0.0, %v2140
        %v2142 = vpop.f32.mrb[0].mxu0
        %v2143 = vadd.f32 0.0, %v2142
        %2144 = vmatprep.mubr.bf16.mxu0 0
        %2145 = vmatmul.mubr.bf16.gmra.mrb[0].mxu0 %v1711
        %v2146 = vpop.f32.mrb[0].mxu0
        %v2147 = vadd.f32 0.0, %v2146
        %v2148 = vpop.f32.mrb[0].mxu0
        %v2149 = vadd.f32 0.0, %v2148
        %v2150 = vpop.f32.mrb[0].mxu0
        %v2151 = vadd.f32 0.0, %v2150
        %v2152 = vpop.f32.mrb[0].mxu0
        %v2153 = vadd.f32 0.0, %v2152
        %2154 = vdwg.mxu0
        %2155 = vmatprep.subr.bf16.mxu0 0
        %2156 = vmatpush1.bf16.msra.mxu0 %v1537
        %2157 = vmatprep.subr.bf16.mxu0 0
        %2158 = vmatpush1.bf16.msra.mxu0 %v1542
        %2159 = vmatprep.subr.bf16.mxu0 0
        %2160 = vmatpush1.bf16.msra.mxu0 %v1547
        %2161 = vmatprep.subr.bf16.mxu0 0
        %2162 = vmatpush1.bf16.msra.mxu0 %v1552
        %2163 = vmatprep.subr.bf16.mxu0 0
        %2164 = vmatpush1.bf16.msra.mxu0 %v1557
        %2165 = vmatprep.subr.bf16.mxu0 0
        %2166 = vmatpush1.bf16.msra.mxu0 %v1562
        %2167 = vmatprep.subr.bf16.mxu0 0
        %2168 = vmatpush1.bf16.msra.mxu0 %v1727
        %2169 = vmatprep.subr.bf16.mxu0 0
        %2170 = vmatpush1.bf16.msra.mxu0 0
        %2171 = vmatprep.subr.bf16.mxu0 0
        %2172 = vmatpush1.bf16.msra.mxu0 0
        %2173 = vmatprep.subr.bf16.mxu0 0
        %2174 = vmatpush1.bf16.msra.mxu0 0
        %2175 = vmatprep.subr.bf16.mxu0 0
        %2176 = vmatpush1.bf16.msra.mxu0 0
        %2177 = vmatprep.subr.bf16.mxu0 0
        %2178 = vmatpush1.bf16.msra.mxu0 0
        %2179 = vmatprep.subr.bf16.mxu0 0
        %2180 = vmatpush1.bf16.msra.mxu0 0
        %2181 = vmatprep.subr.bf16.mxu0 0
        %2182 = vmatpush1.bf16.msra.mxu0 0
        %2183 = vmatprep.subr.bf16.mxu0 0
        %2184 = vmatpush1.bf16.msra.mxu0 0
        %2185 = vmatprep.subr.bf16.mxu0 0
        %2186 = vmatpush1.bf16.msra.mxu0 0
        %2187 = vmatprep.mubr.bf16.mxu0 0
        %2188 = vmatmul.mubr.bf16.gmra.mrb[0].mxu0 %v1660
        %v2189 = vpop.f32.mrb[0].mxu0
        %v2190 = vadd.f32 0.0, %v2189
        %v2191 = vpop.f32.mrb[0].mxu0
        %v2192 = vpop.f32.mrb[0].mxu0
        %v2193 = vadd.f32 0.0, %v2192
        %v2194 = vpop.f32.mrb[0].mxu0
        %2195 = vmatprep.mubr.bf16.mxu0 0
        %2196 = vmatmul.mubr.bf16.gmra.mrb[0].mxu0 %v1663
        %v2197 = vpop.f32.mrb[0].mxu0
        %v2198 = vadd.f32 0.0, %v2197
        %v2199 = vpop.f32.mrb[0].mxu0
        %v2200 = vpop.f32.mrb[0].mxu0
        %v2201 = vadd.f32 0.0, %v2200
        %v2202 = vpop.f32.mrb[0].mxu0
        %2203 = vmatprep.mubr.bf16.mxu0 0
        %2204 = vmatmul.mubr.bf16.gmra.mrb[0].mxu0 %v1666
        %v2205 = vpop.f32.mrb[0].mxu0
        %v2206 = vadd.f32 0.0, %v2205
        %v2207 = vpop.f32.mrb[0].mxu0
        %v2208 = vpop.f32.mrb[0].mxu0
        %v2209 = vadd.f32 0.0, %v2208
        %v2210 = vpop.f32.mrb[0].mxu0
        %2211 = vmatprep.mubr.bf16.mxu0 0
        %2212 = vmatmul.mubr.bf16.gmra.mrb[0].mxu0 %v1669
        %v2213 = vpop.f32.mrb[0].mxu0
        %v2214 = vadd.f32 0.0, %v2213
        %v2215 = vpop.f32.mrb[0].mxu0
        %v2216 = vpop.f32.mrb[0].mxu0
        %v2217 = vadd.f32 0.0, %v2216
        %v2218 = vpop.f32.mrb[0].mxu0
        %2219 = vmatprep.mubr.bf16.mxu0 0
        %2220 = vmatmul.mubr.bf16.gmra.mrb[0].mxu0 %v1672
        %v2221 = vpop.f32.mrb[0].mxu0
        %v2222 = vadd.f32 0.0, %v2221
        %v2223 = vpop.f32.mrb[0].mxu0
        %v2224 = vpop.f32.mrb[0].mxu0
        %v2225 = vadd.f32 0.0, %v2224
        %v2226 = vpop.f32.mrb[0].mxu0
        %2227 = vmatprep.mubr.bf16.mxu0 0
        %2228 = vmatmul.mubr.bf16.gmra.mrb[0].mxu0 %v1675
        %v2229 = vpop.f32.mrb[0].mxu0
        %v2230 = vadd.f32 0.0, %v2229
        %v2231 = vpop.f32.mrb[0].mxu0
        %v2232 = vpop.f32.mrb[0].mxu0
        %v2233 = vadd.f32 0.0, %v2232
        %v2234 = vpop.f32.mrb[0].mxu0
        %2235 = vmatprep.mubr.bf16.mxu0 0
        %2236 = vmatmul.mubr.bf16.gmra.mrb[0].mxu0 %v1678
        %v2237 = vpop.f32.mrb[0].mxu0
        %v2238 = vadd.f32 0.0, %v2237
        %v2239 = vpop.f32.mrb[0].mxu0
        %v2240 = vpop.f32.mrb[0].mxu0
        %v2241 = vadd.f32 0.0, %v2240
        %v2242 = vpop.f32.mrb[0].mxu0
        %2243 = vmatprep.mubr.bf16.mxu0 0
        %2244 = vmatmul.mubr.bf16.gmra.mrb[0].mxu0 %v1681
        %v2245 = vpop.f32.mrb[0].mxu0
        %v2246 = vadd.f32 0.0, %v2245
        %v2247 = vpop.f32.mrb[0].mxu0
        %v2248 = vpop.f32.mrb[0].mxu0
        %v2249 = vadd.f32 0.0, %v2248
        %v2250 = vpop.f32.mrb[0].mxu0
        %2251 = vmatprep.mubr.bf16.mxu0 0
        %2252 = vmatmul.mubr.bf16.gmra.mrb[0].mxu0 %v1684
        %v2253 = vpop.f32.mrb[0].mxu0
        %v2254 = vadd.f32 0.0, %v2253
        %v2255 = vpop.f32.mrb[0].mxu0
        %v2256 = vpop.f32.mrb[0].mxu0
        %v2257 = vadd.f32 0.0, %v2256
        %v2258 = vpop.f32.mrb[0].mxu0
        %2259 = vmatprep.mubr.bf16.mxu0 0
        %2260 = vmatmul.mubr.bf16.gmra.mrb[0].mxu0 %v1687
        %v2261 = vpop.f32.mrb[0].mxu0
        %v2262 = vadd.f32 0.0, %v2261
        %v2263 = vpop.f32.mrb[0].mxu0
        %v2264 = vpop.f32.mrb[0].mxu0
        %v2265 = vadd.f32 0.0, %v2264
        %v2266 = vpop.f32.mrb[0].mxu0
        %2267 = vmatprep.mubr.bf16.mxu0 0
        %2268 = vmatmul.mubr.bf16.gmra.mrb[0].mxu0 %v1690
        %v2269 = vpop.f32.mrb[0].mxu0
        %v2270 = vadd.f32 0.0, %v2269
        %v2271 = vpop.f32.mrb[0].mxu0
        %v2272 = vpop.f32.mrb[0].mxu0
        %v2273 = vadd.f32 0.0, %v2272
        %v2274 = vpop.f32.mrb[0].mxu0
        %2275 = vmatprep.mubr.bf16.mxu0 0
        %2276 = vmatmul.mubr.bf16.gmra.mrb[0].mxu0 %v1693
        %v2277 = vpop.f32.mrb[0].mxu0
        %v2278 = vadd.f32 0.0, %v2277
        %v2279 = vpop.f32.mrb[0].mxu0
        %v2280 = vpop.f32.mrb[0].mxu0
        %v2281 = vadd.f32 0.0, %v2280
        %v2282 = vpop.f32.mrb[0].mxu0
        %2283 = vmatprep.mubr.bf16.mxu0 0
        %2284 = vmatmul.mubr.bf16.gmra.mrb[0].mxu0 %v1696
        %v2285 = vpop.f32.mrb[0].mxu0
        %v2286 = vadd.f32 0.0, %v2285
        %v2287 = vpop.f32.mrb[0].mxu0
        %v2288 = vpop.f32.mrb[0].mxu0
        %v2289 = vadd.f32 0.0, %v2288
        %v2290 = vpop.f32.mrb[0].mxu0
        %2291 = vmatprep.mubr.bf16.mxu0 0
        %2292 = vmatmul.mubr.bf16.gmra.mrb[0].mxu0 %v1699
        %v2293 = vpop.f32.mrb[0].mxu0
        %v2294 = vadd.f32 0.0, %v2293
        %v2295 = vpop.f32.mrb[0].mxu0
        %v2296 = vpop.f32.mrb[0].mxu0
        %v2297 = vadd.f32 0.0, %v2296
        %v2298 = vpop.f32.mrb[0].mxu0
        %2299 = vmatprep.mubr.bf16.mxu0 0
        %2300 = vmatmul.mubr.bf16.gmra.mrb[0].mxu0 %v1702
        %v2301 = vpop.f32.mrb[0].mxu0
        %v2302 = vadd.f32 0.0, %v2301
        %v2303 = vpop.f32.mrb[0].mxu0
        %v2304 = vpop.f32.mrb[0].mxu0
        %v2305 = vadd.f32 0.0, %v2304
        %v2306 = vpop.f32.mrb[0].mxu0
        %2307 = vmatprep.mubr.bf16.mxu0 0
        %2308 = vmatmul.mubr.bf16.gmra.mrb[0].mxu0 %v1705
        %v2309 = vpop.f32.mrb[0].mxu0
        %v2310 = vadd.f32 0.0, %v2309
        %v2311 = vpop.f32.mrb[0].mxu0
        %v2312 = vpop.f32.mrb[0].mxu0
        %v2313 = vadd.f32 0.0, %v2312
        %v2314 = vpop.f32.mrb[0].mxu0
        %2315 = vmatprep.mubr.bf16.mxu0 0
        %2316 = vmatmul.mubr.bf16.gmra.mrb[0].mxu0 %v1708
        %v2317 = vpop.f32.mrb[0].mxu0
        %v2318 = vadd.f32 0.0, %v2317
        %v2319 = vpop.f32.mrb[0].mxu0
        %v2320 = vpop.f32.mrb[0].mxu0
        %v2321 = vadd.f32 0.0, %v2320
        %v2322 = vpop.f32.mrb[0].mxu0
        %2323 = vmatprep.mubr.bf16.mxu0 0
        %2324 = vmatmul.mubr.bf16.gmra.mrb[0].mxu0 %v1711
        %v2325 = vpop.f32.mrb[0].mxu0
        %v2326 = vadd.f32 0.0, %v2325
        %v2327 = vpop.f32.mrb[0].mxu0
        %v2328 = vpop.f32.mrb[0].mxu0
        %v2329 = vadd.f32 0.0, %v2328
        %v2330 = vpop.f32.mrb[0].mxu0
        %2331 = vdwg.mxu0
        %v2332 = vld [vmem:[%s6] sm:$0xff]
        %v2333 = vld [vmem:[%s6 + $0x8] sm:$0xff]
        %v2334 = vld [vmem:[%s6 + $0x10] sm:$0xff]
        %v2335 = vld [vmem:[%s6 + $0x18] sm:$0xff]
        %v2336 = vld [vmem:[%s6 + $0x20] sm:$0xff]
        %v2337 = vld [vmem:[%s6 + $0x28] sm:$0x1]
        %v2338 = vld [vmem:[%s6 + $0x30] sm:$0x1]
        %v2339 = vld [vmem:[%s6 + $0x38] sm:$0x1]
        %v2340 = vld [vmem:[%s6 + $0x40] sm:$0x1]
        %v2341 = vld [vmem:[%s6 + $0x48] sm:$0x1]
        %v2342 = vlaneseq
        %v2343 = vshrl.u32 %v2342, 7
        %v2344 = vsub.s32 0, %v2343
        %v2345 = vrot.slane %v2332, %v2344
        %v2346 = vlaneseq
        %v2347 = vshrl.u32 %v2346, 7
        %v2348 = vsub.s32 0, %v2347
        %v2349 = vrot.slane %v2333, %v2348
        %v2350 = vlaneseq
        %v2351 = vshrl.u32 %v2350, 7
        %v2352 = vsub.s32 0, %v2351
        %v2353 = vrot.slane %v2334, %v2352
        %v2354 = vlaneseq
        %v2355 = vshrl.u32 %v2354, 7
        %v2356 = vsub.s32 0, %v2355
        %v2357 = vrot.slane %v2335, %v2356
        %v2358 = vlaneseq
        %v2359 = vshrl.u32 %v2358, 7
        %v2360 = vsub.s32 0, %v2359
        %v2361 = vrot.slane %v2336, %v2360
        %v2362 = vmul.f32 %v1764, %v2345
        %v2363 = vmul.f32 %v1766, %v2349
        %v2364 = vmul.f32 %v1977, %v2353
        %v2365 = vmul.f32 %v1979, %v2357
        %v2366 = vmul.f32 %v2190, %v2361
        %v2367 = vmul.f32 %v1768, %v2345
        %v2368 = vmul.f32 %v1770, %v2349
        %v2369 = vmul.f32 %v1981, %v2353
        %v2370 = vmul.f32 %v1983, %v2357
        %v2371 = vmul.f32 %v2193, %v2361
        %v2372 = vmul.f32 %v1774, %v2345
        %v2373 = vmul.f32 %v1776, %v2349
        %v2374 = vmul.f32 %v1987, %v2353
        %v2375 = vmul.f32 %v1989, %v2357
        %v2376 = vmul.f32 %v2198, %v2361
        %v2377 = vmul.f32 %v1778, %v2345
        %v2378 = vmul.f32 %v1780, %v2349
        %v2379 = vmul.f32 %v1991, %v2353
        %v2380 = vmul.f32 %v1993, %v2357
        %v2381 = vmul.f32 %v2201, %v2361
        %v2382 = vlaneseq
        %v2383 = vshrl.u32 %v2382, 7
        %v2384 = vsub.s32 1, %v2383
        %v2385 = vrot.slane %v2332, %v2384
        %v2386 = vlaneseq
        %v2387 = vshrl.u32 %v2386, 7
        %v2388 = vsub.s32 1, %v2387
        %v2389 = vrot.slane %v2333, %v2388
        %v2390 = vlaneseq
        %v2391 = vshrl.u32 %v2390, 7
        %v2392 = vsub.s32 1, %v2391
        %v2393 = vrot.slane %v2334, %v2392
        %v2394 = vlaneseq
        %v2395 = vshrl.u32 %v2394, 7
        %v2396 = vsub.s32 1, %v2395
        %v2397 = vrot.slane %v2335, %v2396
        %v2398 = vlaneseq
        %v2399 = vshrl.u32 %v2398, 7
        %v2400 = vsub.s32 1, %v2399
        %v2401 = vrot.slane %v2336, %v2400
        %v2402 = vmul.f32 %v1784, %v2385
        %v2403 = vmul.f32 %v1786, %v2389
        %v2404 = vmul.f32 %v1997, %v2393
        %v2405 = vmul.f32 %v1999, %v2397
        %v2406 = vmul.f32 %v2206, %v2401
        %v2407 = vmul.f32 %v1788, %v2385
        %v2408 = vmul.f32 %v1790, %v2389
        %v2409 = vmul.f32 %v2001, %v2393
        %v2410 = vmul.f32 %v2003, %v2397
        %v2411 = vmul.f32 %v2209, %v2401
        %v2412 = vmul.f32 %v1794, %v2385
        %v2413 = vmul.f32 %v1796, %v2389
        %v2414 = vmul.f32 %v2007, %v2393
        %v2415 = vmul.f32 %v2009, %v2397
        %v2416 = vmul.f32 %v2214, %v2401
        %v2417 = vmul.f32 %v1798, %v2385
        %v2418 = vmul.f32 %v1800, %v2389
        %v2419 = vmul.f32 %v2011, %v2393
        %v2420 = vmul.f32 %v2013, %v2397
        %v2421 = vmul.f32 %v2217, %v2401
        %v2422 = vadd.f32 %v2362, %v2402
        %v2423 = vadd.f32 %v2363, %v2403
        %v2424 = vadd.f32 %v2364, %v2404
        %v2425 = vadd.f32 %v2365, %v2405
        %v2426 = vadd.f32 %v2366, %v2406
        %v2427 = vadd.f32 %v2367, %v2407
        %v2428 = vadd.f32 %v2368, %v2408
        %v2429 = vadd.f32 %v2369, %v2409
        %v2430 = vadd.f32 %v2370, %v2410
        %v2431 = vadd.f32 %v2371, %v2411
        %v2432 = vadd.f32 %v2372, %v2412
        %v2433 = vadd.f32 %v2373, %v2413
        %v2434 = vadd.f32 %v2374, %v2414
        %v2435 = vadd.f32 %v2375, %v2415
        %v2436 = vadd.f32 %v2376, %v2416
        %v2437 = vadd.f32 %v2377, %v2417
        %v2438 = vadd.f32 %v2378, %v2418
        %v2439 = vadd.f32 %v2379, %v2419
        %v2440 = vadd.f32 %v2380, %v2420
        %v2441 = vadd.f32 %v2381, %v2421
        %v2442 = vlaneseq
        %v2443 = vshrl.u32 %v2442, 7
        %v2444 = vsub.s32 2, %v2443
        %v2445 = vrot.slane %v2332, %v2444
        %v2446 = vlaneseq
        %v2447 = vshrl.u32 %v2446, 7
        %v2448 = vsub.s32 2, %v2447
        %v2449 = vrot.slane %v2333, %v2448
        %v2450 = vlaneseq
        %v2451 = vshrl.u32 %v2450, 7
        %v2452 = vsub.s32 2, %v2451
        %v2453 = vrot.slane %v2334, %v2452
        %v2454 = vlaneseq
        %v2455 = vshrl.u32 %v2454, 7
        %v2456 = vsub.s32 2, %v2455
        %v2457 = vrot.slane %v2335, %v2456
        %v2458 = vlaneseq
        %v2459 = vshrl.u32 %v2458, 7
        %v2460 = vsub.s32 2, %v2459
        %v2461 = vrot.slane %v2336, %v2460
        %v2462 = vmul.f32 %v1804, %v2445
        %v2463 = vmul.f32 %v1806, %v2449
        %v2464 = vmul.f32 %v2017, %v2453
        %v2465 = vmul.f32 %v2019, %v2457
        %v2466 = vmul.f32 %v2222, %v2461
        %v2467 = vmul.f32 %v1808, %v2445
        %v2468 = vmul.f32 %v1810, %v2449
        %v2469 = vmul.f32 %v2021, %v2453
        %v2470 = vmul.f32 %v2023, %v2457
        %v2471 = vmul.f32 %v2225, %v2461
        %v2472 = vmul.f32 %v1814, %v2445
        %v2473 = vmul.f32 %v1816, %v2449
        %v2474 = vmul.f32 %v2027, %v2453
        %v2475 = vmul.f32 %v2029, %v2457
        %v2476 = vmul.f32 %v2230, %v2461
        %v2477 = vmul.f32 %v1818, %v2445
        %v2478 = vmul.f32 %v1820, %v2449
        %v2479 = vmul.f32 %v2031, %v2453
        %v2480 = vmul.f32 %v2033, %v2457
        %v2481 = vmul.f32 %v2233, %v2461
        %v2482 = vadd.f32 %v2422, %v2462
        %v2483 = vadd.f32 %v2423, %v2463
        %v2484 = vadd.f32 %v2424, %v2464
        %v2485 = vadd.f32 %v2425, %v2465
        %v2486 = vadd.f32 %v2426, %v2466
        %v2487 = vadd.f32 %v2427, %v2467
        %v2488 = vadd.f32 %v2428, %v2468
        %v2489 = vadd.f32 %v2429, %v2469
        %v2490 = vadd.f32 %v2430, %v2470
        %v2491 = vadd.f32 %v2431, %v2471
        %v2492 = vadd.f32 %v2432, %v2472
        %v2493 = vadd.f32 %v2433, %v2473
        %v2494 = vadd.f32 %v2434, %v2474
        %v2495 = vadd.f32 %v2435, %v2475
        %v2496 = vadd.f32 %v2436, %v2476
        %v2497 = vadd.f32 %v2437, %v2477
        %v2498 = vadd.f32 %v2438, %v2478
        %v2499 = vadd.f32 %v2439, %v2479
        %v2500 = vadd.f32 %v2440, %v2480
        %v2501 = vadd.f32 %v2441, %v2481
        %v2502 = vlaneseq
        %v2503 = vshrl.u32 %v2502, 7
        %v2504 = vsub.s32 3, %v2503
        %v2505 = vrot.slane %v2332, %v2504
        %v2506 = vlaneseq
        %v2507 = vshrl.u32 %v2506, 7
        %v2508 = vsub.s32 3, %v2507
        %v2509 = vrot.slane %v2333, %v2508
        %v2510 = vlaneseq
        %v2511 = vshrl.u32 %v2510, 7
        %v2512 = vsub.s32 3, %v2511
        %v2513 = vrot.slane %v2334, %v2512
        %v2514 = vlaneseq
        %v2515 = vshrl.u32 %v2514, 7
        %v2516 = vsub.s32 3, %v2515
        %v2517 = vrot.slane %v2335, %v2516
        %v2518 = vlaneseq
        %v2519 = vshrl.u32 %v2518, 7
        %v2520 = vsub.s32 3, %v2519
        %v2521 = vrot.slane %v2336, %v2520
        %v2522 = vmul.f32 %v1824, %v2505
        %v2523 = vmul.f32 %v1826, %v2509
        %v2524 = vmul.f32 %v2037, %v2513
        %v2525 = vmul.f32 %v2039, %v2517
        %v2526 = vmul.f32 %v2238, %v2521
        %v2527 = vmul.f32 %v1828, %v2505
        %v2528 = vmul.f32 %v1830, %v2509
        %v2529 = vmul.f32 %v2041, %v2513
        %v2530 = vmul.f32 %v2043, %v2517
        %v2531 = vmul.f32 %v2241, %v2521
        %v2532 = vmul.f32 %v1834, %v2505
        %v2533 = vmul.f32 %v1836, %v2509
        %v2534 = vmul.f32 %v2047, %v2513
        %v2535 = vmul.f32 %v2049, %v2517
        %v2536 = vmul.f32 %v2246, %v2521
        %v2537 = vmul.f32 %v1838, %v2505
        %v2538 = vmul.f32 %v1840, %v2509
        %v2539 = vmul.f32 %v2051, %v2513
        %v2540 = vmul.f32 %v2053, %v2517
        %v2541 = vmul.f32 %v2249, %v2521
        %v2542 = vadd.f32 %v2482, %v2522
        %v2543 = vadd.f32 %v2483, %v2523
        %v2544 = vadd.f32 %v2484, %v2524
        %v2545 = vadd.f32 %v2485, %v2525
        %v2546 = vadd.f32 %v2486, %v2526
        %v2547 = vadd.f32 %v2487, %v2527
        %v2548 = vadd.f32 %v2488, %v2528
        %v2549 = vadd.f32 %v2489, %v2529
        %v2550 = vadd.f32 %v2490, %v2530
        %v2551 = vadd.f32 %v2491, %v2531
        %v2552 = vadd.f32 %v2492, %v2532
        %v2553 = vadd.f32 %v2493, %v2533
        %v2554 = vadd.f32 %v2494, %v2534
        %v2555 = vadd.f32 %v2495, %v2535
        %v2556 = vadd.f32 %v2496, %v2536
        %v2557 = vadd.f32 %v2497, %v2537
        %v2558 = vadd.f32 %v2498, %v2538
        %v2559 = vadd.f32 %v2499, %v2539
        %v2560 = vadd.f32 %v2500, %v2540
        %v2561 = vadd.f32 %v2501, %v2541
        %v2562 = vlaneseq
        %v2563 = vshrl.u32 %v2562, 7
        %v2564 = vsub.s32 4, %v2563
        %v2565 = vrot.slane %v2332, %v2564
        %v2566 = vlaneseq
        %v2567 = vshrl.u32 %v2566, 7
        %v2568 = vsub.s32 4, %v2567
        %v2569 = vrot.slane %v2333, %v2568
        %v2570 = vlaneseq
        %v2571 = vshrl.u32 %v2570, 7
        %v2572 = vsub.s32 4, %v2571
        %v2573 = vrot.slane %v2334, %v2572
        %v2574 = vlaneseq
        %v2575 = vshrl.u32 %v2574, 7
        %v2576 = vsub.s32 4, %v2575
        %v2577 = vrot.slane %v2335, %v2576
        %v2578 = vlaneseq
        %v2579 = vshrl.u32 %v2578, 7
        %v2580 = vsub.s32 4, %v2579
        %v2581 = vrot.slane %v2336, %v2580
        %v2582 = vmul.f32 %v1844, %v2565
        %v2583 = vmul.f32 %v1846, %v2569
        %v2584 = vmul.f32 %v2057, %v2573
        %v2585 = vmul.f32 %v2059, %v2577
        %v2586 = vmul.f32 %v2254, %v2581
        %v2587 = vmul.f32 %v1848, %v2565
        %v2588 = vmul.f32 %v1850, %v2569
        %v2589 = vmul.f32 %v2061, %v2573
        %v2590 = vmul.f32 %v2063, %v2577
        %v2591 = vmul.f32 %v2257, %v2581
        %v2592 = vmul.f32 %v1854, %v2565
        %v2593 = vmul.f32 %v1856, %v2569
        %v2594 = vmul.f32 %v2067, %v2573
        %v2595 = vmul.f32 %v2069, %v2577
        %v2596 = vmul.f32 %v2262, %v2581
        %v2597 = vmul.f32 %v1858, %v2565
        %v2598 = vmul.f32 %v1860, %v2569
        %v2599 = vmul.f32 %v2071, %v2573
        %v2600 = vmul.f32 %v2073, %v2577
        %v2601 = vmul.f32 %v2265, %v2581
        %v2602 = vadd.f32 %v2542, %v2582
        %v2603 = vadd.f32 %v2543, %v2583
        %v2604 = vadd.f32 %v2544, %v2584
        %v2605 = vadd.f32 %v2545, %v2585
        %v2606 = vadd.f32 %v2546, %v2586
        %v2607 = vadd.f32 %v2547, %v2587
        %v2608 = vadd.f32 %v2548, %v2588
        %v2609 = vadd.f32 %v2549, %v2589
        %v2610 = vadd.f32 %v2550, %v2590
        %v2611 = vadd.f32 %v2551, %v2591
        %v2612 = vadd.f32 %v2552, %v2592
        %v2613 = vadd.f32 %v2553, %v2593
        %v2614 = vadd.f32 %v2554, %v2594
        %v2615 = vadd.f32 %v2555, %v2595
        %v2616 = vadd.f32 %v2556, %v2596
        %v2617 = vadd.f32 %v2557, %v2597
        %v2618 = vadd.f32 %v2558, %v2598
        %v2619 = vadd.f32 %v2559, %v2599
        %v2620 = vadd.f32 %v2560, %v2600
        %v2621 = vadd.f32 %v2561, %v2601
        %v2622 = vlaneseq
        %v2623 = vshrl.u32 %v2622, 7
        %v2624 = vsub.s32 5, %v2623
        %v2625 = vrot.slane %v2332, %v2624
        %v2626 = vlaneseq
        %v2627 = vshrl.u32 %v2626, 7
        %v2628 = vsub.s32 5, %v2627
        %v2629 = vrot.slane %v2333, %v2628
        %v2630 = vlaneseq
        %v2631 = vshrl.u32 %v2630, 7
        %v2632 = vsub.s32 5, %v2631
        %v2633 = vrot.slane %v2334, %v2632
        %v2634 = vlaneseq
        %v2635 = vshrl.u32 %v2634, 7
        %v2636 = vsub.s32 5, %v2635
        %v2637 = vrot.slane %v2335, %v2636
        %v2638 = vlaneseq
        %v2639 = vshrl.u32 %v2638, 7
        %v2640 = vsub.s32 5, %v2639
        %v2641 = vrot.slane %v2336, %v2640
        %v2642 = vmul.f32 %v1864, %v2625
        %v2643 = vmul.f32 %v1866, %v2629
        %v2644 = vmul.f32 %v2077, %v2633
        %v2645 = vmul.f32 %v2079, %v2637
        %v2646 = vmul.f32 %v2270, %v2641
        %v2647 = vmul.f32 %v1868, %v2625
        %v2648 = vmul.f32 %v1870, %v2629
        %v2649 = vmul.f32 %v2081, %v2633
        %v2650 = vmul.f32 %v2083, %v2637
        %v2651 = vmul.f32 %v2273, %v2641
        %v2652 = vmul.f32 %v1874, %v2625
        %v2653 = vmul.f32 %v1876, %v2629
        %v2654 = vmul.f32 %v2087, %v2633
        %v2655 = vmul.f32 %v2089, %v2637
        %v2656 = vmul.f32 %v2278, %v2641
        %v2657 = vmul.f32 %v1878, %v2625
        %v2658 = vmul.f32 %v1880, %v2629
        %v2659 = vmul.f32 %v2091, %v2633
        %v2660 = vmul.f32 %v2093, %v2637
        %v2661 = vmul.f32 %v2281, %v2641
        %v2662 = vadd.f32 %v2602, %v2642
        %v2663 = vadd.f32 %v2603, %v2643
        %v2664 = vadd.f32 %v2604, %v2644
        %v2665 = vadd.f32 %v2605, %v2645
        %v2666 = vadd.f32 %v2606, %v2646
        %v2667 = vadd.f32 %v2607, %v2647
        %v2668 = vadd.f32 %v2608, %v2648
        %v2669 = vadd.f32 %v2609, %v2649
        %v2670 = vadd.f32 %v2610, %v2650
        %v2671 = vadd.f32 %v2611, %v2651
        %v2672 = vadd.f32 %v2612, %v2652
        %v2673 = vadd.f32 %v2613, %v2653
        %v2674 = vadd.f32 %v2614, %v2654
        %v2675 = vadd.f32 %v2615, %v2655
        %v2676 = vadd.f32 %v2616, %v2656
        %v2677 = vadd.f32 %v2617, %v2657
        %v2678 = vadd.f32 %v2618, %v2658
        %v2679 = vadd.f32 %v2619, %v2659
        %v2680 = vadd.f32 %v2620, %v2660
        %v2681 = vadd.f32 %v2621, %v2661
        %v2682 = vlaneseq
        %v2683 = vshrl.u32 %v2682, 7
        %v2684 = vsub.s32 6, %v2683
        %v2685 = vrot.slane %v2332, %v2684
        %v2686 = vlaneseq
        %v2687 = vshrl.u32 %v2686, 7
        %v2688 = vsub.s32 6, %v2687
        %v2689 = vrot.slane %v2333, %v2688
        %v2690 = vlaneseq
        %v2691 = vshrl.u32 %v2690, 7
        %v2692 = vsub.s32 6, %v2691
        %v2693 = vrot.slane %v2334, %v2692
        %v2694 = vlaneseq
        %v2695 = vshrl.u32 %v2694, 7
        %v2696 = vsub.s32 6, %v2695
        %v2697 = vrot.slane %v2335, %v2696
        %v2698 = vlaneseq
        %v2699 = vshrl.u32 %v2698, 7
        %v2700 = vsub.s32 6, %v2699
        %v2701 = vrot.slane %v2336, %v2700
        %v2702 = vmul.f32 %v1884, %v2685
        %v2703 = vmul.f32 %v1886, %v2689
        %v2704 = vmul.f32 %v2097, %v2693
        %v2705 = vmul.f32 %v2099, %v2697
        %v2706 = vmul.f32 %v2286, %v2701
        %v2707 = vmul.f32 %v1888, %v2685
        %v2708 = vmul.f32 %v1890, %v2689
        %v2709 = vmul.f32 %v2101, %v2693
        %v2710 = vmul.f32 %v2103, %v2697
        %v2711 = vmul.f32 %v2289, %v2701
        %v2712 = vmul.f32 %v1894, %v2685
        %v2713 = vmul.f32 %v1896, %v2689
        %v2714 = vmul.f32 %v2107, %v2693
        %v2715 = vmul.f32 %v2109, %v2697
        %v2716 = vmul.f32 %v2294, %v2701
        %v2717 = vmul.f32 %v1898, %v2685
        %v2718 = vmul.f32 %v1900, %v2689
        %v2719 = vmul.f32 %v2111, %v2693
        %v2720 = vmul.f32 %v2113, %v2697
        %v2721 = vmul.f32 %v2297, %v2701
        %v2722 = vadd.f32 %v2662, %v2702
        %v2723 = vadd.f32 %v2663, %v2703
        %v2724 = vadd.f32 %v2664, %v2704
        %v2725 = vadd.f32 %v2665, %v2705
        %v2726 = vadd.f32 %v2666, %v2706
        %v2727 = vadd.f32 %v2667, %v2707
        %v2728 = vadd.f32 %v2668, %v2708
        %v2729 = vadd.f32 %v2669, %v2709
        %v2730 = vadd.f32 %v2670, %v2710
        %v2731 = vadd.f32 %v2671, %v2711
        %v2732 = vadd.f32 %v2672, %v2712
        %v2733 = vadd.f32 %v2673, %v2713
        %v2734 = vadd.f32 %v2674, %v2714
        %v2735 = vadd.f32 %v2675, %v2715
        %v2736 = vadd.f32 %v2676, %v2716
        %v2737 = vadd.f32 %v2677, %v2717
        %v2738 = vadd.f32 %v2678, %v2718
        %v2739 = vadd.f32 %v2679, %v2719
        %v2740 = vadd.f32 %v2680, %v2720
        %v2741 = vadd.f32 %v2681, %v2721
        %v2742 = vlaneseq
        %v2743 = vshrl.u32 %v2742, 7
        %v2744 = vsub.s32 7, %v2743
        %v2745 = vrot.slane %v2332, %v2744
        %v2746 = vlaneseq
        %v2747 = vshrl.u32 %v2746, 7
        %v2748 = vsub.s32 7, %v2747
        %v2749 = vrot.slane %v2333, %v2748
        %v2750 = vlaneseq
        %v2751 = vshrl.u32 %v2750, 7
        %v2752 = vsub.s32 7, %v2751
        %v2753 = vrot.slane %v2334, %v2752
        %v2754 = vlaneseq
        %v2755 = vshrl.u32 %v2754, 7
        %v2756 = vsub.s32 7, %v2755
        %v2757 = vrot.slane %v2335, %v2756
        %v2758 = vlaneseq
        %v2759 = vshrl.u32 %v2758, 7
        %v2760 = vsub.s32 7, %v2759
        %v2761 = vrot.slane %v2336, %v2760
        %v2762 = vmul.f32 %v1904, %v2745
        %v2763 = vmul.f32 %v1906, %v2749
        %v2764 = vmul.f32 %v2117, %v2753
        %v2765 = vmul.f32 %v2119, %v2757
        %v2766 = vmul.f32 %v2302, %v2761
        %v2767 = vmul.f32 %v1908, %v2745
        %v2768 = vmul.f32 %v1910, %v2749
        %v2769 = vmul.f32 %v2121, %v2753
        %v2770 = vmul.f32 %v2123, %v2757
        %v2771 = vmul.f32 %v2305, %v2761
        %v2772 = vmul.f32 %v1914, %v2745
        %v2773 = vmul.f32 %v1916, %v2749
        %v2774 = vmul.f32 %v2127, %v2753
        %v2775 = vmul.f32 %v2129, %v2757
        %v2776 = vmul.f32 %v2310, %v2761
        %v2777 = vmul.f32 %v1918, %v2745
        %v2778 = vmul.f32 %v1920, %v2749
        %v2779 = vmul.f32 %v2131, %v2753
        %v2780 = vmul.f32 %v2133, %v2757
        %v2781 = vmul.f32 %v2313, %v2761
        %v2782 = vadd.f32 %v2722, %v2762
        %v2783 = vadd.f32 %v2723, %v2763
        %v2784 = vadd.f32 %v2724, %v2764
        %v2785 = vadd.f32 %v2725, %v2765
        %v2786 = vadd.f32 %v2726, %v2766
        %v2787 = vadd.f32 %v2727, %v2767
        %v2788 = vadd.f32 %v2728, %v2768
        %v2789 = vadd.f32 %v2729, %v2769
        %v2790 = vadd.f32 %v2730, %v2770
        %v2791 = vadd.f32 %v2731, %v2771
        %v2792 = vadd.f32 %v2732, %v2772
        %v2793 = vadd.f32 %v2733, %v2773
        %v2794 = vadd.f32 %v2734, %v2774
        %v2795 = vadd.f32 %v2735, %v2775
        %v2796 = vadd.f32 %v2736, %v2776
        %v2797 = vadd.f32 %v2737, %v2777
        %v2798 = vadd.f32 %v2738, %v2778
        %v2799 = vadd.f32 %v2739, %v2779
        %v2800 = vadd.f32 %v2740, %v2780
        %v2801 = vadd.f32 %v2741, %v2781
        %v2802 = vlaneseq
        %v2803 = vshrl.u32 %v2802, 7
        %v2804 = vsub.s32 0, %v2803
        %v2805 = vrot.slane %v2337, %v2804
        %v2806 = vlaneseq
        %v2807 = vshrl.u32 %v2806, 7
        %v2808 = vsub.s32 0, %v2807
        %v2809 = vrot.slane %v2338, %v2808
        %v2810 = vlaneseq
        %v2811 = vshrl.u32 %v2810, 7
        %v2812 = vsub.s32 0, %v2811
        %v2813 = vrot.slane %v2339, %v2812
        %v2814 = vlaneseq
        %v2815 = vshrl.u32 %v2814, 7
        %v2816 = vsub.s32 0, %v2815
        %v2817 = vrot.slane %v2340, %v2816
        %v2818 = vlaneseq
        %v2819 = vshrl.u32 %v2818, 7
        %v2820 = vsub.s32 0, %v2819
        %v2821 = vrot.slane %v2341, %v2820
        %v2822 = vmul.f32 %v1924, %v2805
        %v2823 = vmul.f32 %v1926, %v2809
        %v2824 = vmul.f32 %v2137, %v2813
        %v2825 = vmul.f32 %v2139, %v2817
        %v2826 = vmul.f32 %v2318, %v2821
        %v2827 = vmul.f32 %v1928, %v2805
        %v2828 = vmul.f32 %v1930, %v2809
        %v2829 = vmul.f32 %v2141, %v2813
        %v2830 = vmul.f32 %v2143, %v2817
        %v2831 = vmul.f32 %v2321, %v2821
        %v2832 = vmul.f32 %v1934, %v2805
        %v2833 = vmul.f32 %v1936, %v2809
        %v2834 = vmul.f32 %v2147, %v2813
        %v2835 = vmul.f32 %v2149, %v2817
        %v2836 = vmul.f32 %v2326, %v2821
        %v2837 = vmul.f32 %v1938, %v2805
        %v2838 = vmul.f32 %v1940, %v2809
        %v2839 = vmul.f32 %v2151, %v2813
        %v2840 = vmul.f32 %v2153, %v2817
        %v2841 = vmul.f32 %v2329, %v2821
        %v2842 = vadd.f32 %v2782, %v2822
        %v2843 = vadd.f32 %v2783, %v2823
        %v2844 = vadd.f32 %v2784, %v2824
        %v2845 = vadd.f32 %v2785, %v2825
        %v2846 = vadd.f32 %v2786, %v2826
        %v2847 = vadd.f32 %v2787, %v2827
        %v2848 = vadd.f32 %v2788, %v2828
        %v2849 = vadd.f32 %v2789, %v2829
        %v2850 = vadd.f32 %v2790, %v2830
        %v2851 = vadd.f32 %v2791, %v2831
        %v2852 = vadd.f32 %v2792, %v2832
        %v2853 = vadd.f32 %v2793, %v2833
        %v2854 = vadd.f32 %v2794, %v2834
        %v2855 = vadd.f32 %v2795, %v2835
        %v2856 = vadd.f32 %v2796, %v2836
        %v2857 = vadd.f32 %v2797, %v2837
        %v2858 = vadd.f32 %v2798, %v2838
        %v2859 = vadd.f32 %v2799, %v2839
        %v2860 = vadd.f32 %v2800, %v2840
        %v2861 = vadd.f32 %v2801, %v2841
        %v2862 = vld [vmem:[%s7] sm:$0x1f]
        %v2864 = vlaneseq
        %v2865 = vshrl.u32 %v2864, 7
        %v2866 = vsub.s32 0, %v2865
        %v2867 = vrot.slane %v2862, %v2866
        %v2868 = vlaneseq
        %v2869 = vshrl.u32 %v2868, 7
        %v2870 = vsub.s32 1, %v2869
        %v2871 = vrot.slane %v2862, %v2870
        %v2872 = vlaneseq
        %v2873 = vshrl.u32 %v2872, 7
        %v2874 = vsub.s32 2, %v2873
        %v2875 = vrot.slane %v2862, %v2874
        %v2876 = vlaneseq
        %v2877 = vshrl.u32 %v2876, 7
        %v2878 = vsub.s32 3, %v2877
        %v2879 = vrot.slane %v2862, %v2878
        %v2880 = vlaneseq
        %v2881 = vshrl.u32 %v2880, 7
        %v2882 = vsub.s32 4, %v2881
        %v2883 = vrot.slane %v2862, %v2882
        %v2889 = vadd.f32 %v2842, %v2867
        %v2890 = vadd.f32 %v2843, %v2871
        %v2891 = vadd.f32 %v2844, %v2875
        %v2892 = vadd.f32 %v2845, %v2879
        %v2893 = vadd.f32 %v2846, %v2883
        %v2894 = vadd.f32 %v2847, %v2867
        %v2895 = vadd.f32 %v2848, %v2871
        %v2896 = vadd.f32 %v2849, %v2875
        %v2897 = vadd.f32 %v2850, %v2879
        %v2898 = vadd.f32 %v2851, %v2883
        %v2899 = vadd.f32 %v2852, %v2867
        %v2900 = vadd.f32 %v2853, %v2871
        %v2901 = vadd.f32 %v2854, %v2875
        %v2902 = vadd.f32 %v2855, %v2879
        %v2903 = vadd.f32 %v2856, %v2883
        %v2904 = vadd.f32 %v2857, %v2867
        %v2905 = vadd.f32 %v2858, %v2871
        %v2906 = vadd.f32 %v2859, %v2875
        %v2907 = vadd.f32 %v2860, %v2879
        %v2908 = vadd.f32 %v2861, %v2883
        %v2909 = vmax.f32 %v2889, 0.0
        %v2910 = vmax.f32 %v2890, 0.0
        %v2911 = vmax.f32 %v2891, 0.0
        %v2912 = vmax.f32 %v2892, 0.0
        %v2913 = vmax.f32 %v2893, 0.0
        %v2914 = vmax.f32 %v2894, 0.0
        %v2915 = vmax.f32 %v2895, 0.0
        %v2916 = vmax.f32 %v2896, 0.0
        %v2917 = vmax.f32 %v2897, 0.0
        %v2918 = vmax.f32 %v2898, 0.0
        %v2919 = vmax.f32 %v2899, 0.0
        %v2920 = vmax.f32 %v2900, 0.0
        %v2921 = vmax.f32 %v2901, 0.0
        %v2922 = vmax.f32 %v2902, 0.0
        %v2923 = vmax.f32 %v2903, 0.0
        %v2924 = vmax.f32 %v2904, 0.0
        %v2925 = vmax.f32 %v2905, 0.0
        %v2926 = vmax.f32 %v2906, 0.0
        %v2927 = vmax.f32 %v2907, 0.0
        %v2928 = vmax.f32 %v2908, 0.0
        %v2929 = vmin.f32 %v2909, 6.0
        %v2930 = vmin.f32 %v2910, 6.0
        %v2931 = vmin.f32 %v2911, 6.0
        %v2932 = vmin.f32 %v2912, 6.0
        %v2933 = vmin.f32 %v2913, 6.0
        %v2934 = vmin.f32 %v2914, 6.0
        %v2935 = vmin.f32 %v2915, 6.0
        %v2936 = vmin.f32 %v2916, 6.0
        %v2937 = vmin.f32 %v2917, 6.0
        %v2938 = vmin.f32 %v2918, 6.0
        %v2939 = vmin.f32 %v2919, 6.0
        %v2940 = vmin.f32 %v2920, 6.0
        %v2941 = vmin.f32 %v2921, 6.0
        %v2942 = vmin.f32 %v2922, 6.0
        %v2943 = vmin.f32 %v2923, 6.0
        %v2944 = vmin.f32 %v2924, 6.0
        %v2945 = vmin.f32 %v2925, 6.0
        %v2946 = vmin.f32 %v2926, 6.0
        %v2947 = vmin.f32 %v2927, 6.0
        %v2948 = vmin.f32 %v2928, 6.0
        %v2949 = vpack.c.bf16 %v2934, %v2929
        %v2950 = vpack.c.bf16 %v2935, %v2930
        %v2951 = vpack.c.bf16 %v2936, %v2931
        %v2952 = vpack.c.bf16 %v2937, %v2932
        %v2953 = vpack.c.bf16 %v2938, %v2933
        %v2954 = vpack.c.bf16 %v2944, %v2939
        %v2955 = vpack.c.bf16 %v2945, %v2940
        %v2956 = vpack.c.bf16 %v2946, %v2941
        %v2957 = vpack.c.bf16 %v2947, %v2942
        %v2958 = vpack.c.bf16 %v2948, %v2943
        %v2959 = vld [vmem:[%s8] sm:$0xff]
        %v2960 = vld [vmem:[%s8 + $0x8] sm:$0xff]
        %v2961 = vld [vmem:[%s8 + $0x10] sm:$0xff]
        %v2962 = vld [vmem:[%s8 + $0x18] sm:$0xff]
        %v2963 = vld [vmem:[%s8 + $0x20] sm:$0xff]
        %v2964 = vld [vmem:[%s8 + $0x28] sm:$0xff]
        %v2965 = vld [vmem:[%s8 + $0x30] sm:$0xff]
        %v2966 = vld [vmem:[%s8 + $0x38] sm:$0xff]
        %v2967 = vld [vmem:[%s8 + $0x40] sm:$0xff]
        %v2968 = vld [vmem:[%s8 + $0x48] sm:$0xff]
        %v2969 = vld [vmem:[%s8 + $0x50] sm:$0xff]
        %v2970 = vld [vmem:[%s8 + $0x58] sm:$0xff]
        %v2971 = vld [vmem:[%s8 + $0x60] sm:$0xff]
        %v2972 = vld [vmem:[%s8 + $0x68] sm:$0xff]
        %v2973 = vld [vmem:[%s8 + $0x70] sm:$0xff]
        %v2974 = vld [vmem:[%s8 + $0x78] sm:$0xff]
        %v2975 = vld [vmem:[%s8 + $0x80] sm:$0xff]
        %v2976 = vld [vmem:[%s8 + $0x88] sm:$0xff]
        %v2977 = vld [vmem:[%s8 + $0x90] sm:$0xff]
        %v2978 = vld [vmem:[%s8 + $0x98] sm:$0xff]
        %v2979 = vld [vmem:[%s8 + $0xa0] sm:$0xff]
        %v2980 = vld [vmem:[%s8 + $0xa8] sm:$0xff]
        %v2981 = vld [vmem:[%s8 + $0xb0] sm:$0xff]
        %v2982 = vld [vmem:[%s8 + $0xb8] sm:$0xff]
        %v2983 = vld [vmem:[%s8 + $0xc0] sm:$0xff]
        %v2984 = vld [vmem:[%s8 + $0xc8] sm:$0xff]
        %v2985 = vld [vmem:[%s8 + $0xd0] sm:$0xff]
        %v2986 = vld [vmem:[%s8 + $0xd8] sm:$0xff]
        %v2987 = vld [vmem:[%s8 + $0xe0] sm:$0xff]
        %v2988 = vld [vmem:[%s8 + $0xe8] sm:$0xff]
        %v2989 = vld [vmem:[%s8 + $0xf0] sm:$0xff]
        %v2990 = vld [vmem:[%s8 + $0xf8] sm:$0xff]
        %v2991 = vld [vmem:[%s8 + $0x100] sm:$0xff]
        %v2992 = vld [vmem:[%s8 + $0x108] sm:$0xff]
        %v2993 = vld [vmem:[%s8 + $0x110] sm:$0xff]
        %v2994 = vld [vmem:[%s8 + $0x118] sm:$0xff]
        %v2995 = vld [vmem:[%s8 + $0x120] sm:$0xff]
        %v2996 = vld [vmem:[%s8 + $0x128] sm:$0xff]
        %v2997 = vld [vmem:[%s8 + $0x130] sm:$0xff]
        %v2998 = vld [vmem:[%s8 + $0x138] sm:$0xff]
        %v2999 = vld [vmem:[%s8 + $0x140] sm:$0xff]
        %v3000 = vld [vmem:[%s8 + $0x148] sm:$0xff]
        %v3001 = vld [vmem:[%s8 + $0x150] sm:$0xff]
        %v3002 = vld [vmem:[%s8 + $0x158] sm:$0xff]
        %v3003 = vld [vmem:[%s8 + $0x160] sm:$0xff]
        %v3004 = vld [vmem:[%s8 + $0x168] sm:$0xff]
        %v3005 = vld [vmem:[%s8 + $0x170] sm:$0xff]
        %v3006 = vld [vmem:[%s8 + $0x178] sm:$0xff]
        %v3007 = vld [vmem:[%s8 + $0x180] sm:$0xff]
        %v3008 = vld [vmem:[%s8 + $0x188] sm:$0xff]
        %v3009 = vld [vmem:[%s8 + $0x190] sm:$0xff]
        %v3010 = vld [vmem:[%s8 + $0x198] sm:$0xff]
        %v3011 = vld [vmem:[%s8 + $0x1a0] sm:$0xff]
        %v3012 = vld [vmem:[%s8 + $0x1a8] sm:$0xff]
        %v3013 = vld [vmem:[%s8 + $0x1b0] sm:$0xff]
        %v3014 = vld [vmem:[%s8 + $0x1b8] sm:$0xff]
        %v3015 = vld [vmem:[%s8 + $0x1c0] sm:$0xff]
        %v3016 = vld [vmem:[%s8 + $0x1c8] sm:$0xff]
        %v3017 = vld [vmem:[%s8 + $0x1d0] sm:$0xff]
        %v3018 = vld [vmem:[%s8 + $0x1d8] sm:$0xff]
        %v3019 = vld [vmem:[%s8 + $0x1e0] sm:$0xff]
        %v3020 = vld [vmem:[%s8 + $0x1e8] sm:$0xff]
        %v3021 = vld [vmem:[%s8 + $0x1f0] sm:$0xff]
        %v3022 = vld [vmem:[%s8 + $0x1f8] sm:$0xff]
        %v3023 = vld [vmem:[%s8 + $0x200] sm:$0xff]
        %v3024 = vld [vmem:[%s8 + $0x208] sm:$0xff]
        %v3025 = vld [vmem:[%s8 + $0x210] sm:$0xff]
        %v3026 = vld [vmem:[%s8 + $0x218] sm:$0xff]
        %v3027 = vld [vmem:[%s8 + $0x220] sm:$0xff]
        %v3028 = vld [vmem:[%s8 + $0x228] sm:$0xff]
        %v3029 = vld [vmem:[%s8 + $0x230] sm:$0xff]
        %v3030 = vld [vmem:[%s8 + $0x238] sm:$0xff]
        %v3031 = vld [vmem:[%s9] sm:$0x3]
        %v3033 = vlaneseq
        %v3034 = vshrl.u32 %v3033, 7
        %v3035 = vsub.s32 0, %v3034
        %v3036 = vrot.slane %v3031, %v3035
        %v3037 = vlaneseq
        %v3038 = vshrl.u32 %v3037, 7
        %v3039 = vsub.s32 1, %v3038
        %v3040 = vrot.slane %v3031, %v3039
        %v3115 = vunpack.c.l.b16 %v2959
        %v3116 = vunpack.c.h.b16 %v2959
        %v3117 = vunpack.c.l.b16 %v2960
        %v3118 = vunpack.c.h.b16 %v2960
        %v3119 = vunpack.c.l.b16 %v2961
        %v3120 = vunpack.c.h.b16 %v2961
        %v3121 = vunpack.c.l.b16 %v2962
        %v3122 = vunpack.c.h.b16 %v2962
        %v3123 = vunpack.c.l.b16 %v2963
        %v3124 = vunpack.c.h.b16 %v2963
        %v3125 = vunpack.c.l.b16 %v2964
        %v3126 = vunpack.c.h.b16 %v2964
        %v3127 = vunpack.c.l.b16 %v2965
        %v3128 = vunpack.c.h.b16 %v2965
        %v3129 = vunpack.c.l.b16 %v2966
        %v3130 = vunpack.c.h.b16 %v2966
        %v3131 = vunpack.c.l.b16 %v2967
        %v3132 = vunpack.c.h.b16 %v2967
        %v3133 = vunpack.c.l.b16 %v2968
        %v3134 = vunpack.c.h.b16 %v2968
        %v3135 = vunpack.c.l.b16 %v2969
        %v3136 = vunpack.c.h.b16 %v2969
        %v3137 = vunpack.c.l.b16 %v2970
        %v3138 = vunpack.c.h.b16 %v2970
        %v3139 = vunpack.c.l.b16 %v2971
        %v3140 = vunpack.c.h.b16 %v2971
        %v3141 = vunpack.c.l.b16 %v2972
        %v3142 = vunpack.c.h.b16 %v2972
        %v3143 = vunpack.c.l.b16 %v2973
        %v3144 = vunpack.c.h.b16 %v2973
        %v3145 = vunpack.c.l.b16 %v2974
        %v3146 = vunpack.c.h.b16 %v2974
        %v3147 = vunpack.c.l.b16 %v2975
        %v3148 = vunpack.c.h.b16 %v2975
        %v3149 = vunpack.c.l.b16 %v2976
        %v3150 = vunpack.c.h.b16 %v2976
        %v3151 = vunpack.c.l.b16 %v2977
        %v3152 = vunpack.c.h.b16 %v2977
        %v3153 = vunpack.c.l.b16 %v2978
        %v3154 = vunpack.c.h.b16 %v2978
        %v3155 = vunpack.c.l.b16 %v2979
        %v3156 = vunpack.c.h.b16 %v2979
        %v3157 = vunpack.c.l.b16 %v2980
        %v3158 = vunpack.c.h.b16 %v2980
        %v3159 = vunpack.c.l.b16 %v2981
        %v3160 = vunpack.c.h.b16 %v2981
        %v3161 = vunpack.c.l.b16 %v2982
        %v3162 = vunpack.c.h.b16 %v2982
        %v3163 = vunpack.c.l.b16 %v2983
        %v3164 = vunpack.c.h.b16 %v2983
        %v3165 = vunpack.c.l.b16 %v2984
        %v3166 = vunpack.c.h.b16 %v2984
        %v3167 = vunpack.c.l.b16 %v2985
        %v3168 = vunpack.c.h.b16 %v2985
        %v3169 = vunpack.c.l.b16 %v2986
        %v3170 = vunpack.c.h.b16 %v2986
        %v3171 = vunpack.c.l.b16 %v2987
        %v3172 = vunpack.c.h.b16 %v2987
        %v3173 = vunpack.c.l.b16 %v2988
        %v3174 = vunpack.c.h.b16 %v2988
        %v3175 = vunpack.c.l.b16 %v2989
        %v3176 = vunpack.c.h.b16 %v2989
        %v3177 = vunpack.c.l.b16 %v2990
        %v3178 = vunpack.c.h.b16 %v2990
        %v3179 = vunpack.c.l.b16 %v2991
        %v3180 = vunpack.c.h.b16 %v2991
        %v3181 = vunpack.c.l.b16 %v2992
        %v3182 = vunpack.c.h.b16 %v2992
        %v3183 = vunpack.c.l.b16 %v2993
        %v3184 = vunpack.c.h.b16 %v2993
        %v3185 = vunpack.c.l.b16 %v2994
        %v3186 = vunpack.c.h.b16 %v2994
        %v3187 = vunpack.c.l.b16 %v2995
        %v3188 = vunpack.c.h.b16 %v2995
        %v3189 = vunpack.c.l.b16 %v2996
        %v3190 = vunpack.c.h.b16 %v2996
        %v3191 = vunpack.c.l.b16 %v2997
        %v3192 = vunpack.c.h.b16 %v2997
        %v3193 = vunpack.c.l.b16 %v2998
        %v3194 = vunpack.c.h.b16 %v2998
        %v3195 = vunpack.c.l.b16 %v2999
        %v3196 = vunpack.c.h.b16 %v2999
        %v3197 = vunpack.c.l.b16 %v3000
        %v3198 = vunpack.c.h.b16 %v3000
        %v3199 = vunpack.c.l.b16 %v3001
        %v3200 = vunpack.c.h.b16 %v3001
        %v3201 = vunpack.c.l.b16 %v3002
        %v3202 = vunpack.c.h.b16 %v3002
        %v3203 = vunpack.c.l.b16 %v3003
        %v3204 = vunpack.c.h.b16 %v3003
        %v3205 = vunpack.c.l.b16 %v3004
        %v3206 = vunpack.c.h.b16 %v3004
        %v3207 = vunpack.c.l.b16 %v3005
        %v3208 = vunpack.c.h.b16 %v3005
        %v3209 = vunpack.c.l.b16 %v3006
        %v3210 = vunpack.c.h.b16 %v3006
        %v3211 = vunpack.c.l.b16 %v3007
        %v3212 = vunpack.c.h.b16 %v3007
        %v3213 = vunpack.c.l.b16 %v3008
        %v3214 = vunpack.c.h.b16 %v3008
        %v3215 = vunpack.c.l.b16 %v3009
        %v3216 = vunpack.c.h.b16 %v3009
        %v3217 = vunpack.c.l.b16 %v3010
        %v3218 = vunpack.c.h.b16 %v3010
        %v3219 = vunpack.c.l.b16 %v3011
        %v3220 = vunpack.c.h.b16 %v3011
        %v3221 = vunpack.c.l.b16 %v3012
        %v3222 = vunpack.c.h.b16 %v3012
        %v3223 = vunpack.c.l.b16 %v3013
        %v3224 = vunpack.c.h.b16 %v3013
        %v3225 = vunpack.c.l.b16 %v3014
        %v3226 = vunpack.c.h.b16 %v3014
        %v3227 = vunpack.c.l.b16 %v3015
        %v3228 = vunpack.c.h.b16 %v3015
        %v3229 = vunpack.c.l.b16 %v3016
        %v3230 = vunpack.c.h.b16 %v3016
        %v3231 = vunpack.c.l.b16 %v3017
        %v3232 = vunpack.c.h.b16 %v3017
        %v3233 = vunpack.c.l.b16 %v3018
        %v3234 = vunpack.c.h.b16 %v3018
        %v3235 = vunpack.c.l.b16 %v3019
        %v3236 = vunpack.c.h.b16 %v3019
        %v3237 = vunpack.c.l.b16 %v3020
        %v3238 = vunpack.c.h.b16 %v3020
        %v3239 = vunpack.c.l.b16 %v3021
        %v3240 = vunpack.c.h.b16 %v3021
        %v3241 = vunpack.c.l.b16 %v3022
        %v3242 = vunpack.c.h.b16 %v3022
        %v3243 = vunpack.c.l.b16 %v3023
        %v3244 = vunpack.c.h.b16 %v3023
        %v3245 = vunpack.c.l.b16 %v3024
        %v3246 = vunpack.c.h.b16 %v3024
        %v3247 = vunpack.c.l.b16 %v3025
        %v3248 = vunpack.c.h.b16 %v3025
        %v3249 = vunpack.c.l.b16 %v3026
        %v3250 = vunpack.c.h.b16 %v3026
        %v3251 = vunpack.c.l.b16 %v3027
        %v3252 = vunpack.c.h.b16 %v3027
        %v3253 = vunpack.c.l.b16 %v3028
        %v3254 = vunpack.c.h.b16 %v3028
        %v3255 = vunpack.c.l.b16 %v3029
        %v3256 = vunpack.c.h.b16 %v3029
        %v3257 = vunpack.c.l.b16 %v3030
        %v3258 = vunpack.c.h.b16 %v3030
        %v3259 = vpack.c.b16 %v3117, %v3115
        %v3260 = vpack.c.b16 %v3118, %v3116
        %v3261 = vpack.c.b16 %v3121, %v3119
        %v3262 = vpack.c.b16 %v3122, %v3120
        %v3263 = vpack.c.b16 %v3125, %v3123
        %v3264 = vpack.c.b16 %v3126, %v3124
        %v3265 = vpack.c.b16 %v3129, %v3127
        %v3266 = vpack.c.b16 %v3130, %v3128
        %v3267 = vpack.c.b16 %v3133, %v3131
        %v3268 = vpack.c.b16 %v3134, %v3132
        %v3269 = vpack.c.b16 %v3137, %v3135
        %v3270 = vpack.c.b16 %v3138, %v3136
        %v3271 = vpack.c.b16 %v3141, %v3139
        %v3272 = vpack.c.b16 %v3142, %v3140
        %v3273 = vpack.c.b16 %v3145, %v3143
        %v3274 = vpack.c.b16 %v3146, %v3144
        %v3275 = vpack.c.b16 %v3149, %v3147
        %v3276 = vpack.c.b16 %v3150, %v3148
        %v3277 = vpack.c.b16 %v3153, %v3151
        %v3278 = vpack.c.b16 %v3154, %v3152
        %v3279 = vpack.c.b16 %v3157, %v3155
        %v3280 = vpack.c.b16 %v3158, %v3156
        %v3281 = vpack.c.b16 %v3161, %v3159
        %v3282 = vpack.c.b16 %v3162, %v3160
        %v3283 = vpack.c.b16 %v3165, %v3163
        %v3284 = vpack.c.b16 %v3166, %v3164
        %v3285 = vpack.c.b16 %v3169, %v3167
        %v3286 = vpack.c.b16 %v3170, %v3168
        %v3287 = vpack.c.b16 %v3173, %v3171
        %v3288 = vpack.c.b16 %v3174, %v3172
        %v3289 = vpack.c.b16 %v3177, %v3175
        %v3290 = vpack.c.b16 %v3178, %v3176
        %v3291 = vpack.c.b16 %v3181, %v3179
        %v3292 = vpack.c.b16 %v3182, %v3180
        %v3293 = vpack.c.b16 %v3185, %v3183
        %v3294 = vpack.c.b16 %v3186, %v3184
        %v3295 = vpack.c.b16 %v3189, %v3187
        %v3296 = vpack.c.b16 %v3190, %v3188
        %v3297 = vpack.c.b16 %v3193, %v3191
        %v3298 = vpack.c.b16 %v3194, %v3192
        %v3299 = vpack.c.b16 %v3197, %v3195
        %v3300 = vpack.c.b16 %v3198, %v3196
        %v3301 = vpack.c.b16 %v3201, %v3199
        %v3302 = vpack.c.b16 %v3202, %v3200
        %v3303 = vpack.c.b16 %v3205, %v3203
        %v3304 = vpack.c.b16 %v3206, %v3204
        %v3305 = vpack.c.b16 %v3209, %v3207
        %v3306 = vpack.c.b16 %v3210, %v3208
        %v3307 = vpack.c.b16 %v3213, %v3211
        %v3308 = vpack.c.b16 %v3214, %v3212
        %v3309 = vpack.c.b16 %v3217, %v3215
        %v3310 = vpack.c.b16 %v3218, %v3216
        %v3311 = vpack.c.b16 %v3221, %v3219
        %v3312 = vpack.c.b16 %v3222, %v3220
        %v3313 = vpack.c.b16 %v3225, %v3223
        %v3314 = vpack.c.b16 %v3226, %v3224
        %v3315 = vpack.c.b16 %v3229, %v3227
        %v3316 = vpack.c.b16 %v3230, %v3228
        %v3317 = vpack.c.b16 %v3233, %v3231
        %v3318 = vpack.c.b16 %v3234, %v3232
        %v3319 = vpack.c.b16 %v3237, %v3235
        %v3320 = vpack.c.b16 %v3238, %v3236
        %v3321 = vpack.c.b16 %v3241, %v3239
        %v3322 = vpack.c.b16 %v3242, %v3240
        %v3323 = vpack.c.b16 %v3245, %v3243
        %v3324 = vpack.c.b16 %v3246, %v3244
        %v3325 = vpack.c.b16 %v3249, %v3247
        %v3326 = vpack.c.b16 %v3250, %v3248
        %v3327 = vpack.c.b16 %v3253, %v3251
        %v3328 = vpack.c.b16 %v3254, %v3252
        %v3329 = vpack.c.b16 %v3257, %v3255
        %v3330 = vpack.c.b16 %v3258, %v3256
        %vm3403 = vcmask 523264
        %v3405 = vsel %vm3403, %v2953, 0
        %v3408 = vsel %vm3403, %v2958, 0
        %3410 = vmatprep.subr.bf16.mxu0 %v3260
        %3411 = vmatpush1.bf16.msra.mxu0 %v3259
        %3412 = vmatprep.subr.bf16.mxu0 %v3262
        %3413 = vmatpush1.bf16.msra.mxu0 %v3261
        %3414 = vmatprep.subr.bf16.mxu0 %v3264
        %3415 = vmatpush1.bf16.msra.mxu0 %v3263
        %3416 = vmatprep.subr.bf16.mxu0 %v3266
        %3417 = vmatpush1.bf16.msra.mxu0 %v3265
        %3418 = vmatprep.subr.bf16.mxu0 %v3268
        %3419 = vmatpush1.bf16.msra.mxu0 %v3267
        %3420 = vmatprep.subr.bf16.mxu0 %v3270
        %3421 = vmatpush1.bf16.msra.mxu0 %v3269
        %3422 = vmatprep.subr.bf16.mxu0 %v3272
        %3423 = vmatpush1.bf16.msra.mxu0 %v3271
        %3424 = vmatprep.subr.bf16.mxu0 %v3274
        %3425 = vmatpush1.bf16.msra.mxu0 %v3273
        %3426 = vmatprep.subr.bf16.mxu0 %v3276
        %3427 = vmatpush1.bf16.msra.mxu0 %v3275
        %3428 = vmatprep.subr.bf16.mxu0 %v3278
        %3429 = vmatpush1.bf16.msra.mxu0 %v3277
        %3430 = vmatprep.subr.bf16.mxu0 %v3280
        %3431 = vmatpush1.bf16.msra.mxu0 %v3279
        %3432 = vmatprep.subr.bf16.mxu0 %v3282
        %3433 = vmatpush1.bf16.msra.mxu0 %v3281
        %3434 = vmatprep.subr.bf16.mxu0 %v3284
        %3435 = vmatpush1.bf16.msra.mxu0 %v3283
        %3436 = vmatprep.subr.bf16.mxu0 %v3286
        %3437 = vmatpush1.bf16.msra.mxu0 %v3285
        %3438 = vmatprep.subr.bf16.mxu0 %v3288
        %3439 = vmatpush1.bf16.msra.mxu0 %v3287
        %3440 = vmatprep.subr.bf16.mxu0 %v3290
        %3441 = vmatpush1.bf16.msra.mxu0 %v3289
        %3442 = vmatprep.mubr.bf16.mxu0 %v2950
        %3443 = vmatmul.mubr.bf16.gmra.mrb[0].mxu0 %v2949
        %v3444 = vpop.f32.mrb[0].mxu0
        %v3445 = vadd.f32 %v3036, %v3444
        %v3446 = vpop.f32.mrb[0].mxu0
        %v3447 = vadd.f32 %v3040, %v3446
        %v3448 = vpop.f32.mrb[0].mxu0
        %v3449 = vadd.f32 %v3036, %v3448
        %v3450 = vpop.f32.mrb[0].mxu0
        %v3451 = vadd.f32 %v3040, %v3450
        %3452 = vmatprep.mubr.bf16.mxu0 %v2955
        %3453 = vmatmul.mubr.bf16.gmra.mrb[0].mxu0 %v2954
        %v3454 = vpop.f32.mrb[0].mxu0
        %v3455 = vadd.f32 %v3036, %v3454
        %v3456 = vpop.f32.mrb[0].mxu0
        %v3457 = vadd.f32 %v3040, %v3456
        %v3458 = vpop.f32.mrb[0].mxu0
        %v3459 = vadd.f32 %v3036, %v3458
        %v3460 = vpop.f32.mrb[0].mxu0
        %v3461 = vadd.f32 %v3040, %v3460
        %3462 = vdwg.mxu0
        %3463 = vmatprep.subr.bf16.mxu0 %v3292
        %3464 = vmatpush1.bf16.msra.mxu0 %v3291
        %3465 = vmatprep.subr.bf16.mxu0 %v3294
        %3466 = vmatpush1.bf16.msra.mxu0 %v3293
        %3467 = vmatprep.subr.bf16.mxu0 %v3296
        %3468 = vmatpush1.bf16.msra.mxu0 %v3295
        %3469 = vmatprep.subr.bf16.mxu0 %v3298
        %3470 = vmatpush1.bf16.msra.mxu0 %v3297
        %3471 = vmatprep.subr.bf16.mxu0 %v3300
        %3472 = vmatpush1.bf16.msra.mxu0 %v3299
        %3473 = vmatprep.subr.bf16.mxu0 %v3302
        %3474 = vmatpush1.bf16.msra.mxu0 %v3301
        %3475 = vmatprep.subr.bf16.mxu0 %v3304
        %3476 = vmatpush1.bf16.msra.mxu0 %v3303
        %3477 = vmatprep.subr.bf16.mxu0 %v3306
        %3478 = vmatpush1.bf16.msra.mxu0 %v3305
        %3479 = vmatprep.subr.bf16.mxu0 %v3308
        %3480 = vmatpush1.bf16.msra.mxu0 %v3307
        %3481 = vmatprep.subr.bf16.mxu0 %v3310
        %3482 = vmatpush1.bf16.msra.mxu0 %v3309
        %3483 = vmatprep.subr.bf16.mxu0 %v3312
        %3484 = vmatpush1.bf16.msra.mxu0 %v3311
        %3485 = vmatprep.subr.bf16.mxu0 %v3314
        %3486 = vmatpush1.bf16.msra.mxu0 %v3313
        %3487 = vmatprep.subr.bf16.mxu0 %v3316
        %3488 = vmatpush1.bf16.msra.mxu0 %v3315
        %3489 = vmatprep.subr.bf16.mxu0 %v3318
        %3490 = vmatpush1.bf16.msra.mxu0 %v3317
        %3491 = vmatprep.subr.bf16.mxu0 %v3320
        %3492 = vmatpush1.bf16.msra.mxu0 %v3319
        %3493 = vmatprep.subr.bf16.mxu0 %v3322
        %3494 = vmatpush1.bf16.msra.mxu0 %v3321
        %3495 = vmatprep.mubr.bf16.mxu0 %v2952
        %3496 = vmatmul.mubr.bf16.gmra.mrb[0].mxu0 %v2951
        %v3497 = vpop.f32.mrb[0].mxu0
        %v3498 = vadd.f32 %v3445, %v3497
        %v3499 = vpop.f32.mrb[0].mxu0
        %v3500 = vadd.f32 %v3447, %v3499
        %v3501 = vpop.f32.mrb[0].mxu0
        %v3502 = vadd.f32 %v3449, %v3501
        %v3503 = vpop.f32.mrb[0].mxu0
        %v3504 = vadd.f32 %v3451, %v3503
        %3505 = vmatprep.mubr.bf16.mxu0 %v2957
        %3506 = vmatmul.mubr.bf16.gmra.mrb[0].mxu0 %v2956
        %v3507 = vpop.f32.mrb[0].mxu0
        %v3508 = vadd.f32 %v3455, %v3507
        %v3509 = vpop.f32.mrb[0].mxu0
        %v3510 = vadd.f32 %v3457, %v3509
        %v3511 = vpop.f32.mrb[0].mxu0
        %v3512 = vadd.f32 %v3459, %v3511
        %v3513 = vpop.f32.mrb[0].mxu0
        %v3514 = vadd.f32 %v3461, %v3513
        %3515 = vdwg.mxu0
        %3516 = vmatprep.subr.bf16.mxu0 %v3324
        %3517 = vmatpush1.bf16.msra.mxu0 %v3323
        %3518 = vmatprep.subr.bf16.mxu0 %v3326
        %3519 = vmatpush1.bf16.msra.mxu0 %v3325
        %3520 = vmatprep.subr.bf16.mxu0 %v3328
        %3521 = vmatpush1.bf16.msra.mxu0 %v3327
        %3522 = vmatprep.subr.bf16.mxu0 %v3330
        %3523 = vmatpush1.bf16.msra.mxu0 %v3329
        %3524 = vmatprep.subr.bf16.mxu0 0
        %3525 = vmatpush1.bf16.msra.mxu0 0
        %3526 = vmatprep.subr.bf16.mxu0 0
        %3527 = vmatpush1.bf16.msra.mxu0 0
        %3528 = vmatprep.subr.bf16.mxu0 0
        %3529 = vmatpush1.bf16.msra.mxu0 0
        %3530 = vmatprep.subr.bf16.mxu0 0
        %3531 = vmatpush1.bf16.msra.mxu0 0
        %3532 = vmatprep.subr.bf16.mxu0 0
        %3533 = vmatpush1.bf16.msra.mxu0 0
        %3534 = vmatprep.subr.bf16.mxu0 0
        %3535 = vmatpush1.bf16.msra.mxu0 0
        %3536 = vmatprep.subr.bf16.mxu0 0
        %3537 = vmatpush1.bf16.msra.mxu0 0
        %3538 = vmatprep.subr.bf16.mxu0 0
        %3539 = vmatpush1.bf16.msra.mxu0 0
        %3540 = vmatprep.subr.bf16.mxu0 0
        %3541 = vmatpush1.bf16.msra.mxu0 0
        %3542 = vmatprep.subr.bf16.mxu0 0
        %3543 = vmatpush1.bf16.msra.mxu0 0
        %3544 = vmatprep.subr.bf16.mxu0 0
        %3545 = vmatpush1.bf16.msra.mxu0 0
        %3546 = vmatprep.subr.bf16.mxu0 0
        %3547 = vmatpush1.bf16.msra.mxu0 0
        %3548 = vmatprep.mubr.bf16.mxu0 0
        %3549 = vmatmul.mubr.bf16.gmra.mrb[0].mxu0 %v3405
        %v3550 = vpop.f32.mrb[0].mxu0
        %v3551 = vadd.f32 %v3498, %v3550
        %v3552 = vpop.f32.mrb[0].mxu0
        %v3553 = vadd.f32 %v3500, %v3552
        %v3554 = vpop.f32.mrb[0].mxu0
        %v3555 = vadd.f32 %v3502, %v3554
        %v3556 = vpop.f32.mrb[0].mxu0
        %v3557 = vadd.f32 %v3504, %v3556
        %3558 = vmatprep.mubr.bf16.mxu0 0
        %3559 = vmatmul.mubr.bf16.gmra.mrb[0].mxu0 %v3408
        %v3560 = vpop.f32.mrb[0].mxu0
        %v3561 = vadd.f32 %v3508, %v3560
        %v3562 = vpop.f32.mrb[0].mxu0
        %v3563 = vadd.f32 %v3510, %v3562
        %v3564 = vpop.f32.mrb[0].mxu0
        %v3565 = vadd.f32 %v3512, %v3564
        %v3566 = vpop.f32.mrb[0].mxu0
        %v3567 = vadd.f32 %v3514, %v3566
        %3568 = vdwg.mxu0
        %v3569 = vpack.c.bf16 %v3555, %v3551
        %v3570 = vpack.c.bf16 %v3557, %v3553
        %v3571 = vpack.c.bf16 %v3565, %v3561
        %v3572 = vpack.c.bf16 %v3567, %v3563
        %v3573 = vld [vmem:[%s10] sm:$0xff]
        %v3574 = vld [vmem:[%s10 + $0x8] sm:$0xff]
        %v3575 = vld [vmem:[%s10 + $0x10] sm:$0xff]
        %v3576 = vld [vmem:[%s10 + $0x18] sm:$0xff]
        %v3577 = vld [vmem:[%s10 + $0x20] sm:$0xff]
        %v3578 = vld [vmem:[%s10 + $0x28] sm:$0xff]
        %v3579 = vld [vmem:[%s10 + $0x30] sm:$0xff]
        %v3580 = vld [vmem:[%s10 + $0x38] sm:$0xff]
        %v3581 = vld [vmem:[%s10 + $0x40] sm:$0xff]
        %v3582 = vld [vmem:[%s10 + $0x48] sm:$0xff]
        %v3583 = vld [vmem:[%s10 + $0x50] sm:$0xff]
        %v3584 = vld [vmem:[%s10 + $0x58] sm:$0xff]
        %v3585 = vld [vmem:[%s10 + $0x60] sm:$0xff]
        %v3586 = vld [vmem:[%s10 + $0x68] sm:$0xff]
        %v3587 = vld [vmem:[%s10 + $0x70] sm:$0xff]
        %v3588 = vld [vmem:[%s10 + $0x78] sm:$0xff]
        %v3589 = vld [vmem:[%s10 + $0x80] sm:$0xff]
        %v3590 = vld [vmem:[%s10 + $0x88] sm:$0xff]
        %v3591 = vld [vmem:[%s10 + $0x90] sm:$0xff]
        %v3592 = vld [vmem:[%s10 + $0x98] sm:$0xff]
        %v3593 = vld [vmem:[%s10 + $0xa0] sm:$0xff]
        %v3594 = vld [vmem:[%s10 + $0xa8] sm:$0xff]
        %v3595 = vld [vmem:[%s10 + $0xb0] sm:$0xff]
        %v3596 = vld [vmem:[%s10 + $0xb8] sm:$0xff]
        %v3597 = vld [vmem:[%s10 + $0xc0] sm:$0xff]
        %v3598 = vld [vmem:[%s10 + $0xc8] sm:$0xff]
        %v3599 = vld [vmem:[%s10 + $0xd0] sm:$0xff]
        %v3600 = vld [vmem:[%s10 + $0xd8] sm:$0xff]
        %v3601 = vld [vmem:[%s10 + $0xe0] sm:$0xff]
        %v3602 = vld [vmem:[%s10 + $0xe8] sm:$0xff]
        %v3603 = vld [vmem:[%s10 + $0xf0] sm:$0xff]
        %v3604 = vld [vmem:[%s10 + $0xf8] sm:$0xff]
        %v3605 = vld [vmem:[%s10 + $0x100] sm:$0xff]
        %v3606 = vld [vmem:[%s10 + $0x108] sm:$0xff]
        %v3607 = vld [vmem:[%s10 + $0x110] sm:$0xff]
        %v3608 = vld [vmem:[%s10 + $0x118] sm:$0xff]
        %v3609 = vld [vmem:[%s10 + $0x120] sm:$0xff]
        %v3610 = vld [vmem:[%s10 + $0x128] sm:$0xff]
        %v3611 = vld [vmem:[%s10 + $0x130] sm:$0xff]
        %v3612 = vld [vmem:[%s10 + $0x138] sm:$0xff]
        %v3613 = vld [vmem:[%s10 + $0x140] sm:$0xff]
        %v3614 = vld [vmem:[%s10 + $0x148] sm:$0xff]
        %v3615 = vld [vmem:[%s10 + $0x150] sm:$0xff]
        %v3616 = vld [vmem:[%s10 + $0x158] sm:$0xff]
        %v3617 = vld [vmem:[%s10 + $0x160] sm:$0xff]
        %v3618 = vld [vmem:[%s10 + $0x168] sm:$0xff]
        %v3619 = vld [vmem:[%s10 + $0x170] sm:$0xff]
        %v3620 = vld [vmem:[%s10 + $0x178] sm:$0xff]
        %v3621 = vld [vmem:[%s10 + $0x180] sm:$0xff]
        %v3622 = vld [vmem:[%s10 + $0x188] sm:$0xff]
        %v3623 = vld [vmem:[%s10 + $0x190] sm:$0xff]
        %v3624 = vld [vmem:[%s10 + $0x198] sm:$0xff]
        %v3625 = vld [vmem:[%s10 + $0x1a0] sm:$0xff]
        %v3626 = vld [vmem:[%s10 + $0x1a8] sm:$0xff]
        %v3627 = vld [vmem:[%s10 + $0x1b0] sm:$0xff]
        %v3628 = vld [vmem:[%s10 + $0x1b8] sm:$0xff]
        %v3629 = vld [vmem:[%s10 + $0x1c0] sm:$0xff]
        %v3630 = vld [vmem:[%s10 + $0x1c8] sm:$0xff]
        %v3631 = vld [vmem:[%s10 + $0x1d0] sm:$0xff]
        %v3632 = vld [vmem:[%s10 + $0x1d8] sm:$0xff]
        %v3633 = vld [vmem:[%s10 + $0x1e0] sm:$0xff]
        %v3634 = vld [vmem:[%s10 + $0x1e8] sm:$0xff]
        %v3635 = vld [vmem:[%s10 + $0x1f0] sm:$0xff]
        %v3636 = vld [vmem:[%s10 + $0x1f8] sm:$0xff]
        %v3637 = vld [vmem:[%s10 + $0x200] sm:$0xff]
        %v3638 = vld [vmem:[%s10 + $0x208] sm:$0xff]
        %v3639 = vld [vmem:[%s10 + $0x210] sm:$0xff]
        %v3640 = vld [vmem:[%s10 + $0x218] sm:$0xff]
        %v3641 = vld [vmem:[%s10 + $0x220] sm:$0xff]
        %v3642 = vld [vmem:[%s10 + $0x228] sm:$0xff]
        %v3643 = vld [vmem:[%s10 + $0x230] sm:$0xff]
        %v3644 = vld [vmem:[%s10 + $0x238] sm:$0xff]
        %v3645 = vld [vmem:[%s10 + $0x240] sm:$0xff]
        %v3646 = vld [vmem:[%s10 + $0x248] sm:$0xff]
        %v3647 = vld [vmem:[%s10 + $0x250] sm:$0xff]
        %v3648 = vld [vmem:[%s10 + $0x258] sm:$0xff]
        %v3649 = vld [vmem:[%s10 + $0x260] sm:$0xff]
        %v3650 = vld [vmem:[%s10 + $0x268] sm:$0xff]
        %v3651 = vld [vmem:[%s10 + $0x270] sm:$0xff]
        %v3652 = vld [vmem:[%s10 + $0x278] sm:$0xff]
        %v3653 = vld [vmem:[%s11] sm:$0xff]
        %v3655 = vlaneseq
        %v3656 = vshrl.u32 %v3655, 7
        %v3657 = vsub.s32 0, %v3656
        %v3658 = vrot.slane %v3653, %v3657
        %v3659 = vlaneseq
        %v3660 = vshrl.u32 %v3659, 7
        %v3661 = vsub.s32 1, %v3660
        %v3662 = vrot.slane %v3653, %v3661
        %v3663 = vlaneseq
        %v3664 = vshrl.u32 %v3663, 7
        %v3665 = vsub.s32 2, %v3664
        %v3666 = vrot.slane %v3653, %v3665
        %v3667 = vlaneseq
        %v3668 = vshrl.u32 %v3667, 7
        %v3669 = vsub.s32 3, %v3668
        %v3670 = vrot.slane %v3653, %v3669
        %v3671 = vlaneseq
        %v3672 = vshrl.u32 %v3671, 7
        %v3673 = vsub.s32 4, %v3672
        %v3674 = vrot.slane %v3653, %v3673
        %v3675 = vlaneseq
        %v3676 = vshrl.u32 %v3675, 7
        %v3677 = vsub.s32 5, %v3676
        %v3678 = vrot.slane %v3653, %v3677
        %v3679 = vlaneseq
        %v3680 = vshrl.u32 %v3679, 7
        %v3681 = vsub.s32 6, %v3680
        %v3682 = vrot.slane %v3653, %v3681
        %v3683 = vlaneseq
        %v3684 = vshrl.u32 %v3683, 7
        %v3685 = vsub.s32 7, %v3684
        %v3686 = vrot.slane %v3653, %v3685
        %v3775 = vunpack.c.l.b16 %v3573
        %v3776 = vunpack.c.h.b16 %v3573
        %v3777 = vunpack.c.l.b16 %v3574
        %v3778 = vunpack.c.h.b16 %v3574
        %v3779 = vunpack.c.l.b16 %v3575
        %v3780 = vunpack.c.h.b16 %v3575
        %v3781 = vunpack.c.l.b16 %v3576
        %v3782 = vunpack.c.h.b16 %v3576
        %v3783 = vunpack.c.l.b16 %v3577
        %v3784 = vunpack.c.h.b16 %v3577
        %v3785 = vunpack.c.l.b16 %v3578
        %v3786 = vunpack.c.h.b16 %v3578
        %v3787 = vunpack.c.l.b16 %v3579
        %v3788 = vunpack.c.h.b16 %v3579
        %v3789 = vunpack.c.l.b16 %v3580
        %v3790 = vunpack.c.h.b16 %v3580
        %v3791 = vunpack.c.l.b16 %v3581
        %v3792 = vunpack.c.h.b16 %v3581
        %v3793 = vunpack.c.l.b16 %v3582
        %v3794 = vunpack.c.h.b16 %v3582
        %v3795 = vunpack.c.l.b16 %v3583
        %v3796 = vunpack.c.h.b16 %v3583
        %v3797 = vunpack.c.l.b16 %v3584
        %v3798 = vunpack.c.h.b16 %v3584
        %v3799 = vunpack.c.l.b16 %v3585
        %v3800 = vunpack.c.h.b16 %v3585
        %v3801 = vunpack.c.l.b16 %v3586
        %v3802 = vunpack.c.h.b16 %v3586
        %v3803 = vunpack.c.l.b16 %v3587
        %v3804 = vunpack.c.h.b16 %v3587
        %v3805 = vunpack.c.l.b16 %v3588
        %v3806 = vunpack.c.h.b16 %v3588
        %v3807 = vunpack.c.l.b16 %v3589
        %v3808 = vunpack.c.h.b16 %v3589
        %v3809 = vunpack.c.l.b16 %v3590
        %v3810 = vunpack.c.h.b16 %v3590
        %v3811 = vunpack.c.l.b16 %v3591
        %v3812 = vunpack.c.h.b16 %v3591
        %v3813 = vunpack.c.l.b16 %v3592
        %v3814 = vunpack.c.h.b16 %v3592
        %v3815 = vunpack.c.l.b16 %v3593
        %v3816 = vunpack.c.h.b16 %v3593
        %v3817 = vunpack.c.l.b16 %v3594
        %v3818 = vunpack.c.h.b16 %v3594
        %v3819 = vunpack.c.l.b16 %v3595
        %v3820 = vunpack.c.h.b16 %v3595
        %v3821 = vunpack.c.l.b16 %v3596
        %v3822 = vunpack.c.h.b16 %v3596
        %v3823 = vunpack.c.l.b16 %v3597
        %v3824 = vunpack.c.h.b16 %v3597
        %v3825 = vunpack.c.l.b16 %v3598
        %v3826 = vunpack.c.h.b16 %v3598
        %v3827 = vunpack.c.l.b16 %v3599
        %v3828 = vunpack.c.h.b16 %v3599
        %v3829 = vunpack.c.l.b16 %v3600
        %v3830 = vunpack.c.h.b16 %v3600
        %v3831 = vunpack.c.l.b16 %v3601
        %v3832 = vunpack.c.h.b16 %v3601
        %v3833 = vunpack.c.l.b16 %v3602
        %v3834 = vunpack.c.h.b16 %v3602
        %v3835 = vunpack.c.l.b16 %v3603
        %v3836 = vunpack.c.h.b16 %v3603
        %v3837 = vunpack.c.l.b16 %v3604
        %v3838 = vunpack.c.h.b16 %v3604
        %v3839 = vunpack.c.l.b16 %v3605
        %v3840 = vunpack.c.h.b16 %v3605
        %v3841 = vunpack.c.l.b16 %v3606
        %v3842 = vunpack.c.h.b16 %v3606
        %v3843 = vunpack.c.l.b16 %v3607
        %v3844 = vunpack.c.h.b16 %v3607
        %v3845 = vunpack.c.l.b16 %v3608
        %v3846 = vunpack.c.h.b16 %v3608
        %v3847 = vunpack.c.l.b16 %v3609
        %v3848 = vunpack.c.h.b16 %v3609
        %v3849 = vunpack.c.l.b16 %v3610
        %v3850 = vunpack.c.h.b16 %v3610
        %v3851 = vunpack.c.l.b16 %v3611
        %v3852 = vunpack.c.h.b16 %v3611
        %v3853 = vunpack.c.l.b16 %v3612
        %v3854 = vunpack.c.h.b16 %v3612
        %v3855 = vunpack.c.l.b16 %v3613
        %v3856 = vunpack.c.h.b16 %v3613
        %v3857 = vunpack.c.l.b16 %v3614
        %v3858 = vunpack.c.h.b16 %v3614
        %v3859 = vunpack.c.l.b16 %v3615
        %v3860 = vunpack.c.h.b16 %v3615
        %v3861 = vunpack.c.l.b16 %v3616
        %v3862 = vunpack.c.h.b16 %v3616
        %v3863 = vunpack.c.l.b16 %v3617
        %v3864 = vunpack.c.h.b16 %v3617
        %v3865 = vunpack.c.l.b16 %v3618
        %v3866 = vunpack.c.h.b16 %v3618
        %v3867 = vunpack.c.l.b16 %v3619
        %v3868 = vunpack.c.h.b16 %v3619
        %v3869 = vunpack.c.l.b16 %v3620
        %v3870 = vunpack.c.h.b16 %v3620
        %v3871 = vunpack.c.l.b16 %v3621
        %v3872 = vunpack.c.h.b16 %v3621
        %v3873 = vunpack.c.l.b16 %v3622
        %v3874 = vunpack.c.h.b16 %v3622
        %v3875 = vunpack.c.l.b16 %v3623
        %v3876 = vunpack.c.h.b16 %v3623
        %v3877 = vunpack.c.l.b16 %v3624
        %v3878 = vunpack.c.h.b16 %v3624
        %v3879 = vunpack.c.l.b16 %v3625
        %v3880 = vunpack.c.h.b16 %v3625
        %v3881 = vunpack.c.l.b16 %v3626
        %v3882 = vunpack.c.h.b16 %v3626
        %v3883 = vunpack.c.l.b16 %v3627
        %v3884 = vunpack.c.h.b16 %v3627
        %v3885 = vunpack.c.l.b16 %v3628
        %v3886 = vunpack.c.h.b16 %v3628
        %v3887 = vunpack.c.l.b16 %v3629
        %v3888 = vunpack.c.h.b16 %v3629
        %v3889 = vunpack.c.l.b16 %v3630
        %v3890 = vunpack.c.h.b16 %v3630
        %v3891 = vunpack.c.l.b16 %v3631
        %v3892 = vunpack.c.h.b16 %v3631
        %v3893 = vunpack.c.l.b16 %v3632
        %v3894 = vunpack.c.h.b16 %v3632
        %v3895 = vunpack.c.l.b16 %v3633
        %v3896 = vunpack.c.h.b16 %v3633
        %v3897 = vunpack.c.l.b16 %v3634
        %v3898 = vunpack.c.h.b16 %v3634
        %v3899 = vunpack.c.l.b16 %v3635
        %v3900 = vunpack.c.h.b16 %v3635
        %v3901 = vunpack.c.l.b16 %v3636
        %v3902 = vunpack.c.h.b16 %v3636
        %v3903 = vunpack.c.l.b16 %v3637
        %v3904 = vunpack.c.h.b16 %v3637
        %v3905 = vunpack.c.l.b16 %v3638
        %v3906 = vunpack.c.h.b16 %v3638
        %v3907 = vunpack.c.l.b16 %v3639
        %v3908 = vunpack.c.h.b16 %v3639
        %v3909 = vunpack.c.l.b16 %v3640
        %v3910 = vunpack.c.h.b16 %v3640
        %v3911 = vunpack.c.l.b16 %v3641
        %v3912 = vunpack.c.h.b16 %v3641
        %v3913 = vunpack.c.l.b16 %v3642
        %v3914 = vunpack.c.h.b16 %v3642
        %v3915 = vunpack.c.l.b16 %v3643
        %v3916 = vunpack.c.h.b16 %v3643
        %v3917 = vunpack.c.l.b16 %v3644
        %v3918 = vunpack.c.h.b16 %v3644
        %v3919 = vunpack.c.l.b16 %v3645
        %v3920 = vunpack.c.h.b16 %v3645
        %v3921 = vunpack.c.l.b16 %v3646
        %v3922 = vunpack.c.h.b16 %v3646
        %v3923 = vunpack.c.l.b16 %v3647
        %v3924 = vunpack.c.h.b16 %v3647
        %v3925 = vunpack.c.l.b16 %v3648
        %v3926 = vunpack.c.h.b16 %v3648
        %v3927 = vunpack.c.l.b16 %v3649
        %v3928 = vunpack.c.h.b16 %v3649
        %v3929 = vunpack.c.l.b16 %v3650
        %v3930 = vunpack.c.h.b16 %v3650
        %v3931 = vunpack.c.l.b16 %v3651
        %v3932 = vunpack.c.h.b16 %v3651
        %v3933 = vunpack.c.l.b16 %v3652
        %v3934 = vunpack.c.h.b16 %v3652
        %v3935 = vpack.c.b16 %v3783, %v3775
        %v3936 = vpack.c.b16 %v3784, %v3776
        %v3937 = vpack.c.b16 %v3785, %v3777
        %v3938 = vpack.c.b16 %v3786, %v3778
        %v3939 = vpack.c.b16 %v3787, %v3779
        %v3940 = vpack.c.b16 %v3788, %v3780
        %v3941 = vpack.c.b16 %v3789, %v3781
        %v3942 = vpack.c.b16 %v3790, %v3782
        %v3943 = vpack.c.b16 %v3799, %v3791
        %v3944 = vpack.c.b16 %v3800, %v3792
        %v3945 = vpack.c.b16 %v3801, %v3793
        %v3946 = vpack.c.b16 %v3802, %v3794
        %v3947 = vpack.c.b16 %v3803, %v3795
        %v3948 = vpack.c.b16 %v3804, %v3796
        %v3949 = vpack.c.b16 %v3805, %v3797
        %v3950 = vpack.c.b16 %v3806, %v3798
        %v3951 = vpack.c.b16 %v3815, %v3807
        %v3952 = vpack.c.b16 %v3816, %v3808
        %v3953 = vpack.c.b16 %v3817, %v3809
        %v3954 = vpack.c.b16 %v3818, %v3810
        %v3955 = vpack.c.b16 %v3819, %v3811
        %v3956 = vpack.c.b16 %v3820, %v3812
        %v3957 = vpack.c.b16 %v3821, %v3813
        %v3958 = vpack.c.b16 %v3822, %v3814
        %v3959 = vpack.c.b16 %v3831, %v3823
        %v3960 = vpack.c.b16 %v3832, %v3824
        %v3961 = vpack.c.b16 %v3833, %v3825
        %v3962 = vpack.c.b16 %v3834, %v3826
        %v3963 = vpack.c.b16 %v3835, %v3827
        %v3964 = vpack.c.b16 %v3836, %v3828
        %v3965 = vpack.c.b16 %v3837, %v3829
        %v3966 = vpack.c.b16 %v3838, %v3830
        %v3967 = vpack.c.b16 %v3847, %v3839
        %v3968 = vpack.c.b16 %v3848, %v3840
        %v3969 = vpack.c.b16 %v3849, %v3841
        %v3970 = vpack.c.b16 %v3850, %v3842
        %v3971 = vpack.c.b16 %v3851, %v3843
        %v3972 = vpack.c.b16 %v3852, %v3844
        %v3973 = vpack.c.b16 %v3853, %v3845
        %v3974 = vpack.c.b16 %v3854, %v3846
        %v3975 = vpack.c.b16 %v3863, %v3855
        %v3976 = vpack.c.b16 %v3864, %v3856
        %v3977 = vpack.c.b16 %v3865, %v3857
        %v3978 = vpack.c.b16 %v3866, %v3858
        %v3979 = vpack.c.b16 %v3867, %v3859
        %v3980 = vpack.c.b16 %v3868, %v3860
        %v3981 = vpack.c.b16 %v3869, %v3861
        %v3982 = vpack.c.b16 %v3870, %v3862
        %v3983 = vpack.c.b16 %v3879, %v3871
        %v3984 = vpack.c.b16 %v3880, %v3872
        %v3985 = vpack.c.b16 %v3881, %v3873
        %v3986 = vpack.c.b16 %v3882, %v3874
        %v3987 = vpack.c.b16 %v3883, %v3875
        %v3988 = vpack.c.b16 %v3884, %v3876
        %v3989 = vpack.c.b16 %v3885, %v3877
        %v3990 = vpack.c.b16 %v3886, %v3878
        %v3991 = vpack.c.b16 %v3895, %v3887
        %v3992 = vpack.c.b16 %v3896, %v3888
        %v3993 = vpack.c.b16 %v3897, %v3889
        %v3994 = vpack.c.b16 %v3898, %v3890
        %v3995 = vpack.c.b16 %v3899, %v3891
        %v3996 = vpack.c.b16 %v3900, %v3892
        %v3997 = vpack.c.b16 %v3901, %v3893
        %v3998 = vpack.c.b16 %v3902, %v3894
        %v3999 = vpack.c.b16 %v3911, %v3903
        %v4000 = vpack.c.b16 %v3912, %v3904
        %v4001 = vpack.c.b16 %v3913, %v3905
        %v4002 = vpack.c.b16 %v3914, %v3906
        %v4003 = vpack.c.b16 %v3915, %v3907
        %v4004 = vpack.c.b16 %v3916, %v3908
        %v4005 = vpack.c.b16 %v3917, %v3909
        %v4006 = vpack.c.b16 %v3918, %v3910
        %v4007 = vpack.c.b16 %v3927, %v3919
        %v4008 = vpack.c.b16 %v3928, %v3920
        %v4009 = vpack.c.b16 %v3929, %v3921
        %v4010 = vpack.c.b16 %v3930, %v3922
        %v4011 = vpack.c.b16 %v3931, %v3923
        %v4012 = vpack.c.b16 %v3932, %v3924
        %v4013 = vpack.c.b16 %v3933, %v3925
        %v4014 = vpack.c.b16 %v3934, %v3926
        %vm4095 = vcmask 261120
        %v4097 = vsel %vm4095, %v3570, 0
        %v4100 = vsel %vm4095, %v3572, 0
        %4102 = vmatprep.subr.bf16.mxu0 %v3936
        %4103 = vmatpush1.bf16.msra.mxu0 %v3935
        %4104 = vmatprep.subr.bf16.mxu0 %v3944
        %4105 = vmatpush1.bf16.msra.mxu0 %v3943
        %4106 = vmatprep.subr.bf16.mxu0 %v3952
        %4107 = vmatpush1.bf16.msra.mxu0 %v3951
        %4108 = vmatprep.subr.bf16.mxu0 %v3960
        %4109 = vmatpush1.bf16.msra.mxu0 %v3959
        %4110 = vmatprep.subr.bf16.mxu0 %v3968
        %4111 = vmatpush1.bf16.msra.mxu0 %v3967
        %4112 = vmatprep.subr.bf16.mxu0 %v3976
        %4113 = vmatpush1.bf16.msra.mxu0 %v3975
        %4114 = vmatprep.subr.bf16.mxu0 %v3984
        %4115 = vmatpush1.bf16.msra.mxu0 %v3983
        %4116 = vmatprep.subr.bf16.mxu0 %v3992
        %4117 = vmatpush1.bf16.msra.mxu0 %v3991
        %4118 = vmatprep.subr.bf16.mxu0 %v4000
        %4119 = vmatpush1.bf16.msra.mxu0 %v3999
        %4120 = vmatprep.subr.bf16.mxu0 %v4008
        %4121 = vmatpush1.bf16.msra.mxu0 %v4007
        %4122 = vmatprep.subr.bf16.mxu0 0
        %4123 = vmatpush1.bf16.msra.mxu0 0
        %4124 = vmatprep.subr.bf16.mxu0 0
        %4125 = vmatpush1.bf16.msra.mxu0 0
        %4126 = vmatprep.subr.bf16.mxu0 0
        %4127 = vmatpush1.bf16.msra.mxu0 0
        %4128 = vmatprep.subr.bf16.mxu0 0
        %4129 = vmatpush1.bf16.msra.mxu0 0
        %4130 = vmatprep.subr.bf16.mxu0 0
        %4131 = vmatpush1.bf16.msra.mxu0 0
        %4132 = vmatprep.subr.bf16.mxu0 0
        %4133 = vmatpush1.bf16.msra.mxu0 0
        %4134 = vmatprep.mubr.bf16.mxu0 %v4097
        %4135 = vmatmul.mubr.bf16.gmra.mrb[0].mxu0 %v3569
        %v4136 = vpop.f32.mrb[0].mxu0
        %v4137 = vadd.f32 %v3658, %v4136
        %v4138 = vpop.f32.mrb[0].mxu0
        %v4139 = vadd.f32 %v3662, %v4138
        %v4140 = vpop.f32.mrb[0].mxu0
        %v4141 = vadd.f32 %v3658, %v4140
        %v4142 = vpop.f32.mrb[0].mxu0
        %v4143 = vadd.f32 %v3662, %v4142
        %4144 = vmatprep.mubr.bf16.mxu0 %v4100
        %4145 = vmatmul.mubr.bf16.gmra.mrb[0].mxu0 %v3571
        %v4146 = vpop.f32.mrb[0].mxu0
        %v4147 = vadd.f32 %v3658, %v4146
        %v4148 = vpop.f32.mrb[0].mxu0
        %v4149 = vadd.f32 %v3662, %v4148
        %v4150 = vpop.f32.mrb[0].mxu0
        %v4151 = vadd.f32 %v3658, %v4150
        %v4152 = vpop.f32.mrb[0].mxu0
        %v4153 = vadd.f32 %v3662, %v4152
        %4154 = vdwg.mxu0
        %4155 = vmatprep.subr.bf16.mxu0 %v3938
        %4156 = vmatpush1.bf16.msra.mxu0 %v3937
        %4157 = vmatprep.subr.bf16.mxu0 %v3946
        %4158 = vmatpush1.bf16.msra.mxu0 %v3945
        %4159 = vmatprep.subr.bf16.mxu0 %v3954
        %4160 = vmatpush1.bf16.msra.mxu0 %v3953
        %4161 = vmatprep.subr.bf16.mxu0 %v3962
        %4162 = vmatpush1.bf16.msra.mxu0 %v3961
        %4163 = vmatprep.subr.bf16.mxu0 %v3970
        %4164 = vmatpush1.bf16.msra.mxu0 %v3969
        %4165 = vmatprep.subr.bf16.mxu0 %v3978
        %4166 = vmatpush1.bf16.msra.mxu0 %v3977
        %4167 = vmatprep.subr.bf16.mxu0 %v3986
        %4168 = vmatpush1.bf16.msra.mxu0 %v3985
        %4169 = vmatprep.subr.bf16.mxu0 %v3994
        %4170 = vmatpush1.bf16.msra.mxu0 %v3993
        %4171 = vmatprep.subr.bf16.mxu0 %v4002
        %4172 = vmatpush1.bf16.msra.mxu0 %v4001
        %4173 = vmatprep.subr.bf16.mxu0 %v4010
        %4174 = vmatpush1.bf16.msra.mxu0 %v4009
        %4175 = vmatprep.subr.bf16.mxu0 0
        %4176 = vmatpush1.bf16.msra.mxu0 0
        %4177 = vmatprep.subr.bf16.mxu0 0
        %4178 = vmatpush1.bf16.msra.mxu0 0
        %4179 = vmatprep.subr.bf16.mxu0 0
        %4180 = vmatpush1.bf16.msra.mxu0 0
        %4181 = vmatprep.subr.bf16.mxu0 0
        %4182 = vmatpush1.bf16.msra.mxu0 0
        %4183 = vmatprep.subr.bf16.mxu0 0
        %4184 = vmatpush1.bf16.msra.mxu0 0
        %4185 = vmatprep.subr.bf16.mxu0 0
        %4186 = vmatpush1.bf16.msra.mxu0 0
        %4187 = vmatprep.mubr.bf16.mxu0 %v4097
        %4188 = vmatmul.mubr.bf16.gmra.mrb[0].mxu0 %v3569
        %v4189 = vpop.f32.mrb[0].mxu0
        %v4190 = vadd.f32 %v3666, %v4189
        %v4191 = vpop.f32.mrb[0].mxu0
        %v4192 = vadd.f32 %v3670, %v4191
        %v4193 = vpop.f32.mrb[0].mxu0
        %v4194 = vadd.f32 %v3666, %v4193
        %v4195 = vpop.f32.mrb[0].mxu0
        %v4196 = vadd.f32 %v3670, %v4195
        %4197 = vmatprep.mubr.bf16.mxu0 %v4100
        %4198 = vmatmul.mubr.bf16.gmra.mrb[0].mxu0 %v3571
        %v4199 = vpop.f32.mrb[0].mxu0
        %v4200 = vadd.f32 %v3666, %v4199
        %v4201 = vpop.f32.mrb[0].mxu0
        %v4202 = vadd.f32 %v3670, %v4201
        %v4203 = vpop.f32.mrb[0].mxu0
        %v4204 = vadd.f32 %v3666, %v4203
        %v4205 = vpop.f32.mrb[0].mxu0
        %v4206 = vadd.f32 %v3670, %v4205
        %4207 = vdwg.mxu0
        %4208 = vmatprep.subr.bf16.mxu0 %v3940
        %4209 = vmatpush1.bf16.msra.mxu0 %v3939
        %4210 = vmatprep.subr.bf16.mxu0 %v3948
        %4211 = vmatpush1.bf16.msra.mxu0 %v3947
        %4212 = vmatprep.subr.bf16.mxu0 %v3956
        %4213 = vmatpush1.bf16.msra.mxu0 %v3955
        %4214 = vmatprep.subr.bf16.mxu0 %v3964
        %4215 = vmatpush1.bf16.msra.mxu0 %v3963
        %4216 = vmatprep.subr.bf16.mxu0 %v3972
        %4217 = vmatpush1.bf16.msra.mxu0 %v3971
        %4218 = vmatprep.subr.bf16.mxu0 %v3980
        %4219 = vmatpush1.bf16.msra.mxu0 %v3979
        %4220 = vmatprep.subr.bf16.mxu0 %v3988
        %4221 = vmatpush1.bf16.msra.mxu0 %v3987
        %4222 = vmatprep.subr.bf16.mxu0 %v3996
        %4223 = vmatpush1.bf16.msra.mxu0 %v3995
        %4224 = vmatprep.subr.bf16.mxu0 %v4004
        %4225 = vmatpush1.bf16.msra.mxu0 %v4003
        %4226 = vmatprep.subr.bf16.mxu0 %v4012
        %4227 = vmatpush1.bf16.msra.mxu0 %v4011
        %4228 = vmatprep.subr.bf16.mxu0 0
        %4229 = vmatpush1.bf16.msra.mxu0 0
        %4230 = vmatprep.subr.bf16.mxu0 0
        %4231 = vmatpush1.bf16.msra.mxu0 0
        %4232 = vmatprep.subr.bf16.mxu0 0
        %4233 = vmatpush1.bf16.msra.mxu0 0
        %4234 = vmatprep.subr.bf16.mxu0 0
        %4235 = vmatpush1.bf16.msra.mxu0 0
        %4236 = vmatprep.subr.bf16.mxu0 0
        %4237 = vmatpush1.bf16.msra.mxu0 0
        %4238 = vmatprep.subr.bf16.mxu0 0
        %4239 = vmatpush1.bf16.msra.mxu0 0
        %4240 = vmatprep.mubr.bf16.mxu0 %v4097
        %4241 = vmatmul.mubr.bf16.gmra.mrb[0].mxu0 %v3569
        %v4242 = vpop.f32.mrb[0].mxu0
        %v4243 = vadd.f32 %v3674, %v4242
        %v4244 = vpop.f32.mrb[0].mxu0
        %v4245 = vadd.f32 %v3678, %v4244
        %v4246 = vpop.f32.mrb[0].mxu0
        %v4247 = vadd.f32 %v3674, %v4246
        %v4248 = vpop.f32.mrb[0].mxu0
        %v4249 = vadd.f32 %v3678, %v4248
        %4250 = vmatprep.mubr.bf16.mxu0 %v4100
        %4251 = vmatmul.mubr.bf16.gmra.mrb[0].mxu0 %v3571
        %v4252 = vpop.f32.mrb[0].mxu0
        %v4253 = vadd.f32 %v3674, %v4252
        %v4254 = vpop.f32.mrb[0].mxu0
        %v4255 = vadd.f32 %v3678, %v4254
        %v4256 = vpop.f32.mrb[0].mxu0
        %v4257 = vadd.f32 %v3674, %v4256
        %v4258 = vpop.f32.mrb[0].mxu0
        %v4259 = vadd.f32 %v3678, %v4258
        %4260 = vdwg.mxu0
        %4261 = vmatprep.subr.bf16.mxu0 %v3942
        %4262 = vmatpush1.bf16.msra.mxu0 %v3941
        %4263 = vmatprep.subr.bf16.mxu0 %v3950
        %4264 = vmatpush1.bf16.msra.mxu0 %v3949
        %4265 = vmatprep.subr.bf16.mxu0 %v3958
        %4266 = vmatpush1.bf16.msra.mxu0 %v3957
        %4267 = vmatprep.subr.bf16.mxu0 %v3966
        %4268 = vmatpush1.bf16.msra.mxu0 %v3965
        %4269 = vmatprep.subr.bf16.mxu0 %v3974
        %4270 = vmatpush1.bf16.msra.mxu0 %v3973
        %4271 = vmatprep.subr.bf16.mxu0 %v3982
        %4272 = vmatpush1.bf16.msra.mxu0 %v3981
        %4273 = vmatprep.subr.bf16.mxu0 %v3990
        %4274 = vmatpush1.bf16.msra.mxu0 %v3989
        %4275 = vmatprep.subr.bf16.mxu0 %v3998
        %4276 = vmatpush1.bf16.msra.mxu0 %v3997
        %4277 = vmatprep.subr.bf16.mxu0 %v4006
        %4278 = vmatpush1.bf16.msra.mxu0 %v4005
        %4279 = vmatprep.subr.bf16.mxu0 %v4014
        %4280 = vmatpush1.bf16.msra.mxu0 %v4013
        %4281 = vmatprep.subr.bf16.mxu0 0
        %4282 = vmatpush1.bf16.msra.mxu0 0
        %4283 = vmatprep.subr.bf16.mxu0 0
        %4284 = vmatpush1.bf16.msra.mxu0 0
        %4285 = vmatprep.subr.bf16.mxu0 0
        %4286 = vmatpush1.bf16.msra.mxu0 0
        %4287 = vmatprep.subr.bf16.mxu0 0
        %4288 = vmatpush1.bf16.msra.mxu0 0
        %4289 = vmatprep.subr.bf16.mxu0 0
        %4290 = vmatpush1.bf16.msra.mxu0 0
        %4291 = vmatprep.subr.bf16.mxu0 0
        %4292 = vmatpush1.bf16.msra.mxu0 0
        %4293 = vmatprep.mubr.bf16.mxu0 %v4097
        %4294 = vmatmul.mubr.bf16.gmra.mrb[0].mxu0 %v3569
        %v4295 = vpop.f32.mrb[0].mxu0
        %v4296 = vadd.f32 %v3682, %v4295
        %v4297 = vpop.f32.mrb[0].mxu0
        %v4298 = vadd.f32 %v3686, %v4297
        %v4299 = vpop.f32.mrb[0].mxu0
        %v4300 = vadd.f32 %v3682, %v4299
        %v4301 = vpop.f32.mrb[0].mxu0
        %v4302 = vadd.f32 %v3686, %v4301
        %4303 = vmatprep.mubr.bf16.mxu0 %v4100
        %4304 = vmatmul.mubr.bf16.gmra.mrb[0].mxu0 %v3571
        %v4305 = vpop.f32.mrb[0].mxu0
        %v4306 = vadd.f32 %v3682, %v4305
        %v4307 = vpop.f32.mrb[0].mxu0
        %v4308 = vadd.f32 %v3686, %v4307
        %v4309 = vpop.f32.mrb[0].mxu0
        %v4310 = vadd.f32 %v3682, %v4309
        %v4311 = vpop.f32.mrb[0].mxu0
        %v4312 = vadd.f32 %v3686, %v4311
        %4313 = vdwg.mxu0
        %v4314 = vmax.f32 %v4137, 0.0
        %v4315 = vmax.f32 %v4139, 0.0
        %v4316 = vmax.f32 %v4190, 0.0
        %v4317 = vmax.f32 %v4192, 0.0
        %v4318 = vmax.f32 %v4243, 0.0
        %v4319 = vmax.f32 %v4245, 0.0
        %v4320 = vmax.f32 %v4296, 0.0
        %v4321 = vmax.f32 %v4298, 0.0
        %v4322 = vmax.f32 %v4141, 0.0
        %v4323 = vmax.f32 %v4143, 0.0
        %v4324 = vmax.f32 %v4194, 0.0
        %v4325 = vmax.f32 %v4196, 0.0
        %v4326 = vmax.f32 %v4247, 0.0
        %v4327 = vmax.f32 %v4249, 0.0
        %v4328 = vmax.f32 %v4300, 0.0
        %v4329 = vmax.f32 %v4302, 0.0
        %v4330 = vmax.f32 %v4147, 0.0
        %v4331 = vmax.f32 %v4149, 0.0
        %v4332 = vmax.f32 %v4200, 0.0
        %v4333 = vmax.f32 %v4202, 0.0
        %v4334 = vmax.f32 %v4253, 0.0
        %v4335 = vmax.f32 %v4255, 0.0
        %v4336 = vmax.f32 %v4306, 0.0
        %v4337 = vmax.f32 %v4308, 0.0
        %v4338 = vmax.f32 %v4151, 0.0
        %v4339 = vmax.f32 %v4153, 0.0
        %v4340 = vmax.f32 %v4204, 0.0
        %v4341 = vmax.f32 %v4206, 0.0
        %v4342 = vmax.f32 %v4257, 0.0
        %v4343 = vmax.f32 %v4259, 0.0
        %v4344 = vmax.f32 %v4310, 0.0
        %v4345 = vmax.f32 %v4312, 0.0
        %v4346 = vmin.f32 %v4314, 6.0
        %v4347 = vmin.f32 %v4315, 6.0
        %v4348 = vmin.f32 %v4316, 6.0
        %v4349 = vmin.f32 %v4317, 6.0
        %v4350 = vmin.f32 %v4318, 6.0
        %v4351 = vmin.f32 %v4319, 6.0
        %v4352 = vmin.f32 %v4320, 6.0
        %v4353 = vmin.f32 %v4321, 6.0
        %v4354 = vmin.f32 %v4322, 6.0
        %v4355 = vmin.f32 %v4323, 6.0
        %v4356 = vmin.f32 %v4324, 6.0
        %v4357 = vmin.f32 %v4325, 6.0
        %v4358 = vmin.f32 %v4326, 6.0
        %v4359 = vmin.f32 %v4327, 6.0
        %v4360 = vmin.f32 %v4328, 6.0
        %v4361 = vmin.f32 %v4329, 6.0
        %v4362 = vmin.f32 %v4330, 6.0
        %v4363 = vmin.f32 %v4331, 6.0
        %v4364 = vmin.f32 %v4332, 6.0
        %v4365 = vmin.f32 %v4333, 6.0
        %v4366 = vmin.f32 %v4334, 6.0
        %v4367 = vmin.f32 %v4335, 6.0
        %v4368 = vmin.f32 %v4336, 6.0
        %v4369 = vmin.f32 %v4337, 6.0
        %v4370 = vmin.f32 %v4338, 6.0
        %v4371 = vmin.f32 %v4339, 6.0
        %v4372 = vmin.f32 %v4340, 6.0
        %v4373 = vmin.f32 %v4341, 6.0
        %v4374 = vmin.f32 %v4342, 6.0
        %v4375 = vmin.f32 %v4343, 6.0
        %v4376 = vmin.f32 %v4344, 6.0
        %v4377 = vmin.f32 %v4345, 6.0
        %v4378 = vld [vmem:[%s2] sm:$0xf]
        %v4379 = vld [vmem:[%s2 + $0x4] sm:$0xf]
        %v4380 = vld [vmem:[%s2 + $0x8] sm:$0xf]
        %v4381 = vld [vmem:[%s2 + $0xc] sm:$0xf]
        %v4382 = vld [vmem:[%s2 + $0x10] sm:$0xf]
        %v4383 = vld [vmem:[%s2 + $0x14] sm:$0xf]
        %v4384 = vld [vmem:[%s2 + $0x18] sm:$0xf]
        %v4385 = vld [vmem:[%s2 + $0x1c] sm:$0xf]
        %v4386 = vld [vmem:[%s2 + $0x20] sm:$0xf]
        %v4387 = vld [vmem:[%s2 + $0x24] sm:$0xf]
        %v4388 = vld [vmem:[%s2 + $0x28] sm:$0xf]
        %v4389 = vld [vmem:[%s2 + $0x2c] sm:$0xf]
        %v4390 = vld [vmem:[%s2 + $0x30] sm:$0xf]
        %v4391 = vld [vmem:[%s2 + $0x34] sm:$0xf]
        %v4392 = vld [vmem:[%s2 + $0x38] sm:$0xf]
        %v4393 = vld [vmem:[%s2 + $0x3c] sm:$0xf]
        %v4394 = vld [vmem:[%s2 + $0x40] sm:$0xf]
        %v4395 = vld [vmem:[%s2 + $0x44] sm:$0xf]
        %v4396 = vld [vmem:[%s2 + $0x48] sm:$0xf]
        %v4397 = vld [vmem:[%s2 + $0x4c] sm:$0xf]
        %v4398 = vld [vmem:[%s2 + $0x50] sm:$0xf]
        %v4399 = vld [vmem:[%s2 + $0x54] sm:$0xf]
        %v4400 = vld [vmem:[%s2 + $0x58] sm:$0xf]
        %v4401 = vld [vmem:[%s2 + $0x5c] sm:$0xf]
        %v4402 = vld [vmem:[%s2 + $0x60] sm:$0xf]
        %v4403 = vld [vmem:[%s2 + $0x64] sm:$0xf]
        %v4404 = vld [vmem:[%s2 + $0x68] sm:$0xf]
        %v4405 = vld [vmem:[%s2 + $0x6c] sm:$0xf]
        %v4406 = vld [vmem:[%s2 + $0x70] sm:$0xf]
        %v4407 = vld [vmem:[%s2 + $0x74] sm:$0xf]
        %v4408 = vld [vmem:[%s2 + $0x78] sm:$0xf]
        %v4409 = vld [vmem:[%s2 + $0x7c] sm:$0xf]
        %v4410 = vld [vmem:[%s2 + $0x80] sm:$0xf]
        %v4411 = vld [vmem:[%s2 + $0x84] sm:$0xf]
        %v4412 = vld [vmem:[%s2 + $0x88] sm:$0xf]
        %v4413 = vld [vmem:[%s2 + $0x8c] sm:$0xf]
        %v4414 = vpack.c.bf16 %v4354, %v4346
        %v4415 = vpack.c.bf16 %v4355, %v4347
        %v4416 = vpack.c.bf16 %v4356, %v4348
        %v4417 = vpack.c.bf16 %v4357, %v4349
        %v4418 = vpack.c.bf16 %v4358, %v4350
        %v4419 = vpack.c.bf16 %v4359, %v4351
        %v4420 = vpack.c.bf16 %v4360, %v4352
        %v4421 = vpack.c.bf16 %v4361, %v4353
        %v4422 = vpack.c.bf16 %v4370, %v4362
        %v4423 = vpack.c.bf16 %v4371, %v4363
        %v4424 = vpack.c.bf16 %v4372, %v4364
        %v4425 = vpack.c.bf16 %v4373, %v4365
        %v4426 = vpack.c.bf16 %v4374, %v4366
        %v4427 = vpack.c.bf16 %v4375, %v4367
        %v4428 = vpack.c.bf16 %v4376, %v4368
        %v4429 = vpack.c.bf16 %v4377, %v4369
        %v4466 = vunpack.c.l.b16 %v4378
        %v4467 = vunpack.c.l.b16 %v4379
        %v4468 = vunpack.c.l.b16 %v4380
        %v4469 = vunpack.c.l.b16 %v4381
        %v4470 = vunpack.c.l.b16 %v4382
        %v4471 = vunpack.c.l.b16 %v4383
        %v4472 = vunpack.c.l.b16 %v4384
        %v4473 = vunpack.c.l.b16 %v4385
        %v4474 = vunpack.c.l.b16 %v4386
        %v4475 = vunpack.c.l.b16 %v4387
        %v4476 = vunpack.c.l.b16 %v4388
        %v4477 = vunpack.c.l.b16 %v4389
        %v4478 = vunpack.c.l.b16 %v4390
        %v4479 = vunpack.c.l.b16 %v4391
        %v4480 = vunpack.c.l.b16 %v4392
        %v4481 = vunpack.c.l.b16 %v4393
        %v4482 = vunpack.c.l.b16 %v4394
        %v4483 = vunpack.c.l.b16 %v4395
        %v4484 = vunpack.c.l.b16 %v4396
        %v4485 = vunpack.c.l.b16 %v4397
        %v4486 = vunpack.c.l.b16 %v4398
        %v4487 = vunpack.c.l.b16 %v4399
        %v4488 = vunpack.c.l.b16 %v4400
        %v4489 = vunpack.c.l.b16 %v4401
        %v4490 = vunpack.c.l.b16 %v4402
        %v4491 = vunpack.c.l.b16 %v4403
        %v4492 = vunpack.c.l.b16 %v4404
        %v4493 = vunpack.c.l.b16 %v4405
        %v4494 = vunpack.c.l.b16 %v4406
        %v4495 = vunpack.c.l.b16 %v4407
        %v4496 = vunpack.c.l.b16 %v4408
        %v4497 = vunpack.c.l.b16 %v4409
        %v4498 = vunpack.c.l.b16 %v4410
        %v4499 = vunpack.c.l.b16 %v4411
        %v4500 = vunpack.c.l.b16 %v4412
        %v4501 = vunpack.c.l.b16 %v4413
        %v4502 = vpack.c.b16 %v4467, %v4466
        %v4503 = vpack.c.b16 %v4469, %v4468
        %v4504 = vpack.c.b16 %v4471, %v4470
        %v4505 = vpack.c.b16 %v4473, %v4472
        %v4506 = vpack.c.b16 %v4475, %v4474
        %v4507 = vpack.c.b16 %v4477, %v4476
        %v4508 = vpack.c.b16 %v4479, %v4478
        %v4509 = vpack.c.b16 %v4481, %v4480
        %v4510 = vpack.c.b16 %v4483, %v4482
        %v4511 = vpack.c.b16 %v4485, %v4484
        %v4512 = vpack.c.b16 %v4487, %v4486
        %v4513 = vpack.c.b16 %v4489, %v4488
        %v4514 = vpack.c.b16 %v4491, %v4490
        %v4515 = vpack.c.b16 %v4493, %v4492
        %v4516 = vpack.c.b16 %v4495, %v4494
        %v4517 = vpack.c.b16 %v4497, %v4496
        %v4518 = vpack.c.b16 %v4499, %v4498
        %v4519 = vpack.c.b16 %v4501, %v4500
        %vm4520 = vcmask 203776
        %v4522 = vsel %vm4520, %v4502, 0
        %v4525 = vsel %vm4520, %v4503, 0
        %v4528 = vsel %vm4520, %v4504, 0
        %v4531 = vsel %vm4520, %v4505, 0
        %v4534 = vsel %vm4520, %v4506, 0
        %v4537 = vsel %vm4520, %v4507, 0
        %v4540 = vsel %vm4520, %v4508, 0
        %v4543 = vsel %vm4520, %v4509, 0
        %v4546 = vsel %vm4520, %v4510, 0
        %v4549 = vsel %vm4520, %v4511, 0
        %v4552 = vsel %vm4520, %v4512, 0
        %v4555 = vsel %vm4520, %v4513, 0
        %v4558 = vsel %vm4520, %v4514, 0
        %v4561 = vsel %vm4520, %v4515, 0
        %v4564 = vsel %vm4520, %v4516, 0
        %v4567 = vsel %vm4520, %v4517, 0
        %v4570 = vsel %vm4520, %v4518, 0
        %v4573 = vsel %vm4520, %v4519, 0
        %vm4575 = vcmask 1043456
        %vm4576 = vcmask 1044480
        %v4577 = vsel %vm4575, 4294967295, 65535
        %v4578 = vsel %vm4576, %v4577, 0
        %v4580 = vand.u32 %v4422, %v4578
        %v4583 = vand.u32 %v4423, %v4578
        %v4586 = vand.u32 %v4424, %v4578
        %v4589 = vand.u32 %v4425, %v4578
        %v4592 = vand.u32 %v4426, %v4578
        %v4595 = vand.u32 %v4427, %v4578
        %v4598 = vand.u32 %v4428, %v4578
        %v4601 = vand.u32 %v4429, %v4578
        %4603 = vmatprep.subr.bf16.mxu0 %v4415
        %4604 = vmatpush1.bf16.msra.mxu0 %v4414
        %4605 = vmatprep.subr.bf16.mxu0 %v4583
        %4606 = vmatpush1.bf16.msra.mxu0 %v4580
        %4607 = vmatprep.subr.bf16.mxu0 0
        %4608 = vmatpush1.bf16.msra.mxu0 0
        %4609 = vmatprep.subr.bf16.mxu0 0
        %4610 = vmatpush1.bf16.msra.mxu0 0
        %4611 = vmatprep.subr.bf16.mxu0 0
        %4612 = vmatpush1.bf16.msra.mxu0 0
        %4613 = vmatprep.subr.bf16.mxu0 0
        %4614 = vmatpush1.bf16.msra.mxu0 0
        %4615 = vmatprep.subr.bf16.mxu0 0
        %4616 = vmatpush1.bf16.msra.mxu0 0
        %4617 = vmatprep.subr.bf16.mxu0 0
        %4618 = vmatpush1.bf16.msra.mxu0 0
        %4619 = vmatprep.subr.bf16.mxu0 0
        %4620 = vmatpush1.bf16.msra.mxu0 0
        %4621 = vmatprep.subr.bf16.mxu0 0
        %4622 = vmatpush1.bf16.msra.mxu0 0
        %4623 = vmatprep.subr.bf16.mxu0 0
        %4624 = vmatpush1.bf16.msra.mxu0 0
        %4625 = vmatprep.subr.bf16.mxu0 0
        %4626 = vmatpush1.bf16.msra.mxu0 0
        %4627 = vmatprep.subr.bf16.mxu0 0
        %4628 = vmatpush1.bf16.msra.mxu0 0
        %4629 = vmatprep.subr.bf16.mxu0 0
        %4630 = vmatpush1.bf16.msra.mxu0 0
        %4631 = vmatprep.subr.bf16.mxu0 0
        %4632 = vmatpush1.bf16.msra.mxu0 0
        %4633 = vmatprep.subr.bf16.mxu0 0
        %4634 = vmatpush1.bf16.msra.mxu0 0
        %4635 = vmatprep.mubr.bf16.mxu0 0
        %4636 = vmatmul.mubr.bf16.gmra.mrb[0].mxu0 %v4522
        %v4637 = vpop.f32.mrb[0].mxu0
        %v4638 = vadd.f32 0.0, %v4637
        %v4639 = vpop.f32.mrb[0].mxu0
        %v4640 = vadd.f32 0.0, %v4639
        %v4641 = vpop.f32.mrb[0].mxu0
        %v4642 = vadd.f32 0.0, %v4641
        %v4643 = vpop.f32.mrb[0].mxu0
        %v4644 = vadd.f32 0.0, %v4643
        %4645 = vmatprep.mubr.bf16.mxu0 0
        %4646 = vmatmul.mubr.bf16.gmra.mrb[0].mxu0 %v4525
        %v4647 = vpop.f32.mrb[0].mxu0
        %v4648 = vadd.f32 0.0, %v4647
        %v4649 = vpop.f32.mrb[0].mxu0
        %v4650 = vadd.f32 0.0, %v4649
        %v4651 = vpop.f32.mrb[0].mxu0
        %v4652 = vadd.f32 0.0, %v4651
        %v4653 = vpop.f32.mrb[0].mxu0
        %v4654 = vadd.f32 0.0, %v4653
        %4655 = vmatprep.mubr.bf16.mxu0 0
        %4656 = vmatmul.mubr.bf16.gmra.mrb[0].mxu0 %v4528
        %v4657 = vpop.f32.mrb[0].mxu0
        %v4658 = vadd.f32 0.0, %v4657
        %v4659 = vpop.f32.mrb[0].mxu0
        %v4660 = vadd.f32 0.0, %v4659
        %v4661 = vpop.f32.mrb[0].mxu0
        %v4662 = vadd.f32 0.0, %v4661
        %v4663 = vpop.f32.mrb[0].mxu0
        %v4664 = vadd.f32 0.0, %v4663
        %4665 = vmatprep.mubr.bf16.mxu0 0
        %4666 = vmatmul.mubr.bf16.gmra.mrb[0].mxu0 %v4531
        %v4667 = vpop.f32.mrb[0].mxu0
        %v4668 = vadd.f32 0.0, %v4667
        %v4669 = vpop.f32.mrb[0].mxu0
        %v4670 = vadd.f32 0.0, %v4669
        %v4671 = vpop.f32.mrb[0].mxu0
        %v4672 = vadd.f32 0.0, %v4671
        %v4673 = vpop.f32.mrb[0].mxu0
        %v4674 = vadd.f32 0.0, %v4673
        %4675 = vmatprep.mubr.bf16.mxu0 0
        %4676 = vmatmul.mubr.bf16.gmra.mrb[0].mxu0 %v4534
        %v4677 = vpop.f32.mrb[0].mxu0
        %v4678 = vadd.f32 0.0, %v4677
        %v4679 = vpop.f32.mrb[0].mxu0
        %v4680 = vadd.f32 0.0, %v4679
        %v4681 = vpop.f32.mrb[0].mxu0
        %v4682 = vadd.f32 0.0, %v4681
        %v4683 = vpop.f32.mrb[0].mxu0
        %v4684 = vadd.f32 0.0, %v4683
        %4685 = vmatprep.mubr.bf16.mxu0 0
        %4686 = vmatmul.mubr.bf16.gmra.mrb[0].mxu0 %v4537
        %v4687 = vpop.f32.mrb[0].mxu0
        %v4688 = vadd.f32 0.0, %v4687
        %v4689 = vpop.f32.mrb[0].mxu0
        %v4690 = vadd.f32 0.0, %v4689
        %v4691 = vpop.f32.mrb[0].mxu0
        %v4692 = vadd.f32 0.0, %v4691
        %v4693 = vpop.f32.mrb[0].mxu0
        %v4694 = vadd.f32 0.0, %v4693
        %4695 = vmatprep.mubr.bf16.mxu0 0
        %4696 = vmatmul.mubr.bf16.gmra.mrb[0].mxu0 %v4540
        %v4697 = vpop.f32.mrb[0].mxu0
        %v4698 = vadd.f32 0.0, %v4697
        %v4699 = vpop.f32.mrb[0].mxu0
        %v4700 = vadd.f32 0.0, %v4699
        %v4701 = vpop.f32.mrb[0].mxu0
        %v4702 = vadd.f32 0.0, %v4701
        %v4703 = vpop.f32.mrb[0].mxu0
        %v4704 = vadd.f32 0.0, %v4703
        %4705 = vmatprep.mubr.bf16.mxu0 0
        %4706 = vmatmul.mubr.bf16.gmra.mrb[0].mxu0 %v4543
        %v4707 = vpop.f32.mrb[0].mxu0
        %v4708 = vadd.f32 0.0, %v4707
        %v4709 = vpop.f32.mrb[0].mxu0
        %v4710 = vadd.f32 0.0, %v4709
        %v4711 = vpop.f32.mrb[0].mxu0
        %v4712 = vadd.f32 0.0, %v4711
        %v4713 = vpop.f32.mrb[0].mxu0
        %v4714 = vadd.f32 0.0, %v4713
        %4715 = vmatprep.mubr.bf16.mxu0 0
        %4716 = vmatmul.mubr.bf16.gmra.mrb[0].mxu0 %v4546
        %v4717 = vpop.f32.mrb[0].mxu0
        %v4718 = vadd.f32 0.0, %v4717
        %v4719 = vpop.f32.mrb[0].mxu0
        %v4720 = vadd.f32 0.0, %v4719
        %v4721 = vpop.f32.mrb[0].mxu0
        %v4722 = vadd.f32 0.0, %v4721
        %v4723 = vpop.f32.mrb[0].mxu0
        %v4724 = vadd.f32 0.0, %v4723
        %4725 = vmatprep.mubr.bf16.mxu0 0
        %4726 = vmatmul.mubr.bf16.gmra.mrb[0].mxu0 %v4549
        %v4727 = vpop.f32.mrb[0].mxu0
        %v4728 = vadd.f32 0.0, %v4727
        %v4729 = vpop.f32.mrb[0].mxu0
        %v4730 = vadd.f32 0.0, %v4729
        %v4731 = vpop.f32.mrb[0].mxu0
        %v4732 = vadd.f32 0.0, %v4731
        %v4733 = vpop.f32.mrb[0].mxu0
        %v4734 = vadd.f32 0.0, %v4733
        %4735 = vmatprep.mubr.bf16.mxu0 0
        %4736 = vmatmul.mubr.bf16.gmra.mrb[0].mxu0 %v4552
        %v4737 = vpop.f32.mrb[0].mxu0
        %v4738 = vadd.f32 0.0, %v4737
        %v4739 = vpop.f32.mrb[0].mxu0
        %v4740 = vadd.f32 0.0, %v4739
        %v4741 = vpop.f32.mrb[0].mxu0
        %v4742 = vadd.f32 0.0, %v4741
        %v4743 = vpop.f32.mrb[0].mxu0
        %v4744 = vadd.f32 0.0, %v4743
        %4745 = vmatprep.mubr.bf16.mxu0 0
        %4746 = vmatmul.mubr.bf16.gmra.mrb[0].mxu0 %v4555
        %v4747 = vpop.f32.mrb[0].mxu0
        %v4748 = vadd.f32 0.0, %v4747
        %v4749 = vpop.f32.mrb[0].mxu0
        %v4750 = vadd.f32 0.0, %v4749
        %v4751 = vpop.f32.mrb[0].mxu0
        %v4752 = vadd.f32 0.0, %v4751
        %v4753 = vpop.f32.mrb[0].mxu0
        %v4754 = vadd.f32 0.0, %v4753
        %4755 = vmatprep.mubr.bf16.mxu0 0
        %4756 = vmatmul.mubr.bf16.gmra.mrb[0].mxu0 %v4558
        %v4757 = vpop.f32.mrb[0].mxu0
        %v4758 = vadd.f32 0.0, %v4757
        %v4759 = vpop.f32.mrb[0].mxu0
        %v4760 = vadd.f32 0.0, %v4759
        %v4761 = vpop.f32.mrb[0].mxu0
        %v4762 = vadd.f32 0.0, %v4761
        %v4763 = vpop.f32.mrb[0].mxu0
        %v4764 = vadd.f32 0.0, %v4763
        %4765 = vmatprep.mubr.bf16.mxu0 0
        %4766 = vmatmul.mubr.bf16.gmra.mrb[0].mxu0 %v4561
        %v4767 = vpop.f32.mrb[0].mxu0
        %v4768 = vadd.f32 0.0, %v4767
        %v4769 = vpop.f32.mrb[0].mxu0
        %v4770 = vadd.f32 0.0, %v4769
        %v4771 = vpop.f32.mrb[0].mxu0
        %v4772 = vadd.f32 0.0, %v4771
        %v4773 = vpop.f32.mrb[0].mxu0
        %v4774 = vadd.f32 0.0, %v4773
        %4775 = vmatprep.mubr.bf16.mxu0 0
        %4776 = vmatmul.mubr.bf16.gmra.mrb[0].mxu0 %v4564
        %v4777 = vpop.f32.mrb[0].mxu0
        %v4778 = vadd.f32 0.0, %v4777
        %v4779 = vpop.f32.mrb[0].mxu0
        %v4780 = vadd.f32 0.0, %v4779
        %v4781 = vpop.f32.mrb[0].mxu0
        %v4782 = vadd.f32 0.0, %v4781
        %v4783 = vpop.f32.mrb[0].mxu0
        %v4784 = vadd.f32 0.0, %v4783
        %4785 = vmatprep.mubr.bf16.mxu0 0
        %4786 = vmatmul.mubr.bf16.gmra.mrb[0].mxu0 %v4567
        %v4787 = vpop.f32.mrb[0].mxu0
        %v4788 = vadd.f32 0.0, %v4787
        %v4789 = vpop.f32.mrb[0].mxu0
        %v4790 = vadd.f32 0.0, %v4789
        %v4791 = vpop.f32.mrb[0].mxu0
        %v4792 = vadd.f32 0.0, %v4791
        %v4793 = vpop.f32.mrb[0].mxu0
        %v4794 = vadd.f32 0.0, %v4793
        %4795 = vmatprep.mubr.bf16.mxu0 0
        %4796 = vmatmul.mubr.bf16.gmra.mrb[0].mxu0 %v4570
        %v4797 = vpop.f32.mrb[0].mxu0
        %v4798 = vadd.f32 0.0, %v4797
        %v4799 = vpop.f32.mrb[0].mxu0
        %v4800 = vadd.f32 0.0, %v4799
        %v4801 = vpop.f32.mrb[0].mxu0
        %v4802 = vadd.f32 0.0, %v4801
        %v4803 = vpop.f32.mrb[0].mxu0
        %v4804 = vadd.f32 0.0, %v4803
        %4805 = vmatprep.mubr.bf16.mxu0 0
        %4806 = vmatmul.mubr.bf16.gmra.mrb[0].mxu0 %v4573
        %v4807 = vpop.f32.mrb[0].mxu0
        %v4808 = vadd.f32 0.0, %v4807
        %v4809 = vpop.f32.mrb[0].mxu0
        %v4810 = vadd.f32 0.0, %v4809
        %v4811 = vpop.f32.mrb[0].mxu0
        %v4812 = vadd.f32 0.0, %v4811
        %v4813 = vpop.f32.mrb[0].mxu0
        %v4814 = vadd.f32 0.0, %v4813
        %4815 = vdwg.mxu0
        %4816 = vmatprep.subr.bf16.mxu0 %v4417
        %4817 = vmatpush1.bf16.msra.mxu0 %v4416
        %4818 = vmatprep.subr.bf16.mxu0 %v4589
        %4819 = vmatpush1.bf16.msra.mxu0 %v4586
        %4820 = vmatprep.subr.bf16.mxu0 0
        %4821 = vmatpush1.bf16.msra.mxu0 0
        %4822 = vmatprep.subr.bf16.mxu0 0
        %4823 = vmatpush1.bf16.msra.mxu0 0
        %4824 = vmatprep.subr.bf16.mxu0 0
        %4825 = vmatpush1.bf16.msra.mxu0 0
        %4826 = vmatprep.subr.bf16.mxu0 0
        %4827 = vmatpush1.bf16.msra.mxu0 0
        %4828 = vmatprep.subr.bf16.mxu0 0
        %4829 = vmatpush1.bf16.msra.mxu0 0
        %4830 = vmatprep.subr.bf16.mxu0 0
        %4831 = vmatpush1.bf16.msra.mxu0 0
        %4832 = vmatprep.subr.bf16.mxu0 0
        %4833 = vmatpush1.bf16.msra.mxu0 0
        %4834 = vmatprep.subr.bf16.mxu0 0
        %4835 = vmatpush1.bf16.msra.mxu0 0
        %4836 = vmatprep.subr.bf16.mxu0 0
        %4837 = vmatpush1.bf16.msra.mxu0 0
        %4838 = vmatprep.subr.bf16.mxu0 0
        %4839 = vmatpush1.bf16.msra.mxu0 0
        %4840 = vmatprep.subr.bf16.mxu0 0
        %4841 = vmatpush1.bf16.msra.mxu0 0
        %4842 = vmatprep.subr.bf16.mxu0 0
        %4843 = vmatpush1.bf16.msra.mxu0 0
        %4844 = vmatprep.subr.bf16.mxu0 0
        %4845 = vmatpush1.bf16.msra.mxu0 0
        %4846 = vmatprep.subr.bf16.mxu0 0
        %4847 = vmatpush1.bf16.msra.mxu0 0
        %4848 = vmatprep.mubr.bf16.mxu0 0
        %4849 = vmatmul.mubr.bf16.gmra.mrb[0].mxu0 %v4522
        %v4850 = vpop.f32.mrb[0].mxu0
        %v4851 = vadd.f32 0.0, %v4850
        %v4852 = vpop.f32.mrb[0].mxu0
        %v4853 = vadd.f32 0.0, %v4852
        %v4854 = vpop.f32.mrb[0].mxu0
        %v4855 = vadd.f32 0.0, %v4854
        %v4856 = vpop.f32.mrb[0].mxu0
        %v4857 = vadd.f32 0.0, %v4856
        %4858 = vmatprep.mubr.bf16.mxu0 0
        %4859 = vmatmul.mubr.bf16.gmra.mrb[0].mxu0 %v4525
        %v4860 = vpop.f32.mrb[0].mxu0
        %v4861 = vadd.f32 0.0, %v4860
        %v4862 = vpop.f32.mrb[0].mxu0
        %v4863 = vadd.f32 0.0, %v4862
        %v4864 = vpop.f32.mrb[0].mxu0
        %v4865 = vadd.f32 0.0, %v4864
        %v4866 = vpop.f32.mrb[0].mxu0
        %v4867 = vadd.f32 0.0, %v4866
        %4868 = vmatprep.mubr.bf16.mxu0 0
        %4869 = vmatmul.mubr.bf16.gmra.mrb[0].mxu0 %v4528
        %v4870 = vpop.f32.mrb[0].mxu0
        %v4871 = vadd.f32 0.0, %v4870
        %v4872 = vpop.f32.mrb[0].mxu0
        %v4873 = vadd.f32 0.0, %v4872
        %v4874 = vpop.f32.mrb[0].mxu0
        %v4875 = vadd.f32 0.0, %v4874
        %v4876 = vpop.f32.mrb[0].mxu0
        %v4877 = vadd.f32 0.0, %v4876
        %4878 = vmatprep.mubr.bf16.mxu0 0
        %4879 = vmatmul.mubr.bf16.gmra.mrb[0].mxu0 %v4531
        %v4880 = vpop.f32.mrb[0].mxu0
        %v4881 = vadd.f32 0.0, %v4880
        %v4882 = vpop.f32.mrb[0].mxu0
        %v4883 = vadd.f32 0.0, %v4882
        %v4884 = vpop.f32.mrb[0].mxu0
        %v4885 = vadd.f32 0.0, %v4884
        %v4886 = vpop.f32.mrb[0].mxu0
        %v4887 = vadd.f32 0.0, %v4886
        %4888 = vmatprep.mubr.bf16.mxu0 0
        %4889 = vmatmul.mubr.bf16.gmra.mrb[0].mxu0 %v4534
        %v4890 = vpop.f32.mrb[0].mxu0
        %v4891 = vadd.f32 0.0, %v4890
        %v4892 = vpop.f32.mrb[0].mxu0
        %v4893 = vadd.f32 0.0, %v4892
        %v4894 = vpop.f32.mrb[0].mxu0
        %v4895 = vadd.f32 0.0, %v4894
        %v4896 = vpop.f32.mrb[0].mxu0
        %v4897 = vadd.f32 0.0, %v4896
        %4898 = vmatprep.mubr.bf16.mxu0 0
        %4899 = vmatmul.mubr.bf16.gmra.mrb[0].mxu0 %v4537
        %v4900 = vpop.f32.mrb[0].mxu0
        %v4901 = vadd.f32 0.0, %v4900
        %v4902 = vpop.f32.mrb[0].mxu0
        %v4903 = vadd.f32 0.0, %v4902
        %v4904 = vpop.f32.mrb[0].mxu0
        %v4905 = vadd.f32 0.0, %v4904
        %v4906 = vpop.f32.mrb[0].mxu0
        %v4907 = vadd.f32 0.0, %v4906
        %4908 = vmatprep.mubr.bf16.mxu0 0
        %4909 = vmatmul.mubr.bf16.gmra.mrb[0].mxu0 %v4540
        %v4910 = vpop.f32.mrb[0].mxu0
        %v4911 = vadd.f32 0.0, %v4910
        %v4912 = vpop.f32.mrb[0].mxu0
        %v4913 = vadd.f32 0.0, %v4912
        %v4914 = vpop.f32.mrb[0].mxu0
        %v4915 = vadd.f32 0.0, %v4914
        %v4916 = vpop.f32.mrb[0].mxu0
        %v4917 = vadd.f32 0.0, %v4916
        %4918 = vmatprep.mubr.bf16.mxu0 0
        %4919 = vmatmul.mubr.bf16.gmra.mrb[0].mxu0 %v4543
        %v4920 = vpop.f32.mrb[0].mxu0
        %v4921 = vadd.f32 0.0, %v4920
        %v4922 = vpop.f32.mrb[0].mxu0
        %v4923 = vadd.f32 0.0, %v4922
        %v4924 = vpop.f32.mrb[0].mxu0
        %v4925 = vadd.f32 0.0, %v4924
        %v4926 = vpop.f32.mrb[0].mxu0
        %v4927 = vadd.f32 0.0, %v4926
        %4928 = vmatprep.mubr.bf16.mxu0 0
        %4929 = vmatmul.mubr.bf16.gmra.mrb[0].mxu0 %v4546
        %v4930 = vpop.f32.mrb[0].mxu0
        %v4931 = vadd.f32 0.0, %v4930
        %v4932 = vpop.f32.mrb[0].mxu0
        %v4933 = vadd.f32 0.0, %v4932
        %v4934 = vpop.f32.mrb[0].mxu0
        %v4935 = vadd.f32 0.0, %v4934
        %v4936 = vpop.f32.mrb[0].mxu0
        %v4937 = vadd.f32 0.0, %v4936
        %4938 = vmatprep.mubr.bf16.mxu0 0
        %4939 = vmatmul.mubr.bf16.gmra.mrb[0].mxu0 %v4549
        %v4940 = vpop.f32.mrb[0].mxu0
        %v4941 = vadd.f32 0.0, %v4940
        %v4942 = vpop.f32.mrb[0].mxu0
        %v4943 = vadd.f32 0.0, %v4942
        %v4944 = vpop.f32.mrb[0].mxu0
        %v4945 = vadd.f32 0.0, %v4944
        %v4946 = vpop.f32.mrb[0].mxu0
        %v4947 = vadd.f32 0.0, %v4946
        %4948 = vmatprep.mubr.bf16.mxu0 0
        %4949 = vmatmul.mubr.bf16.gmra.mrb[0].mxu0 %v4552
        %v4950 = vpop.f32.mrb[0].mxu0
        %v4951 = vadd.f32 0.0, %v4950
        %v4952 = vpop.f32.mrb[0].mxu0
        %v4953 = vadd.f32 0.0, %v4952
        %v4954 = vpop.f32.mrb[0].mxu0
        %v4955 = vadd.f32 0.0, %v4954
        %v4956 = vpop.f32.mrb[0].mxu0
        %v4957 = vadd.f32 0.0, %v4956
        %4958 = vmatprep.mubr.bf16.mxu0 0
        %4959 = vmatmul.mubr.bf16.gmra.mrb[0].mxu0 %v4555
        %v4960 = vpop.f32.mrb[0].mxu0
        %v4961 = vadd.f32 0.0, %v4960
        %v4962 = vpop.f32.mrb[0].mxu0
        %v4963 = vadd.f32 0.0, %v4962
        %v4964 = vpop.f32.mrb[0].mxu0
        %v4965 = vadd.f32 0.0, %v4964
        %v4966 = vpop.f32.mrb[0].mxu0
        %v4967 = vadd.f32 0.0, %v4966
        %4968 = vmatprep.mubr.bf16.mxu0 0
        %4969 = vmatmul.mubr.bf16.gmra.mrb[0].mxu0 %v4558
        %v4970 = vpop.f32.mrb[0].mxu0
        %v4971 = vadd.f32 0.0, %v4970
        %v4972 = vpop.f32.mrb[0].mxu0
        %v4973 = vadd.f32 0.0, %v4972
        %v4974 = vpop.f32.mrb[0].mxu0
        %v4975 = vadd.f32 0.0, %v4974
        %v4976 = vpop.f32.mrb[0].mxu0
        %v4977 = vadd.f32 0.0, %v4976
        %4978 = vmatprep.mubr.bf16.mxu0 0
        %4979 = vmatmul.mubr.bf16.gmra.mrb[0].mxu0 %v4561
        %v4980 = vpop.f32.mrb[0].mxu0
        %v4981 = vadd.f32 0.0, %v4980
        %v4982 = vpop.f32.mrb[0].mxu0
        %v4983 = vadd.f32 0.0, %v4982
        %v4984 = vpop.f32.mrb[0].mxu0
        %v4985 = vadd.f32 0.0, %v4984
        %v4986 = vpop.f32.mrb[0].mxu0
        %v4987 = vadd.f32 0.0, %v4986
        %4988 = vmatprep.mubr.bf16.mxu0 0
        %4989 = vmatmul.mubr.bf16.gmra.mrb[0].mxu0 %v4564
        %v4990 = vpop.f32.mrb[0].mxu0
        %v4991 = vadd.f32 0.0, %v4990
        %v4992 = vpop.f32.mrb[0].mxu0
        %v4993 = vadd.f32 0.0, %v4992
        %v4994 = vpop.f32.mrb[0].mxu0
        %v4995 = vadd.f32 0.0, %v4994
        %v4996 = vpop.f32.mrb[0].mxu0
        %v4997 = vadd.f32 0.0, %v4996
        %4998 = vmatprep.mubr.bf16.mxu0 0
        %4999 = vmatmul.mubr.bf16.gmra.mrb[0].mxu0 %v4567
        %v5000 = vpop.f32.mrb[0].mxu0
        %v5001 = vadd.f32 0.0, %v5000
        %v5002 = vpop.f32.mrb[0].mxu0
        %v5003 = vadd.f32 0.0, %v5002
        %v5004 = vpop.f32.mrb[0].mxu0
        %v5005 = vadd.f32 0.0, %v5004
        %v5006 = vpop.f32.mrb[0].mxu0
        %v5007 = vadd.f32 0.0, %v5006
        %5008 = vmatprep.mubr.bf16.mxu0 0
        %5009 = vmatmul.mubr.bf16.gmra.mrb[0].mxu0 %v4570
        %v5010 = vpop.f32.mrb[0].mxu0
        %v5011 = vadd.f32 0.0, %v5010
        %v5012 = vpop.f32.mrb[0].mxu0
        %v5013 = vadd.f32 0.0, %v5012
        %v5014 = vpop.f32.mrb[0].mxu0
        %v5015 = vadd.f32 0.0, %v5014
        %v5016 = vpop.f32.mrb[0].mxu0
        %v5017 = vadd.f32 0.0, %v5016
        %5018 = vmatprep.mubr.bf16.mxu0 0
        %5019 = vmatmul.mubr.bf16.gmra.mrb[0].mxu0 %v4573
        %v5020 = vpop.f32.mrb[0].mxu0
        %v5021 = vadd.f32 0.0, %v5020
        %v5022 = vpop.f32.mrb[0].mxu0
        %v5023 = vadd.f32 0.0, %v5022
        %v5024 = vpop.f32.mrb[0].mxu0
        %v5025 = vadd.f32 0.0, %v5024
        %v5026 = vpop.f32.mrb[0].mxu0
        %v5027 = vadd.f32 0.0, %v5026
        %5028 = vdwg.mxu0
        %5029 = vmatprep.subr.bf16.mxu0 %v4419
        %5030 = vmatpush1.bf16.msra.mxu0 %v4418
        %5031 = vmatprep.subr.bf16.mxu0 %v4595
        %5032 = vmatpush1.bf16.msra.mxu0 %v4592
        %5033 = vmatprep.subr.bf16.mxu0 0
        %5034 = vmatpush1.bf16.msra.mxu0 0
        %5035 = vmatprep.subr.bf16.mxu0 0
        %5036 = vmatpush1.bf16.msra.mxu0 0
        %5037 = vmatprep.subr.bf16.mxu0 0
        %5038 = vmatpush1.bf16.msra.mxu0 0
        %5039 = vmatprep.subr.bf16.mxu0 0
        %5040 = vmatpush1.bf16.msra.mxu0 0
        %5041 = vmatprep.subr.bf16.mxu0 0
        %5042 = vmatpush1.bf16.msra.mxu0 0
        %5043 = vmatprep.subr.bf16.mxu0 0
        %5044 = vmatpush1.bf16.msra.mxu0 0
        %5045 = vmatprep.subr.bf16.mxu0 0
        %5046 = vmatpush1.bf16.msra.mxu0 0
        %5047 = vmatprep.subr.bf16.mxu0 0
        %5048 = vmatpush1.bf16.msra.mxu0 0
        %5049 = vmatprep.subr.bf16.mxu0 0
        %5050 = vmatpush1.bf16.msra.mxu0 0
        %5051 = vmatprep.subr.bf16.mxu0 0
        %5052 = vmatpush1.bf16.msra.mxu0 0
        %5053 = vmatprep.subr.bf16.mxu0 0
        %5054 = vmatpush1.bf16.msra.mxu0 0
        %5055 = vmatprep.subr.bf16.mxu0 0
        %5056 = vmatpush1.bf16.msra.mxu0 0
        %5057 = vmatprep.subr.bf16.mxu0 0
        %5058 = vmatpush1.bf16.msra.mxu0 0
        %5059 = vmatprep.subr.bf16.mxu0 0
        %5060 = vmatpush1.bf16.msra.mxu0 0
        %5061 = vmatprep.mubr.bf16.mxu0 0
        %5062 = vmatmul.mubr.bf16.gmra.mrb[0].mxu0 %v4522
        %v5063 = vpop.f32.mrb[0].mxu0
        %v5064 = vadd.f32 0.0, %v5063
        %v5065 = vpop.f32.mrb[0].mxu0
        %v5066 = vadd.f32 0.0, %v5065
        %v5067 = vpop.f32.mrb[0].mxu0
        %v5068 = vadd.f32 0.0, %v5067
        %v5069 = vpop.f32.mrb[0].mxu0
        %v5070 = vadd.f32 0.0, %v5069
        %5071 = vmatprep.mubr.bf16.mxu0 0
        %5072 = vmatmul.mubr.bf16.gmra.mrb[0].mxu0 %v4525
        %v5073 = vpop.f32.mrb[0].mxu0
        %v5074 = vadd.f32 0.0, %v5073
        %v5075 = vpop.f32.mrb[0].mxu0
        %v5076 = vadd.f32 0.0, %v5075
        %v5077 = vpop.f32.mrb[0].mxu0
        %v5078 = vadd.f32 0.0, %v5077
        %v5079 = vpop.f32.mrb[0].mxu0
        %v5080 = vadd.f32 0.0, %v5079
        %5081 = vmatprep.mubr.bf16.mxu0 0
        %5082 = vmatmul.mubr.bf16.gmra.mrb[0].mxu0 %v4528
        %v5083 = vpop.f32.mrb[0].mxu0
        %v5084 = vadd.f32 0.0, %v5083
        %v5085 = vpop.f32.mrb[0].mxu0
        %v5086 = vadd.f32 0.0, %v5085
        %v5087 = vpop.f32.mrb[0].mxu0
        %v5088 = vadd.f32 0.0, %v5087
        %v5089 = vpop.f32.mrb[0].mxu0
        %v5090 = vadd.f32 0.0, %v5089
        %5091 = vmatprep.mubr.bf16.mxu0 0
        %5092 = vmatmul.mubr.bf16.gmra.mrb[0].mxu0 %v4531
        %v5093 = vpop.f32.mrb[0].mxu0
        %v5094 = vadd.f32 0.0, %v5093
        %v5095 = vpop.f32.mrb[0].mxu0
        %v5096 = vadd.f32 0.0, %v5095
        %v5097 = vpop.f32.mrb[0].mxu0
        %v5098 = vadd.f32 0.0, %v5097
        %v5099 = vpop.f32.mrb[0].mxu0
        %v5100 = vadd.f32 0.0, %v5099
        %5101 = vmatprep.mubr.bf16.mxu0 0
        %5102 = vmatmul.mubr.bf16.gmra.mrb[0].mxu0 %v4534
        %v5103 = vpop.f32.mrb[0].mxu0
        %v5104 = vadd.f32 0.0, %v5103
        %v5105 = vpop.f32.mrb[0].mxu0
        %v5106 = vadd.f32 0.0, %v5105
        %v5107 = vpop.f32.mrb[0].mxu0
        %v5108 = vadd.f32 0.0, %v5107
        %v5109 = vpop.f32.mrb[0].mxu0
        %v5110 = vadd.f32 0.0, %v5109
        %5111 = vmatprep.mubr.bf16.mxu0 0
        %5112 = vmatmul.mubr.bf16.gmra.mrb[0].mxu0 %v4537
        %v5113 = vpop.f32.mrb[0].mxu0
        %v5114 = vadd.f32 0.0, %v5113
        %v5115 = vpop.f32.mrb[0].mxu0
        %v5116 = vadd.f32 0.0, %v5115
        %v5117 = vpop.f32.mrb[0].mxu0
        %v5118 = vadd.f32 0.0, %v5117
        %v5119 = vpop.f32.mrb[0].mxu0
        %v5120 = vadd.f32 0.0, %v5119
        %5121 = vmatprep.mubr.bf16.mxu0 0
        %5122 = vmatmul.mubr.bf16.gmra.mrb[0].mxu0 %v4540
        %v5123 = vpop.f32.mrb[0].mxu0
        %v5124 = vadd.f32 0.0, %v5123
        %v5125 = vpop.f32.mrb[0].mxu0
        %v5126 = vadd.f32 0.0, %v5125
        %v5127 = vpop.f32.mrb[0].mxu0
        %v5128 = vadd.f32 0.0, %v5127
        %v5129 = vpop.f32.mrb[0].mxu0
        %v5130 = vadd.f32 0.0, %v5129
        %5131 = vmatprep.mubr.bf16.mxu0 0
        %5132 = vmatmul.mubr.bf16.gmra.mrb[0].mxu0 %v4543
        %v5133 = vpop.f32.mrb[0].mxu0
        %v5134 = vadd.f32 0.0, %v5133
        %v5135 = vpop.f32.mrb[0].mxu0
        %v5136 = vadd.f32 0.0, %v5135
        %v5137 = vpop.f32.mrb[0].mxu0
        %v5138 = vadd.f32 0.0, %v5137
        %v5139 = vpop.f32.mrb[0].mxu0
        %v5140 = vadd.f32 0.0, %v5139
        %5141 = vmatprep.mubr.bf16.mxu0 0
        %5142 = vmatmul.mubr.bf16.gmra.mrb[0].mxu0 %v4546
        %v5143 = vpop.f32.mrb[0].mxu0
        %v5144 = vadd.f32 0.0, %v5143
        %v5145 = vpop.f32.mrb[0].mxu0
        %v5146 = vadd.f32 0.0, %v5145
        %v5147 = vpop.f32.mrb[0].mxu0
        %v5148 = vadd.f32 0.0, %v5147
        %v5149 = vpop.f32.mrb[0].mxu0
        %v5150 = vadd.f32 0.0, %v5149
        %5151 = vmatprep.mubr.bf16.mxu0 0
        %5152 = vmatmul.mubr.bf16.gmra.mrb[0].mxu0 %v4549
        %v5153 = vpop.f32.mrb[0].mxu0
        %v5154 = vadd.f32 0.0, %v5153
        %v5155 = vpop.f32.mrb[0].mxu0
        %v5156 = vadd.f32 0.0, %v5155
        %v5157 = vpop.f32.mrb[0].mxu0
        %v5158 = vadd.f32 0.0, %v5157
        %v5159 = vpop.f32.mrb[0].mxu0
        %v5160 = vadd.f32 0.0, %v5159
        %5161 = vmatprep.mubr.bf16.mxu0 0
        %5162 = vmatmul.mubr.bf16.gmra.mrb[0].mxu0 %v4552
        %v5163 = vpop.f32.mrb[0].mxu0
        %v5164 = vadd.f32 0.0, %v5163
        %v5165 = vpop.f32.mrb[0].mxu0
        %v5166 = vadd.f32 0.0, %v5165
        %v5167 = vpop.f32.mrb[0].mxu0
        %v5168 = vadd.f32 0.0, %v5167
        %v5169 = vpop.f32.mrb[0].mxu0
        %v5170 = vadd.f32 0.0, %v5169
        %5171 = vmatprep.mubr.bf16.mxu0 0
        %5172 = vmatmul.mubr.bf16.gmra.mrb[0].mxu0 %v4555
        %v5173 = vpop.f32.mrb[0].mxu0
        %v5174 = vadd.f32 0.0, %v5173
        %v5175 = vpop.f32.mrb[0].mxu0
        %v5176 = vadd.f32 0.0, %v5175
        %v5177 = vpop.f32.mrb[0].mxu0
        %v5178 = vadd.f32 0.0, %v5177
        %v5179 = vpop.f32.mrb[0].mxu0
        %v5180 = vadd.f32 0.0, %v5179
        %5181 = vmatprep.mubr.bf16.mxu0 0
        %5182 = vmatmul.mubr.bf16.gmra.mrb[0].mxu0 %v4558
        %v5183 = vpop.f32.mrb[0].mxu0
        %v5184 = vadd.f32 0.0, %v5183
        %v5185 = vpop.f32.mrb[0].mxu0
        %v5186 = vadd.f32 0.0, %v5185
        %v5187 = vpop.f32.mrb[0].mxu0
        %v5188 = vadd.f32 0.0, %v5187
        %v5189 = vpop.f32.mrb[0].mxu0
        %v5190 = vadd.f32 0.0, %v5189
        %5191 = vmatprep.mubr.bf16.mxu0 0
        %5192 = vmatmul.mubr.bf16.gmra.mrb[0].mxu0 %v4561
        %v5193 = vpop.f32.mrb[0].mxu0
        %v5194 = vadd.f32 0.0, %v5193
        %v5195 = vpop.f32.mrb[0].mxu0
        %v5196 = vadd.f32 0.0, %v5195
        %v5197 = vpop.f32.mrb[0].mxu0
        %v5198 = vadd.f32 0.0, %v5197
        %v5199 = vpop.f32.mrb[0].mxu0
        %v5200 = vadd.f32 0.0, %v5199
        %5201 = vmatprep.mubr.bf16.mxu0 0
        %5202 = vmatmul.mubr.bf16.gmra.mrb[0].mxu0 %v4564
        %v5203 = vpop.f32.mrb[0].mxu0
        %v5204 = vadd.f32 0.0, %v5203
        %v5205 = vpop.f32.mrb[0].mxu0
        %v5206 = vadd.f32 0.0, %v5205
        %v5207 = vpop.f32.mrb[0].mxu0
        %v5208 = vadd.f32 0.0, %v5207
        %v5209 = vpop.f32.mrb[0].mxu0
        %v5210 = vadd.f32 0.0, %v5209
        %5211 = vmatprep.mubr.bf16.mxu0 0
        %5212 = vmatmul.mubr.bf16.gmra.mrb[0].mxu0 %v4567
        %v5213 = vpop.f32.mrb[0].mxu0
        %v5214 = vadd.f32 0.0, %v5213
        %v5215 = vpop.f32.mrb[0].mxu0
        %v5216 = vadd.f32 0.0, %v5215
        %v5217 = vpop.f32.mrb[0].mxu0
        %v5218 = vadd.f32 0.0, %v5217
        %v5219 = vpop.f32.mrb[0].mxu0
        %v5220 = vadd.f32 0.0, %v5219
        %5221 = vmatprep.mubr.bf16.mxu0 0
        %5222 = vmatmul.mubr.bf16.gmra.mrb[0].mxu0 %v4570
        %v5223 = vpop.f32.mrb[0].mxu0
        %v5224 = vadd.f32 0.0, %v5223
        %v5225 = vpop.f32.mrb[0].mxu0
        %v5226 = vadd.f32 0.0, %v5225
        %v5227 = vpop.f32.mrb[0].mxu0
        %v5228 = vadd.f32 0.0, %v5227
        %v5229 = vpop.f32.mrb[0].mxu0
        %v5230 = vadd.f32 0.0, %v5229
        %5231 = vmatprep.mubr.bf16.mxu0 0
        %5232 = vmatmul.mubr.bf16.gmra.mrb[0].mxu0 %v4573
        %v5233 = vpop.f32.mrb[0].mxu0
        %v5234 = vadd.f32 0.0, %v5233
        %v5235 = vpop.f32.mrb[0].mxu0
        %v5236 = vadd.f32 0.0, %v5235
        %v5237 = vpop.f32.mrb[0].mxu0
        %v5238 = vadd.f32 0.0, %v5237
        %v5239 = vpop.f32.mrb[0].mxu0
        %v5240 = vadd.f32 0.0, %v5239
        %5241 = vdwg.mxu0
        %5242 = vmatprep.subr.bf16.mxu0 %v4421
        %5243 = vmatpush1.bf16.msra.mxu0 %v4420
        %5244 = vmatprep.subr.bf16.mxu0 %v4601
        %5245 = vmatpush1.bf16.msra.mxu0 %v4598
        %5246 = vmatprep.subr.bf16.mxu0 0
        %5247 = vmatpush1.bf16.msra.mxu0 0
        %5248 = vmatprep.subr.bf16.mxu0 0
        %5249 = vmatpush1.bf16.msra.mxu0 0
        %5250 = vmatprep.subr.bf16.mxu0 0
        %5251 = vmatpush1.bf16.msra.mxu0 0
        %5252 = vmatprep.subr.bf16.mxu0 0
        %5253 = vmatpush1.bf16.msra.mxu0 0
        %5254 = vmatprep.subr.bf16.mxu0 0
        %5255 = vmatpush1.bf16.msra.mxu0 0
        %5256 = vmatprep.subr.bf16.mxu0 0
        %5257 = vmatpush1.bf16.msra.mxu0 0
        %5258 = vmatprep.subr.bf16.mxu0 0
        %5259 = vmatpush1.bf16.msra.mxu0 0
        %5260 = vmatprep.subr.bf16.mxu0 0
        %5261 = vmatpush1.bf16.msra.mxu0 0
        %5262 = vmatprep.subr.bf16.mxu0 0
        %5263 = vmatpush1.bf16.msra.mxu0 0
        %5264 = vmatprep.subr.bf16.mxu0 0
        %5265 = vmatpush1.bf16.msra.mxu0 0
        %5266 = vmatprep.subr.bf16.mxu0 0
        %5267 = vmatpush1.bf16.msra.mxu0 0
        %5268 = vmatprep.subr.bf16.mxu0 0
        %5269 = vmatpush1.bf16.msra.mxu0 0
        %5270 = vmatprep.subr.bf16.mxu0 0
        %5271 = vmatpush1.bf16.msra.mxu0 0
        %5272 = vmatprep.subr.bf16.mxu0 0
        %5273 = vmatpush1.bf16.msra.mxu0 0
        %5274 = vmatprep.mubr.bf16.mxu0 0
        %5275 = vmatmul.mubr.bf16.gmra.mrb[0].mxu0 %v4522
        %v5276 = vpop.f32.mrb[0].mxu0
        %v5277 = vadd.f32 0.0, %v5276
        %v5278 = vpop.f32.mrb[0].mxu0
        %v5279 = vadd.f32 0.0, %v5278
        %v5280 = vpop.f32.mrb[0].mxu0
        %v5281 = vadd.f32 0.0, %v5280
        %v5282 = vpop.f32.mrb[0].mxu0
        %v5283 = vadd.f32 0.0, %v5282
        %5284 = vmatprep.mubr.bf16.mxu0 0
        %5285 = vmatmul.mubr.bf16.gmra.mrb[0].mxu0 %v4525
        %v5286 = vpop.f32.mrb[0].mxu0
        %v5287 = vadd.f32 0.0, %v5286
        %v5288 = vpop.f32.mrb[0].mxu0
        %v5289 = vadd.f32 0.0, %v5288
        %v5290 = vpop.f32.mrb[0].mxu0
        %v5291 = vadd.f32 0.0, %v5290
        %v5292 = vpop.f32.mrb[0].mxu0
        %v5293 = vadd.f32 0.0, %v5292
        %5294 = vmatprep.mubr.bf16.mxu0 0
        %5295 = vmatmul.mubr.bf16.gmra.mrb[0].mxu0 %v4528
        %v5296 = vpop.f32.mrb[0].mxu0
        %v5297 = vadd.f32 0.0, %v5296
        %v5298 = vpop.f32.mrb[0].mxu0
        %v5299 = vadd.f32 0.0, %v5298
        %v5300 = vpop.f32.mrb[0].mxu0
        %v5301 = vadd.f32 0.0, %v5300
        %v5302 = vpop.f32.mrb[0].mxu0
        %v5303 = vadd.f32 0.0, %v5302
        %5304 = vmatprep.mubr.bf16.mxu0 0
        %5305 = vmatmul.mubr.bf16.gmra.mrb[0].mxu0 %v4531
        %v5306 = vpop.f32.mrb[0].mxu0
        %v5307 = vadd.f32 0.0, %v5306
        %v5308 = vpop.f32.mrb[0].mxu0
        %v5309 = vadd.f32 0.0, %v5308
        %v5310 = vpop.f32.mrb[0].mxu0
        %v5311 = vadd.f32 0.0, %v5310
        %v5312 = vpop.f32.mrb[0].mxu0
        %v5313 = vadd.f32 0.0, %v5312
        %5314 = vmatprep.mubr.bf16.mxu0 0
        %5315 = vmatmul.mubr.bf16.gmra.mrb[0].mxu0 %v4534
        %v5316 = vpop.f32.mrb[0].mxu0
        %v5317 = vadd.f32 0.0, %v5316
        %v5318 = vpop.f32.mrb[0].mxu0
        %v5319 = vadd.f32 0.0, %v5318
        %v5320 = vpop.f32.mrb[0].mxu0
        %v5321 = vadd.f32 0.0, %v5320
        %v5322 = vpop.f32.mrb[0].mxu0
        %v5323 = vadd.f32 0.0, %v5322
        %5324 = vmatprep.mubr.bf16.mxu0 0
        %5325 = vmatmul.mubr.bf16.gmra.mrb[0].mxu0 %v4537
        %v5326 = vpop.f32.mrb[0].mxu0
        %v5327 = vadd.f32 0.0, %v5326
        %v5328 = vpop.f32.mrb[0].mxu0
        %v5329 = vadd.f32 0.0, %v5328
        %v5330 = vpop.f32.mrb[0].mxu0
        %v5331 = vadd.f32 0.0, %v5330
        %v5332 = vpop.f32.mrb[0].mxu0
        %v5333 = vadd.f32 0.0, %v5332
        %5334 = vmatprep.mubr.bf16.mxu0 0
        %5335 = vmatmul.mubr.bf16.gmra.mrb[0].mxu0 %v4540
        %v5336 = vpop.f32.mrb[0].mxu0
        %v5337 = vadd.f32 0.0, %v5336
        %v5338 = vpop.f32.mrb[0].mxu0
        %v5339 = vadd.f32 0.0, %v5338
        %v5340 = vpop.f32.mrb[0].mxu0
        %v5341 = vadd.f32 0.0, %v5340
        %v5342 = vpop.f32.mrb[0].mxu0
        %v5343 = vadd.f32 0.0, %v5342
        %5344 = vmatprep.mubr.bf16.mxu0 0
        %5345 = vmatmul.mubr.bf16.gmra.mrb[0].mxu0 %v4543
        %v5346 = vpop.f32.mrb[0].mxu0
        %v5347 = vadd.f32 0.0, %v5346
        %v5348 = vpop.f32.mrb[0].mxu0
        %v5349 = vadd.f32 0.0, %v5348
        %v5350 = vpop.f32.mrb[0].mxu0
        %v5351 = vadd.f32 0.0, %v5350
        %v5352 = vpop.f32.mrb[0].mxu0
        %v5353 = vadd.f32 0.0, %v5352
        %5354 = vmatprep.mubr.bf16.mxu0 0
        %5355 = vmatmul.mubr.bf16.gmra.mrb[0].mxu0 %v4546
        %v5356 = vpop.f32.mrb[0].mxu0
        %v5357 = vadd.f32 0.0, %v5356
        %v5358 = vpop.f32.mrb[0].mxu0
        %v5359 = vadd.f32 0.0, %v5358
        %v5360 = vpop.f32.mrb[0].mxu0
        %v5361 = vadd.f32 0.0, %v5360
        %v5362 = vpop.f32.mrb[0].mxu0
        %v5363 = vadd.f32 0.0, %v5362
        %5364 = vmatprep.mubr.bf16.mxu0 0
        %5365 = vmatmul.mubr.bf16.gmra.mrb[0].mxu0 %v4549
        %v5366 = vpop.f32.mrb[0].mxu0
        %v5367 = vadd.f32 0.0, %v5366
        %v5368 = vpop.f32.mrb[0].mxu0
        %v5369 = vadd.f32 0.0, %v5368
        %v5370 = vpop.f32.mrb[0].mxu0
        %v5371 = vadd.f32 0.0, %v5370
        %v5372 = vpop.f32.mrb[0].mxu0
        %v5373 = vadd.f32 0.0, %v5372
        %5374 = vmatprep.mubr.bf16.mxu0 0
        %5375 = vmatmul.mubr.bf16.gmra.mrb[0].mxu0 %v4552
        %v5376 = vpop.f32.mrb[0].mxu0
        %v5377 = vadd.f32 0.0, %v5376
        %v5378 = vpop.f32.mrb[0].mxu0
        %v5379 = vadd.f32 0.0, %v5378
        %v5380 = vpop.f32.mrb[0].mxu0
        %v5381 = vadd.f32 0.0, %v5380
        %v5382 = vpop.f32.mrb[0].mxu0
        %v5383 = vadd.f32 0.0, %v5382
        %5384 = vmatprep.mubr.bf16.mxu0 0
        %5385 = vmatmul.mubr.bf16.gmra.mrb[0].mxu0 %v4555
        %v5386 = vpop.f32.mrb[0].mxu0
        %v5387 = vadd.f32 0.0, %v5386
        %v5388 = vpop.f32.mrb[0].mxu0
        %v5389 = vadd.f32 0.0, %v5388
        %v5390 = vpop.f32.mrb[0].mxu0
        %v5391 = vadd.f32 0.0, %v5390
        %v5392 = vpop.f32.mrb[0].mxu0
        %v5393 = vadd.f32 0.0, %v5392
        %5394 = vmatprep.mubr.bf16.mxu0 0
        %5395 = vmatmul.mubr.bf16.gmra.mrb[0].mxu0 %v4558
        %v5396 = vpop.f32.mrb[0].mxu0
        %v5397 = vadd.f32 0.0, %v5396
        %v5398 = vpop.f32.mrb[0].mxu0
        %v5399 = vadd.f32 0.0, %v5398
        %v5400 = vpop.f32.mrb[0].mxu0
        %v5401 = vadd.f32 0.0, %v5400
        %v5402 = vpop.f32.mrb[0].mxu0
        %v5403 = vadd.f32 0.0, %v5402
        %5404 = vmatprep.mubr.bf16.mxu0 0
        %5405 = vmatmul.mubr.bf16.gmra.mrb[0].mxu0 %v4561
        %v5406 = vpop.f32.mrb[0].mxu0
        %v5407 = vadd.f32 0.0, %v5406
        %v5408 = vpop.f32.mrb[0].mxu0
        %v5409 = vadd.f32 0.0, %v5408
        %v5410 = vpop.f32.mrb[0].mxu0
        %v5411 = vadd.f32 0.0, %v5410
        %v5412 = vpop.f32.mrb[0].mxu0
        %v5413 = vadd.f32 0.0, %v5412
        %5414 = vmatprep.mubr.bf16.mxu0 0
        %5415 = vmatmul.mubr.bf16.gmra.mrb[0].mxu0 %v4564
        %v5416 = vpop.f32.mrb[0].mxu0
        %v5417 = vadd.f32 0.0, %v5416
        %v5418 = vpop.f32.mrb[0].mxu0
        %v5419 = vadd.f32 0.0, %v5418
        %v5420 = vpop.f32.mrb[0].mxu0
        %v5421 = vadd.f32 0.0, %v5420
        %v5422 = vpop.f32.mrb[0].mxu0
        %v5423 = vadd.f32 0.0, %v5422
        %5424 = vmatprep.mubr.bf16.mxu0 0
        %5425 = vmatmul.mubr.bf16.gmra.mrb[0].mxu0 %v4567
        %v5426 = vpop.f32.mrb[0].mxu0
        %v5427 = vadd.f32 0.0, %v5426
        %v5428 = vpop.f32.mrb[0].mxu0
        %v5429 = vadd.f32 0.0, %v5428
        %v5430 = vpop.f32.mrb[0].mxu0
        %v5431 = vadd.f32 0.0, %v5430
        %v5432 = vpop.f32.mrb[0].mxu0
        %v5433 = vadd.f32 0.0, %v5432
        %5434 = vmatprep.mubr.bf16.mxu0 0
        %5435 = vmatmul.mubr.bf16.gmra.mrb[0].mxu0 %v4570
        %v5436 = vpop.f32.mrb[0].mxu0
        %v5437 = vadd.f32 0.0, %v5436
        %v5438 = vpop.f32.mrb[0].mxu0
        %v5439 = vadd.f32 0.0, %v5438
        %v5440 = vpop.f32.mrb[0].mxu0
        %v5441 = vadd.f32 0.0, %v5440
        %v5442 = vpop.f32.mrb[0].mxu0
        %v5443 = vadd.f32 0.0, %v5442
        %5444 = vmatprep.mubr.bf16.mxu0 0
        %5445 = vmatmul.mubr.bf16.gmra.mrb[0].mxu0 %v4573
        %v5446 = vpop.f32.mrb[0].mxu0
        %v5447 = vadd.f32 0.0, %v5446
        %v5448 = vpop.f32.mrb[0].mxu0
        %v5449 = vadd.f32 0.0, %v5448
        %v5450 = vpop.f32.mrb[0].mxu0
        %v5451 = vadd.f32 0.0, %v5450
        %v5452 = vpop.f32.mrb[0].mxu0
        %v5453 = vadd.f32 0.0, %v5452
        %5454 = vdwg.mxu0
        %v5455 = vld [vmem:[%s12] sm:$0xff]
        %v5456 = vld [vmem:[%s12 + $0x8] sm:$0xff]
        %v5457 = vld [vmem:[%s12 + $0x10] sm:$0xff]
        %v5458 = vld [vmem:[%s12 + $0x18] sm:$0xff]
        %v5459 = vld [vmem:[%s12 + $0x20] sm:$0xff]
        %v5460 = vld [vmem:[%s12 + $0x28] sm:$0xff]
        %v5461 = vld [vmem:[%s12 + $0x30] sm:$0xff]
        %v5462 = vld [vmem:[%s12 + $0x38] sm:$0xff]
        %v5463 = vld [vmem:[%s12 + $0x40] sm:$0x1]
        %v5464 = vld [vmem:[%s12 + $0x48] sm:$0x1]
        %v5465 = vld [vmem:[%s12 + $0x50] sm:$0x1]
        %v5466 = vld [vmem:[%s12 + $0x58] sm:$0x1]
        %v5467 = vld [vmem:[%s12 + $0x60] sm:$0x1]
        %v5468 = vld [vmem:[%s12 + $0x68] sm:$0x1]
        %v5469 = vld [vmem:[%s12 + $0x70] sm:$0x1]
        %v5470 = vld [vmem:[%s12 + $0x78] sm:$0x1]
        %v5471 = vlaneseq
        %v5472 = vshrl.u32 %v5471, 7
        %v5473 = vsub.s32 0, %v5472
        %v5474 = vrot.slane %v5455, %v5473
        %v5475 = vlaneseq
        %v5476 = vshrl.u32 %v5475, 7
        %v5477 = vsub.s32 0, %v5476
        %v5478 = vrot.slane %v5456, %v5477
        %v5479 = vlaneseq
        %v5480 = vshrl.u32 %v5479, 7
        %v5481 = vsub.s32 0, %v5480
        %v5482 = vrot.slane %v5457, %v5481
        %v5483 = vlaneseq
        %v5484 = vshrl.u32 %v5483, 7
        %v5485 = vsub.s32 0, %v5484
        %v5486 = vrot.slane %v5458, %v5485
        %v5487 = vlaneseq
        %v5488 = vshrl.u32 %v5487, 7
        %v5489 = vsub.s32 0, %v5488
        %v5490 = vrot.slane %v5459, %v5489
        %v5491 = vlaneseq
        %v5492 = vshrl.u32 %v5491, 7
        %v5493 = vsub.s32 0, %v5492
        %v5494 = vrot.slane %v5460, %v5493
        %v5495 = vlaneseq
        %v5496 = vshrl.u32 %v5495, 7
        %v5497 = vsub.s32 0, %v5496
        %v5498 = vrot.slane %v5461, %v5497
        %v5499 = vlaneseq
        %v5500 = vshrl.u32 %v5499, 7
        %v5501 = vsub.s32 0, %v5500
        %v5502 = vrot.slane %v5462, %v5501
        %v5503 = vmul.f32 %v4638, %v5474
        %v5504 = vmul.f32 %v4640, %v5478
        %v5505 = vmul.f32 %v4851, %v5482
        %v5506 = vmul.f32 %v4853, %v5486
        %v5507 = vmul.f32 %v5064, %v5490
        %v5508 = vmul.f32 %v5066, %v5494
        %v5509 = vmul.f32 %v5277, %v5498
        %v5510 = vmul.f32 %v5279, %v5502
        %v5511 = vmul.f32 %v4642, %v5474
        %v5512 = vmul.f32 %v4644, %v5478
        %v5513 = vmul.f32 %v4855, %v5482
        %v5514 = vmul.f32 %v4857, %v5486
        %v5515 = vmul.f32 %v5068, %v5490
        %v5516 = vmul.f32 %v5070, %v5494
        %v5517 = vmul.f32 %v5281, %v5498
        %v5518 = vmul.f32 %v5283, %v5502
        %v5519 = vmul.f32 %v4648, %v5474
        %v5520 = vmul.f32 %v4650, %v5478
        %v5521 = vmul.f32 %v4861, %v5482
        %v5522 = vmul.f32 %v4863, %v5486
        %v5523 = vmul.f32 %v5074, %v5490
        %v5524 = vmul.f32 %v5076, %v5494
        %v5525 = vmul.f32 %v5287, %v5498
        %v5526 = vmul.f32 %v5289, %v5502
        %v5527 = vmul.f32 %v4652, %v5474
        %v5528 = vmul.f32 %v4654, %v5478
        %v5529 = vmul.f32 %v4865, %v5482
        %v5530 = vmul.f32 %v4867, %v5486
        %v5531 = vmul.f32 %v5078, %v5490
        %v5532 = vmul.f32 %v5080, %v5494
        %v5533 = vmul.f32 %v5291, %v5498
        %v5534 = vmul.f32 %v5293, %v5502
        %v5535 = vlaneseq
        %v5536 = vshrl.u32 %v5535, 7
        %v5537 = vsub.s32 1, %v5536
        %v5538 = vrot.slane %v5455, %v5537
        %v5539 = vlaneseq
        %v5540 = vshrl.u32 %v5539, 7
        %v5541 = vsub.s32 1, %v5540
        %v5542 = vrot.slane %v5456, %v5541
        %v5543 = vlaneseq
        %v5544 = vshrl.u32 %v5543, 7
        %v5545 = vsub.s32 1, %v5544
        %v5546 = vrot.slane %v5457, %v5545
        %v5547 = vlaneseq
        %v5548 = vshrl.u32 %v5547, 7
        %v5549 = vsub.s32 1, %v5548
        %v5550 = vrot.slane %v5458, %v5549
        %v5551 = vlaneseq
        %v5552 = vshrl.u32 %v5551, 7
        %v5553 = vsub.s32 1, %v5552
        %v5554 = vrot.slane %v5459, %v5553
        %v5555 = vlaneseq
        %v5556 = vshrl.u32 %v5555, 7
        %v5557 = vsub.s32 1, %v5556
        %v5558 = vrot.slane %v5460, %v5557
        %v5559 = vlaneseq
        %v5560 = vshrl.u32 %v5559, 7
        %v5561 = vsub.s32 1, %v5560
        %v5562 = vrot.slane %v5461, %v5561
        %v5563 = vlaneseq
        %v5564 = vshrl.u32 %v5563, 7
        %v5565 = vsub.s32 1, %v5564
        %v5566 = vrot.slane %v5462, %v5565
        %v5567 = vmul.f32 %v4658, %v5538
        %v5568 = vmul.f32 %v4660, %v5542
        %v5569 = vmul.f32 %v4871, %v5546
        %v5570 = vmul.f32 %v4873, %v5550
        %v5571 = vmul.f32 %v5084, %v5554
        %v5572 = vmul.f32 %v5086, %v5558
        %v5573 = vmul.f32 %v5297, %v5562
        %v5574 = vmul.f32 %v5299, %v5566
        %v5575 = vmul.f32 %v4662, %v5538
        %v5576 = vmul.f32 %v4664, %v5542
        %v5577 = vmul.f32 %v4875, %v5546
        %v5578 = vmul.f32 %v4877, %v5550
        %v5579 = vmul.f32 %v5088, %v5554
        %v5580 = vmul.f32 %v5090, %v5558
        %v5581 = vmul.f32 %v5301, %v5562
        %v5582 = vmul.f32 %v5303, %v5566
        %v5583 = vmul.f32 %v4668, %v5538
        %v5584 = vmul.f32 %v4670, %v5542
        %v5585 = vmul.f32 %v4881, %v5546
        %v5586 = vmul.f32 %v4883, %v5550
        %v5587 = vmul.f32 %v5094, %v5554
        %v5588 = vmul.f32 %v5096, %v5558
        %v5589 = vmul.f32 %v5307, %v5562
        %v5590 = vmul.f32 %v5309, %v5566
        %v5591 = vmul.f32 %v4672, %v5538
        %v5592 = vmul.f32 %v4674, %v5542
        %v5593 = vmul.f32 %v4885, %v5546
        %v5594 = vmul.f32 %v4887, %v5550
        %v5595 = vmul.f32 %v5098, %v5554
        %v5596 = vmul.f32 %v5100, %v5558
        %v5597 = vmul.f32 %v5311, %v5562
        %v5598 = vmul.f32 %v5313, %v5566
        %v5599 = vadd.f32 %v5503, %v5567
        %v5600 = vadd.f32 %v5504, %v5568
        %v5601 = vadd.f32 %v5505, %v5569
        %v5602 = vadd.f32 %v5506, %v5570
        %v5603 = vadd.f32 %v5507, %v5571
        %v5604 = vadd.f32 %v5508, %v5572
        %v5605 = vadd.f32 %v5509, %v5573
        %v5606 = vadd.f32 %v5510, %v5574
        %v5607 = vadd.f32 %v5511, %v5575
        %v5608 = vadd.f32 %v5512, %v5576
        %v5609 = vadd.f32 %v5513, %v5577
        %v5610 = vadd.f32 %v5514, %v5578
        %v5611 = vadd.f32 %v5515, %v5579
        %v5612 = vadd.f32 %v5516, %v5580
        %v5613 = vadd.f32 %v5517, %v5581
        %v5614 = vadd.f32 %v5518, %v5582
        %v5615 = vadd.f32 %v5519, %v5583
        %v5616 = vadd.f32 %v5520, %v5584
        %v5617 = vadd.f32 %v5521, %v5585
        %v5618 = vadd.f32 %v5522, %v5586
        %v5619 = vadd.f32 %v5523, %v5587
        %v5620 = vadd.f32 %v5524, %v5588
        %v5621 = vadd.f32 %v5525, %v5589
        %v5622 = vadd.f32 %v5526, %v5590
        %v5623 = vadd.f32 %v5527, %v5591
        %v5624 = vadd.f32 %v5528, %v5592
        %v5625 = vadd.f32 %v5529, %v5593
        %v5626 = vadd.f32 %v5530, %v5594
        %v5627 = vadd.f32 %v5531, %v5595
        %v5628 = vadd.f32 %v5532, %v5596
        %v5629 = vadd.f32 %v5533, %v5597
        %v5630 = vadd.f32 %v5534, %v5598
        %v5631 = vlaneseq
        %v5632 = vshrl.u32 %v5631, 7
        %v5633 = vsub.s32 2, %v5632
        %v5634 = vrot.slane %v5455, %v5633
        %v5635 = vlaneseq
        %v5636 = vshrl.u32 %v5635, 7
        %v5637 = vsub.s32 2, %v5636
        %v5638 = vrot.slane %v5456, %v5637
        %v5639 = vlaneseq
        %v5640 = vshrl.u32 %v5639, 7
        %v5641 = vsub.s32 2, %v5640
        %v5642 = vrot.slane %v5457, %v5641
        %v5643 = vlaneseq
        %v5644 = vshrl.u32 %v5643, 7
        %v5645 = vsub.s32 2, %v5644
        %v5646 = vrot.slane %v5458, %v5645
        %v5647 = vlaneseq
        %v5648 = vshrl.u32 %v5647, 7
        %v5649 = vsub.s32 2, %v5648
        %v5650 = vrot.slane %v5459, %v5649
        %v5651 = vlaneseq
        %v5652 = vshrl.u32 %v5651, 7
        %v5653 = vsub.s32 2, %v5652
        %v5654 = vrot.slane %v5460, %v5653
        %v5655 = vlaneseq
        %v5656 = vshrl.u32 %v5655, 7
        %v5657 = vsub.s32 2, %v5656
        %v5658 = vrot.slane %v5461, %v5657
        %v5659 = vlaneseq
        %v5660 = vshrl.u32 %v5659, 7
        %v5661 = vsub.s32 2, %v5660
        %v5662 = vrot.slane %v5462, %v5661
        %v5663 = vmul.f32 %v4678, %v5634
        %v5664 = vmul.f32 %v4680, %v5638
        %v5665 = vmul.f32 %v4891, %v5642
        %v5666 = vmul.f32 %v4893, %v5646
        %v5667 = vmul.f32 %v5104, %v5650
        %v5668 = vmul.f32 %v5106, %v5654
        %v5669 = vmul.f32 %v5317, %v5658
        %v5670 = vmul.f32 %v5319, %v5662
        %v5671 = vmul.f32 %v4682, %v5634
        %v5672 = vmul.f32 %v4684, %v5638
        %v5673 = vmul.f32 %v4895, %v5642
        %v5674 = vmul.f32 %v4897, %v5646
        %v5675 = vmul.f32 %v5108, %v5650
        %v5676 = vmul.f32 %v5110, %v5654
        %v5677 = vmul.f32 %v5321, %v5658
        %v5678 = vmul.f32 %v5323, %v5662
        %v5679 = vmul.f32 %v4688, %v5634
        %v5680 = vmul.f32 %v4690, %v5638
        %v5681 = vmul.f32 %v4901, %v5642
        %v5682 = vmul.f32 %v4903, %v5646
        %v5683 = vmul.f32 %v5114, %v5650
        %v5684 = vmul.f32 %v5116, %v5654
        %v5685 = vmul.f32 %v5327, %v5658
        %v5686 = vmul.f32 %v5329, %v5662
        %v5687 = vmul.f32 %v4692, %v5634
        %v5688 = vmul.f32 %v4694, %v5638
        %v5689 = vmul.f32 %v4905, %v5642
        %v5690 = vmul.f32 %v4907, %v5646
        %v5691 = vmul.f32 %v5118, %v5650
        %v5692 = vmul.f32 %v5120, %v5654
        %v5693 = vmul.f32 %v5331, %v5658
        %v5694 = vmul.f32 %v5333, %v5662
        %v5695 = vadd.f32 %v5599, %v5663
        %v5696 = vadd.f32 %v5600, %v5664
        %v5697 = vadd.f32 %v5601, %v5665
        %v5698 = vadd.f32 %v5602, %v5666
        %v5699 = vadd.f32 %v5603, %v5667
        %v5700 = vadd.f32 %v5604, %v5668
        %v5701 = vadd.f32 %v5605, %v5669
        %v5702 = vadd.f32 %v5606, %v5670
        %v5703 = vadd.f32 %v5607, %v5671
        %v5704 = vadd.f32 %v5608, %v5672
        %v5705 = vadd.f32 %v5609, %v5673
        %v5706 = vadd.f32 %v5610, %v5674
        %v5707 = vadd.f32 %v5611, %v5675
        %v5708 = vadd.f32 %v5612, %v5676
        %v5709 = vadd.f32 %v5613, %v5677
        %v5710 = vadd.f32 %v5614, %v5678
        %v5711 = vadd.f32 %v5615, %v5679
        %v5712 = vadd.f32 %v5616, %v5680
        %v5713 = vadd.f32 %v5617, %v5681
        %v5714 = vadd.f32 %v5618, %v5682
        %v5715 = vadd.f32 %v5619, %v5683
        %v5716 = vadd.f32 %v5620, %v5684
        %v5717 = vadd.f32 %v5621, %v5685
        %v5718 = vadd.f32 %v5622, %v5686
        %v5719 = vadd.f32 %v5623, %v5687
        %v5720 = vadd.f32 %v5624, %v5688
        %v5721 = vadd.f32 %v5625, %v5689
        %v5722 = vadd.f32 %v5626, %v5690
        %v5723 = vadd.f32 %v5627, %v5691
        %v5724 = vadd.f32 %v5628, %v5692
        %v5725 = vadd.f32 %v5629, %v5693
        %v5726 = vadd.f32 %v5630, %v5694
        %v5727 = vlaneseq
        %v5728 = vshrl.u32 %v5727, 7
        %v5729 = vsub.s32 3, %v5728
        %v5730 = vrot.slane %v5455, %v5729
        %v5731 = vlaneseq
        %v5732 = vshrl.u32 %v5731, 7
        %v5733 = vsub.s32 3, %v5732
        %v5734 = vrot.slane %v5456, %v5733
        %v5735 = vlaneseq
        %v5736 = vshrl.u32 %v5735, 7
        %v5737 = vsub.s32 3, %v5736
        %v5738 = vrot.slane %v5457, %v5737
        %v5739 = vlaneseq
        %v5740 = vshrl.u32 %v5739, 7
        %v5741 = vsub.s32 3, %v5740
        %v5742 = vrot.slane %v5458, %v5741
        %v5743 = vlaneseq
        %v5744 = vshrl.u32 %v5743, 7
        %v5745 = vsub.s32 3, %v5744
        %v5746 = vrot.slane %v5459, %v5745
        %v5747 = vlaneseq
        %v5748 = vshrl.u32 %v5747, 7
        %v5749 = vsub.s32 3, %v5748
        %v5750 = vrot.slane %v5460, %v5749
        %v5751 = vlaneseq
        %v5752 = vshrl.u32 %v5751, 7
        %v5753 = vsub.s32 3, %v5752
        %v5754 = vrot.slane %v5461, %v5753
        %v5755 = vlaneseq
        %v5756 = vshrl.u32 %v5755, 7
        %v5757 = vsub.s32 3, %v5756
        %v5758 = vrot.slane %v5462, %v5757
        %v5759 = vmul.f32 %v4698, %v5730
        %v5760 = vmul.f32 %v4700, %v5734
        %v5761 = vmul.f32 %v4911, %v5738
        %v5762 = vmul.f32 %v4913, %v5742
        %v5763 = vmul.f32 %v5124, %v5746
        %v5764 = vmul.f32 %v5126, %v5750
        %v5765 = vmul.f32 %v5337, %v5754
        %v5766 = vmul.f32 %v5339, %v5758
        %v5767 = vmul.f32 %v4702, %v5730
        %v5768 = vmul.f32 %v4704, %v5734
        %v5769 = vmul.f32 %v4915, %v5738
        %v5770 = vmul.f32 %v4917, %v5742
        %v5771 = vmul.f32 %v5128, %v5746
        %v5772 = vmul.f32 %v5130, %v5750
        %v5773 = vmul.f32 %v5341, %v5754
        %v5774 = vmul.f32 %v5343, %v5758
        %v5775 = vmul.f32 %v4708, %v5730
        %v5776 = vmul.f32 %v4710, %v5734
        %v5777 = vmul.f32 %v4921, %v5738
        %v5778 = vmul.f32 %v4923, %v5742
        %v5779 = vmul.f32 %v5134, %v5746
        %v5780 = vmul.f32 %v5136, %v5750
        %v5781 = vmul.f32 %v5347, %v5754
        %v5782 = vmul.f32 %v5349, %v5758
        %v5783 = vmul.f32 %v4712, %v5730
        %v5784 = vmul.f32 %v4714, %v5734
        %v5785 = vmul.f32 %v4925, %v5738
        %v5786 = vmul.f32 %v4927, %v5742
        %v5787 = vmul.f32 %v5138, %v5746
        %v5788 = vmul.f32 %v5140, %v5750
        %v5789 = vmul.f32 %v5351, %v5754
        %v5790 = vmul.f32 %v5353, %v5758
        %v5791 = vadd.f32 %v5695, %v5759
        %v5792 = vadd.f32 %v5696, %v5760
        %v5793 = vadd.f32 %v5697, %v5761
        %v5794 = vadd.f32 %v5698, %v5762
        %v5795 = vadd.f32 %v5699, %v5763
        %v5796 = vadd.f32 %v5700, %v5764
        %v5797 = vadd.f32 %v5701, %v5765
        %v5798 = vadd.f32 %v5702, %v5766
        %v5799 = vadd.f32 %v5703, %v5767
        %v5800 = vadd.f32 %v5704, %v5768
        %v5801 = vadd.f32 %v5705, %v5769
        %v5802 = vadd.f32 %v5706, %v5770
        %v5803 = vadd.f32 %v5707, %v5771
        %v5804 = vadd.f32 %v5708, %v5772
        %v5805 = vadd.f32 %v5709, %v5773
        %v5806 = vadd.f32 %v5710, %v5774
        %v5807 = vadd.f32 %v5711, %v5775
        %v5808 = vadd.f32 %v5712, %v5776
        %v5809 = vadd.f32 %v5713, %v5777
        %v5810 = vadd.f32 %v5714, %v5778
        %v5811 = vadd.f32 %v5715, %v5779
        %v5812 = vadd.f32 %v5716, %v5780
        %v5813 = vadd.f32 %v5717, %v5781
        %v5814 = vadd.f32 %v5718, %v5782
        %v5815 = vadd.f32 %v5719, %v5783
        %v5816 = vadd.f32 %v5720, %v5784
        %v5817 = vadd.f32 %v5721, %v5785
        %v5818 = vadd.f32 %v5722, %v5786
        %v5819 = vadd.f32 %v5723, %v5787
        %v5820 = vadd.f32 %v5724, %v5788
        %v5821 = vadd.f32 %v5725, %v5789
        %v5822 = vadd.f32 %v5726, %v5790
        %v5823 = vlaneseq
        %v5824 = vshrl.u32 %v5823, 7
        %v5825 = vsub.s32 4, %v5824
        %v5826 = vrot.slane %v5455, %v5825
        %v5827 = vlaneseq
        %v5828 = vshrl.u32 %v5827, 7
        %v5829 = vsub.s32 4, %v5828
        %v5830 = vrot.slane %v5456, %v5829
        %v5831 = vlaneseq
        %v5832 = vshrl.u32 %v5831, 7
        %v5833 = vsub.s32 4, %v5832
        %v5834 = vrot.slane %v5457, %v5833
        %v5835 = vlaneseq
        %v5836 = vshrl.u32 %v5835, 7
        %v5837 = vsub.s32 4, %v5836
        %v5838 = vrot.slane %v5458, %v5837
        %v5839 = vlaneseq
        %v5840 = vshrl.u32 %v5839, 7
        %v5841 = vsub.s32 4, %v5840
        %v5842 = vrot.slane %v5459, %v5841
        %v5843 = vlaneseq
        %v5844 = vshrl.u32 %v5843, 7
        %v5845 = vsub.s32 4, %v5844
        %v5846 = vrot.slane %v5460, %v5845
        %v5847 = vlaneseq
        %v5848 = vshrl.u32 %v5847, 7
        %v5849 = vsub.s32 4, %v5848
        %v5850 = vrot.slane %v5461, %v5849
        %v5851 = vlaneseq
        %v5852 = vshrl.u32 %v5851, 7
        %v5853 = vsub.s32 4, %v5852
        %v5854 = vrot.slane %v5462, %v5853
        %v5855 = vmul.f32 %v4718, %v5826
        %v5856 = vmul.f32 %v4720, %v5830
        %v5857 = vmul.f32 %v4931, %v5834
        %v5858 = vmul.f32 %v4933, %v5838
        %v5859 = vmul.f32 %v5144, %v5842
        %v5860 = vmul.f32 %v5146, %v5846
        %v5861 = vmul.f32 %v5357, %v5850
        %v5862 = vmul.f32 %v5359, %v5854
        %v5863 = vmul.f32 %v4722, %v5826
        %v5864 = vmul.f32 %v4724, %v5830
        %v5865 = vmul.f32 %v4935, %v5834
        %v5866 = vmul.f32 %v4937, %v5838
        %v5867 = vmul.f32 %v5148, %v5842
        %v5868 = vmul.f32 %v5150, %v5846
        %v5869 = vmul.f32 %v5361, %v5850
        %v5870 = vmul.f32 %v5363, %v5854
        %v5871 = vmul.f32 %v4728, %v5826
        %v5872 = vmul.f32 %v4730, %v5830
        %v5873 = vmul.f32 %v4941, %v5834
        %v5874 = vmul.f32 %v4943, %v5838
        %v5875 = vmul.f32 %v5154, %v5842
        %v5876 = vmul.f32 %v5156, %v5846
        %v5877 = vmul.f32 %v5367, %v5850
        %v5878 = vmul.f32 %v5369, %v5854
        %v5879 = vmul.f32 %v4732, %v5826
        %v5880 = vmul.f32 %v4734, %v5830
        %v5881 = vmul.f32 %v4945, %v5834
        %v5882 = vmul.f32 %v4947, %v5838
        %v5883 = vmul.f32 %v5158, %v5842
        %v5884 = vmul.f32 %v5160, %v5846
        %v5885 = vmul.f32 %v5371, %v5850
        %v5886 = vmul.f32 %v5373, %v5854
        %v5887 = vadd.f32 %v5791, %v5855
        %v5888 = vadd.f32 %v5792, %v5856
        %v5889 = vadd.f32 %v5793, %v5857
        %v5890 = vadd.f32 %v5794, %v5858
        %v5891 = vadd.f32 %v5795, %v5859
        %v5892 = vadd.f32 %v5796, %v5860
        %v5893 = vadd.f32 %v5797, %v5861
        %v5894 = vadd.f32 %v5798, %v5862
        %v5895 = vadd.f32 %v5799, %v5863
        %v5896 = vadd.f32 %v5800, %v5864
        %v5897 = vadd.f32 %v5801, %v5865
        %v5898 = vadd.f32 %v5802, %v5866
        %v5899 = vadd.f32 %v5803, %v5867
        %v5900 = vadd.f32 %v5804, %v5868
        %v5901 = vadd.f32 %v5805, %v5869
        %v5902 = vadd.f32 %v5806, %v5870
        %v5903 = vadd.f32 %v5807, %v5871
        %v5904 = vadd.f32 %v5808, %v5872
        %v5905 = vadd.f32 %v5809, %v5873
        %v5906 = vadd.f32 %v5810, %v5874
        %v5907 = vadd.f32 %v5811, %v5875
        %v5908 = vadd.f32 %v5812, %v5876
        %v5909 = vadd.f32 %v5813, %v5877
        %v5910 = vadd.f32 %v5814, %v5878
        %v5911 = vadd.f32 %v5815, %v5879
        %v5912 = vadd.f32 %v5816, %v5880
        %v5913 = vadd.f32 %v5817, %v5881
        %v5914 = vadd.f32 %v5818, %v5882
        %v5915 = vadd.f32 %v5819, %v5883
        %v5916 = vadd.f32 %v5820, %v5884
        %v5917 = vadd.f32 %v5821, %v5885
        %v5918 = vadd.f32 %v5822, %v5886
        %v5919 = vlaneseq
        %v5920 = vshrl.u32 %v5919, 7
        %v5921 = vsub.s32 5, %v5920
        %v5922 = vrot.slane %v5455, %v5921
        %v5923 = vlaneseq
        %v5924 = vshrl.u32 %v5923, 7
        %v5925 = vsub.s32 5, %v5924
        %v5926 = vrot.slane %v5456, %v5925
        %v5927 = vlaneseq
        %v5928 = vshrl.u32 %v5927, 7
        %v5929 = vsub.s32 5, %v5928
        %v5930 = vrot.slane %v5457, %v5929
        %v5931 = vlaneseq
        %v5932 = vshrl.u32 %v5931, 7
        %v5933 = vsub.s32 5, %v5932
        %v5934 = vrot.slane %v5458, %v5933
        %v5935 = vlaneseq
        %v5936 = vshrl.u32 %v5935, 7
        %v5937 = vsub.s32 5, %v5936
        %v5938 = vrot.slane %v5459, %v5937
        %v5939 = vlaneseq
        %v5940 = vshrl.u32 %v5939, 7
        %v5941 = vsub.s32 5, %v5940
        %v5942 = vrot.slane %v5460, %v5941
        %v5943 = vlaneseq
        %v5944 = vshrl.u32 %v5943, 7
        %v5945 = vsub.s32 5, %v5944
        %v5946 = vrot.slane %v5461, %v5945
        %v5947 = vlaneseq
        %v5948 = vshrl.u32 %v5947, 7
        %v5949 = vsub.s32 5, %v5948
        %v5950 = vrot.slane %v5462, %v5949
        %v5951 = vmul.f32 %v4738, %v5922
        %v5952 = vmul.f32 %v4740, %v5926
        %v5953 = vmul.f32 %v4951, %v5930
        %v5954 = vmul.f32 %v4953, %v5934
        %v5955 = vmul.f32 %v5164, %v5938
        %v5956 = vmul.f32 %v5166, %v5942
        %v5957 = vmul.f32 %v5377, %v5946
        %v5958 = vmul.f32 %v5379, %v5950
        %v5959 = vmul.f32 %v4742, %v5922
        %v5960 = vmul.f32 %v4744, %v5926
        %v5961 = vmul.f32 %v4955, %v5930
        %v5962 = vmul.f32 %v4957, %v5934
        %v5963 = vmul.f32 %v5168, %v5938
        %v5964 = vmul.f32 %v5170, %v5942
        %v5965 = vmul.f32 %v5381, %v5946
        %v5966 = vmul.f32 %v5383, %v5950
        %v5967 = vmul.f32 %v4748, %v5922
        %v5968 = vmul.f32 %v4750, %v5926
        %v5969 = vmul.f32 %v4961, %v5930
        %v5970 = vmul.f32 %v4963, %v5934
        %v5971 = vmul.f32 %v5174, %v5938
        %v5972 = vmul.f32 %v5176, %v5942
        %v5973 = vmul.f32 %v5387, %v5946
        %v5974 = vmul.f32 %v5389, %v5950
        %v5975 = vmul.f32 %v4752, %v5922
        %v5976 = vmul.f32 %v4754, %v5926
        %v5977 = vmul.f32 %v4965, %v5930
        %v5978 = vmul.f32 %v4967, %v5934
        %v5979 = vmul.f32 %v5178, %v5938
        %v5980 = vmul.f32 %v5180, %v5942
        %v5981 = vmul.f32 %v5391, %v5946
        %v5982 = vmul.f32 %v5393, %v5950
        %v5983 = vadd.f32 %v5887, %v5951
        %v5984 = vadd.f32 %v5888, %v5952
        %v5985 = vadd.f32 %v5889, %v5953
        %v5986 = vadd.f32 %v5890, %v5954
        %v5987 = vadd.f32 %v5891, %v5955
        %v5988 = vadd.f32 %v5892, %v5956
        %v5989 = vadd.f32 %v5893, %v5957
        %v5990 = vadd.f32 %v5894, %v5958
        %v5991 = vadd.f32 %v5895, %v5959
        %v5992 = vadd.f32 %v5896, %v5960
        %v5993 = vadd.f32 %v5897, %v5961
        %v5994 = vadd.f32 %v5898, %v5962
        %v5995 = vadd.f32 %v5899, %v5963
        %v5996 = vadd.f32 %v5900, %v5964
        %v5997 = vadd.f32 %v5901, %v5965
        %v5998 = vadd.f32 %v5902, %v5966
        %v5999 = vadd.f32 %v5903, %v5967
        %v6000 = vadd.f32 %v5904, %v5968
        %v6001 = vadd.f32 %v5905, %v5969
        %v6002 = vadd.f32 %v5906, %v5970
        %v6003 = vadd.f32 %v5907, %v5971
        %v6004 = vadd.f32 %v5908, %v5972
        %v6005 = vadd.f32 %v5909, %v5973
        %v6006 = vadd.f32 %v5910, %v5974
        %v6007 = vadd.f32 %v5911, %v5975
        %v6008 = vadd.f32 %v5912, %v5976
        %v6009 = vadd.f32 %v5913, %v5977
        %v6010 = vadd.f32 %v5914, %v5978
        %v6011 = vadd.f32 %v5915, %v5979
        %v6012 = vadd.f32 %v5916, %v5980
        %v6013 = vadd.f32 %v5917, %v5981
        %v6014 = vadd.f32 %v5918, %v5982
        %v6015 = vlaneseq
        %v6016 = vshrl.u32 %v6015, 7
        %v6017 = vsub.s32 6, %v6016
        %v6018 = vrot.slane %v5455, %v6017
        %v6019 = vlaneseq
        %v6020 = vshrl.u32 %v6019, 7
        %v6021 = vsub.s32 6, %v6020
        %v6022 = vrot.slane %v5456, %v6021
        %v6023 = vlaneseq
        %v6024 = vshrl.u32 %v6023, 7
        %v6025 = vsub.s32 6, %v6024
        %v6026 = vrot.slane %v5457, %v6025
        %v6027 = vlaneseq
        %v6028 = vshrl.u32 %v6027, 7
        %v6029 = vsub.s32 6, %v6028
        %v6030 = vrot.slane %v5458, %v6029
        %v6031 = vlaneseq
        %v6032 = vshrl.u32 %v6031, 7
        %v6033 = vsub.s32 6, %v6032
        %v6034 = vrot.slane %v5459, %v6033
        %v6035 = vlaneseq
        %v6036 = vshrl.u32 %v6035, 7
        %v6037 = vsub.s32 6, %v6036
        %v6038 = vrot.slane %v5460, %v6037
        %v6039 = vlaneseq
        %v6040 = vshrl.u32 %v6039, 7
        %v6041 = vsub.s32 6, %v6040
        %v6042 = vrot.slane %v5461, %v6041
        %v6043 = vlaneseq
        %v6044 = vshrl.u32 %v6043, 7
        %v6045 = vsub.s32 6, %v6044
        %v6046 = vrot.slane %v5462, %v6045
        %v6047 = vmul.f32 %v4758, %v6018
        %v6048 = vmul.f32 %v4760, %v6022
        %v6049 = vmul.f32 %v4971, %v6026
        %v6050 = vmul.f32 %v4973, %v6030
        %v6051 = vmul.f32 %v5184, %v6034
        %v6052 = vmul.f32 %v5186, %v6038
        %v6053 = vmul.f32 %v5397, %v6042
        %v6054 = vmul.f32 %v5399, %v6046
        %v6055 = vmul.f32 %v4762, %v6018
        %v6056 = vmul.f32 %v4764, %v6022
        %v6057 = vmul.f32 %v4975, %v6026
        %v6058 = vmul.f32 %v4977, %v6030
        %v6059 = vmul.f32 %v5188, %v6034
        %v6060 = vmul.f32 %v5190, %v6038
        %v6061 = vmul.f32 %v5401, %v6042
        %v6062 = vmul.f32 %v5403, %v6046
        %v6063 = vmul.f32 %v4768, %v6018
        %v6064 = vmul.f32 %v4770, %v6022
        %v6065 = vmul.f32 %v4981, %v6026
        %v6066 = vmul.f32 %v4983, %v6030
        %v6067 = vmul.f32 %v5194, %v6034
        %v6068 = vmul.f32 %v5196, %v6038
        %v6069 = vmul.f32 %v5407, %v6042
        %v6070 = vmul.f32 %v5409, %v6046
        %v6071 = vmul.f32 %v4772, %v6018
        %v6072 = vmul.f32 %v4774, %v6022
        %v6073 = vmul.f32 %v4985, %v6026
        %v6074 = vmul.f32 %v4987, %v6030
        %v6075 = vmul.f32 %v5198, %v6034
        %v6076 = vmul.f32 %v5200, %v6038
        %v6077 = vmul.f32 %v5411, %v6042
        %v6078 = vmul.f32 %v5413, %v6046
        %v6079 = vadd.f32 %v5983, %v6047
        %v6080 = vadd.f32 %v5984, %v6048
        %v6081 = vadd.f32 %v5985, %v6049
        %v6082 = vadd.f32 %v5986, %v6050
        %v6083 = vadd.f32 %v5987, %v6051
        %v6084 = vadd.f32 %v5988, %v6052
        %v6085 = vadd.f32 %v5989, %v6053
        %v6086 = vadd.f32 %v5990, %v6054
        %v6087 = vadd.f32 %v5991, %v6055
        %v6088 = vadd.f32 %v5992, %v6056
        %v6089 = vadd.f32 %v5993, %v6057
        %v6090 = vadd.f32 %v5994, %v6058
        %v6091 = vadd.f32 %v5995, %v6059
        %v6092 = vadd.f32 %v5996, %v6060
        %v6093 = vadd.f32 %v5997, %v6061
        %v6094 = vadd.f32 %v5998, %v6062
        %v6095 = vadd.f32 %v5999, %v6063
        %v6096 = vadd.f32 %v6000, %v6064
        %v6097 = vadd.f32 %v6001, %v6065
        %v6098 = vadd.f32 %v6002, %v6066
        %v6099 = vadd.f32 %v6003, %v6067
        %v6100 = vadd.f32 %v6004, %v6068
        %v6101 = vadd.f32 %v6005, %v6069
        %v6102 = vadd.f32 %v6006, %v6070
        %v6103 = vadd.f32 %v6007, %v6071
        %v6104 = vadd.f32 %v6008, %v6072
        %v6105 = vadd.f32 %v6009, %v6073
        %v6106 = vadd.f32 %v6010, %v6074
        %v6107 = vadd.f32 %v6011, %v6075
        %v6108 = vadd.f32 %v6012, %v6076
        %v6109 = vadd.f32 %v6013, %v6077
        %v6110 = vadd.f32 %v6014, %v6078
        %v6111 = vlaneseq
        %v6112 = vshrl.u32 %v6111, 7
        %v6113 = vsub.s32 7, %v6112
        %v6114 = vrot.slane %v5455, %v6113
        %v6115 = vlaneseq
        %v6116 = vshrl.u32 %v6115, 7
        %v6117 = vsub.s32 7, %v6116
        %v6118 = vrot.slane %v5456, %v6117
        %v6119 = vlaneseq
        %v6120 = vshrl.u32 %v6119, 7
        %v6121 = vsub.s32 7, %v6120
        %v6122 = vrot.slane %v5457, %v6121
        %v6123 = vlaneseq
        %v6124 = vshrl.u32 %v6123, 7
        %v6125 = vsub.s32 7, %v6124
        %v6126 = vrot.slane %v5458, %v6125
        %v6127 = vlaneseq
        %v6128 = vshrl.u32 %v6127, 7
        %v6129 = vsub.s32 7, %v6128
        %v6130 = vrot.slane %v5459, %v6129
        %v6131 = vlaneseq
        %v6132 = vshrl.u32 %v6131, 7
        %v6133 = vsub.s32 7, %v6132
        %v6134 = vrot.slane %v5460, %v6133
        %v6135 = vlaneseq
        %v6136 = vshrl.u32 %v6135, 7
        %v6137 = vsub.s32 7, %v6136
        %v6138 = vrot.slane %v5461, %v6137
        %v6139 = vlaneseq
        %v6140 = vshrl.u32 %v6139, 7
        %v6141 = vsub.s32 7, %v6140
        %v6142 = vrot.slane %v5462, %v6141
        %v6143 = vmul.f32 %v4778, %v6114
        %v6144 = vmul.f32 %v4780, %v6118
        %v6145 = vmul.f32 %v4991, %v6122
        %v6146 = vmul.f32 %v4993, %v6126
        %v6147 = vmul.f32 %v5204, %v6130
        %v6148 = vmul.f32 %v5206, %v6134
        %v6149 = vmul.f32 %v5417, %v6138
        %v6150 = vmul.f32 %v5419, %v6142
        %v6151 = vmul.f32 %v4782, %v6114
        %v6152 = vmul.f32 %v4784, %v6118
        %v6153 = vmul.f32 %v4995, %v6122
        %v6154 = vmul.f32 %v4997, %v6126
        %v6155 = vmul.f32 %v5208, %v6130
        %v6156 = vmul.f32 %v5210, %v6134
        %v6157 = vmul.f32 %v5421, %v6138
        %v6158 = vmul.f32 %v5423, %v6142
        %v6159 = vmul.f32 %v4788, %v6114
        %v6160 = vmul.f32 %v4790, %v6118
        %v6161 = vmul.f32 %v5001, %v6122
        %v6162 = vmul.f32 %v5003, %v6126
        %v6163 = vmul.f32 %v5214, %v6130
        %v6164 = vmul.f32 %v5216, %v6134
        %v6165 = vmul.f32 %v5427, %v6138
        %v6166 = vmul.f32 %v5429, %v6142
        %v6167 = vmul.f32 %v4792, %v6114
        %v6168 = vmul.f32 %v4794, %v6118
        %v6169 = vmul.f32 %v5005, %v6122
        %v6170 = vmul.f32 %v5007, %v6126
        %v6171 = vmul.f32 %v5218, %v6130
        %v6172 = vmul.f32 %v5220, %v6134
        %v6173 = vmul.f32 %v5431, %v6138
        %v6174 = vmul.f32 %v5433, %v6142
        %v6175 = vadd.f32 %v6079, %v6143
        %v6176 = vadd.f32 %v6080, %v6144
        %v6177 = vadd.f32 %v6081, %v6145
        %v6178 = vadd.f32 %v6082, %v6146
        %v6179 = vadd.f32 %v6083, %v6147
        %v6180 = vadd.f32 %v6084, %v6148
        %v6181 = vadd.f32 %v6085, %v6149
        %v6182 = vadd.f32 %v6086, %v6150
        %v6183 = vadd.f32 %v6087, %v6151
        %v6184 = vadd.f32 %v6088, %v6152
        %v6185 = vadd.f32 %v6089, %v6153
        %v6186 = vadd.f32 %v6090, %v6154
        %v6187 = vadd.f32 %v6091, %v6155
        %v6188 = vadd.f32 %v6092, %v6156
        %v6189 = vadd.f32 %v6093, %v6157
        %v6190 = vadd.f32 %v6094, %v6158
        %v6191 = vadd.f32 %v6095, %v6159
        %v6192 = vadd.f32 %v6096, %v6160
        %v6193 = vadd.f32 %v6097, %v6161
        %v6194 = vadd.f32 %v6098, %v6162
        %v6195 = vadd.f32 %v6099, %v6163
        %v6196 = vadd.f32 %v6100, %v6164
        %v6197 = vadd.f32 %v6101, %v6165
        %v6198 = vadd.f32 %v6102, %v6166
        %v6199 = vadd.f32 %v6103, %v6167
        %v6200 = vadd.f32 %v6104, %v6168
        %v6201 = vadd.f32 %v6105, %v6169
        %v6202 = vadd.f32 %v6106, %v6170
        %v6203 = vadd.f32 %v6107, %v6171
        %v6204 = vadd.f32 %v6108, %v6172
        %v6205 = vadd.f32 %v6109, %v6173
        %v6206 = vadd.f32 %v6110, %v6174
        %v6207 = vlaneseq
        %v6208 = vshrl.u32 %v6207, 7
        %v6209 = vsub.s32 0, %v6208
        %v6210 = vrot.slane %v5463, %v6209
        %v6211 = vlaneseq
        %v6212 = vshrl.u32 %v6211, 7
        %v6213 = vsub.s32 0, %v6212
        %v6214 = vrot.slane %v5464, %v6213
        %v6215 = vlaneseq
        %v6216 = vshrl.u32 %v6215, 7
        %v6217 = vsub.s32 0, %v6216
        %v6218 = vrot.slane %v5465, %v6217
        %v6219 = vlaneseq
        %v6220 = vshrl.u32 %v6219, 7
        %v6221 = vsub.s32 0, %v6220
        %v6222 = vrot.slane %v5466, %v6221
        %v6223 = vlaneseq
        %v6224 = vshrl.u32 %v6223, 7
        %v6225 = vsub.s32 0, %v6224
        %v6226 = vrot.slane %v5467, %v6225
        %v6227 = vlaneseq
        %v6228 = vshrl.u32 %v6227, 7
        %v6229 = vsub.s32 0, %v6228
        %v6230 = vrot.slane %v5468, %v6229
        %v6231 = vlaneseq
        %v6232 = vshrl.u32 %v6231, 7
        %v6233 = vsub.s32 0, %v6232
        %v6234 = vrot.slane %v5469, %v6233
        %v6235 = vlaneseq
        %v6236 = vshrl.u32 %v6235, 7
        %v6237 = vsub.s32 0, %v6236
        %v6238 = vrot.slane %v5470, %v6237
        %v6239 = vmul.f32 %v4798, %v6210
        %v6240 = vmul.f32 %v4800, %v6214
        %v6241 = vmul.f32 %v5011, %v6218
        %v6242 = vmul.f32 %v5013, %v6222
        %v6243 = vmul.f32 %v5224, %v6226
        %v6244 = vmul.f32 %v5226, %v6230
        %v6245 = vmul.f32 %v5437, %v6234
        %v6246 = vmul.f32 %v5439, %v6238
        %v6247 = vmul.f32 %v4802, %v6210
        %v6248 = vmul.f32 %v4804, %v6214
        %v6249 = vmul.f32 %v5015, %v6218
        %v6250 = vmul.f32 %v5017, %v6222
        %v6251 = vmul.f32 %v5228, %v6226
        %v6252 = vmul.f32 %v5230, %v6230
        %v6253 = vmul.f32 %v5441, %v6234
        %v6254 = vmul.f32 %v5443, %v6238
        %v6255 = vmul.f32 %v4808, %v6210
        %v6256 = vmul.f32 %v4810, %v6214
        %v6257 = vmul.f32 %v5021, %v6218
        %v6258 = vmul.f32 %v5023, %v6222
        %v6259 = vmul.f32 %v5234, %v6226
        %v6260 = vmul.f32 %v5236, %v6230
        %v6261 = vmul.f32 %v5447, %v6234
        %v6262 = vmul.f32 %v5449, %v6238
        %v6263 = vmul.f32 %v4812, %v6210
        %v6264 = vmul.f32 %v4814, %v6214
        %v6265 = vmul.f32 %v5025, %v6218
        %v6266 = vmul.f32 %v5027, %v6222
        %v6267 = vmul.f32 %v5238, %v6226
        %v6268 = vmul.f32 %v5240, %v6230
        %v6269 = vmul.f32 %v5451, %v6234
        %v6270 = vmul.f32 %v5453, %v6238
        %v6271 = vadd.f32 %v6175, %v6239
        %v6272 = vadd.f32 %v6176, %v6240
        %v6273 = vadd.f32 %v6177, %v6241
        %v6274 = vadd.f32 %v6178, %v6242
        %v6275 = vadd.f32 %v6179, %v6243
        %v6276 = vadd.f32 %v6180, %v6244
        %v6277 = vadd.f32 %v6181, %v6245
        %v6278 = vadd.f32 %v6182, %v6246
        %v6279 = vadd.f32 %v6183, %v6247
        %v6280 = vadd.f32 %v6184, %v6248
        %v6281 = vadd.f32 %v6185, %v6249
        %v6282 = vadd.f32 %v6186, %v6250
        %v6283 = vadd.f32 %v6187, %v6251
        %v6284 = vadd.f32 %v6188, %v6252
        %v6285 = vadd.f32 %v6189, %v6253
        %v6286 = vadd.f32 %v6190, %v6254
        %v6287 = vadd.f32 %v6191, %v6255
        %v6288 = vadd.f32 %v6192, %v6256
        %v6289 = vadd.f32 %v6193, %v6257
        %v6290 = vadd.f32 %v6194, %v6258
        %v6291 = vadd.f32 %v6195, %v6259
        %v6292 = vadd.f32 %v6196, %v6260
        %v6293 = vadd.f32 %v6197, %v6261
        %v6294 = vadd.f32 %v6198, %v6262
        %v6295 = vadd.f32 %v6199, %v6263
        %v6296 = vadd.f32 %v6200, %v6264
        %v6297 = vadd.f32 %v6201, %v6265
        %v6298 = vadd.f32 %v6202, %v6266
        %v6299 = vadd.f32 %v6203, %v6267
        %v6300 = vadd.f32 %v6204, %v6268
        %v6301 = vadd.f32 %v6205, %v6269
        %v6302 = vadd.f32 %v6206, %v6270
        %v6303 = vld [vmem:[%s13] sm:$0xff]
        %v6305 = vlaneseq
        %v6306 = vshrl.u32 %v6305, 7
        %v6307 = vsub.s32 0, %v6306
        %v6308 = vrot.slane %v6303, %v6307
        %v6309 = vlaneseq
        %v6310 = vshrl.u32 %v6309, 7
        %v6311 = vsub.s32 1, %v6310
        %v6312 = vrot.slane %v6303, %v6311
        %v6313 = vlaneseq
        %v6314 = vshrl.u32 %v6313, 7
        %v6315 = vsub.s32 2, %v6314
        %v6316 = vrot.slane %v6303, %v6315
        %v6317 = vlaneseq
        %v6318 = vshrl.u32 %v6317, 7
        %v6319 = vsub.s32 3, %v6318
        %v6320 = vrot.slane %v6303, %v6319
        %v6321 = vlaneseq
        %v6322 = vshrl.u32 %v6321, 7
        %v6323 = vsub.s32 4, %v6322
        %v6324 = vrot.slane %v6303, %v6323
        %v6325 = vlaneseq
        %v6326 = vshrl.u32 %v6325, 7
        %v6327 = vsub.s32 5, %v6326
        %v6328 = vrot.slane %v6303, %v6327
        %v6329 = vlaneseq
        %v6330 = vshrl.u32 %v6329, 7
        %v6331 = vsub.s32 6, %v6330
        %v6332 = vrot.slane %v6303, %v6331
        %v6333 = vlaneseq
        %v6334 = vshrl.u32 %v6333, 7
        %v6335 = vsub.s32 7, %v6334
        %v6336 = vrot.slane %v6303, %v6335
        %v6345 = vadd.f32 %v6271, %v6308
        %v6346 = vadd.f32 %v6272, %v6312
        %v6347 = vadd.f32 %v6273, %v6316
        %v6348 = vadd.f32 %v6274, %v6320
        %v6349 = vadd.f32 %v6275, %v6324
        %v6350 = vadd.f32 %v6276, %v6328
        %v6351 = vadd.f32 %v6277, %v6332
        %v6352 = vadd.f32 %v6278, %v6336
        %v6353 = vadd.f32 %v6279, %v6308
        %v6354 = vadd.f32 %v6280, %v6312
        %v6355 = vadd.f32 %v6281, %v6316
        %v6356 = vadd.f32 %v6282, %v6320
        %v6357 = vadd.f32 %v6283, %v6324
        %v6358 = vadd.f32 %v6284, %v6328
        %v6359 = vadd.f32 %v6285, %v6332
        %v6360 = vadd.f32 %v6286, %v6336
        %v6361 = vadd.f32 %v6287, %v6308
        %v6362 = vadd.f32 %v6288, %v6312
        %v6363 = vadd.f32 %v6289, %v6316
        %v6364 = vadd.f32 %v6290, %v6320
        %v6365 = vadd.f32 %v6291, %v6324
        %v6366 = vadd.f32 %v6292, %v6328
        %v6367 = vadd.f32 %v6293, %v6332
        %v6368 = vadd.f32 %v6294, %v6336
        %v6369 = vadd.f32 %v6295, %v6308
        %v6370 = vadd.f32 %v6296, %v6312
        %v6371 = vadd.f32 %v6297, %v6316
        %v6372 = vadd.f32 %v6298, %v6320
        %v6373 = vadd.f32 %v6299, %v6324
        %v6374 = vadd.f32 %v6300, %v6328
        %v6375 = vadd.f32 %v6301, %v6332
        %v6376 = vadd.f32 %v6302, %v6336
        %v6377 = vmax.f32 %v6345, 0.0
        %v6378 = vmax.f32 %v6346, 0.0
        %v6379 = vmax.f32 %v6347, 0.0
        %v6380 = vmax.f32 %v6348, 0.0
        %v6381 = vmax.f32 %v6349, 0.0
        %v6382 = vmax.f32 %v6350, 0.0
        %v6383 = vmax.f32 %v6351, 0.0
        %v6384 = vmax.f32 %v6352, 0.0
        %v6385 = vmax.f32 %v6353, 0.0
        %v6386 = vmax.f32 %v6354, 0.0
        %v6387 = vmax.f32 %v6355, 0.0
        %v6388 = vmax.f32 %v6356, 0.0
        %v6389 = vmax.f32 %v6357, 0.0
        %v6390 = vmax.f32 %v6358, 0.0
        %v6391 = vmax.f32 %v6359, 0.0
        %v6392 = vmax.f32 %v6360, 0.0
        %v6393 = vmax.f32 %v6361, 0.0
        %v6394 = vmax.f32 %v6362, 0.0
        %v6395 = vmax.f32 %v6363, 0.0
        %v6396 = vmax.f32 %v6364, 0.0
        %v6397 = vmax.f32 %v6365, 0.0
        %v6398 = vmax.f32 %v6366, 0.0
        %v6399 = vmax.f32 %v6367, 0.0
        %v6400 = vmax.f32 %v6368, 0.0
        %v6401 = vmax.f32 %v6369, 0.0
        %v6402 = vmax.f32 %v6370, 0.0
        %v6403 = vmax.f32 %v6371, 0.0
        %v6404 = vmax.f32 %v6372, 0.0
        %v6405 = vmax.f32 %v6373, 0.0
        %v6406 = vmax.f32 %v6374, 0.0
        %v6407 = vmax.f32 %v6375, 0.0
        %v6408 = vmax.f32 %v6376, 0.0
        %v6409 = vmin.f32 %v6377, 6.0
        %v6410 = vmin.f32 %v6378, 6.0
        %v6411 = vmin.f32 %v6379, 6.0
        %v6412 = vmin.f32 %v6380, 6.0
        %v6413 = vmin.f32 %v6381, 6.0
        %v6414 = vmin.f32 %v6382, 6.0
        %v6415 = vmin.f32 %v6383, 6.0
        %v6416 = vmin.f32 %v6384, 6.0
        %v6417 = vmin.f32 %v6385, 6.0
        %v6418 = vmin.f32 %v6386, 6.0
        %v6419 = vmin.f32 %v6387, 6.0
        %v6420 = vmin.f32 %v6388, 6.0
        %v6421 = vmin.f32 %v6389, 6.0
        %v6422 = vmin.f32 %v6390, 6.0
        %v6423 = vmin.f32 %v6391, 6.0
        %v6424 = vmin.f32 %v6392, 6.0
        %v6425 = vmin.f32 %v6393, 6.0
        %v6426 = vmin.f32 %v6394, 6.0
        %v6427 = vmin.f32 %v6395, 6.0
        %v6428 = vmin.f32 %v6396, 6.0
        %v6429 = vmin.f32 %v6397, 6.0
        %v6430 = vmin.f32 %v6398, 6.0
        %v6431 = vmin.f32 %v6399, 6.0
        %v6432 = vmin.f32 %v6400, 6.0
        %v6433 = vmin.f32 %v6401, 6.0
        %v6434 = vmin.f32 %v6402, 6.0
        %v6435 = vmin.f32 %v6403, 6.0
        %v6436 = vmin.f32 %v6404, 6.0
        %v6437 = vmin.f32 %v6405, 6.0
        %v6438 = vmin.f32 %v6406, 6.0
        %v6439 = vmin.f32 %v6407, 6.0
        %v6440 = vmin.f32 %v6408, 6.0
        %v6441 = vpack.c.bf16 %v6417, %v6409
        %v6442 = vpack.c.bf16 %v6418, %v6410
        %v6443 = vpack.c.bf16 %v6419, %v6411
        %v6444 = vpack.c.bf16 %v6420, %v6412
        %v6445 = vpack.c.bf16 %v6421, %v6413
        %v6446 = vpack.c.bf16 %v6422, %v6414
        %v6447 = vpack.c.bf16 %v6423, %v6415
        %v6448 = vpack.c.bf16 %v6424, %v6416
        %v6449 = vpack.c.bf16 %v6433, %v6425
        %v6450 = vpack.c.bf16 %v6434, %v6426
        %v6451 = vpack.c.bf16 %v6435, %v6427
        %v6452 = vpack.c.bf16 %v6436, %v6428
        %v6453 = vpack.c.bf16 %v6437, %v6429
        %v6454 = vpack.c.bf16 %v6438, %v6430
        %v6455 = vpack.c.bf16 %v6439, %v6431
        %v6456 = vpack.c.bf16 %v6440, %v6432
        %v6457 = vld [vmem:[%s14] sm:$0xff]
        %v6458 = vld [vmem:[%s14 + $0x8] sm:$0xff]
        %v6459 = vld [vmem:[%s14 + $0x10] sm:$0xff]
        %v6460 = vld [vmem:[%s14 + $0x18] sm:$0xff]
        %v6461 = vld [vmem:[%s14 + $0x20] sm:$0xff]
        %v6462 = vld [vmem:[%s14 + $0x28] sm:$0xff]
        %v6463 = vld [vmem:[%s14 + $0x30] sm:$0xff]
        %v6464 = vld [vmem:[%s14 + $0x38] sm:$0xff]
        %v6465 = vld [vmem:[%s14 + $0x40] sm:$0xff]
        %v6466 = vld [vmem:[%s14 + $0x48] sm:$0xff]
        %v6467 = vld [vmem:[%s14 + $0x50] sm:$0xff]
        %v6468 = vld [vmem:[%s14 + $0x58] sm:$0xff]
        %v6469 = vld [vmem:[%s14 + $0x60] sm:$0xff]
        %v6470 = vld [vmem:[%s14 + $0x68] sm:$0xff]
        %v6471 = vld [vmem:[%s14 + $0x70] sm:$0xff]
        %v6472 = vld [vmem:[%s14 + $0x78] sm:$0xff]
        %v6473 = vld [vmem:[%s14 + $0x80] sm:$0xff]
        %v6474 = vld [vmem:[%s14 + $0x88] sm:$0xff]
        %v6475 = vld [vmem:[%s14 + $0x90] sm:$0xff]
        %v6476 = vld [vmem:[%s14 + $0x98] sm:$0xff]
        %v6477 = vld [vmem:[%s14 + $0xa0] sm:$0xff]
        %v6478 = vld [vmem:[%s14 + $0xa8] sm:$0xff]
        %v6479 = vld [vmem:[%s14 + $0xb0] sm:$0xff]
        %v6480 = vld [vmem:[%s14 + $0xb8] sm:$0xff]
        %v6481 = vld [vmem:[%s14 + $0xc0] sm:$0xff]
        %v6482 = vld [vmem:[%s14 + $0xc8] sm:$0xff]
        %v6483 = vld [vmem:[%s14 + $0xd0] sm:$0xff]
        %v6484 = vld [vmem:[%s14 + $0xd8] sm:$0xff]
        %v6485 = vld [vmem:[%s14 + $0xe0] sm:$0xff]
        %v6486 = vld [vmem:[%s14 + $0xe8] sm:$0xff]
        %v6487 = vld [vmem:[%s14 + $0xf0] sm:$0xff]
        %v6488 = vld [vmem:[%s14 + $0xf8] sm:$0xff]
        %v6489 = vld [vmem:[%s14 + $0x100] sm:$0xff]
        %v6490 = vld [vmem:[%s14 + $0x108] sm:$0xff]
        %v6491 = vld [vmem:[%s14 + $0x110] sm:$0xff]
        %v6492 = vld [vmem:[%s14 + $0x118] sm:$0xff]
        %v6493 = vld [vmem:[%s14 + $0x120] sm:$0xff]
        %v6494 = vld [vmem:[%s14 + $0x128] sm:$0xff]
        %v6495 = vld [vmem:[%s14 + $0x130] sm:$0xff]
        %v6496 = vld [vmem:[%s14 + $0x138] sm:$0xff]
        %v6497 = vld [vmem:[%s14 + $0x140] sm:$0xff]
        %v6498 = vld [vmem:[%s14 + $0x148] sm:$0xff]
        %v6499 = vld [vmem:[%s14 + $0x150] sm:$0xff]
        %v6500 = vld [vmem:[%s14 + $0x158] sm:$0xff]
        %v6501 = vld [vmem:[%s14 + $0x160] sm:$0xff]
        %v6502 = vld [vmem:[%s14 + $0x168] sm:$0xff]
        %v6503 = vld [vmem:[%s14 + $0x170] sm:$0xff]
        %v6504 = vld [vmem:[%s14 + $0x178] sm:$0xff]
        %v6505 = vld [vmem:[%s14 + $0x180] sm:$0xff]
        %v6506 = vld [vmem:[%s14 + $0x188] sm:$0xff]
        %v6507 = vld [vmem:[%s14 + $0x190] sm:$0xff]
        %v6508 = vld [vmem:[%s14 + $0x198] sm:$0xff]
        %v6509 = vld [vmem:[%s14 + $0x1a0] sm:$0xff]
        %v6510 = vld [vmem:[%s14 + $0x1a8] sm:$0xff]
        %v6511 = vld [vmem:[%s14 + $0x1b0] sm:$0xff]
        %v6512 = vld [vmem:[%s14 + $0x1b8] sm:$0xff]
        %v6513 = vld [vmem:[%s14 + $0x1c0] sm:$0xff]
        %v6514 = vld [vmem:[%s14 + $0x1c8] sm:$0xff]
        %v6515 = vld [vmem:[%s14 + $0x1d0] sm:$0xff]
        %v6516 = vld [vmem:[%s14 + $0x1d8] sm:$0xff]
        %v6517 = vld [vmem:[%s14 + $0x1e0] sm:$0xff]
        %v6518 = vld [vmem:[%s14 + $0x1e8] sm:$0xff]
        %v6519 = vld [vmem:[%s14 + $0x1f0] sm:$0xff]
        %v6520 = vld [vmem:[%s14 + $0x1f8] sm:$0xff]
        %v6521 = vld [vmem:[%s14 + $0x200] sm:$0xff]
        %v6522 = vld [vmem:[%s14 + $0x208] sm:$0xff]
        %v6523 = vld [vmem:[%s14 + $0x210] sm:$0xff]
        %v6524 = vld [vmem:[%s14 + $0x218] sm:$0xff]
        %v6525 = vld [vmem:[%s14 + $0x220] sm:$0xff]
        %v6526 = vld [vmem:[%s14 + $0x228] sm:$0xff]
        %v6527 = vld [vmem:[%s14 + $0x230] sm:$0xff]
        %v6528 = vld [vmem:[%s14 + $0x238] sm:$0xff]
        %v6529 = vld [vmem:[%s14 + $0x240] sm:$0xff]
        %v6530 = vld [vmem:[%s14 + $0x248] sm:$0xff]
        %v6531 = vld [vmem:[%s14 + $0x250] sm:$0xff]
        %v6532 = vld [vmem:[%s14 + $0x258] sm:$0xff]
        %v6533 = vld [vmem:[%s14 + $0x260] sm:$0xff]
        %v6534 = vld [vmem:[%s14 + $0x268] sm:$0xff]
        %v6535 = vld [vmem:[%s14 + $0x270] sm:$0xff]
        %v6536 = vld [vmem:[%s14 + $0x278] sm:$0xff]
        %v6537 = vld [vmem:[%s14 + $0x280] sm:$0xff]
        %v6538 = vld [vmem:[%s14 + $0x288] sm:$0xff]
        %v6539 = vld [vmem:[%s14 + $0x290] sm:$0xff]
        %v6540 = vld [vmem:[%s14 + $0x298] sm:$0xff]
        %v6541 = vld [vmem:[%s14 + $0x2a0] sm:$0xff]
        %v6542 = vld [vmem:[%s14 + $0x2a8] sm:$0xff]
        %v6543 = vld [vmem:[%s14 + $0x2b0] sm:$0xff]
        %v6544 = vld [vmem:[%s14 + $0x2b8] sm:$0xff]
        %v6545 = vld [vmem:[%s14 + $0x2c0] sm:$0xff]
        %v6546 = vld [vmem:[%s14 + $0x2c8] sm:$0xff]
        %v6547 = vld [vmem:[%s14 + $0x2d0] sm:$0xff]
        %v6548 = vld [vmem:[%s14 + $0x2d8] sm:$0xff]
        %v6549 = vld [vmem:[%s14 + $0x2e0] sm:$0xff]
        %v6550 = vld [vmem:[%s14 + $0x2e8] sm:$0xff]
        %v6551 = vld [vmem:[%s14 + $0x2f0] sm:$0xff]
        %v6552 = vld [vmem:[%s14 + $0x2f8] sm:$0xff]
        %v6553 = vld [vmem:[%s14 + $0x300] sm:$0xff]
        %v6554 = vld [vmem:[%s14 + $0x308] sm:$0xff]
        %v6555 = vld [vmem:[%s14 + $0x310] sm:$0xff]
        %v6556 = vld [vmem:[%s14 + $0x318] sm:$0xff]
        %v6557 = vld [vmem:[%s14 + $0x320] sm:$0xff]
        %v6558 = vld [vmem:[%s14 + $0x328] sm:$0xff]
        %v6559 = vld [vmem:[%s14 + $0x330] sm:$0xff]
        %v6560 = vld [vmem:[%s14 + $0x338] sm:$0xff]
        %v6561 = vld [vmem:[%s14 + $0x340] sm:$0xff]
        %v6562 = vld [vmem:[%s14 + $0x348] sm:$0xff]
        %v6563 = vld [vmem:[%s14 + $0x350] sm:$0xff]
        %v6564 = vld [vmem:[%s14 + $0x358] sm:$0xff]
        %v6565 = vld [vmem:[%s14 + $0x360] sm:$0xff]
        %v6566 = vld [vmem:[%s14 + $0x368] sm:$0xff]
        %v6567 = vld [vmem:[%s14 + $0x370] sm:$0xff]
        %v6568 = vld [vmem:[%s14 + $0x378] sm:$0xff]
        %v6569 = vld [vmem:[%s14 + $0x380] sm:$0xff]
        %v6570 = vld [vmem:[%s14 + $0x388] sm:$0xff]
        %v6571 = vld [vmem:[%s14 + $0x390] sm:$0xff]
        %v6572 = vld [vmem:[%s14 + $0x398] sm:$0xff]
        %v6573 = vld [vmem:[%s14 + $0x3a0] sm:$0xff]
        %v6574 = vld [vmem:[%s14 + $0x3a8] sm:$0xff]
        %v6575 = vld [vmem:[%s14 + $0x3b0] sm:$0xff]
        %v6576 = vld [vmem:[%s14 + $0x3b8] sm:$0xff]
        %v6577 = vld [vmem:[%s15] sm:$0x3]
        %v6579 = vlaneseq
        %v6580 = vshrl.u32 %v6579, 7
        %v6581 = vsub.s32 0, %v6580
        %v6582 = vrot.slane %v6577, %v6581
        %v6583 = vlaneseq
        %v6584 = vshrl.u32 %v6583, 7
        %v6585 = vsub.s32 1, %v6584
        %v6586 = vrot.slane %v6577, %v6585
        %v6709 = vunpack.c.l.b16 %v6457
        %v6710 = vunpack.c.h.b16 %v6457
        %v6711 = vunpack.c.l.b16 %v6458
        %v6712 = vunpack.c.h.b16 %v6458
        %v6713 = vunpack.c.l.b16 %v6459
        %v6714 = vunpack.c.h.b16 %v6459
        %v6715 = vunpack.c.l.b16 %v6460
        %v6716 = vunpack.c.h.b16 %v6460
        %v6717 = vunpack.c.l.b16 %v6461
        %v6718 = vunpack.c.h.b16 %v6461
        %v6719 = vunpack.c.l.b16 %v6462
        %v6720 = vunpack.c.h.b16 %v6462
        %v6721 = vunpack.c.l.b16 %v6463
        %v6722 = vunpack.c.h.b16 %v6463
        %v6723 = vunpack.c.l.b16 %v6464
        %v6724 = vunpack.c.h.b16 %v6464
        %v6725 = vunpack.c.l.b16 %v6465
        %v6726 = vunpack.c.h.b16 %v6465
        %v6727 = vunpack.c.l.b16 %v6466
        %v6728 = vunpack.c.h.b16 %v6466
        %v6729 = vunpack.c.l.b16 %v6467
        %v6730 = vunpack.c.h.b16 %v6467
        %v6731 = vunpack.c.l.b16 %v6468
        %v6732 = vunpack.c.h.b16 %v6468
        %v6733 = vunpack.c.l.b16 %v6469
        %v6734 = vunpack.c.h.b16 %v6469
        %v6735 = vunpack.c.l.b16 %v6470
        %v6736 = vunpack.c.h.b16 %v6470
        %v6737 = vunpack.c.l.b16 %v6471
        %v6738 = vunpack.c.h.b16 %v6471
        %v6739 = vunpack.c.l.b16 %v6472
        %v6740 = vunpack.c.h.b16 %v6472
        %v6741 = vunpack.c.l.b16 %v6473
        %v6742 = vunpack.c.h.b16 %v6473
        %v6743 = vunpack.c.l.b16 %v6474
        %v6744 = vunpack.c.h.b16 %v6474
        %v6745 = vunpack.c.l.b16 %v6475
        %v6746 = vunpack.c.h.b16 %v6475
        %v6747 = vunpack.c.l.b16 %v6476
        %v6748 = vunpack.c.h.b16 %v6476
        %v6749 = vunpack.c.l.b16 %v6477
        %v6750 = vunpack.c.h.b16 %v6477
        %v6751 = vunpack.c.l.b16 %v6478
        %v6752 = vunpack.c.h.b16 %v6478
        %v6753 = vunpack.c.l.b16 %v6479
        %v6754 = vunpack.c.h.b16 %v6479
        %v6755 = vunpack.c.l.b16 %v6480
        %v6756 = vunpack.c.h.b16 %v6480
        %v6757 = vunpack.c.l.b16 %v6481
        %v6758 = vunpack.c.h.b16 %v6481
        %v6759 = vunpack.c.l.b16 %v6482
        %v6760 = vunpack.c.h.b16 %v6482
        %v6761 = vunpack.c.l.b16 %v6483
        %v6762 = vunpack.c.h.b16 %v6483
        %v6763 = vunpack.c.l.b16 %v6484
        %v6764 = vunpack.c.h.b16 %v6484
        %v6765 = vunpack.c.l.b16 %v6485
        %v6766 = vunpack.c.h.b16 %v6485
        %v6767 = vunpack.c.l.b16 %v6486
        %v6768 = vunpack.c.h.b16 %v6486
        %v6769 = vunpack.c.l.b16 %v6487
        %v6770 = vunpack.c.h.b16 %v6487
        %v6771 = vunpack.c.l.b16 %v6488
        %v6772 = vunpack.c.h.b16 %v6488
        %v6773 = vunpack.c.l.b16 %v6489
        %v6774 = vunpack.c.h.b16 %v6489
        %v6775 = vunpack.c.l.b16 %v6490
        %v6776 = vunpack.c.h.b16 %v6490
        %v6777 = vunpack.c.l.b16 %v6491
        %v6778 = vunpack.c.h.b16 %v6491
        %v6779 = vunpack.c.l.b16 %v6492
        %v6780 = vunpack.c.h.b16 %v6492
        %v6781 = vunpack.c.l.b16 %v6493
        %v6782 = vunpack.c.h.b16 %v6493
        %v6783 = vunpack.c.l.b16 %v6494
        %v6784 = vunpack.c.h.b16 %v6494
        %v6785 = vunpack.c.l.b16 %v6495
        %v6786 = vunpack.c.h.b16 %v6495
        %v6787 = vunpack.c.l.b16 %v6496
        %v6788 = vunpack.c.h.b16 %v6496
        %v6789 = vunpack.c.l.b16 %v6497
        %v6790 = vunpack.c.h.b16 %v6497
        %v6791 = vunpack.c.l.b16 %v6498
        %v6792 = vunpack.c.h.b16 %v6498
        %v6793 = vunpack.c.l.b16 %v6499
        %v6794 = vunpack.c.h.b16 %v6499
        %v6795 = vunpack.c.l.b16 %v6500
        %v6796 = vunpack.c.h.b16 %v6500
        %v6797 = vunpack.c.l.b16 %v6501
        %v6798 = vunpack.c.h.b16 %v6501
        %v6799 = vunpack.c.l.b16 %v6502
        %v6800 = vunpack.c.h.b16 %v6502
        %v6801 = vunpack.c.l.b16 %v6503
        %v6802 = vunpack.c.h.b16 %v6503
        %v6803 = vunpack.c.l.b16 %v6504
        %v6804 = vunpack.c.h.b16 %v6504
        %v6805 = vunpack.c.l.b16 %v6505
        %v6806 = vunpack.c.h.b16 %v6505
        %v6807 = vunpack.c.l.b16 %v6506
        %v6808 = vunpack.c.h.b16 %v6506
        %v6809 = vunpack.c.l.b16 %v6507
        %v6810 = vunpack.c.h.b16 %v6507
        %v6811 = vunpack.c.l.b16 %v6508
        %v6812 = vunpack.c.h.b16 %v6508
        %v6813 = vunpack.c.l.b16 %v6509
        %v6814 = vunpack.c.h.b16 %v6509
        %v6815 = vunpack.c.l.b16 %v6510
        %v6816 = vunpack.c.h.b16 %v6510
        %v6817 = vunpack.c.l.b16 %v6511
        %v6818 = vunpack.c.h.b16 %v6511
        %v6819 = vunpack.c.l.b16 %v6512
        %v6820 = vunpack.c.h.b16 %v6512
        %v6821 = vunpack.c.l.b16 %v6513
        %v6822 = vunpack.c.h.b16 %v6513
        %v6823 = vunpack.c.l.b16 %v6514
        %v6824 = vunpack.c.h.b16 %v6514
        %v6825 = vunpack.c.l.b16 %v6515
        %v6826 = vunpack.c.h.b16 %v6515
        %v6827 = vunpack.c.l.b16 %v6516
        %v6828 = vunpack.c.h.b16 %v6516
        %v6829 = vunpack.c.l.b16 %v6517
        %v6830 = vunpack.c.h.b16 %v6517
        %v6831 = vunpack.c.l.b16 %v6518
        %v6832 = vunpack.c.h.b16 %v6518
        %v6833 = vunpack.c.l.b16 %v6519
        %v6834 = vunpack.c.h.b16 %v6519
        %v6835 = vunpack.c.l.b16 %v6520
        %v6836 = vunpack.c.h.b16 %v6520
        %v6837 = vunpack.c.l.b16 %v6521
        %v6838 = vunpack.c.h.b16 %v6521
        %v6839 = vunpack.c.l.b16 %v6522
        %v6840 = vunpack.c.h.b16 %v6522
        %v6841 = vunpack.c.l.b16 %v6523
        %v6842 = vunpack.c.h.b16 %v6523
        %v6843 = vunpack.c.l.b16 %v6524
        %v6844 = vunpack.c.h.b16 %v6524
        %v6845 = vunpack.c.l.b16 %v6525
        %v6846 = vunpack.c.h.b16 %v6525
        %v6847 = vunpack.c.l.b16 %v6526
        %v6848 = vunpack.c.h.b16 %v6526
        %v6849 = vunpack.c.l.b16 %v6527
        %v6850 = vunpack.c.h.b16 %v6527
        %v6851 = vunpack.c.l.b16 %v6528
        %v6852 = vunpack.c.h.b16 %v6528
        %v6853 = vunpack.c.l.b16 %v6529
        %v6854 = vunpack.c.h.b16 %v6529
        %v6855 = vunpack.c.l.b16 %v6530
        %v6856 = vunpack.c.h.b16 %v6530
        %v6857 = vunpack.c.l.b16 %v6531
        %v6858 = vunpack.c.h.b16 %v6531
        %v6859 = vunpack.c.l.b16 %v6532
        %v6860 = vunpack.c.h.b16 %v6532
        %v6861 = vunpack.c.l.b16 %v6533
        %v6862 = vunpack.c.h.b16 %v6533
        %v6863 = vunpack.c.l.b16 %v6534
        %v6864 = vunpack.c.h.b16 %v6534
        %v6865 = vunpack.c.l.b16 %v6535
        %v6866 = vunpack.c.h.b16 %v6535
        %v6867 = vunpack.c.l.b16 %v6536
        %v6868 = vunpack.c.h.b16 %v6536
        %v6869 = vunpack.c.l.b16 %v6537
        %v6870 = vunpack.c.h.b16 %v6537
        %v6871 = vunpack.c.l.b16 %v6538
        %v6872 = vunpack.c.h.b16 %v6538
        %v6873 = vunpack.c.l.b16 %v6539
        %v6874 = vunpack.c.h.b16 %v6539
        %v6875 = vunpack.c.l.b16 %v6540
        %v6876 = vunpack.c.h.b16 %v6540
        %v6877 = vunpack.c.l.b16 %v6541
        %v6878 = vunpack.c.h.b16 %v6541
        %v6879 = vunpack.c.l.b16 %v6542
        %v6880 = vunpack.c.h.b16 %v6542
        %v6881 = vunpack.c.l.b16 %v6543
        %v6882 = vunpack.c.h.b16 %v6543
        %v6883 = vunpack.c.l.b16 %v6544
        %v6884 = vunpack.c.h.b16 %v6544
        %v6885 = vunpack.c.l.b16 %v6545
        %v6886 = vunpack.c.h.b16 %v6545
        %v6887 = vunpack.c.l.b16 %v6546
        %v6888 = vunpack.c.h.b16 %v6546
        %v6889 = vunpack.c.l.b16 %v6547
        %v6890 = vunpack.c.h.b16 %v6547
        %v6891 = vunpack.c.l.b16 %v6548
        %v6892 = vunpack.c.h.b16 %v6548
        %v6893 = vunpack.c.l.b16 %v6549
        %v6894 = vunpack.c.h.b16 %v6549
        %v6895 = vunpack.c.l.b16 %v6550
        %v6896 = vunpack.c.h.b16 %v6550
        %v6897 = vunpack.c.l.b16 %v6551
        %v6898 = vunpack.c.h.b16 %v6551
        %v6899 = vunpack.c.l.b16 %v6552
        %v6900 = vunpack.c.h.b16 %v6552
        %v6901 = vunpack.c.l.b16 %v6553
        %v6902 = vunpack.c.h.b16 %v6553
        %v6903 = vunpack.c.l.b16 %v6554
        %v6904 = vunpack.c.h.b16 %v6554
        %v6905 = vunpack.c.l.b16 %v6555
        %v6906 = vunpack.c.h.b16 %v6555
        %v6907 = vunpack.c.l.b16 %v6556
        %v6908 = vunpack.c.h.b16 %v6556
        %v6909 = vunpack.c.l.b16 %v6557
        %v6910 = vunpack.c.h.b16 %v6557
        %v6911 = vunpack.c.l.b16 %v6558
        %v6912 = vunpack.c.h.b16 %v6558
        %v6913 = vunpack.c.l.b16 %v6559
        %v6914 = vunpack.c.h.b16 %v6559
        %v6915 = vunpack.c.l.b16 %v6560
        %v6916 = vunpack.c.h.b16 %v6560
        %v6917 = vunpack.c.l.b16 %v6561
        %v6918 = vunpack.c.h.b16 %v6561
        %v6919 = vunpack.c.l.b16 %v6562
        %v6920 = vunpack.c.h.b16 %v6562
        %v6921 = vunpack.c.l.b16 %v6563
        %v6922 = vunpack.c.h.b16 %v6563
        %v6923 = vunpack.c.l.b16 %v6564
        %v6924 = vunpack.c.h.b16 %v6564
        %v6925 = vunpack.c.l.b16 %v6565
        %v6926 = vunpack.c.h.b16 %v6565
        %v6927 = vunpack.c.l.b16 %v6566
        %v6928 = vunpack.c.h.b16 %v6566
        %v6929 = vunpack.c.l.b16 %v6567
        %v6930 = vunpack.c.h.b16 %v6567
        %v6931 = vunpack.c.l.b16 %v6568
        %v6932 = vunpack.c.h.b16 %v6568
        %v6933 = vunpack.c.l.b16 %v6569
        %v6934 = vunpack.c.h.b16 %v6569
        %v6935 = vunpack.c.l.b16 %v6570
        %v6936 = vunpack.c.h.b16 %v6570
        %v6937 = vunpack.c.l.b16 %v6571
        %v6938 = vunpack.c.h.b16 %v6571
        %v6939 = vunpack.c.l.b16 %v6572
        %v6940 = vunpack.c.h.b16 %v6572
        %v6941 = vunpack.c.l.b16 %v6573
        %v6942 = vunpack.c.h.b16 %v6573
        %v6943 = vunpack.c.l.b16 %v6574
        %v6944 = vunpack.c.h.b16 %v6574
        %v6945 = vunpack.c.l.b16 %v6575
        %v6946 = vunpack.c.h.b16 %v6575
        %v6947 = vunpack.c.l.b16 %v6576
        %v6948 = vunpack.c.h.b16 %v6576
        %v6949 = vpack.c.b16 %v6711, %v6709
        %v6950 = vpack.c.b16 %v6712, %v6710
        %v6951 = vpack.c.b16 %v6715, %v6713
        %v6952 = vpack.c.b16 %v6716, %v6714
        %v6953 = vpack.c.b16 %v6719, %v6717
        %v6954 = vpack.c.b16 %v6720, %v6718
        %v6955 = vpack.c.b16 %v6723, %v6721
        %v6956 = vpack.c.b16 %v6724, %v6722
        %v6957 = vpack.c.b16 %v6727, %v6725
        %v6958 = vpack.c.b16 %v6728, %v6726
        %v6959 = vpack.c.b16 %v6731, %v6729
        %v6960 = vpack.c.b16 %v6732, %v6730
        %v6961 = vpack.c.b16 %v6735, %v6733
        %v6962 = vpack.c.b16 %v6736, %v6734
        %v6963 = vpack.c.b16 %v6739, %v6737
        %v6964 = vpack.c.b16 %v6740, %v6738
        %v6965 = vpack.c.b16 %v6743, %v6741
        %v6966 = vpack.c.b16 %v6744, %v6742
        %v6967 = vpack.c.b16 %v6747, %v6745
        %v6968 = vpack.c.b16 %v6748, %v6746
        %v6969 = vpack.c.b16 %v6751, %v6749
        %v6970 = vpack.c.b16 %v6752, %v6750
        %v6971 = vpack.c.b16 %v6755, %v6753
        %v6972 = vpack.c.b16 %v6756, %v6754
        %v6973 = vpack.c.b16 %v6759, %v6757
        %v6974 = vpack.c.b16 %v6760, %v6758
        %v6975 = vpack.c.b16 %v6763, %v6761
        %v6976 = vpack.c.b16 %v6764, %v6762
        %v6977 = vpack.c.b16 %v6767, %v6765
        %v6978 = vpack.c.b16 %v6768, %v6766
        %v6979 = vpack.c.b16 %v6771, %v6769
        %v6980 = vpack.c.b16 %v6772, %v6770
        %v6981 = vpack.c.b16 %v6775, %v6773
        %v6982 = vpack.c.b16 %v6776, %v6774
        %v6983 = vpack.c.b16 %v6779, %v6777
        %v6984 = vpack.c.b16 %v6780, %v6778
        %v6985 = vpack.c.b16 %v6783, %v6781
        %v6986 = vpack.c.b16 %v6784, %v6782
        %v6987 = vpack.c.b16 %v6787, %v6785
        %v6988 = vpack.c.b16 %v6788, %v6786
        %v6989 = vpack.c.b16 %v6791, %v6789
        %v6990 = vpack.c.b16 %v6792, %v6790
        %v6991 = vpack.c.b16 %v6795, %v6793
        %v6992 = vpack.c.b16 %v6796, %v6794
        %v6993 = vpack.c.b16 %v6799, %v6797
        %v6994 = vpack.c.b16 %v6800, %v6798
        %v6995 = vpack.c.b16 %v6803, %v6801
        %v6996 = vpack.c.b16 %v6804, %v6802
        %v6997 = vpack.c.b16 %v6807, %v6805
        %v6998 = vpack.c.b16 %v6808, %v6806
        %v6999 = vpack.c.b16 %v6811, %v6809
        %v7000 = vpack.c.b16 %v6812, %v6810
        %v7001 = vpack.c.b16 %v6815, %v6813
        %v7002 = vpack.c.b16 %v6816, %v6814
        %v7003 = vpack.c.b16 %v6819, %v6817
        %v7004 = vpack.c.b16 %v6820, %v6818
        %v7005 = vpack.c.b16 %v6823, %v6821
        %v7006 = vpack.c.b16 %v6824, %v6822
        %v7007 = vpack.c.b16 %v6827, %v6825
        %v7008 = vpack.c.b16 %v6828, %v6826
        %v7009 = vpack.c.b16 %v6831, %v6829
        %v7010 = vpack.c.b16 %v6832, %v6830
        %v7011 = vpack.c.b16 %v6835, %v6833
        %v7012 = vpack.c.b16 %v6836, %v6834
        %v7013 = vpack.c.b16 %v6839, %v6837
        %v7014 = vpack.c.b16 %v6840, %v6838
        %v7015 = vpack.c.b16 %v6843, %v6841
        %v7016 = vpack.c.b16 %v6844, %v6842
        %v7017 = vpack.c.b16 %v6847, %v6845
        %v7018 = vpack.c.b16 %v6848, %v6846
        %v7019 = vpack.c.b16 %v6851, %v6849
        %v7020 = vpack.c.b16 %v6852, %v6850
        %v7021 = vpack.c.b16 %v6855, %v6853
        %v7022 = vpack.c.b16 %v6856, %v6854
        %v7023 = vpack.c.b16 %v6859, %v6857
        %v7024 = vpack.c.b16 %v6860, %v6858
        %v7025 = vpack.c.b16 %v6863, %v6861
        %v7026 = vpack.c.b16 %v6864, %v6862
        %v7027 = vpack.c.b16 %v6867, %v6865
        %v7028 = vpack.c.b16 %v6868, %v6866
        %v7029 = vpack.c.b16 %v6871, %v6869
        %v7030 = vpack.c.b16 %v6872, %v6870
        %v7031 = vpack.c.b16 %v6875, %v6873
        %v7032 = vpack.c.b16 %v6876, %v6874
        %v7033 = vpack.c.b16 %v6879, %v6877
        %v7034 = vpack.c.b16 %v6880, %v6878
        %v7035 = vpack.c.b16 %v6883, %v6881
        %v7036 = vpack.c.b16 %v6884, %v6882
        %v7037 = vpack.c.b16 %v6887, %v6885
        %v7038 = vpack.c.b16 %v6888, %v6886
        %v7039 = vpack.c.b16 %v6891, %v6889
        %v7040 = vpack.c.b16 %v6892, %v6890
        %v7041 = vpack.c.b16 %v6895, %v6893
        %v7042 = vpack.c.b16 %v6896, %v6894
        %v7043 = vpack.c.b16 %v6899, %v6897
        %v7044 = vpack.c.b16 %v6900, %v6898
        %v7045 = vpack.c.b16 %v6903, %v6901
        %v7046 = vpack.c.b16 %v6904, %v6902
        %v7047 = vpack.c.b16 %v6907, %v6905
        %v7048 = vpack.c.b16 %v6908, %v6906
        %v7049 = vpack.c.b16 %v6911, %v6909
        %v7050 = vpack.c.b16 %v6912, %v6910
        %v7051 = vpack.c.b16 %v6915, %v6913
        %v7052 = vpack.c.b16 %v6916, %v6914
        %v7053 = vpack.c.b16 %v6919, %v6917
        %v7054 = vpack.c.b16 %v6920, %v6918
        %v7055 = vpack.c.b16 %v6923, %v6921
        %v7056 = vpack.c.b16 %v6924, %v6922
        %v7057 = vpack.c.b16 %v6927, %v6925
        %v7058 = vpack.c.b16 %v6928, %v6926
        %v7059 = vpack.c.b16 %v6931, %v6929
        %v7060 = vpack.c.b16 %v6932, %v6930
        %v7061 = vpack.c.b16 %v6935, %v6933
        %v7062 = vpack.c.b16 %v6936, %v6934
        %v7063 = vpack.c.b16 %v6939, %v6937
        %v7064 = vpack.c.b16 %v6940, %v6938
        %v7065 = vpack.c.b16 %v6943, %v6941
        %v7066 = vpack.c.b16 %v6944, %v6942
        %v7067 = vpack.c.b16 %v6947, %v6945
        %v7068 = vpack.c.b16 %v6948, %v6946
        %v7190 = vsel %vm3403, %v6448, 0
        %v7193 = vsel %vm3403, %v6456, 0
        %7195 = vmatprep.subr.bf16.mxu0 %v6950
        %7196 = vmatpush1.bf16.msra.mxu0 %v6949
        %7197 = vmatprep.subr.bf16.mxu0 %v6952
        %7198 = vmatpush1.bf16.msra.mxu0 %v6951
        %7199 = vmatprep.subr.bf16.mxu0 %v6954
        %7200 = vmatpush1.bf16.msra.mxu0 %v6953
        %7201 = vmatprep.subr.bf16.mxu0 %v6956
        %7202 = vmatpush1.bf16.msra.mxu0 %v6955
        %7203 = vmatprep.subr.bf16.mxu0 %v6958
        %7204 = vmatpush1.bf16.msra.mxu0 %v6957
        %7205 = vmatprep.subr.bf16.mxu0 %v6960
        %7206 = vmatpush1.bf16.msra.mxu0 %v6959
        %7207 = vmatprep.subr.bf16.mxu0 %v6962
        %7208 = vmatpush1.bf16.msra.mxu0 %v6961
        %7209 = vmatprep.subr.bf16.mxu0 %v6964
        %7210 = vmatpush1.bf16.msra.mxu0 %v6963
        %7211 = vmatprep.subr.bf16.mxu0 %v6966
        %7212 = vmatpush1.bf16.msra.mxu0 %v6965
        %7213 = vmatprep.subr.bf16.mxu0 %v6968
        %7214 = vmatpush1.bf16.msra.mxu0 %v6967
        %7215 = vmatprep.subr.bf16.mxu0 %v6970
        %7216 = vmatpush1.bf16.msra.mxu0 %v6969
        %7217 = vmatprep.subr.bf16.mxu0 %v6972
        %7218 = vmatpush1.bf16.msra.mxu0 %v6971
        %7219 = vmatprep.subr.bf16.mxu0 %v6974
        %7220 = vmatpush1.bf16.msra.mxu0 %v6973
        %7221 = vmatprep.subr.bf16.mxu0 %v6976
        %7222 = vmatpush1.bf16.msra.mxu0 %v6975
        %7223 = vmatprep.subr.bf16.mxu0 %v6978
        %7224 = vmatpush1.bf16.msra.mxu0 %v6977
        %7225 = vmatprep.subr.bf16.mxu0 %v6980
        %7226 = vmatpush1.bf16.msra.mxu0 %v6979
        %7227 = vmatprep.mubr.bf16.mxu0 %v6442
        %7228 = vmatmul.mubr.bf16.gmra.mrb[0].mxu0 %v6441
        %v7229 = vpop.f32.mrb[0].mxu0
        %v7230 = vadd.f32 %v6582, %v7229
        %v7231 = vpop.f32.mrb[0].mxu0
        %v7232 = vadd.f32 %v6586, %v7231
        %v7233 = vpop.f32.mrb[0].mxu0
        %v7234 = vadd.f32 %v6582, %v7233
        %v7235 = vpop.f32.mrb[0].mxu0
        %v7236 = vadd.f32 %v6586, %v7235
        %7237 = vmatprep.mubr.bf16.mxu0 %v6450
        %7238 = vmatmul.mubr.bf16.gmra.mrb[0].mxu0 %v6449
        %v7239 = vpop.f32.mrb[0].mxu0
        %v7240 = vadd.f32 %v6582, %v7239
        %v7241 = vpop.f32.mrb[0].mxu0
        %v7242 = vadd.f32 %v6586, %v7241
        %v7243 = vpop.f32.mrb[0].mxu0
        %v7244 = vadd.f32 %v6582, %v7243
        %v7245 = vpop.f32.mrb[0].mxu0
        %v7246 = vadd.f32 %v6586, %v7245
        %7247 = vdwg.mxu0
        %7248 = vmatprep.subr.bf16.mxu0 %v6982
        %7249 = vmatpush1.bf16.msra.mxu0 %v6981
        %7250 = vmatprep.subr.bf16.mxu0 %v6984
        %7251 = vmatpush1.bf16.msra.mxu0 %v6983
        %7252 = vmatprep.subr.bf16.mxu0 %v6986
        %7253 = vmatpush1.bf16.msra.mxu0 %v6985
        %7254 = vmatprep.subr.bf16.mxu0 %v6988
        %7255 = vmatpush1.bf16.msra.mxu0 %v6987
        %7256 = vmatprep.subr.bf16.mxu0 %v6990
        %7257 = vmatpush1.bf16.msra.mxu0 %v6989
        %7258 = vmatprep.subr.bf16.mxu0 %v6992
        %7259 = vmatpush1.bf16.msra.mxu0 %v6991
        %7260 = vmatprep.subr.bf16.mxu0 %v6994
        %7261 = vmatpush1.bf16.msra.mxu0 %v6993
        %7262 = vmatprep.subr.bf16.mxu0 %v6996
        %7263 = vmatpush1.bf16.msra.mxu0 %v6995
        %7264 = vmatprep.subr.bf16.mxu0 %v6998
        %7265 = vmatpush1.bf16.msra.mxu0 %v6997
        %7266 = vmatprep.subr.bf16.mxu0 %v7000
        %7267 = vmatpush1.bf16.msra.mxu0 %v6999
        %7268 = vmatprep.subr.bf16.mxu0 %v7002
        %7269 = vmatpush1.bf16.msra.mxu0 %v7001
        %7270 = vmatprep.subr.bf16.mxu0 %v7004
        %7271 = vmatpush1.bf16.msra.mxu0 %v7003
        %7272 = vmatprep.subr.bf16.mxu0 %v7006
        %7273 = vmatpush1.bf16.msra.mxu0 %v7005
        %7274 = vmatprep.subr.bf16.mxu0 %v7008
        %7275 = vmatpush1.bf16.msra.mxu0 %v7007
        %7276 = vmatprep.subr.bf16.mxu0 %v7010
        %7277 = vmatpush1.bf16.msra.mxu0 %v7009
        %7278 = vmatprep.subr.bf16.mxu0 %v7012
        %7279 = vmatpush1.bf16.msra.mxu0 %v7011
        %7280 = vmatprep.mubr.bf16.mxu0 %v6444
        %7281 = vmatmul.mubr.bf16.gmra.mrb[0].mxu0 %v6443
        %v7282 = vpop.f32.mrb[0].mxu0
        %v7283 = vadd.f32 %v7230, %v7282
        %v7284 = vpop.f32.mrb[0].mxu0
        %v7285 = vadd.f32 %v7232, %v7284
        %v7286 = vpop.f32.mrb[0].mxu0
        %v7287 = vadd.f32 %v7234, %v7286
        %v7288 = vpop.f32.mrb[0].mxu0
        %v7289 = vadd.f32 %v7236, %v7288
        %7290 = vmatprep.mubr.bf16.mxu0 %v6452
        %7291 = vmatmul.mubr.bf16.gmra.mrb[0].mxu0 %v6451
        %v7292 = vpop.f32.mrb[0].mxu0
        %v7293 = vadd.f32 %v7240, %v7292
        %v7294 = vpop.f32.mrb[0].mxu0
        %v7295 = vadd.f32 %v7242, %v7294
        %v7296 = vpop.f32.mrb[0].mxu0
        %v7297 = vadd.f32 %v7244, %v7296
        %v7298 = vpop.f32.mrb[0].mxu0
        %v7299 = vadd.f32 %v7246, %v7298
        %7300 = vdwg.mxu0
        %7301 = vmatprep.subr.bf16.mxu0 %v7014
        %7302 = vmatpush1.bf16.msra.mxu0 %v7013
        %7303 = vmatprep.subr.bf16.mxu0 %v7016
        %7304 = vmatpush1.bf16.msra.mxu0 %v7015
        %7305 = vmatprep.subr.bf16.mxu0 %v7018
        %7306 = vmatpush1.bf16.msra.mxu0 %v7017
        %7307 = vmatprep.subr.bf16.mxu0 %v7020
        %7308 = vmatpush1.bf16.msra.mxu0 %v7019
        %7309 = vmatprep.subr.bf16.mxu0 %v7022
        %7310 = vmatpush1.bf16.msra.mxu0 %v7021
        %7311 = vmatprep.subr.bf16.mxu0 %v7024
        %7312 = vmatpush1.bf16.msra.mxu0 %v7023
        %7313 = vmatprep.subr.bf16.mxu0 %v7026
        %7314 = vmatpush1.bf16.msra.mxu0 %v7025
        %7315 = vmatprep.subr.bf16.mxu0 %v7028
        %7316 = vmatpush1.bf16.msra.mxu0 %v7027
        %7317 = vmatprep.subr.bf16.mxu0 %v7030
        %7318 = vmatpush1.bf16.msra.mxu0 %v7029
        %7319 = vmatprep.subr.bf16.mxu0 %v7032
        %7320 = vmatpush1.bf16.msra.mxu0 %v7031
        %7321 = vmatprep.subr.bf16.mxu0 %v7034
        %7322 = vmatpush1.bf16.msra.mxu0 %v7033
        %7323 = vmatprep.subr.bf16.mxu0 %v7036
        %7324 = vmatpush1.bf16.msra.mxu0 %v7035
        %7325 = vmatprep.subr.bf16.mxu0 %v7038
        %7326 = vmatpush1.bf16.msra.mxu0 %v7037
        %7327 = vmatprep.subr.bf16.mxu0 %v7040
        %7328 = vmatpush1.bf16.msra.mxu0 %v7039
        %7329 = vmatprep.subr.bf16.mxu0 %v7042
        %7330 = vmatpush1.bf16.msra.mxu0 %v7041
        %7331 = vmatprep.subr.bf16.mxu0 %v7044
        %7332 = vmatpush1.bf16.msra.mxu0 %v7043
        %7333 = vmatprep.mubr.bf16.mxu0 %v6446
        %7334 = vmatmul.mubr.bf16.gmra.mrb[0].mxu0 %v6445
        %v7335 = vpop.f32.mrb[0].mxu0
        %v7336 = vadd.f32 %v7283, %v7335
        %v7337 = vpop.f32.mrb[0].mxu0
        %v7338 = vadd.f32 %v7285, %v7337
        %v7339 = vpop.f32.mrb[0].mxu0
        %v7340 = vadd.f32 %v7287, %v7339
        %v7341 = vpop.f32.mrb[0].mxu0
        %v7342 = vadd.f32 %v7289, %v7341
        %7343 = vmatprep.mubr.bf16.mxu0 %v6454
        %7344 = vmatmul.mubr.bf16.gmra.mrb[0].mxu0 %v6453
        %v7345 = vpop.f32.mrb[0].mxu0
        %v7346 = vadd.f32 %v7293, %v7345
        %v7347 = vpop.f32.mrb[0].mxu0
        %v7348 = vadd.f32 %v7295, %v7347
        %v7349 = vpop.f32.mrb[0].mxu0
        %v7350 = vadd.f32 %v7297, %v7349
        %v7351 = vpop.f32.mrb[0].mxu0
        %v7352 = vadd.f32 %v7299, %v7351
        %7353 = vdwg.mxu0
        %7354 = vmatprep.subr.bf16.mxu0 %v7046
        %7355 = vmatpush1.bf16.msra.mxu0 %v7045
        %7356 = vmatprep.subr.bf16.mxu0 %v7048
        %7357 = vmatpush1.bf16.msra.mxu0 %v7047
        %7358 = vmatprep.subr.bf16.mxu0 %v7050
        %7359 = vmatpush1.bf16.msra.mxu0 %v7049
        %7360 = vmatprep.subr.bf16.mxu0 %v7052
        %7361 = vmatpush1.bf16.msra.mxu0 %v7051
        %7362 = vmatprep.subr.bf16.mxu0 %v7054
        %7363 = vmatpush1.bf16.msra.mxu0 %v7053
        %7364 = vmatprep.subr.bf16.mxu0 %v7056
        %7365 = vmatpush1.bf16.msra.mxu0 %v7055
        %7366 = vmatprep.subr.bf16.mxu0 %v7058
        %7367 = vmatpush1.bf16.msra.mxu0 %v7057
        %7368 = vmatprep.subr.bf16.mxu0 %v7060
        %7369 = vmatpush1.bf16.msra.mxu0 %v7059
        %7370 = vmatprep.subr.bf16.mxu0 %v7062
        %7371 = vmatpush1.bf16.msra.mxu0 %v7061
        %7372 = vmatprep.subr.bf16.mxu0 %v7064
        %7373 = vmatpush1.bf16.msra.mxu0 %v7063
        %7374 = vmatprep.subr.bf16.mxu0 %v7066
        %7375 = vmatpush1.bf16.msra.mxu0 %v7065
        %7376 = vmatprep.subr.bf16.mxu0 %v7068
        %7377 = vmatpush1.bf16.msra.mxu0 %v7067
        %7378 = vmatprep.subr.bf16.mxu0 0
        %7379 = vmatpush1.bf16.msra.mxu0 0
        %7380 = vmatprep.subr.bf16.mxu0 0
        %7381 = vmatpush1.bf16.msra.mxu0 0
        %7382 = vmatprep.subr.bf16.mxu0 0
        %7383 = vmatpush1.bf16.msra.mxu0 0
        %7384 = vmatprep.subr.bf16.mxu0 0
        %7385 = vmatpush1.bf16.msra.mxu0 0
        %7386 = vmatprep.mubr.bf16.mxu0 %v7190
        %7387 = vmatmul.mubr.bf16.gmra.mrb[0].mxu0 %v6447
        %v7388 = vpop.f32.mrb[0].mxu0
        %v7389 = vadd.f32 %v7336, %v7388
        %v7390 = vpop.f32.mrb[0].mxu0
        %v7391 = vadd.f32 %v7338, %v7390
        %v7392 = vpop.f32.mrb[0].mxu0
        %v7393 = vadd.f32 %v7340, %v7392
        %v7394 = vpop.f32.mrb[0].mxu0
        %v7395 = vadd.f32 %v7342, %v7394
        %7396 = vmatprep.mubr.bf16.mxu0 %v7193
        %7397 = vmatmul.mubr.bf16.gmra.mrb[0].mxu0 %v6455
        %v7398 = vpop.f32.mrb[0].mxu0
        %v7399 = vadd.f32 %v7346, %v7398
        %v7400 = vpop.f32.mrb[0].mxu0
        %v7401 = vadd.f32 %v7348, %v7400
        %v7402 = vpop.f32.mrb[0].mxu0
        %v7403 = vadd.f32 %v7350, %v7402
        %v7404 = vpop.f32.mrb[0].mxu0
        %v7405 = vadd.f32 %v7352, %v7404
        %7406 = vdwg.mxu0
        %v7407 = vadd.f32 %v7389, %v3551
        %v7408 = vadd.f32 %v7391, %v3553
        %v7409 = vadd.f32 %v7393, %v3555
        %v7410 = vadd.f32 %v7395, %v3557
        %v7411 = vadd.f32 %v7399, %v3561
        %v7412 = vadd.f32 %v7401, %v3563
        %v7413 = vadd.f32 %v7403, %v3565
        %v7414 = vadd.f32 %v7405, %v3567
        %v7415 = vpack.c.bf16 %v7409, %v7407
        %v7416 = vpack.c.bf16 %v7410, %v7408
        %v7417 = vpack.c.bf16 %v7413, %v7411
        %v7418 = vpack.c.bf16 %v7414, %v7412
        %v7419 = vld [vmem:[%s16] sm:$0xff]
        %v7420 = vld [vmem:[%s16 + $0x8] sm:$0xff]
        %v7421 = vld [vmem:[%s16 + $0x10] sm:$0xff]
        %v7422 = vld [vmem:[%s16 + $0x18] sm:$0xff]
        %v7423 = vld [vmem:[%s16 + $0x20] sm:$0xff]
        %v7424 = vld [vmem:[%s16 + $0x28] sm:$0xff]
        %v7425 = vld [vmem:[%s16 + $0x30] sm:$0xff]
        %v7426 = vld [vmem:[%s16 + $0x38] sm:$0xff]
        %v7427 = vld [vmem:[%s16 + $0x40] sm:$0xff]
        %v7428 = vld [vmem:[%s16 + $0x48] sm:$0xff]
        %v7429 = vld [vmem:[%s16 + $0x50] sm:$0xff]
        %v7430 = vld [vmem:[%s16 + $0x58] sm:$0xff]
        %v7431 = vld [vmem:[%s16 + $0x60] sm:$0xff]
        %v7432 = vld [vmem:[%s16 + $0x68] sm:$0xff]
        %v7433 = vld [vmem:[%s16 + $0x70] sm:$0xff]
        %v7434 = vld [vmem:[%s16 + $0x78] sm:$0xff]
        %v7435 = vld [vmem:[%s16 + $0x80] sm:$0xff]
        %v7436 = vld [vmem:[%s16 + $0x88] sm:$0xff]
        %v7437 = vld [vmem:[%s16 + $0x90] sm:$0xff]
        %v7438 = vld [vmem:[%s16 + $0x98] sm:$0xff]
        %v7439 = vld [vmem:[%s16 + $0xa0] sm:$0xff]
        %v7440 = vld [vmem:[%s16 + $0xa8] sm:$0xff]
        %v7441 = vld [vmem:[%s16 + $0xb0] sm:$0xff]
        %v7442 = vld [vmem:[%s16 + $0xb8] sm:$0xff]
        %v7443 = vld [vmem:[%s16 + $0xc0] sm:$0xff]
        %v7444 = vld [vmem:[%s16 + $0xc8] sm:$0xff]
        %v7445 = vld [vmem:[%s16 + $0xd0] sm:$0xff]
        %v7446 = vld [vmem:[%s16 + $0xd8] sm:$0xff]
        %v7447 = vld [vmem:[%s16 + $0xe0] sm:$0xff]
        %v7448 = vld [vmem:[%s16 + $0xe8] sm:$0xff]
        %v7449 = vld [vmem:[%s16 + $0xf0] sm:$0xff]
        %v7450 = vld [vmem:[%s16 + $0xf8] sm:$0xff]
        %v7451 = vld [vmem:[%s16 + $0x100] sm:$0xff]
        %v7452 = vld [vmem:[%s16 + $0x108] sm:$0xff]
        %v7453 = vld [vmem:[%s16 + $0x110] sm:$0xff]
        %v7454 = vld [vmem:[%s16 + $0x118] sm:$0xff]
        %v7455 = vld [vmem:[%s16 + $0x120] sm:$0xff]
        %v7456 = vld [vmem:[%s16 + $0x128] sm:$0xff]
        %v7457 = vld [vmem:[%s16 + $0x130] sm:$0xff]
        %v7458 = vld [vmem:[%s16 + $0x138] sm:$0xff]
        %v7459 = vld [vmem:[%s16 + $0x140] sm:$0xff]
        %v7460 = vld [vmem:[%s16 + $0x148] sm:$0xff]
        %v7461 = vld [vmem:[%s16 + $0x150] sm:$0xff]
        %v7462 = vld [vmem:[%s16 + $0x158] sm:$0xff]
        %v7463 = vld [vmem:[%s16 + $0x160] sm:$0xff]
        %v7464 = vld [vmem:[%s16 + $0x168] sm:$0xff]
        %v7465 = vld [vmem:[%s16 + $0x170] sm:$0xff]
        %v7466 = vld [vmem:[%s16 + $0x178] sm:$0xff]
        %v7467 = vld [vmem:[%s16 + $0x180] sm:$0xff]
        %v7468 = vld [vmem:[%s16 + $0x188] sm:$0xff]
        %v7469 = vld [vmem:[%s16 + $0x190] sm:$0xff]
        %v7470 = vld [vmem:[%s16 + $0x198] sm:$0xff]
        %v7471 = vld [vmem:[%s16 + $0x1a0] sm:$0xff]
        %v7472 = vld [vmem:[%s16 + $0x1a8] sm:$0xff]
        %v7473 = vld [vmem:[%s16 + $0x1b0] sm:$0xff]
        %v7474 = vld [vmem:[%s16 + $0x1b8] sm:$0xff]
        %v7475 = vld [vmem:[%s16 + $0x1c0] sm:$0xff]
        %v7476 = vld [vmem:[%s16 + $0x1c8] sm:$0xff]
        %v7477 = vld [vmem:[%s16 + $0x1d0] sm:$0xff]
        %v7478 = vld [vmem:[%s16 + $0x1d8] sm:$0xff]
        %v7479 = vld [vmem:[%s16 + $0x1e0] sm:$0xff]
        %v7480 = vld [vmem:[%s16 + $0x1e8] sm:$0xff]
        %v7481 = vld [vmem:[%s16 + $0x1f0] sm:$0xff]
        %v7482 = vld [vmem:[%s16 + $0x1f8] sm:$0xff]
        %v7483 = vld [vmem:[%s16 + $0x200] sm:$0xff]
        %v7484 = vld [vmem:[%s16 + $0x208] sm:$0xff]
        %v7485 = vld [vmem:[%s16 + $0x210] sm:$0xff]
        %v7486 = vld [vmem:[%s16 + $0x218] sm:$0xff]
        %v7487 = vld [vmem:[%s16 + $0x220] sm:$0xff]
        %v7488 = vld [vmem:[%s16 + $0x228] sm:$0xff]
        %v7489 = vld [vmem:[%s16 + $0x230] sm:$0xff]
        %v7490 = vld [vmem:[%s16 + $0x238] sm:$0xff]
        %v7491 = vld [vmem:[%s16 + $0x240] sm:$0xff]
        %v7492 = vld [vmem:[%s16 + $0x248] sm:$0xff]
        %v7493 = vld [vmem:[%s16 + $0x250] sm:$0xff]
        %v7494 = vld [vmem:[%s16 + $0x258] sm:$0xff]
        %v7495 = vld [vmem:[%s16 + $0x260] sm:$0xff]
        %v7496 = vld [vmem:[%s16 + $0x268] sm:$0xff]
        %v7497 = vld [vmem:[%s16 + $0x270] sm:$0xff]
        %v7498 = vld [vmem:[%s16 + $0x278] sm:$0xff]
        %v7499 = vld [vmem:[%s17] sm:$0xff]
        %v7501 = vlaneseq
        %v7502 = vshrl.u32 %v7501, 7
        %v7503 = vsub.s32 0, %v7502
        %v7504 = vrot.slane %v7499, %v7503
        %v7505 = vlaneseq
        %v7506 = vshrl.u32 %v7505, 7
        %v7507 = vsub.s32 1, %v7506
        %v7508 = vrot.slane %v7499, %v7507
        %v7509 = vlaneseq
        %v7510 = vshrl.u32 %v7509, 7
        %v7511 = vsub.s32 2, %v7510
        %v7512 = vrot.slane %v7499, %v7511
        %v7513 = vlaneseq
        %v7514 = vshrl.u32 %v7513, 7
        %v7515 = vsub.s32 3, %v7514
        %v7516 = vrot.slane %v7499, %v7515
        %v7517 = vlaneseq
        %v7518 = vshrl.u32 %v7517, 7
        %v7519 = vsub.s32 4, %v7518
        %v7520 = vrot.slane %v7499, %v7519
        %v7521 = vlaneseq
        %v7522 = vshrl.u32 %v7521, 7
        %v7523 = vsub.s32 5, %v7522
        %v7524 = vrot.slane %v7499, %v7523
        %v7525 = vlaneseq
        %v7526 = vshrl.u32 %v7525, 7
        %v7527 = vsub.s32 6, %v7526
        %v7528 = vrot.slane %v7499, %v7527
        %v7529 = vlaneseq
        %v7530 = vshrl.u32 %v7529, 7
        %v7531 = vsub.s32 7, %v7530
        %v7532 = vrot.slane %v7499, %v7531
        %v7621 = vunpack.c.l.b16 %v7419
        %v7622 = vunpack.c.h.b16 %v7419
        %v7623 = vunpack.c.l.b16 %v7420
        %v7624 = vunpack.c.h.b16 %v7420
        %v7625 = vunpack.c.l.b16 %v7421
        %v7626 = vunpack.c.h.b16 %v7421
        %v7627 = vunpack.c.l.b16 %v7422
        %v7628 = vunpack.c.h.b16 %v7422
        %v7629 = vunpack.c.l.b16 %v7423
        %v7630 = vunpack.c.h.b16 %v7423
        %v7631 = vunpack.c.l.b16 %v7424
        %v7632 = vunpack.c.h.b16 %v7424
        %v7633 = vunpack.c.l.b16 %v7425
        %v7634 = vunpack.c.h.b16 %v7425
        %v7635 = vunpack.c.l.b16 %v7426
        %v7636 = vunpack.c.h.b16 %v7426
        %v7637 = vunpack.c.l.b16 %v7427
        %v7638 = vunpack.c.h.b16 %v7427
        %v7639 = vunpack.c.l.b16 %v7428
        %v7640 = vunpack.c.h.b16 %v7428
        %v7641 = vunpack.c.l.b16 %v7429
        %v7642 = vunpack.c.h.b16 %v7429
        %v7643 = vunpack.c.l.b16 %v7430
        %v7644 = vunpack.c.h.b16 %v7430
        %v7645 = vunpack.c.l.b16 %v7431
        %v7646 = vunpack.c.h.b16 %v7431
        %v7647 = vunpack.c.l.b16 %v7432
        %v7648 = vunpack.c.h.b16 %v7432
        %v7649 = vunpack.c.l.b16 %v7433
        %v7650 = vunpack.c.h.b16 %v7433
        %v7651 = vunpack.c.l.b16 %v7434
        %v7652 = vunpack.c.h.b16 %v7434
        %v7653 = vunpack.c.l.b16 %v7435
        %v7654 = vunpack.c.h.b16 %v7435
        %v7655 = vunpack.c.l.b16 %v7436
        %v7656 = vunpack.c.h.b16 %v7436
        %v7657 = vunpack.c.l.b16 %v7437
        %v7658 = vunpack.c.h.b16 %v7437
        %v7659 = vunpack.c.l.b16 %v7438
        %v7660 = vunpack.c.h.b16 %v7438
        %v7661 = vunpack.c.l.b16 %v7439
        %v7662 = vunpack.c.h.b16 %v7439
        %v7663 = vunpack.c.l.b16 %v7440
        %v7664 = vunpack.c.h.b16 %v7440
        %v7665 = vunpack.c.l.b16 %v7441
        %v7666 = vunpack.c.h.b16 %v7441
        %v7667 = vunpack.c.l.b16 %v7442
        %v7668 = vunpack.c.h.b16 %v7442
        %v7669 = vunpack.c.l.b16 %v7443
        %v7670 = vunpack.c.h.b16 %v7443
        %v7671 = vunpack.c.l.b16 %v7444
        %v7672 = vunpack.c.h.b16 %v7444
        %v7673 = vunpack.c.l.b16 %v7445
        %v7674 = vunpack.c.h.b16 %v7445
        %v7675 = vunpack.c.l.b16 %v7446
        %v7676 = vunpack.c.h.b16 %v7446
        %v7677 = vunpack.c.l.b16 %v7447
        %v7678 = vunpack.c.h.b16 %v7447
        %v7679 = vunpack.c.l.b16 %v7448
        %v7680 = vunpack.c.h.b16 %v7448
        %v7681 = vunpack.c.l.b16 %v7449
        %v7682 = vunpack.c.h.b16 %v7449
        %v7683 = vunpack.c.l.b16 %v7450
        %v7684 = vunpack.c.h.b16 %v7450
        %v7685 = vunpack.c.l.b16 %v7451
        %v7686 = vunpack.c.h.b16 %v7451
        %v7687 = vunpack.c.l.b16 %v7452
        %v7688 = vunpack.c.h.b16 %v7452
        %v7689 = vunpack.c.l.b16 %v7453
        %v7690 = vunpack.c.h.b16 %v7453
        %v7691 = vunpack.c.l.b16 %v7454
        %v7692 = vunpack.c.h.b16 %v7454
        %v7693 = vunpack.c.l.b16 %v7455
        %v7694 = vunpack.c.h.b16 %v7455
        %v7695 = vunpack.c.l.b16 %v7456
        %v7696 = vunpack.c.h.b16 %v7456
        %v7697 = vunpack.c.l.b16 %v7457
        %v7698 = vunpack.c.h.b16 %v7457
        %v7699 = vunpack.c.l.b16 %v7458
        %v7700 = vunpack.c.h.b16 %v7458
        %v7701 = vunpack.c.l.b16 %v7459
        %v7702 = vunpack.c.h.b16 %v7459
        %v7703 = vunpack.c.l.b16 %v7460
        %v7704 = vunpack.c.h.b16 %v7460
        %v7705 = vunpack.c.l.b16 %v7461
        %v7706 = vunpack.c.h.b16 %v7461
        %v7707 = vunpack.c.l.b16 %v7462
        %v7708 = vunpack.c.h.b16 %v7462
        %v7709 = vunpack.c.l.b16 %v7463
        %v7710 = vunpack.c.h.b16 %v7463
        %v7711 = vunpack.c.l.b16 %v7464
        %v7712 = vunpack.c.h.b16 %v7464
        %v7713 = vunpack.c.l.b16 %v7465
        %v7714 = vunpack.c.h.b16 %v7465
        %v7715 = vunpack.c.l.b16 %v7466
        %v7716 = vunpack.c.h.b16 %v7466
        %v7717 = vunpack.c.l.b16 %v7467
        %v7718 = vunpack.c.h.b16 %v7467
        %v7719 = vunpack.c.l.b16 %v7468
        %v7720 = vunpack.c.h.b16 %v7468
        %v7721 = vunpack.c.l.b16 %v7469
        %v7722 = vunpack.c.h.b16 %v7469
        %v7723 = vunpack.c.l.b16 %v7470
        %v7724 = vunpack.c.h.b16 %v7470
        %v7725 = vunpack.c.l.b16 %v7471
        %v7726 = vunpack.c.h.b16 %v7471
        %v7727 = vunpack.c.l.b16 %v7472
        %v7728 = vunpack.c.h.b16 %v7472
        %v7729 = vunpack.c.l.b16 %v7473
        %v7730 = vunpack.c.h.b16 %v7473
        %v7731 = vunpack.c.l.b16 %v7474
        %v7732 = vunpack.c.h.b16 %v7474
        %v7733 = vunpack.c.l.b16 %v7475
        %v7734 = vunpack.c.h.b16 %v7475
        %v7735 = vunpack.c.l.b16 %v7476
        %v7736 = vunpack.c.h.b16 %v7476
        %v7737 = vunpack.c.l.b16 %v7477
        %v7738 = vunpack.c.h.b16 %v7477
        %v7739 = vunpack.c.l.b16 %v7478
        %v7740 = vunpack.c.h.b16 %v7478
        %v7741 = vunpack.c.l.b16 %v7479
        %v7742 = vunpack.c.h.b16 %v7479
        %v7743 = vunpack.c.l.b16 %v7480
        %v7744 = vunpack.c.h.b16 %v7480
        %v7745 = vunpack.c.l.b16 %v7481
        %v7746 = vunpack.c.h.b16 %v7481
        %v7747 = vunpack.c.l.b16 %v7482
        %v7748 = vunpack.c.h.b16 %v7482
        %v7749 = vunpack.c.l.b16 %v7483
        %v7750 = vunpack.c.h.b16 %v7483
        %v7751 = vunpack.c.l.b16 %v7484
        %v7752 = vunpack.c.h.b16 %v7484
        %v7753 = vunpack.c.l.b16 %v7485
        %v7754 = vunpack.c.h.b16 %v7485
        %v7755 = vunpack.c.l.b16 %v7486
        %v7756 = vunpack.c.h.b16 %v7486
        %v7757 = vunpack.c.l.b16 %v7487
        %v7758 = vunpack.c.h.b16 %v7487
        %v7759 = vunpack.c.l.b16 %v7488
        %v7760 = vunpack.c.h.b16 %v7488
        %v7761 = vunpack.c.l.b16 %v7489
        %v7762 = vunpack.c.h.b16 %v7489
        %v7763 = vunpack.c.l.b16 %v7490
        %v7764 = vunpack.c.h.b16 %v7490
        %v7765 = vunpack.c.l.b16 %v7491
        %v7766 = vunpack.c.h.b16 %v7491
        %v7767 = vunpack.c.l.b16 %v7492
        %v7768 = vunpack.c.h.b16 %v7492
        %v7769 = vunpack.c.l.b16 %v7493
        %v7770 = vunpack.c.h.b16 %v7493
        %v7771 = vunpack.c.l.b16 %v7494
        %v7772 = vunpack.c.h.b16 %v7494
        %v7773 = vunpack.c.l.b16 %v7495
        %v7774 = vunpack.c.h.b16 %v7495
        %v7775 = vunpack.c.l.b16 %v7496
        %v7776 = vunpack.c.h.b16 %v7496
        %v7777 = vunpack.c.l.b16 %v7497
        %v7778 = vunpack.c.h.b16 %v7497
        %v7779 = vunpack.c.l.b16 %v7498
        %v7780 = vunpack.c.h.b16 %v7498
        %v7781 = vpack.c.b16 %v7629, %v7621
        %v7782 = vpack.c.b16 %v7630, %v7622
        %v7783 = vpack.c.b16 %v7631, %v7623
        %v7784 = vpack.c.b16 %v7632, %v7624
        %v7785 = vpack.c.b16 %v7633, %v7625
        %v7786 = vpack.c.b16 %v7634, %v7626
        %v7787 = vpack.c.b16 %v7635, %v7627
        %v7788 = vpack.c.b16 %v7636, %v7628
        %v7789 = vpack.c.b16 %v7645, %v7637
        %v7790 = vpack.c.b16 %v7646, %v7638
        %v7791 = vpack.c.b16 %v7647, %v7639
        %v7792 = vpack.c.b16 %v7648, %v7640
        %v7793 = vpack.c.b16 %v7649, %v7641
        %v7794 = vpack.c.b16 %v7650, %v7642
        %v7795 = vpack.c.b16 %v7651, %v7643
        %v7796 = vpack.c.b16 %v7652, %v7644
        %v7797 = vpack.c.b16 %v7661, %v7653
        %v7798 = vpack.c.b16 %v7662, %v7654
        %v7799 = vpack.c.b16 %v7663, %v7655
        %v7800 = vpack.c.b16 %v7664, %v7656
        %v7801 = vpack.c.b16 %v7665, %v7657
        %v7802 = vpack.c.b16 %v7666, %v7658
        %v7803 = vpack.c.b16 %v7667, %v7659
        %v7804 = vpack.c.b16 %v7668, %v7660
        %v7805 = vpack.c.b16 %v7677, %v7669
        %v7806 = vpack.c.b16 %v7678, %v7670
        %v7807 = vpack.c.b16 %v7679, %v7671
        %v7808 = vpack.c.b16 %v7680, %v7672
        %v7809 = vpack.c.b16 %v7681, %v7673
        %v7810 = vpack.c.b16 %v7682, %v7674
        %v7811 = vpack.c.b16 %v7683, %v7675
        %v7812 = vpack.c.b16 %v7684, %v7676
        %v7813 = vpack.c.b16 %v7693, %v7685
        %v7814 = vpack.c.b16 %v7694, %v7686
        %v7815 = vpack.c.b16 %v7695, %v7687
        %v7816 = vpack.c.b16 %v7696, %v7688
        %v7817 = vpack.c.b16 %v7697, %v7689
        %v7818 = vpack.c.b16 %v7698, %v7690
        %v7819 = vpack.c.b16 %v7699, %v7691
        %v7820 = vpack.c.b16 %v7700, %v7692
        %v7821 = vpack.c.b16 %v7709, %v7701
        %v7822 = vpack.c.b16 %v7710, %v7702
        %v7823 = vpack.c.b16 %v7711, %v7703
        %v7824 = vpack.c.b16 %v7712, %v7704
        %v7825 = vpack.c.b16 %v7713, %v7705
        %v7826 = vpack.c.b16 %v7714, %v7706
        %v7827 = vpack.c.b16 %v7715, %v7707
        %v7828 = vpack.c.b16 %v7716, %v7708
        %v7829 = vpack.c.b16 %v7725, %v7717
        %v7830 = vpack.c.b16 %v7726, %v7718
        %v7831 = vpack.c.b16 %v7727, %v7719
        %v7832 = vpack.c.b16 %v7728, %v7720
        %v7833 = vpack.c.b16 %v7729, %v7721
        %v7834 = vpack.c.b16 %v7730, %v7722
        %v7835 = vpack.c.b16 %v7731, %v7723
        %v7836 = vpack.c.b16 %v7732, %v7724
        %v7837 = vpack.c.b16 %v7741, %v7733
        %v7838 = vpack.c.b16 %v7742, %v7734
        %v7839 = vpack.c.b16 %v7743, %v7735
        %v7840 = vpack.c.b16 %v7744, %v7736
        %v7841 = vpack.c.b16 %v7745, %v7737
        %v7842 = vpack.c.b16 %v7746, %v7738
        %v7843 = vpack.c.b16 %v7747, %v7739
        %v7844 = vpack.c.b16 %v7748, %v7740
        %v7845 = vpack.c.b16 %v7757, %v7749
        %v7846 = vpack.c.b16 %v7758, %v7750
        %v7847 = vpack.c.b16 %v7759, %v7751
        %v7848 = vpack.c.b16 %v7760, %v7752
        %v7849 = vpack.c.b16 %v7761, %v7753
        %v7850 = vpack.c.b16 %v7762, %v7754
        %v7851 = vpack.c.b16 %v7763, %v7755
        %v7852 = vpack.c.b16 %v7764, %v7756
        %v7853 = vpack.c.b16 %v7773, %v7765
        %v7854 = vpack.c.b16 %v7774, %v7766
        %v7855 = vpack.c.b16 %v7775, %v7767
        %v7856 = vpack.c.b16 %v7776, %v7768
        %v7857 = vpack.c.b16 %v7777, %v7769
        %v7858 = vpack.c.b16 %v7778, %v7770
        %v7859 = vpack.c.b16 %v7779, %v7771
        %v7860 = vpack.c.b16 %v7780, %v7772
        %v7942 = vsel %vm4095, %v7416, 0
        %v7945 = vsel %vm4095, %v7418, 0
        %7947 = vmatprep.subr.bf16.mxu0 %v7782
        %7948 = vmatpush1.bf16.msra.mxu0 %v7781
        %7949 = vmatprep.subr.bf16.mxu0 %v7790
        %7950 = vmatpush1.bf16.msra.mxu0 %v7789
        %7951 = vmatprep.subr.bf16.mxu0 %v7798
        %7952 = vmatpush1.bf16.msra.mxu0 %v7797
        %7953 = vmatprep.subr.bf16.mxu0 %v7806
        %7954 = vmatpush1.bf16.msra.mxu0 %v7805
        %7955 = vmatprep.subr.bf16.mxu0 %v7814
        %7956 = vmatpush1.bf16.msra.mxu0 %v7813
        %7957 = vmatprep.subr.bf16.mxu0 %v7822
        %7958 = vmatpush1.bf16.msra.mxu0 %v7821
        %7959 = vmatprep.subr.bf16.mxu0 %v7830
        %7960 = vmatpush1.bf16.msra.mxu0 %v7829
        %7961 = vmatprep.subr.bf16.mxu0 %v7838
        %7962 = vmatpush1.bf16.msra.mxu0 %v7837
        %7963 = vmatprep.subr.bf16.mxu0 %v7846
        %7964 = vmatpush1.bf16.msra.mxu0 %v7845
        %7965 = vmatprep.subr.bf16.mxu0 %v7854
        %7966 = vmatpush1.bf16.msra.mxu0 %v7853
        %7967 = vmatprep.subr.bf16.mxu0 0
        %7968 = vmatpush1.bf16.msra.mxu0 0
        %7969 = vmatprep.subr.bf16.mxu0 0
        %7970 = vmatpush1.bf16.msra.mxu0 0
        %7971 = vmatprep.subr.bf16.mxu0 0
        %7972 = vmatpush1.bf16.msra.mxu0 0
        %7973 = vmatprep.subr.bf16.mxu0 0
        %7974 = vmatpush1.bf16.msra.mxu0 0
        %7975 = vmatprep.subr.bf16.mxu0 0
        %7976 = vmatpush1.bf16.msra.mxu0 0
        %7977 = vmatprep.subr.bf16.mxu0 0
        %7978 = vmatpush1.bf16.msra.mxu0 0
        %7979 = vmatprep.mubr.bf16.mxu0 %v7942
        %7980 = vmatmul.mubr.bf16.gmra.mrb[0].mxu0 %v7415
        %v7981 = vpop.f32.mrb[0].mxu0
        %v7982 = vadd.f32 %v7504, %v7981
        %v7983 = vpop.f32.mrb[0].mxu0
        %v7984 = vadd.f32 %v7508, %v7983
        %v7985 = vpop.f32.mrb[0].mxu0
        %v7986 = vadd.f32 %v7504, %v7985
        %v7987 = vpop.f32.mrb[0].mxu0
        %v7988 = vadd.f32 %v7508, %v7987
        %7989 = vmatprep.mubr.bf16.mxu0 %v7945
        %7990 = vmatmul.mubr.bf16.gmra.mrb[0].mxu0 %v7417
        %v7991 = vpop.f32.mrb[0].mxu0
        %v7992 = vadd.f32 %v7504, %v7991
        %v7993 = vpop.f32.mrb[0].mxu0
        %v7994 = vadd.f32 %v7508, %v7993
        %v7995 = vpop.f32.mrb[0].mxu0
        %v7996 = vadd.f32 %v7504, %v7995
        %v7997 = vpop.f32.mrb[0].mxu0
        %v7998 = vadd.f32 %v7508, %v7997
        %7999 = vdwg.mxu0
        %8000 = vmatprep.subr.bf16.mxu0 %v7784
        %8001 = vmatpush1.bf16.msra.mxu0 %v7783
        %8002 = vmatprep.subr.bf16.mxu0 %v7792
        %8003 = vmatpush1.bf16.msra.mxu0 %v7791
        %8004 = vmatprep.subr.bf16.mxu0 %v7800
        %8005 = vmatpush1.bf16.msra.mxu0 %v7799
        %8006 = vmatprep.subr.bf16.mxu0 %v7808
        %8007 = vmatpush1.bf16.msra.mxu0 %v7807
        %8008 = vmatprep.subr.bf16.mxu0 %v7816
        %8009 = vmatpush1.bf16.msra.mxu0 %v7815
        %8010 = vmatprep.subr.bf16.mxu0 %v7824
        %8011 = vmatpush1.bf16.msra.mxu0 %v7823
        %8012 = vmatprep.subr.bf16.mxu0 %v7832
        %8013 = vmatpush1.bf16.msra.mxu0 %v7831
        %8014 = vmatprep.subr.bf16.mxu0 %v7840
        %8015 = vmatpush1.bf16.msra.mxu0 %v7839
        %8016 = vmatprep.subr.bf16.mxu0 %v7848
        %8017 = vmatpush1.bf16.msra.mxu0 %v7847
        %8018 = vmatprep.subr.bf16.mxu0 %v7856
        %8019 = vmatpush1.bf16.msra.mxu0 %v7855
        %8020 = vmatprep.subr.bf16.mxu0 0
        %8021 = vmatpush1.bf16.msra.mxu0 0
        %8022 = vmatprep.subr.bf16.mxu0 0
        %8023 = vmatpush1.bf16.msra.mxu0 0
        %8024 = vmatprep.subr.bf16.mxu0 0
        %8025 = vmatpush1.bf16.msra.mxu0 0
        %8026 = vmatprep.subr.bf16.mxu0 0
        %8027 = vmatpush1.bf16.msra.mxu0 0
        %8028 = vmatprep.subr.bf16.mxu0 0
        %8029 = vmatpush1.bf16.msra.mxu0 0
        %8030 = vmatprep.subr.bf16.mxu0 0
        %8031 = vmatpush1.bf16.msra.mxu0 0
        %8032 = vmatprep.mubr.bf16.mxu0 %v7942
        %8033 = vmatmul.mubr.bf16.gmra.mrb[0].mxu0 %v7415
        %v8034 = vpop.f32.mrb[0].mxu0
        %v8035 = vadd.f32 %v7512, %v8034
        %v8036 = vpop.f32.mrb[0].mxu0
        %v8037 = vadd.f32 %v7516, %v8036
        %v8038 = vpop.f32.mrb[0].mxu0
        %v8039 = vadd.f32 %v7512, %v8038
        %v8040 = vpop.f32.mrb[0].mxu0
        %v8041 = vadd.f32 %v7516, %v8040
        %8042 = vmatprep.mubr.bf16.mxu0 %v7945
        %8043 = vmatmul.mubr.bf16.gmra.mrb[0].mxu0 %v7417
        %v8044 = vpop.f32.mrb[0].mxu0
        %v8045 = vadd.f32 %v7512, %v8044
        %v8046 = vpop.f32.mrb[0].mxu0
        %v8047 = vadd.f32 %v7516, %v8046
        %v8048 = vpop.f32.mrb[0].mxu0
        %v8049 = vadd.f32 %v7512, %v8048
        %v8050 = vpop.f32.mrb[0].mxu0
        %v8051 = vadd.f32 %v7516, %v8050
        %8052 = vdwg.mxu0
        %8053 = vmatprep.subr.bf16.mxu0 %v7786
        %8054 = vmatpush1.bf16.msra.mxu0 %v7785
        %8055 = vmatprep.subr.bf16.mxu0 %v7794
        %8056 = vmatpush1.bf16.msra.mxu0 %v7793
        %8057 = vmatprep.subr.bf16.mxu0 %v7802
        %8058 = vmatpush1.bf16.msra.mxu0 %v7801
        %8059 = vmatprep.subr.bf16.mxu0 %v7810
        %8060 = vmatpush1.bf16.msra.mxu0 %v7809
        %8061 = vmatprep.subr.bf16.mxu0 %v7818
        %8062 = vmatpush1.bf16.msra.mxu0 %v7817
        %8063 = vmatprep.subr.bf16.mxu0 %v7826
        %8064 = vmatpush1.bf16.msra.mxu0 %v7825
        %8065 = vmatprep.subr.bf16.mxu0 %v7834
        %8066 = vmatpush1.bf16.msra.mxu0 %v7833
        %8067 = vmatprep.subr.bf16.mxu0 %v7842
        %8068 = vmatpush1.bf16.msra.mxu0 %v7841
        %8069 = vmatprep.subr.bf16.mxu0 %v7850
        %8070 = vmatpush1.bf16.msra.mxu0 %v7849
        %8071 = vmatprep.subr.bf16.mxu0 %v7858
        %8072 = vmatpush1.bf16.msra.mxu0 %v7857
        %8073 = vmatprep.subr.bf16.mxu0 0
        %8074 = vmatpush1.bf16.msra.mxu0 0
        %8075 = vmatprep.subr.bf16.mxu0 0
        %8076 = vmatpush1.bf16.msra.mxu0 0
        %8077 = vmatprep.subr.bf16.mxu0 0
        %8078 = vmatpush1.bf16.msra.mxu0 0
        %8079 = vmatprep.subr.bf16.mxu0 0
        %8080 = vmatpush1.bf16.msra.mxu0 0
        %8081 = vmatprep.subr.bf16.mxu0 0
        %8082 = vmatpush1.bf16.msra.mxu0 0
        %8083 = vmatprep.subr.bf16.mxu0 0
        %8084 = vmatpush1.bf16.msra.mxu0 0
        %8085 = vmatprep.mubr.bf16.mxu0 %v7942
        %8086 = vmatmul.mubr.bf16.gmra.mrb[0].mxu0 %v7415
        %v8087 = vpop.f32.mrb[0].mxu0
        %v8088 = vadd.f32 %v7520, %v8087
        %v8089 = vpop.f32.mrb[0].mxu0
        %v8090 = vadd.f32 %v7524, %v8089
        %v8091 = vpop.f32.mrb[0].mxu0
        %v8092 = vadd.f32 %v7520, %v8091
        %v8093 = vpop.f32.mrb[0].mxu0
        %v8094 = vadd.f32 %v7524, %v8093
        %8095 = vmatprep.mubr.bf16.mxu0 %v7945
        %8096 = vmatmul.mubr.bf16.gmra.mrb[0].mxu0 %v7417
        %v8097 = vpop.f32.mrb[0].mxu0
        %v8098 = vadd.f32 %v7520, %v8097
        %v8099 = vpop.f32.mrb[0].mxu0
        %v8100 = vadd.f32 %v7524, %v8099
        %v8101 = vpop.f32.mrb[0].mxu0
        %v8102 = vadd.f32 %v7520, %v8101
        %v8103 = vpop.f32.mrb[0].mxu0
        %v8104 = vadd.f32 %v7524, %v8103
        %8105 = vdwg.mxu0
        %8106 = vmatprep.subr.bf16.mxu0 %v7788
        %8107 = vmatpush1.bf16.msra.mxu0 %v7787
        %8108 = vmatprep.subr.bf16.mxu0 %v7796
        %8109 = vmatpush1.bf16.msra.mxu0 %v7795
        %8110 = vmatprep.subr.bf16.mxu0 %v7804
        %8111 = vmatpush1.bf16.msra.mxu0 %v7803
        %8112 = vmatprep.subr.bf16.mxu0 %v7812
        %8113 = vmatpush1.bf16.msra.mxu0 %v7811
        %8114 = vmatprep.subr.bf16.mxu0 %v7820
        %8115 = vmatpush1.bf16.msra.mxu0 %v7819
        %8116 = vmatprep.subr.bf16.mxu0 %v7828
        %8117 = vmatpush1.bf16.msra.mxu0 %v7827
        %8118 = vmatprep.subr.bf16.mxu0 %v7836
        %8119 = vmatpush1.bf16.msra.mxu0 %v7835
        %8120 = vmatprep.subr.bf16.mxu0 %v7844
        %8121 = vmatpush1.bf16.msra.mxu0 %v7843
        %8122 = vmatprep.subr.bf16.mxu0 %v7852
        %8123 = vmatpush1.bf16.msra.mxu0 %v7851
        %8124 = vmatprep.subr.bf16.mxu0 %v7860
        %8125 = vmatpush1.bf16.msra.mxu0 %v7859
        %8126 = vmatprep.subr.bf16.mxu0 0
        %8127 = vmatpush1.bf16.msra.mxu0 0
        %8128 = vmatprep.subr.bf16.mxu0 0
        %8129 = vmatpush1.bf16.msra.mxu0 0
        %8130 = vmatprep.subr.bf16.mxu0 0
        %8131 = vmatpush1.bf16.msra.mxu0 0
        %8132 = vmatprep.subr.bf16.mxu0 0
        %8133 = vmatpush1.bf16.msra.mxu0 0
        %8134 = vmatprep.subr.bf16.mxu0 0
        %8135 = vmatpush1.bf16.msra.mxu0 0
        %8136 = vmatprep.subr.bf16.mxu0 0
        %8137 = vmatpush1.bf16.msra.mxu0 0
        %8138 = vmatprep.mubr.bf16.mxu0 %v7942
        %8139 = vmatmul.mubr.bf16.gmra.mrb[0].mxu0 %v7415
        %v8140 = vpop.f32.mrb[0].mxu0
        %v8141 = vadd.f32 %v7528, %v8140
        %v8142 = vpop.f32.mrb[0].mxu0
        %v8143 = vadd.f32 %v7532, %v8142
        %v8144 = vpop.f32.mrb[0].mxu0
        %v8145 = vadd.f32 %v7528, %v8144
        %v8146 = vpop.f32.mrb[0].mxu0
        %v8147 = vadd.f32 %v7532, %v8146
        %8148 = vmatprep.mubr.bf16.mxu0 %v7945
        %8149 = vmatmul.mubr.bf16.gmra.mrb[0].mxu0 %v7417
        %v8150 = vpop.f32.mrb[0].mxu0
        %v8151 = vadd.f32 %v7528, %v8150
        %v8152 = vpop.f32.mrb[0].mxu0
        %v8153 = vadd.f32 %v7532, %v8152
        %v8154 = vpop.f32.mrb[0].mxu0
        %v8155 = vadd.f32 %v7528, %v8154
        %v8156 = vpop.f32.mrb[0].mxu0
        %v8157 = vadd.f32 %v7532, %v8156
        %8158 = vdwg.mxu0
        %v8159 = vmax.f32 %v7982, 0.0
        %v8160 = vmax.f32 %v7984, 0.0
        %v8161 = vmax.f32 %v8035, 0.0
        %v8162 = vmax.f32 %v8037, 0.0
        %v8163 = vmax.f32 %v8088, 0.0
        %v8164 = vmax.f32 %v8090, 0.0
        %v8165 = vmax.f32 %v8141, 0.0
        %v8166 = vmax.f32 %v8143, 0.0
        %v8167 = vmax.f32 %v7986, 0.0
        %v8168 = vmax.f32 %v7988, 0.0
        %v8169 = vmax.f32 %v8039, 0.0
        %v8170 = vmax.f32 %v8041, 0.0
        %v8171 = vmax.f32 %v8092, 0.0
        %v8172 = vmax.f32 %v8094, 0.0
        %v8173 = vmax.f32 %v8145, 0.0
        %v8174 = vmax.f32 %v8147, 0.0
        %v8175 = vmax.f32 %v7992, 0.0
        %v8176 = vmax.f32 %v7994, 0.0
        %v8177 = vmax.f32 %v8045, 0.0
        %v8178 = vmax.f32 %v8047, 0.0
        %v8179 = vmax.f32 %v8098, 0.0
        %v8180 = vmax.f32 %v8100, 0.0
        %v8181 = vmax.f32 %v8151, 0.0
        %v8182 = vmax.f32 %v8153, 0.0
        %v8183 = vmax.f32 %v7996, 0.0
        %v8184 = vmax.f32 %v7998, 0.0
        %v8185 = vmax.f32 %v8049, 0.0
        %v8186 = vmax.f32 %v8051, 0.0
        %v8187 = vmax.f32 %v8102, 0.0
        %v8188 = vmax.f32 %v8104, 0.0
        %v8189 = vmax.f32 %v8155, 0.0
        %v8190 = vmax.f32 %v8157, 0.0
        %v8191 = vmin.f32 %v8159, 6.0
        %v8192 = vmin.f32 %v8160, 6.0
        %v8193 = vmin.f32 %v8161, 6.0
        %v8194 = vmin.f32 %v8162, 6.0
        %v8195 = vmin.f32 %v8163, 6.0
        %v8196 = vmin.f32 %v8164, 6.0
        %v8197 = vmin.f32 %v8165, 6.0
        %v8198 = vmin.f32 %v8166, 6.0
        %v8199 = vmin.f32 %v8167, 6.0
        %v8200 = vmin.f32 %v8168, 6.0
        %v8201 = vmin.f32 %v8169, 6.0
        %v8202 = vmin.f32 %v8170, 6.0
        %v8203 = vmin.f32 %v8171, 6.0
        %v8204 = vmin.f32 %v8172, 6.0
        %v8205 = vmin.f32 %v8173, 6.0
        %v8206 = vmin.f32 %v8174, 6.0
        %v8207 = vmin.f32 %v8175, 6.0
        %v8208 = vmin.f32 %v8176, 6.0
        %v8209 = vmin.f32 %v8177, 6.0
        %v8210 = vmin.f32 %v8178, 6.0
        %v8211 = vmin.f32 %v8179, 6.0
        %v8212 = vmin.f32 %v8180, 6.0
        %v8213 = vmin.f32 %v8181, 6.0
        %v8214 = vmin.f32 %v8182, 6.0
        %v8215 = vmin.f32 %v8183, 6.0
        %v8216 = vmin.f32 %v8184, 6.0
        %v8217 = vmin.f32 %v8185, 6.0
        %v8218 = vmin.f32 %v8186, 6.0
        %v8219 = vmin.f32 %v8187, 6.0
        %v8220 = vmin.f32 %v8188, 6.0
        %v8221 = vmin.f32 %v8189, 6.0
        %v8222 = vmin.f32 %v8190, 6.0
        %v8223 = vpack.c.bf16 %v8199, %v8191
        %v8224 = vpack.c.bf16 %v8200, %v8192
        %v8225 = vpack.c.bf16 %v8201, %v8193
        %v8226 = vpack.c.bf16 %v8202, %v8194
        %v8227 = vpack.c.bf16 %v8203, %v8195
        %v8228 = vpack.c.bf16 %v8204, %v8196
        %v8229 = vpack.c.bf16 %v8205, %v8197
        %v8230 = vpack.c.bf16 %v8206, %v8198
        %v8231 = vpack.c.bf16 %v8215, %v8207
        %v8232 = vpack.c.bf16 %v8216, %v8208
        %v8233 = vpack.c.bf16 %v8217, %v8209
        %v8234 = vpack.c.bf16 %v8218, %v8210
        %v8235 = vpack.c.bf16 %v8219, %v8211
        %v8236 = vpack.c.bf16 %v8220, %v8212
        %v8237 = vpack.c.bf16 %v8221, %v8213
        %v8238 = vpack.c.bf16 %v8222, %v8214
        %v8240 = vand.u32 %v8231, %v4578
        %v8243 = vand.u32 %v8232, %v4578
        %v8246 = vand.u32 %v8233, %v4578
        %v8249 = vand.u32 %v8234, %v4578
        %v8252 = vand.u32 %v8235, %v4578
        %v8255 = vand.u32 %v8236, %v4578
        %v8258 = vand.u32 %v8237, %v4578
        %v8261 = vand.u32 %v8238, %v4578
        %8263 = vmatprep.subr.bf16.mxu0 %v8224
        %8264 = vmatpush1.bf16.msra.mxu0 %v8223
        %8265 = vmatprep.subr.bf16.mxu0 %v8243
        %8266 = vmatpush1.bf16.msra.mxu0 %v8240
        %8267 = vmatprep.subr.bf16.mxu0 0
        %8268 = vmatpush1.bf16.msra.mxu0 0
        %8269 = vmatprep.subr.bf16.mxu0 0
        %8270 = vmatpush1.bf16.msra.mxu0 0
        %8271 = vmatprep.subr.bf16.mxu0 0
        %8272 = vmatpush1.bf16.msra.mxu0 0
        %8273 = vmatprep.subr.bf16.mxu0 0
        %8274 = vmatpush1.bf16.msra.mxu0 0
        %8275 = vmatprep.subr.bf16.mxu0 0
        %8276 = vmatpush1.bf16.msra.mxu0 0
        %8277 = vmatprep.subr.bf16.mxu0 0
        %8278 = vmatpush1.bf16.msra.mxu0 0
        %8279 = vmatprep.subr.bf16.mxu0 0
        %8280 = vmatpush1.bf16.msra.mxu0 0
        %8281 = vmatprep.subr.bf16.mxu0 0
        %8282 = vmatpush1.bf16.msra.mxu0 0
        %8283 = vmatprep.subr.bf16.mxu0 0
        %8284 = vmatpush1.bf16.msra.mxu0 0
        %8285 = vmatprep.subr.bf16.mxu0 0
        %8286 = vmatpush1.bf16.msra.mxu0 0
        %8287 = vmatprep.subr.bf16.mxu0 0
        %8288 = vmatpush1.bf16.msra.mxu0 0
        %8289 = vmatprep.subr.bf16.mxu0 0
        %8290 = vmatpush1.bf16.msra.mxu0 0
        %8291 = vmatprep.subr.bf16.mxu0 0
        %8292 = vmatpush1.bf16.msra.mxu0 0
        %8293 = vmatprep.subr.bf16.mxu0 0
        %8294 = vmatpush1.bf16.msra.mxu0 0
        %8295 = vmatprep.mubr.bf16.mxu0 0
        %8296 = vmatmul.mubr.bf16.gmra.mrb[0].mxu0 %v4522
        %v8297 = vpop.f32.mrb[0].mxu0
        %v8298 = vadd.f32 0.0, %v8297
        %v8299 = vpop.f32.mrb[0].mxu0
        %v8300 = vadd.f32 0.0, %v8299
        %v8301 = vpop.f32.mrb[0].mxu0
        %v8302 = vadd.f32 0.0, %v8301
        %v8303 = vpop.f32.mrb[0].mxu0
        %v8304 = vadd.f32 0.0, %v8303
        %8305 = vmatprep.mubr.bf16.mxu0 0
        %8306 = vmatmul.mubr.bf16.gmra.mrb[0].mxu0 %v4525
        %v8307 = vpop.f32.mrb[0].mxu0
        %v8308 = vadd.f32 0.0, %v8307
        %v8309 = vpop.f32.mrb[0].mxu0
        %v8310 = vadd.f32 0.0, %v8309
        %v8311 = vpop.f32.mrb[0].mxu0
        %v8312 = vadd.f32 0.0, %v8311
        %v8313 = vpop.f32.mrb[0].mxu0
        %v8314 = vadd.f32 0.0, %v8313
        %8315 = vmatprep.mubr.bf16.mxu0 0
        %8316 = vmatmul.mubr.bf16.gmra.mrb[0].mxu0 %v4528
        %v8317 = vpop.f32.mrb[0].mxu0
        %v8318 = vadd.f32 0.0, %v8317
        %v8319 = vpop.f32.mrb[0].mxu0
        %v8320 = vadd.f32 0.0, %v8319
        %v8321 = vpop.f32.mrb[0].mxu0
        %v8322 = vadd.f32 0.0, %v8321
        %v8323 = vpop.f32.mrb[0].mxu0
        %v8324 = vadd.f32 0.0, %v8323
        %8325 = vmatprep.mubr.bf16.mxu0 0
        %8326 = vmatmul.mubr.bf16.gmra.mrb[0].mxu0 %v4531
        %v8327 = vpop.f32.mrb[0].mxu0
        %v8328 = vadd.f32 0.0, %v8327
        %v8329 = vpop.f32.mrb[0].mxu0
        %v8330 = vadd.f32 0.0, %v8329
        %v8331 = vpop.f32.mrb[0].mxu0
        %v8332 = vadd.f32 0.0, %v8331
        %v8333 = vpop.f32.mrb[0].mxu0
        %v8334 = vadd.f32 0.0, %v8333
        %8335 = vmatprep.mubr.bf16.mxu0 0
        %8336 = vmatmul.mubr.bf16.gmra.mrb[0].mxu0 %v4534
        %v8337 = vpop.f32.mrb[0].mxu0
        %v8338 = vadd.f32 0.0, %v8337
        %v8339 = vpop.f32.mrb[0].mxu0
        %v8340 = vadd.f32 0.0, %v8339
        %v8341 = vpop.f32.mrb[0].mxu0
        %v8342 = vadd.f32 0.0, %v8341
        %v8343 = vpop.f32.mrb[0].mxu0
        %v8344 = vadd.f32 0.0, %v8343
        %8345 = vmatprep.mubr.bf16.mxu0 0
        %8346 = vmatmul.mubr.bf16.gmra.mrb[0].mxu0 %v4537
        %v8347 = vpop.f32.mrb[0].mxu0
        %v8348 = vadd.f32 0.0, %v8347
        %v8349 = vpop.f32.mrb[0].mxu0
        %v8350 = vadd.f32 0.0, %v8349
        %v8351 = vpop.f32.mrb[0].mxu0
        %v8352 = vadd.f32 0.0, %v8351
        %v8353 = vpop.f32.mrb[0].mxu0
        %v8354 = vadd.f32 0.0, %v8353
        %8355 = vmatprep.mubr.bf16.mxu0 0
        %8356 = vmatmul.mubr.bf16.gmra.mrb[0].mxu0 %v4540
        %v8357 = vpop.f32.mrb[0].mxu0
        %v8358 = vadd.f32 0.0, %v8357
        %v8359 = vpop.f32.mrb[0].mxu0
        %v8360 = vadd.f32 0.0, %v8359
        %v8361 = vpop.f32.mrb[0].mxu0
        %v8362 = vadd.f32 0.0, %v8361
        %v8363 = vpop.f32.mrb[0].mxu0
        %v8364 = vadd.f32 0.0, %v8363
        %8365 = vmatprep.mubr.bf16.mxu0 0
        %8366 = vmatmul.mubr.bf16.gmra.mrb[0].mxu0 %v4543
        %v8367 = vpop.f32.mrb[0].mxu0
        %v8368 = vadd.f32 0.0, %v8367
        %v8369 = vpop.f32.mrb[0].mxu0
        %v8370 = vadd.f32 0.0, %v8369
        %v8371 = vpop.f32.mrb[0].mxu0
        %v8372 = vadd.f32 0.0, %v8371
        %v8373 = vpop.f32.mrb[0].mxu0
        %v8374 = vadd.f32 0.0, %v8373
        %8375 = vmatprep.mubr.bf16.mxu0 0
        %8376 = vmatmul.mubr.bf16.gmra.mrb[0].mxu0 %v4546
        %v8377 = vpop.f32.mrb[0].mxu0
        %v8378 = vadd.f32 0.0, %v8377
        %v8379 = vpop.f32.mrb[0].mxu0
        %v8380 = vadd.f32 0.0, %v8379
        %v8381 = vpop.f32.mrb[0].mxu0
        %v8382 = vadd.f32 0.0, %v8381
        %v8383 = vpop.f32.mrb[0].mxu0
        %v8384 = vadd.f32 0.0, %v8383
        %8385 = vmatprep.mubr.bf16.mxu0 0
        %8386 = vmatmul.mubr.bf16.gmra.mrb[0].mxu0 %v4549
        %v8387 = vpop.f32.mrb[0].mxu0
        %v8388 = vadd.f32 0.0, %v8387
        %v8389 = vpop.f32.mrb[0].mxu0
        %v8390 = vadd.f32 0.0, %v8389
        %v8391 = vpop.f32.mrb[0].mxu0
        %v8392 = vadd.f32 0.0, %v8391
        %v8393 = vpop.f32.mrb[0].mxu0
        %v8394 = vadd.f32 0.0, %v8393
        %8395 = vmatprep.mubr.bf16.mxu0 0
        %8396 = vmatmul.mubr.bf16.gmra.mrb[0].mxu0 %v4552
        %v8397 = vpop.f32.mrb[0].mxu0
        %v8398 = vadd.f32 0.0, %v8397
        %v8399 = vpop.f32.mrb[0].mxu0
        %v8400 = vadd.f32 0.0, %v8399
        %v8401 = vpop.f32.mrb[0].mxu0
        %v8402 = vadd.f32 0.0, %v8401
        %v8403 = vpop.f32.mrb[0].mxu0
        %v8404 = vadd.f32 0.0, %v8403
        %8405 = vmatprep.mubr.bf16.mxu0 0
        %8406 = vmatmul.mubr.bf16.gmra.mrb[0].mxu0 %v4555
        %v8407 = vpop.f32.mrb[0].mxu0
        %v8408 = vadd.f32 0.0, %v8407
        %v8409 = vpop.f32.mrb[0].mxu0
        %v8410 = vadd.f32 0.0, %v8409
        %v8411 = vpop.f32.mrb[0].mxu0
        %v8412 = vadd.f32 0.0, %v8411
        %v8413 = vpop.f32.mrb[0].mxu0
        %v8414 = vadd.f32 0.0, %v8413
        %8415 = vmatprep.mubr.bf16.mxu0 0
        %8416 = vmatmul.mubr.bf16.gmra.mrb[0].mxu0 %v4558
        %v8417 = vpop.f32.mrb[0].mxu0
        %v8418 = vadd.f32 0.0, %v8417
        %v8419 = vpop.f32.mrb[0].mxu0
        %v8420 = vadd.f32 0.0, %v8419
        %v8421 = vpop.f32.mrb[0].mxu0
        %v8422 = vadd.f32 0.0, %v8421
        %v8423 = vpop.f32.mrb[0].mxu0
        %v8424 = vadd.f32 0.0, %v8423
        %8425 = vmatprep.mubr.bf16.mxu0 0
        %8426 = vmatmul.mubr.bf16.gmra.mrb[0].mxu0 %v4561
        %v8427 = vpop.f32.mrb[0].mxu0
        %v8428 = vadd.f32 0.0, %v8427
        %v8429 = vpop.f32.mrb[0].mxu0
        %v8430 = vadd.f32 0.0, %v8429
        %v8431 = vpop.f32.mrb[0].mxu0
        %v8432 = vadd.f32 0.0, %v8431
        %v8433 = vpop.f32.mrb[0].mxu0
        %v8434 = vadd.f32 0.0, %v8433
        %8435 = vmatprep.mubr.bf16.mxu0 0
        %8436 = vmatmul.mubr.bf16.gmra.mrb[0].mxu0 %v4564
        %v8437 = vpop.f32.mrb[0].mxu0
        %v8438 = vadd.f32 0.0, %v8437
        %v8439 = vpop.f32.mrb[0].mxu0
        %v8440 = vadd.f32 0.0, %v8439
        %v8441 = vpop.f32.mrb[0].mxu0
        %v8442 = vadd.f32 0.0, %v8441
        %v8443 = vpop.f32.mrb[0].mxu0
        %v8444 = vadd.f32 0.0, %v8443
        %8445 = vmatprep.mubr.bf16.mxu0 0
        %8446 = vmatmul.mubr.bf16.gmra.mrb[0].mxu0 %v4567
        %v8447 = vpop.f32.mrb[0].mxu0
        %v8448 = vadd.f32 0.0, %v8447
        %v8449 = vpop.f32.mrb[0].mxu0
        %v8450 = vadd.f32 0.0, %v8449
        %v8451 = vpop.f32.mrb[0].mxu0
        %v8452 = vadd.f32 0.0, %v8451
        %v8453 = vpop.f32.mrb[0].mxu0
        %v8454 = vadd.f32 0.0, %v8453
        %8455 = vmatprep.mubr.bf16.mxu0 0
        %8456 = vmatmul.mubr.bf16.gmra.mrb[0].mxu0 %v4570
        %v8457 = vpop.f32.mrb[0].mxu0
        %v8458 = vadd.f32 0.0, %v8457
        %v8459 = vpop.f32.mrb[0].mxu0
        %v8460 = vadd.f32 0.0, %v8459
        %v8461 = vpop.f32.mrb[0].mxu0
        %v8462 = vadd.f32 0.0, %v8461
        %v8463 = vpop.f32.mrb[0].mxu0
        %v8464 = vadd.f32 0.0, %v8463
        %8465 = vmatprep.mubr.bf16.mxu0 0
        %8466 = vmatmul.mubr.bf16.gmra.mrb[0].mxu0 %v4573
        %v8467 = vpop.f32.mrb[0].mxu0
        %v8468 = vadd.f32 0.0, %v8467
        %v8469 = vpop.f32.mrb[0].mxu0
        %v8470 = vadd.f32 0.0, %v8469
        %v8471 = vpop.f32.mrb[0].mxu0
        %v8472 = vadd.f32 0.0, %v8471
        %v8473 = vpop.f32.mrb[0].mxu0
        %v8474 = vadd.f32 0.0, %v8473
        %8475 = vdwg.mxu0
        %8476 = vmatprep.subr.bf16.mxu0 %v8226
        %8477 = vmatpush1.bf16.msra.mxu0 %v8225
        %8478 = vmatprep.subr.bf16.mxu0 %v8249
        %8479 = vmatpush1.bf16.msra.mxu0 %v8246
        %8480 = vmatprep.subr.bf16.mxu0 0
        %8481 = vmatpush1.bf16.msra.mxu0 0
        %8482 = vmatprep.subr.bf16.mxu0 0
        %8483 = vmatpush1.bf16.msra.mxu0 0
        %8484 = vmatprep.subr.bf16.mxu0 0
        %8485 = vmatpush1.bf16.msra.mxu0 0
        %8486 = vmatprep.subr.bf16.mxu0 0
        %8487 = vmatpush1.bf16.msra.mxu0 0
        %8488 = vmatprep.subr.bf16.mxu0 0
        %8489 = vmatpush1.bf16.msra.mxu0 0
        %8490 = vmatprep.subr.bf16.mxu0 0
        %8491 = vmatpush1.bf16.msra.mxu0 0
        %8492 = vmatprep.subr.bf16.mxu0 0
        %8493 = vmatpush1.bf16.msra.mxu0 0
        %8494 = vmatprep.subr.bf16.mxu0 0
        %8495 = vmatpush1.bf16.msra.mxu0 0
        %8496 = vmatprep.subr.bf16.mxu0 0
        %8497 = vmatpush1.bf16.msra.mxu0 0
        %8498 = vmatprep.subr.bf16.mxu0 0
        %8499 = vmatpush1.bf16.msra.mxu0 0
        %8500 = vmatprep.subr.bf16.mxu0 0
        %8501 = vmatpush1.bf16.msra.mxu0 0
        %8502 = vmatprep.subr.bf16.mxu0 0
        %8503 = vmatpush1.bf16.msra.mxu0 0
        %8504 = vmatprep.subr.bf16.mxu0 0
        %8505 = vmatpush1.bf16.msra.mxu0 0
        %8506 = vmatprep.subr.bf16.mxu0 0
        %8507 = vmatpush1.bf16.msra.mxu0 0
        %8508 = vmatprep.mubr.bf16.mxu0 0
        %8509 = vmatmul.mubr.bf16.gmra.mrb[0].mxu0 %v4522
        %v8510 = vpop.f32.mrb[0].mxu0
        %v8511 = vadd.f32 0.0, %v8510
        %v8512 = vpop.f32.mrb[0].mxu0
        %v8513 = vadd.f32 0.0, %v8512
        %v8514 = vpop.f32.mrb[0].mxu0
        %v8515 = vadd.f32 0.0, %v8514
        %v8516 = vpop.f32.mrb[0].mxu0
        %v8517 = vadd.f32 0.0, %v8516
        %8518 = vmatprep.mubr.bf16.mxu0 0
        %8519 = vmatmul.mubr.bf16.gmra.mrb[0].mxu0 %v4525
        %v8520 = vpop.f32.mrb[0].mxu0
        %v8521 = vadd.f32 0.0, %v8520
        %v8522 = vpop.f32.mrb[0].mxu0
        %v8523 = vadd.f32 0.0, %v8522
        %v8524 = vpop.f32.mrb[0].mxu0
        %v8525 = vadd.f32 0.0, %v8524
        %v8526 = vpop.f32.mrb[0].mxu0
        %v8527 = vadd.f32 0.0, %v8526
        %8528 = vmatprep.mubr.bf16.mxu0 0
        %8529 = vmatmul.mubr.bf16.gmra.mrb[0].mxu0 %v4528
        %v8530 = vpop.f32.mrb[0].mxu0
        %v8531 = vadd.f32 0.0, %v8530
        %v8532 = vpop.f32.mrb[0].mxu0
        %v8533 = vadd.f32 0.0, %v8532
        %v8534 = vpop.f32.mrb[0].mxu0
        %v8535 = vadd.f32 0.0, %v8534
        %v8536 = vpop.f32.mrb[0].mxu0
        %v8537 = vadd.f32 0.0, %v8536
        %8538 = vmatprep.mubr.bf16.mxu0 0
        %8539 = vmatmul.mubr.bf16.gmra.mrb[0].mxu0 %v4531
        %v8540 = vpop.f32.mrb[0].mxu0
        %v8541 = vadd.f32 0.0, %v8540
        %v8542 = vpop.f32.mrb[0].mxu0
        %v8543 = vadd.f32 0.0, %v8542
        %v8544 = vpop.f32.mrb[0].mxu0
        %v8545 = vadd.f32 0.0, %v8544
        %v8546 = vpop.f32.mrb[0].mxu0
        %v8547 = vadd.f32 0.0, %v8546
        %8548 = vmatprep.mubr.bf16.mxu0 0
        %8549 = vmatmul.mubr.bf16.gmra.mrb[0].mxu0 %v4534
        %v8550 = vpop.f32.mrb[0].mxu0
        %v8551 = vadd.f32 0.0, %v8550
        %v8552 = vpop.f32.mrb[0].mxu0
        %v8553 = vadd.f32 0.0, %v8552
        %v8554 = vpop.f32.mrb[0].mxu0
        %v8555 = vadd.f32 0.0, %v8554
        %v8556 = vpop.f32.mrb[0].mxu0
        %v8557 = vadd.f32 0.0, %v8556
        %8558 = vmatprep.mubr.bf16.mxu0 0
        %8559 = vmatmul.mubr.bf16.gmra.mrb[0].mxu0 %v4537
        %v8560 = vpop.f32.mrb[0].mxu0
        %v8561 = vadd.f32 0.0, %v8560
        %v8562 = vpop.f32.mrb[0].mxu0
        %v8563 = vadd.f32 0.0, %v8562
        %v8564 = vpop.f32.mrb[0].mxu0
        %v8565 = vadd.f32 0.0, %v8564
        %v8566 = vpop.f32.mrb[0].mxu0
        %v8567 = vadd.f32 0.0, %v8566
        %8568 = vmatprep.mubr.bf16.mxu0 0
        %8569 = vmatmul.mubr.bf16.gmra.mrb[0].mxu0 %v4540
        %v8570 = vpop.f32.mrb[0].mxu0
        %v8571 = vadd.f32 0.0, %v8570
        %v8572 = vpop.f32.mrb[0].mxu0
        %v8573 = vadd.f32 0.0, %v8572
        %v8574 = vpop.f32.mrb[0].mxu0
        %v8575 = vadd.f32 0.0, %v8574
        %v8576 = vpop.f32.mrb[0].mxu0
        %v8577 = vadd.f32 0.0, %v8576
        %8578 = vmatprep.mubr.bf16.mxu0 0
        %8579 = vmatmul.mubr.bf16.gmra.mrb[0].mxu0 %v4543
        %v8580 = vpop.f32.mrb[0].mxu0
        %v8581 = vadd.f32 0.0, %v8580
        %v8582 = vpop.f32.mrb[0].mxu0
        %v8583 = vadd.f32 0.0, %v8582
        %v8584 = vpop.f32.mrb[0].mxu0
        %v8585 = vadd.f32 0.0, %v8584
        %v8586 = vpop.f32.mrb[0].mxu0
        %v8587 = vadd.f32 0.0, %v8586
        %8588 = vmatprep.mubr.bf16.mxu0 0
        %8589 = vmatmul.mubr.bf16.gmra.mrb[0].mxu0 %v4546
        %v8590 = vpop.f32.mrb[0].mxu0
        %v8591 = vadd.f32 0.0, %v8590
        %v8592 = vpop.f32.mrb[0].mxu0
        %v8593 = vadd.f32 0.0, %v8592
        %v8594 = vpop.f32.mrb[0].mxu0
        %v8595 = vadd.f32 0.0, %v8594
        %v8596 = vpop.f32.mrb[0].mxu0
        %v8597 = vadd.f32 0.0, %v8596
        %8598 = vmatprep.mubr.bf16.mxu0 0
        %8599 = vmatmul.mubr.bf16.gmra.mrb[0].mxu0 %v4549
        %v8600 = vpop.f32.mrb[0].mxu0
        %v8601 = vadd.f32 0.0, %v8600
        %v8602 = vpop.f32.mrb[0].mxu0
        %v8603 = vadd.f32 0.0, %v8602
        %v8604 = vpop.f32.mrb[0].mxu0
        %v8605 = vadd.f32 0.0, %v8604
        %v8606 = vpop.f32.mrb[0].mxu0
        %v8607 = vadd.f32 0.0, %v8606
        %8608 = vmatprep.mubr.bf16.mxu0 0
        %8609 = vmatmul.mubr.bf16.gmra.mrb[0].mxu0 %v4552
        %v8610 = vpop.f32.mrb[0].mxu0
        %v8611 = vadd.f32 0.0, %v8610
        %v8612 = vpop.f32.mrb[0].mxu0
        %v8613 = vadd.f32 0.0, %v8612
        %v8614 = vpop.f32.mrb[0].mxu0
        %v8615 = vadd.f32 0.0, %v8614
        %v8616 = vpop.f32.mrb[0].mxu0
        %v8617 = vadd.f32 0.0, %v8616
        %8618 = vmatprep.mubr.bf16.mxu0 0
        %8619 = vmatmul.mubr.bf16.gmra.mrb[0].mxu0 %v4555
        %v8620 = vpop.f32.mrb[0].mxu0
        %v8621 = vadd.f32 0.0, %v8620
        %v8622 = vpop.f32.mrb[0].mxu0
        %v8623 = vadd.f32 0.0, %v8622
        %v8624 = vpop.f32.mrb[0].mxu0
        %v8625 = vadd.f32 0.0, %v8624
        %v8626 = vpop.f32.mrb[0].mxu0
        %v8627 = vadd.f32 0.0, %v8626
        %8628 = vmatprep.mubr.bf16.mxu0 0
        %8629 = vmatmul.mubr.bf16.gmra.mrb[0].mxu0 %v4558
        %v8630 = vpop.f32.mrb[0].mxu0
        %v8631 = vadd.f32 0.0, %v8630
        %v8632 = vpop.f32.mrb[0].mxu0
        %v8633 = vadd.f32 0.0, %v8632
        %v8634 = vpop.f32.mrb[0].mxu0
        %v8635 = vadd.f32 0.0, %v8634
        %v8636 = vpop.f32.mrb[0].mxu0
        %v8637 = vadd.f32 0.0, %v8636
        %8638 = vmatprep.mubr.bf16.mxu0 0
        %8639 = vmatmul.mubr.bf16.gmra.mrb[0].mxu0 %v4561
        %v8640 = vpop.f32.mrb[0].mxu0
        %v8641 = vadd.f32 0.0, %v8640
        %v8642 = vpop.f32.mrb[0].mxu0
        %v8643 = vadd.f32 0.0, %v8642
        %v8644 = vpop.f32.mrb[0].mxu0
        %v8645 = vadd.f32 0.0, %v8644
        %v8646 = vpop.f32.mrb[0].mxu0
        %v8647 = vadd.f32 0.0, %v8646
        %8648 = vmatprep.mubr.bf16.mxu0 0
        %8649 = vmatmul.mubr.bf16.gmra.mrb[0].mxu0 %v4564
        %v8650 = vpop.f32.mrb[0].mxu0
        %v8651 = vadd.f32 0.0, %v8650
        %v8652 = vpop.f32.mrb[0].mxu0
        %v8653 = vadd.f32 0.0, %v8652
        %v8654 = vpop.f32.mrb[0].mxu0
        %v8655 = vadd.f32 0.0, %v8654
        %v8656 = vpop.f32.mrb[0].mxu0
        %v8657 = vadd.f32 0.0, %v8656
        %8658 = vmatprep.mubr.bf16.mxu0 0
        %8659 = vmatmul.mubr.bf16.gmra.mrb[0].mxu0 %v4567
        %v8660 = vpop.f32.mrb[0].mxu0
        %v8661 = vadd.f32 0.0, %v8660
        %v8662 = vpop.f32.mrb[0].mxu0
        %v8663 = vadd.f32 0.0, %v8662
        %v8664 = vpop.f32.mrb[0].mxu0
        %v8665 = vadd.f32 0.0, %v8664
        %v8666 = vpop.f32.mrb[0].mxu0
        %v8667 = vadd.f32 0.0, %v8666
        %8668 = vmatprep.mubr.bf16.mxu0 0
        %8669 = vmatmul.mubr.bf16.gmra.mrb[0].mxu0 %v4570
        %v8670 = vpop.f32.mrb[0].mxu0
        %v8671 = vadd.f32 0.0, %v8670
        %v8672 = vpop.f32.mrb[0].mxu0
        %v8673 = vadd.f32 0.0, %v8672
        %v8674 = vpop.f32.mrb[0].mxu0
        %v8675 = vadd.f32 0.0, %v8674
        %v8676 = vpop.f32.mrb[0].mxu0
        %v8677 = vadd.f32 0.0, %v8676
        %8678 = vmatprep.mubr.bf16.mxu0 0
        %8679 = vmatmul.mubr.bf16.gmra.mrb[0].mxu0 %v4573
        %v8680 = vpop.f32.mrb[0].mxu0
        %v8681 = vadd.f32 0.0, %v8680
        %v8682 = vpop.f32.mrb[0].mxu0
        %v8683 = vadd.f32 0.0, %v8682
        %v8684 = vpop.f32.mrb[0].mxu0
        %v8685 = vadd.f32 0.0, %v8684
        %v8686 = vpop.f32.mrb[0].mxu0
        %v8687 = vadd.f32 0.0, %v8686
        %8688 = vdwg.mxu0
        %8689 = vmatprep.subr.bf16.mxu0 %v8228
        %8690 = vmatpush1.bf16.msra.mxu0 %v8227
        %8691 = vmatprep.subr.bf16.mxu0 %v8255
        %8692 = vmatpush1.bf16.msra.mxu0 %v8252
        %8693 = vmatprep.subr.bf16.mxu0 0
        %8694 = vmatpush1.bf16.msra.mxu0 0
        %8695 = vmatprep.subr.bf16.mxu0 0
        %8696 = vmatpush1.bf16.msra.mxu0 0
        %8697 = vmatprep.subr.bf16.mxu0 0
        %8698 = vmatpush1.bf16.msra.mxu0 0
        %8699 = vmatprep.subr.bf16.mxu0 0
        %8700 = vmatpush1.bf16.msra.mxu0 0
        %8701 = vmatprep.subr.bf16.mxu0 0
        %8702 = vmatpush1.bf16.msra.mxu0 0
        %8703 = vmatprep.subr.bf16.mxu0 0
        %8704 = vmatpush1.bf16.msra.mxu0 0
        %8705 = vmatprep.subr.bf16.mxu0 0
        %8706 = vmatpush1.bf16.msra.mxu0 0
        %8707 = vmatprep.subr.bf16.mxu0 0
        %8708 = vmatpush1.bf16.msra.mxu0 0
        %8709 = vmatprep.subr.bf16.mxu0 0
        %8710 = vmatpush1.bf16.msra.mxu0 0
        %8711 = vmatprep.subr.bf16.mxu0 0
        %8712 = vmatpush1.bf16.msra.mxu0 0
        %8713 = vmatprep.subr.bf16.mxu0 0
        %8714 = vmatpush1.bf16.msra.mxu0 0
        %8715 = vmatprep.subr.bf16.mxu0 0
        %8716 = vmatpush1.bf16.msra.mxu0 0
        %8717 = vmatprep.subr.bf16.mxu0 0
        %8718 = vmatpush1.bf16.msra.mxu0 0
        %8719 = vmatprep.subr.bf16.mxu0 0
        %8720 = vmatpush1.bf16.msra.mxu0 0
        %8721 = vmatprep.mubr.bf16.mxu0 0
        %8722 = vmatmul.mubr.bf16.gmra.mrb[0].mxu0 %v4522
        %v8723 = vpop.f32.mrb[0].mxu0
        %v8724 = vadd.f32 0.0, %v8723
        %v8725 = vpop.f32.mrb[0].mxu0
        %v8726 = vadd.f32 0.0, %v8725
        %v8727 = vpop.f32.mrb[0].mxu0
        %v8728 = vadd.f32 0.0, %v8727
        %v8729 = vpop.f32.mrb[0].mxu0
        %v8730 = vadd.f32 0.0, %v8729
        %8731 = vmatprep.mubr.bf16.mxu0 0
        %8732 = vmatmul.mubr.bf16.gmra.mrb[0].mxu0 %v4525
        %v8733 = vpop.f32.mrb[0].mxu0
        %v8734 = vadd.f32 0.0, %v8733
        %v8735 = vpop.f32.mrb[0].mxu0
        %v8736 = vadd.f32 0.0, %v8735
        %v8737 = vpop.f32.mrb[0].mxu0
        %v8738 = vadd.f32 0.0, %v8737
        %v8739 = vpop.f32.mrb[0].mxu0
        %v8740 = vadd.f32 0.0, %v8739
        %8741 = vmatprep.mubr.bf16.mxu0 0
        %8742 = vmatmul.mubr.bf16.gmra.mrb[0].mxu0 %v4528
        %v8743 = vpop.f32.mrb[0].mxu0
        %v8744 = vadd.f32 0.0, %v8743
        %v8745 = vpop.f32.mrb[0].mxu0
        %v8746 = vadd.f32 0.0, %v8745
        %v8747 = vpop.f32.mrb[0].mxu0
        %v8748 = vadd.f32 0.0, %v8747
        %v8749 = vpop.f32.mrb[0].mxu0
        %v8750 = vadd.f32 0.0, %v8749
        %8751 = vmatprep.mubr.bf16.mxu0 0
        %8752 = vmatmul.mubr.bf16.gmra.mrb[0].mxu0 %v4531
        %v8753 = vpop.f32.mrb[0].mxu0
        %v8754 = vadd.f32 0.0, %v8753
        %v8755 = vpop.f32.mrb[0].mxu0
        %v8756 = vadd.f32 0.0, %v8755
        %v8757 = vpop.f32.mrb[0].mxu0
        %v8758 = vadd.f32 0.0, %v8757
        %v8759 = vpop.f32.mrb[0].mxu0
        %v8760 = vadd.f32 0.0, %v8759
        %8761 = vmatprep.mubr.bf16.mxu0 0
        %8762 = vmatmul.mubr.bf16.gmra.mrb[0].mxu0 %v4534
        %v8763 = vpop.f32.mrb[0].mxu0
        %v8764 = vadd.f32 0.0, %v8763
        %v8765 = vpop.f32.mrb[0].mxu0
        %v8766 = vadd.f32 0.0, %v8765
        %v8767 = vpop.f32.mrb[0].mxu0
        %v8768 = vadd.f32 0.0, %v8767
        %v8769 = vpop.f32.mrb[0].mxu0
        %v8770 = vadd.f32 0.0, %v8769
        %8771 = vmatprep.mubr.bf16.mxu0 0
        %8772 = vmatmul.mubr.bf16.gmra.mrb[0].mxu0 %v4537
        %v8773 = vpop.f32.mrb[0].mxu0
        %v8774 = vadd.f32 0.0, %v8773
        %v8775 = vpop.f32.mrb[0].mxu0
        %v8776 = vadd.f32 0.0, %v8775
        %v8777 = vpop.f32.mrb[0].mxu0
        %v8778 = vadd.f32 0.0, %v8777
        %v8779 = vpop.f32.mrb[0].mxu0
        %v8780 = vadd.f32 0.0, %v8779
        %8781 = vmatprep.mubr.bf16.mxu0 0
        %8782 = vmatmul.mubr.bf16.gmra.mrb[0].mxu0 %v4540
        %v8783 = vpop.f32.mrb[0].mxu0
        %v8784 = vadd.f32 0.0, %v8783
        %v8785 = vpop.f32.mrb[0].mxu0
        %v8786 = vadd.f32 0.0, %v8785
        %v8787 = vpop.f32.mrb[0].mxu0
        %v8788 = vadd.f32 0.0, %v8787
        %v8789 = vpop.f32.mrb[0].mxu0
        %v8790 = vadd.f32 0.0, %v8789
        %8791 = vmatprep.mubr.bf16.mxu0 0
        %8792 = vmatmul.mubr.bf16.gmra.mrb[0].mxu0 %v4543
        %v8793 = vpop.f32.mrb[0].mxu0
        %v8794 = vadd.f32 0.0, %v8793
        %v8795 = vpop.f32.mrb[0].mxu0
        %v8796 = vadd.f32 0.0, %v8795
        %v8797 = vpop.f32.mrb[0].mxu0
        %v8798 = vadd.f32 0.0, %v8797
        %v8799 = vpop.f32.mrb[0].mxu0
        %v8800 = vadd.f32 0.0, %v8799
        %8801 = vmatprep.mubr.bf16.mxu0 0
        %8802 = vmatmul.mubr.bf16.gmra.mrb[0].mxu0 %v4546
        %v8803 = vpop.f32.mrb[0].mxu0
        %v8804 = vadd.f32 0.0, %v8803
        %v8805 = vpop.f32.mrb[0].mxu0
        %v8806 = vadd.f32 0.0, %v8805
        %v8807 = vpop.f32.mrb[0].mxu0
        %v8808 = vadd.f32 0.0, %v8807
        %v8809 = vpop.f32.mrb[0].mxu0
        %v8810 = vadd.f32 0.0, %v8809
        %8811 = vmatprep.mubr.bf16.mxu0 0
        %8812 = vmatmul.mubr.bf16.gmra.mrb[0].mxu0 %v4549
        %v8813 = vpop.f32.mrb[0].mxu0
        %v8814 = vadd.f32 0.0, %v8813
        %v8815 = vpop.f32.mrb[0].mxu0
        %v8816 = vadd.f32 0.0, %v8815
        %v8817 = vpop.f32.mrb[0].mxu0
        %v8818 = vadd.f32 0.0, %v8817
        %v8819 = vpop.f32.mrb[0].mxu0
        %v8820 = vadd.f32 0.0, %v8819
        %8821 = vmatprep.mubr.bf16.mxu0 0
        %8822 = vmatmul.mubr.bf16.gmra.mrb[0].mxu0 %v4552
        %v8823 = vpop.f32.mrb[0].mxu0
        %v8824 = vadd.f32 0.0, %v8823
        %v8825 = vpop.f32.mrb[0].mxu0
        %v8826 = vadd.f32 0.0, %v8825
        %v8827 = vpop.f32.mrb[0].mxu0
        %v8828 = vadd.f32 0.0, %v8827
        %v8829 = vpop.f32.mrb[0].mxu0
        %v8830 = vadd.f32 0.0, %v8829
        %8831 = vmatprep.mubr.bf16.mxu0 0
        %8832 = vmatmul.mubr.bf16.gmra.mrb[0].mxu0 %v4555
        %v8833 = vpop.f32.mrb[0].mxu0
        %v8834 = vadd.f32 0.0, %v8833
        %v8835 = vpop.f32.mrb[0].mxu0
        %v8836 = vadd.f32 0.0, %v8835
        %v8837 = vpop.f32.mrb[0].mxu0
        %v8838 = vadd.f32 0.0, %v8837
        %v8839 = vpop.f32.mrb[0].mxu0
        %v8840 = vadd.f32 0.0, %v8839
        %8841 = vmatprep.mubr.bf16.mxu0 0
        %8842 = vmatmul.mubr.bf16.gmra.mrb[0].mxu0 %v4558
        %v8843 = vpop.f32.mrb[0].mxu0
        %v8844 = vadd.f32 0.0, %v8843
        %v8845 = vpop.f32.mrb[0].mxu0
        %v8846 = vadd.f32 0.0, %v8845
        %v8847 = vpop.f32.mrb[0].mxu0
        %v8848 = vadd.f32 0.0, %v8847
        %v8849 = vpop.f32.mrb[0].mxu0
        %v8850 = vadd.f32 0.0, %v8849
        %8851 = vmatprep.mubr.bf16.mxu0 0
        %8852 = vmatmul.mubr.bf16.gmra.mrb[0].mxu0 %v4561
        %v8853 = vpop.f32.mrb[0].mxu0
        %v8854 = vadd.f32 0.0, %v8853
        %v8855 = vpop.f32.mrb[0].mxu0
        %v8856 = vadd.f32 0.0, %v8855
        %v8857 = vpop.f32.mrb[0].mxu0
        %v8858 = vadd.f32 0.0, %v8857
        %v8859 = vpop.f32.mrb[0].mxu0
        %v8860 = vadd.f32 0.0, %v8859
        %8861 = vmatprep.mubr.bf16.mxu0 0
        %8862 = vmatmul.mubr.bf16.gmra.mrb[0].mxu0 %v4564
        %v8863 = vpop.f32.mrb[0].mxu0
        %v8864 = vadd.f32 0.0, %v8863
        %v8865 = vpop.f32.mrb[0].mxu0
        %v8866 = vadd.f32 0.0, %v8865
        %v8867 = vpop.f32.mrb[0].mxu0
        %v8868 = vadd.f32 0.0, %v8867
        %v8869 = vpop.f32.mrb[0].mxu0
        %v8870 = vadd.f32 0.0, %v8869
        %8871 = vmatprep.mubr.bf16.mxu0 0
        %8872 = vmatmul.mubr.bf16.gmra.mrb[0].mxu0 %v4567
        %v8873 = vpop.f32.mrb[0].mxu0
        %v8874 = vadd.f32 0.0, %v8873
        %v8875 = vpop.f32.mrb[0].mxu0
        %v8876 = vadd.f32 0.0, %v8875
        %v8877 = vpop.f32.mrb[0].mxu0
        %v8878 = vadd.f32 0.0, %v8877
        %v8879 = vpop.f32.mrb[0].mxu0
        %v8880 = vadd.f32 0.0, %v8879
        %8881 = vmatprep.mubr.bf16.mxu0 0
        %8882 = vmatmul.mubr.bf16.gmra.mrb[0].mxu0 %v4570
        %v8883 = vpop.f32.mrb[0].mxu0
        %v8884 = vadd.f32 0.0, %v8883
        %v8885 = vpop.f32.mrb[0].mxu0
        %v8886 = vadd.f32 0.0, %v8885
        %v8887 = vpop.f32.mrb[0].mxu0
        %v8888 = vadd.f32 0.0, %v8887
        %v8889 = vpop.f32.mrb[0].mxu0
        %v8890 = vadd.f32 0.0, %v8889
        %8891 = vmatprep.mubr.bf16.mxu0 0
        %8892 = vmatmul.mubr.bf16.gmra.mrb[0].mxu0 %v4573
        %v8893 = vpop.f32.mrb[0].mxu0
        %v8894 = vadd.f32 0.0, %v8893
        %v8895 = vpop.f32.mrb[0].mxu0
        %v8896 = vadd.f32 0.0, %v8895
        %v8897 = vpop.f32.mrb[0].mxu0
        %v8898 = vadd.f32 0.0, %v8897
        %v8899 = vpop.f32.mrb[0].mxu0
        %v8900 = vadd.f32 0.0, %v8899
        %8901 = vdwg.mxu0
        %8902 = vmatprep.subr.bf16.mxu0 %v8230
        %8903 = vmatpush1.bf16.msra.mxu0 %v8229
        %8904 = vmatprep.subr.bf16.mxu0 %v8261
        %8905 = vmatpush1.bf16.msra.mxu0 %v8258
        %8906 = vmatprep.subr.bf16.mxu0 0
        %8907 = vmatpush1.bf16.msra.mxu0 0
        %8908 = vmatprep.subr.bf16.mxu0 0
        %8909 = vmatpush1.bf16.msra.mxu0 0
        %8910 = vmatprep.subr.bf16.mxu0 0
        %8911 = vmatpush1.bf16.msra.mxu0 0
        %8912 = vmatprep.subr.bf16.mxu0 0
        %8913 = vmatpush1.bf16.msra.mxu0 0
        %8914 = vmatprep.subr.bf16.mxu0 0
        %8915 = vmatpush1.bf16.msra.mxu0 0
        %8916 = vmatprep.subr.bf16.mxu0 0
        %8917 = vmatpush1.bf16.msra.mxu0 0
        %8918 = vmatprep.subr.bf16.mxu0 0
        %8919 = vmatpush1.bf16.msra.mxu0 0
        %8920 = vmatprep.subr.bf16.mxu0 0
        %8921 = vmatpush1.bf16.msra.mxu0 0
        %8922 = vmatprep.subr.bf16.mxu0 0
        %8923 = vmatpush1.bf16.msra.mxu0 0
        %8924 = vmatprep.subr.bf16.mxu0 0
        %8925 = vmatpush1.bf16.msra.mxu0 0
        %8926 = vmatprep.subr.bf16.mxu0 0
        %8927 = vmatpush1.bf16.msra.mxu0 0
        %8928 = vmatprep.subr.bf16.mxu0 0
        %8929 = vmatpush1.bf16.msra.mxu0 0
        %8930 = vmatprep.subr.bf16.mxu0 0
        %8931 = vmatpush1.bf16.msra.mxu0 0
        %8932 = vmatprep.subr.bf16.mxu0 0
        %8933 = vmatpush1.bf16.msra.mxu0 0
        %8934 = vmatprep.mubr.bf16.mxu0 0
        %8935 = vmatmul.mubr.bf16.gmra.mrb[0].mxu0 %v4522
        %v8936 = vpop.f32.mrb[0].mxu0
        %v8937 = vadd.f32 0.0, %v8936
        %v8938 = vpop.f32.mrb[0].mxu0
        %v8939 = vadd.f32 0.0, %v8938
        %v8940 = vpop.f32.mrb[0].mxu0
        %v8941 = vadd.f32 0.0, %v8940
        %v8942 = vpop.f32.mrb[0].mxu0
        %v8943 = vadd.f32 0.0, %v8942
        %8944 = vmatprep.mubr.bf16.mxu0 0
        %8945 = vmatmul.mubr.bf16.gmra.mrb[0].mxu0 %v4525
        %v8946 = vpop.f32.mrb[0].mxu0
        %v8947 = vadd.f32 0.0, %v8946
        %v8948 = vpop.f32.mrb[0].mxu0
        %v8949 = vadd.f32 0.0, %v8948
        %v8950 = vpop.f32.mrb[0].mxu0
        %v8951 = vadd.f32 0.0, %v8950
        %v8952 = vpop.f32.mrb[0].mxu0
        %v8953 = vadd.f32 0.0, %v8952
        %8954 = vmatprep.mubr.bf16.mxu0 0
        %8955 = vmatmul.mubr.bf16.gmra.mrb[0].mxu0 %v4528
        %v8956 = vpop.f32.mrb[0].mxu0
        %v8957 = vadd.f32 0.0, %v8956
        %v8958 = vpop.f32.mrb[0].mxu0
        %v8959 = vadd.f32 0.0, %v8958
        %v8960 = vpop.f32.mrb[0].mxu0
        %v8961 = vadd.f32 0.0, %v8960
        %v8962 = vpop.f32.mrb[0].mxu0
        %v8963 = vadd.f32 0.0, %v8962
        %8964 = vmatprep.mubr.bf16.mxu0 0
        %8965 = vmatmul.mubr.bf16.gmra.mrb[0].mxu0 %v4531
        %v8966 = vpop.f32.mrb[0].mxu0
        %v8967 = vadd.f32 0.0, %v8966
        %v8968 = vpop.f32.mrb[0].mxu0
        %v8969 = vadd.f32 0.0, %v8968
        %v8970 = vpop.f32.mrb[0].mxu0
        %v8971 = vadd.f32 0.0, %v8970
        %v8972 = vpop.f32.mrb[0].mxu0
        %v8973 = vadd.f32 0.0, %v8972
        %8974 = vmatprep.mubr.bf16.mxu0 0
        %8975 = vmatmul.mubr.bf16.gmra.mrb[0].mxu0 %v4534
        %v8976 = vpop.f32.mrb[0].mxu0
        %v8977 = vadd.f32 0.0, %v8976
        %v8978 = vpop.f32.mrb[0].mxu0
        %v8979 = vadd.f32 0.0, %v8978
        %v8980 = vpop.f32.mrb[0].mxu0
        %v8981 = vadd.f32 0.0, %v8980
        %v8982 = vpop.f32.mrb[0].mxu0
        %v8983 = vadd.f32 0.0, %v8982
        %8984 = vmatprep.mubr.bf16.mxu0 0
        %8985 = vmatmul.mubr.bf16.gmra.mrb[0].mxu0 %v4537
        %v8986 = vpop.f32.mrb[0].mxu0
        %v8987 = vadd.f32 0.0, %v8986
        %v8988 = vpop.f32.mrb[0].mxu0
        %v8989 = vadd.f32 0.0, %v8988
        %v8990 = vpop.f32.mrb[0].mxu0
        %v8991 = vadd.f32 0.0, %v8990
        %v8992 = vpop.f32.mrb[0].mxu0
        %v8993 = vadd.f32 0.0, %v8992
        %8994 = vmatprep.mubr.bf16.mxu0 0
        %8995 = vmatmul.mubr.bf16.gmra.mrb[0].mxu0 %v4540
        %v8996 = vpop.f32.mrb[0].mxu0
        %v8997 = vadd.f32 0.0, %v8996
        %v8998 = vpop.f32.mrb[0].mxu0
        %v8999 = vadd.f32 0.0, %v8998
        %v9000 = vpop.f32.mrb[0].mxu0
        %v9001 = vadd.f32 0.0, %v9000
        %v9002 = vpop.f32.mrb[0].mxu0
        %v9003 = vadd.f32 0.0, %v9002
        %9004 = vmatprep.mubr.bf16.mxu0 0
        %9005 = vmatmul.mubr.bf16.gmra.mrb[0].mxu0 %v4543
        %v9006 = vpop.f32.mrb[0].mxu0
        %v9007 = vadd.f32 0.0, %v9006
        %v9008 = vpop.f32.mrb[0].mxu0
        %v9009 = vadd.f32 0.0, %v9008
        %v9010 = vpop.f32.mrb[0].mxu0
        %v9011 = vadd.f32 0.0, %v9010
        %v9012 = vpop.f32.mrb[0].mxu0
        %v9013 = vadd.f32 0.0, %v9012
        %9014 = vmatprep.mubr.bf16.mxu0 0
        %9015 = vmatmul.mubr.bf16.gmra.mrb[0].mxu0 %v4546
        %v9016 = vpop.f32.mrb[0].mxu0
        %v9017 = vadd.f32 0.0, %v9016
        %v9018 = vpop.f32.mrb[0].mxu0
        %v9019 = vadd.f32 0.0, %v9018
        %v9020 = vpop.f32.mrb[0].mxu0
        %v9021 = vadd.f32 0.0, %v9020
        %v9022 = vpop.f32.mrb[0].mxu0
        %v9023 = vadd.f32 0.0, %v9022
        %9024 = vmatprep.mubr.bf16.mxu0 0
        %9025 = vmatmul.mubr.bf16.gmra.mrb[0].mxu0 %v4549
        %v9026 = vpop.f32.mrb[0].mxu0
        %v9027 = vadd.f32 0.0, %v9026
        %v9028 = vpop.f32.mrb[0].mxu0
        %v9029 = vadd.f32 0.0, %v9028
        %v9030 = vpop.f32.mrb[0].mxu0
        %v9031 = vadd.f32 0.0, %v9030
        %v9032 = vpop.f32.mrb[0].mxu0
        %v9033 = vadd.f32 0.0, %v9032
        %9034 = vmatprep.mubr.bf16.mxu0 0
        %9035 = vmatmul.mubr.bf16.gmra.mrb[0].mxu0 %v4552
        %v9036 = vpop.f32.mrb[0].mxu0
        %v9037 = vadd.f32 0.0, %v9036
        %v9038 = vpop.f32.mrb[0].mxu0
        %v9039 = vadd.f32 0.0, %v9038
        %v9040 = vpop.f32.mrb[0].mxu0
        %v9041 = vadd.f32 0.0, %v9040
        %v9042 = vpop.f32.mrb[0].mxu0
        %v9043 = vadd.f32 0.0, %v9042
        %9044 = vmatprep.mubr.bf16.mxu0 0
        %9045 = vmatmul.mubr.bf16.gmra.mrb[0].mxu0 %v4555
        %v9046 = vpop.f32.mrb[0].mxu0
        %v9047 = vadd.f32 0.0, %v9046
        %v9048 = vpop.f32.mrb[0].mxu0
        %v9049 = vadd.f32 0.0, %v9048
        %v9050 = vpop.f32.mrb[0].mxu0
        %v9051 = vadd.f32 0.0, %v9050
        %v9052 = vpop.f32.mrb[0].mxu0
        %v9053 = vadd.f32 0.0, %v9052
        %9054 = vmatprep.mubr.bf16.mxu0 0
        %9055 = vmatmul.mubr.bf16.gmra.mrb[0].mxu0 %v4558
        %v9056 = vpop.f32.mrb[0].mxu0
        %v9057 = vadd.f32 0.0, %v9056
        %v9058 = vpop.f32.mrb[0].mxu0
        %v9059 = vadd.f32 0.0, %v9058
        %v9060 = vpop.f32.mrb[0].mxu0
        %v9061 = vadd.f32 0.0, %v9060
        %v9062 = vpop.f32.mrb[0].mxu0
        %v9063 = vadd.f32 0.0, %v9062
        %9064 = vmatprep.mubr.bf16.mxu0 0
        %9065 = vmatmul.mubr.bf16.gmra.mrb[0].mxu0 %v4561
        %v9066 = vpop.f32.mrb[0].mxu0
        %v9067 = vadd.f32 0.0, %v9066
        %v9068 = vpop.f32.mrb[0].mxu0
        %v9069 = vadd.f32 0.0, %v9068
        %v9070 = vpop.f32.mrb[0].mxu0
        %v9071 = vadd.f32 0.0, %v9070
        %v9072 = vpop.f32.mrb[0].mxu0
        %v9073 = vadd.f32 0.0, %v9072
        %9074 = vmatprep.mubr.bf16.mxu0 0
        %9075 = vmatmul.mubr.bf16.gmra.mrb[0].mxu0 %v4564
        %v9076 = vpop.f32.mrb[0].mxu0
        %v9077 = vadd.f32 0.0, %v9076
        %v9078 = vpop.f32.mrb[0].mxu0
        %v9079 = vadd.f32 0.0, %v9078
        %v9080 = vpop.f32.mrb[0].mxu0
        %v9081 = vadd.f32 0.0, %v9080
        %v9082 = vpop.f32.mrb[0].mxu0
        %v9083 = vadd.f32 0.0, %v9082
        %9084 = vmatprep.mubr.bf16.mxu0 0
        %9085 = vmatmul.mubr.bf16.gmra.mrb[0].mxu0 %v4567
        %v9086 = vpop.f32.mrb[0].mxu0
        %v9087 = vadd.f32 0.0, %v9086
        %v9088 = vpop.f32.mrb[0].mxu0
        %v9089 = vadd.f32 0.0, %v9088
        %v9090 = vpop.f32.mrb[0].mxu0
        %v9091 = vadd.f32 0.0, %v9090
        %v9092 = vpop.f32.mrb[0].mxu0
        %v9093 = vadd.f32 0.0, %v9092
        %9094 = vmatprep.mubr.bf16.mxu0 0
        %9095 = vmatmul.mubr.bf16.gmra.mrb[0].mxu0 %v4570
        %v9096 = vpop.f32.mrb[0].mxu0
        %v9097 = vadd.f32 0.0, %v9096
        %v9098 = vpop.f32.mrb[0].mxu0
        %v9099 = vadd.f32 0.0, %v9098
        %v9100 = vpop.f32.mrb[0].mxu0
        %v9101 = vadd.f32 0.0, %v9100
        %v9102 = vpop.f32.mrb[0].mxu0
        %v9103 = vadd.f32 0.0, %v9102
        %9104 = vmatprep.mubr.bf16.mxu0 0
        %9105 = vmatmul.mubr.bf16.gmra.mrb[0].mxu0 %v4573
        %v9106 = vpop.f32.mrb[0].mxu0
        %v9107 = vadd.f32 0.0, %v9106
        %v9108 = vpop.f32.mrb[0].mxu0
        %v9109 = vadd.f32 0.0, %v9108
        %v9110 = vpop.f32.mrb[0].mxu0
        %v9111 = vadd.f32 0.0, %v9110
        %v9112 = vpop.f32.mrb[0].mxu0
        %v9113 = vadd.f32 0.0, %v9112
        %9114 = vdwg.mxu0
        %v9115 = vld [vmem:[%s18] sm:$0xff]
        %v9116 = vld [vmem:[%s18 + $0x8] sm:$0xff]
        %v9117 = vld [vmem:[%s18 + $0x10] sm:$0xff]
        %v9118 = vld [vmem:[%s18 + $0x18] sm:$0xff]
        %v9119 = vld [vmem:[%s18 + $0x20] sm:$0xff]
        %v9120 = vld [vmem:[%s18 + $0x28] sm:$0xff]
        %v9121 = vld [vmem:[%s18 + $0x30] sm:$0xff]
        %v9122 = vld [vmem:[%s18 + $0x38] sm:$0xff]
        %v9123 = vld [vmem:[%s18 + $0x40] sm:$0x1]
        %v9124 = vld [vmem:[%s18 + $0x48] sm:$0x1]
        %v9125 = vld [vmem:[%s18 + $0x50] sm:$0x1]
        %v9126 = vld [vmem:[%s18 + $0x58] sm:$0x1]
        %v9127 = vld [vmem:[%s18 + $0x60] sm:$0x1]
        %v9128 = vld [vmem:[%s18 + $0x68] sm:$0x1]
        %v9129 = vld [vmem:[%s18 + $0x70] sm:$0x1]
        %v9130 = vld [vmem:[%s18 + $0x78] sm:$0x1]
        %v9131 = vlaneseq
        %v9132 = vshrl.u32 %v9131, 7
        %v9133 = vsub.s32 0, %v9132
        %v9134 = vrot.slane %v9115, %v9133
        %v9135 = vlaneseq
        %v9136 = vshrl.u32 %v9135, 7
        %v9137 = vsub.s32 0, %v9136
        %v9138 = vrot.slane %v9116, %v9137
        %v9139 = vlaneseq
        %v9140 = vshrl.u32 %v9139, 7
        %v9141 = vsub.s32 0, %v9140
        %v9142 = vrot.slane %v9117, %v9141
        %v9143 = vlaneseq
        %v9144 = vshrl.u32 %v9143, 7
        %v9145 = vsub.s32 0, %v9144
        %v9146 = vrot.slane %v9118, %v9145
        %v9147 = vlaneseq
        %v9148 = vshrl.u32 %v9147, 7
        %v9149 = vsub.s32 0, %v9148
        %v9150 = vrot.slane %v9119, %v9149
        %v9151 = vlaneseq
        %v9152 = vshrl.u32 %v9151, 7
        %v9153 = vsub.s32 0, %v9152
        %v9154 = vrot.slane %v9120, %v9153
        %v9155 = vlaneseq
        %v9156 = vshrl.u32 %v9155, 7
        %v9157 = vsub.s32 0, %v9156
        %v9158 = vrot.slane %v9121, %v9157
        %v9159 = vlaneseq
        %v9160 = vshrl.u32 %v9159, 7
        %v9161 = vsub.s32 0, %v9160
        %v9162 = vrot.slane %v9122, %v9161
        %v9163 = vmul.f32 %v8298, %v9134
        %v9164 = vmul.f32 %v8300, %v9138
        %v9165 = vmul.f32 %v8511, %v9142
        %v9166 = vmul.f32 %v8513, %v9146
        %v9167 = vmul.f32 %v8724, %v9150
        %v9168 = vmul.f32 %v8726, %v9154
        %v9169 = vmul.f32 %v8937, %v9158
        %v9170 = vmul.f32 %v8939, %v9162
        %v9171 = vmul.f32 %v8302, %v9134
        %v9172 = vmul.f32 %v8304, %v9138
        %v9173 = vmul.f32 %v8515, %v9142
        %v9174 = vmul.f32 %v8517, %v9146
        %v9175 = vmul.f32 %v8728, %v9150
        %v9176 = vmul.f32 %v8730, %v9154
        %v9177 = vmul.f32 %v8941, %v9158
        %v9178 = vmul.f32 %v8943, %v9162
        %v9179 = vmul.f32 %v8308, %v9134
        %v9180 = vmul.f32 %v8310, %v9138
        %v9181 = vmul.f32 %v8521, %v9142
        %v9182 = vmul.f32 %v8523, %v9146
        %v9183 = vmul.f32 %v8734, %v9150
        %v9184 = vmul.f32 %v8736, %v9154
        %v9185 = vmul.f32 %v8947, %v9158
        %v9186 = vmul.f32 %v8949, %v9162
        %v9187 = vmul.f32 %v8312, %v9134
        %v9188 = vmul.f32 %v8314, %v9138
        %v9189 = vmul.f32 %v8525, %v9142
        %v9190 = vmul.f32 %v8527, %v9146
        %v9191 = vmul.f32 %v8738, %v9150
        %v9192 = vmul.f32 %v8740, %v9154
        %v9193 = vmul.f32 %v8951, %v9158
        %v9194 = vmul.f32 %v8953, %v9162
        %v9195 = vlaneseq
        %v9196 = vshrl.u32 %v9195, 7
        %v9197 = vsub.s32 1, %v9196
        %v9198 = vrot.slane %v9115, %v9197
        %v9199 = vlaneseq
        %v9200 = vshrl.u32 %v9199, 7
        %v9201 = vsub.s32 1, %v9200
        %v9202 = vrot.slane %v9116, %v9201
        %v9203 = vlaneseq
        %v9204 = vshrl.u32 %v9203, 7
        %v9205 = vsub.s32 1, %v9204
        %v9206 = vrot.slane %v9117, %v9205
        %v9207 = vlaneseq
        %v9208 = vshrl.u32 %v9207, 7
        %v9209 = vsub.s32 1, %v9208
        %v9210 = vrot.slane %v9118, %v9209
        %v9211 = vlaneseq
        %v9212 = vshrl.u32 %v9211, 7
        %v9213 = vsub.s32 1, %v9212
        %v9214 = vrot.slane %v9119, %v9213
        %v9215 = vlaneseq
        %v9216 = vshrl.u32 %v9215, 7
        %v9217 = vsub.s32 1, %v9216
        %v9218 = vrot.slane %v9120, %v9217
        %v9219 = vlaneseq
        %v9220 = vshrl.u32 %v9219, 7
        %v9221 = vsub.s32 1, %v9220
        %v9222 = vrot.slane %v9121, %v9221
        %v9223 = vlaneseq
        %v9224 = vshrl.u32 %v9223, 7
        %v9225 = vsub.s32 1, %v9224
        %v9226 = vrot.slane %v9122, %v9225
        %v9227 = vmul.f32 %v8318, %v9198
        %v9228 = vmul.f32 %v8320, %v9202
        %v9229 = vmul.f32 %v8531, %v9206
        %v9230 = vmul.f32 %v8533, %v9210
        %v9231 = vmul.f32 %v8744, %v9214
        %v9232 = vmul.f32 %v8746, %v9218
        %v9233 = vmul.f32 %v8957, %v9222
        %v9234 = vmul.f32 %v8959, %v9226
        %v9235 = vmul.f32 %v8322, %v9198
        %v9236 = vmul.f32 %v8324, %v9202
        %v9237 = vmul.f32 %v8535, %v9206
        %v9238 = vmul.f32 %v8537, %v9210
        %v9239 = vmul.f32 %v8748, %v9214
        %v9240 = vmul.f32 %v8750, %v9218
        %v9241 = vmul.f32 %v8961, %v9222
        %v9242 = vmul.f32 %v8963, %v9226
        %v9243 = vmul.f32 %v8328, %v9198
        %v9244 = vmul.f32 %v8330, %v9202
        %v9245 = vmul.f32 %v8541, %v9206
        %v9246 = vmul.f32 %v8543, %v9210
        %v9247 = vmul.f32 %v8754, %v9214
        %v9248 = vmul.f32 %v8756, %v9218
        %v9249 = vmul.f32 %v8967, %v9222
        %v9250 = vmul.f32 %v8969, %v9226
        %v9251 = vmul.f32 %v8332, %v9198
        %v9252 = vmul.f32 %v8334, %v9202
        %v9253 = vmul.f32 %v8545, %v9206
        %v9254 = vmul.f32 %v8547, %v9210
        %v9255 = vmul.f32 %v8758, %v9214
        %v9256 = vmul.f32 %v8760, %v9218
        %v9257 = vmul.f32 %v8971, %v9222
        %v9258 = vmul.f32 %v8973, %v9226
        %v9259 = vadd.f32 %v9163, %v9227
        %v9260 = vadd.f32 %v9164, %v9228
        %v9261 = vadd.f32 %v9165, %v9229
        %v9262 = vadd.f32 %v9166, %v9230
        %v9263 = vadd.f32 %v9167, %v9231
        %v9264 = vadd.f32 %v9168, %v9232
        %v9265 = vadd.f32 %v9169, %v9233
        %v9266 = vadd.f32 %v9170, %v9234
        %v9267 = vadd.f32 %v9171, %v9235
        %v9268 = vadd.f32 %v9172, %v9236
        %v9269 = vadd.f32 %v9173, %v9237
        %v9270 = vadd.f32 %v9174, %v9238
        %v9271 = vadd.f32 %v9175, %v9239
        %v9272 = vadd.f32 %v9176, %v9240
        %v9273 = vadd.f32 %v9177, %v9241
        %v9274 = vadd.f32 %v9178, %v9242
        %v9275 = vadd.f32 %v9179, %v9243
        %v9276 = vadd.f32 %v9180, %v9244
        %v9277 = vadd.f32 %v9181, %v9245
        %v9278 = vadd.f32 %v9182, %v9246
        %v9279 = vadd.f32 %v9183, %v9247
        %v9280 = vadd.f32 %v9184, %v9248
        %v9281 = vadd.f32 %v9185, %v9249
        %v9282 = vadd.f32 %v9186, %v9250
        %v9283 = vadd.f32 %v9187, %v9251
        %v9284 = vadd.f32 %v9188, %v9252
        %v9285 = vadd.f32 %v9189, %v9253
        %v9286 = vadd.f32 %v9190, %v9254
        %v9287 = vadd.f32 %v9191, %v9255
        %v9288 = vadd.f32 %v9192, %v9256
        %v9289 = vadd.f32 %v9193, %v9257
        %v9290 = vadd.f32 %v9194, %v9258
        %v9291 = vlaneseq
        %v9292 = vshrl.u32 %v9291, 7
        %v9293 = vsub.s32 2, %v9292
        %v9294 = vrot.slane %v9115, %v9293
        %v9295 = vlaneseq
        %v9296 = vshrl.u32 %v9295, 7
        %v9297 = vsub.s32 2, %v9296
        %v9298 = vrot.slane %v9116, %v9297
        %v9299 = vlaneseq
        %v9300 = vshrl.u32 %v9299, 7
        %v9301 = vsub.s32 2, %v9300
        %v9302 = vrot.slane %v9117, %v9301
        %v9303 = vlaneseq
        %v9304 = vshrl.u32 %v9303, 7
        %v9305 = vsub.s32 2, %v9304
        %v9306 = vrot.slane %v9118, %v9305
        %v9307 = vlaneseq
        %v9308 = vshrl.u32 %v9307, 7
        %v9309 = vsub.s32 2, %v9308
        %v9310 = vrot.slane %v9119, %v9309
        %v9311 = vlaneseq
        %v9312 = vshrl.u32 %v9311, 7
        %v9313 = vsub.s32 2, %v9312
        %v9314 = vrot.slane %v9120, %v9313
        %v9315 = vlaneseq
        %v9316 = vshrl.u32 %v9315, 7
        %v9317 = vsub.s32 2, %v9316
        %v9318 = vrot.slane %v9121, %v9317
        %v9319 = vlaneseq
        %v9320 = vshrl.u32 %v9319, 7
        %v9321 = vsub.s32 2, %v9320
        %v9322 = vrot.slane %v9122, %v9321
        %v9323 = vmul.f32 %v8338, %v9294
        %v9324 = vmul.f32 %v8340, %v9298
        %v9325 = vmul.f32 %v8551, %v9302
        %v9326 = vmul.f32 %v8553, %v9306
        %v9327 = vmul.f32 %v8764, %v9310
        %v9328 = vmul.f32 %v8766, %v9314
        %v9329 = vmul.f32 %v8977, %v9318
        %v9330 = vmul.f32 %v8979, %v9322
        %v9331 = vmul.f32 %v8342, %v9294
        %v9332 = vmul.f32 %v8344, %v9298
        %v9333 = vmul.f32 %v8555, %v9302
        %v9334 = vmul.f32 %v8557, %v9306
        %v9335 = vmul.f32 %v8768, %v9310
        %v9336 = vmul.f32 %v8770, %v9314
        %v9337 = vmul.f32 %v8981, %v9318
        %v9338 = vmul.f32 %v8983, %v9322
        %v9339 = vmul.f32 %v8348, %v9294
        %v9340 = vmul.f32 %v8350, %v9298
        %v9341 = vmul.f32 %v8561, %v9302
        %v9342 = vmul.f32 %v8563, %v9306
        %v9343 = vmul.f32 %v8774, %v9310
        %v9344 = vmul.f32 %v8776, %v9314
        %v9345 = vmul.f32 %v8987, %v9318
        %v9346 = vmul.f32 %v8989, %v9322
        %v9347 = vmul.f32 %v8352, %v9294
        %v9348 = vmul.f32 %v8354, %v9298
        %v9349 = vmul.f32 %v8565, %v9302
        %v9350 = vmul.f32 %v8567, %v9306
        %v9351 = vmul.f32 %v8778, %v9310
        %v9352 = vmul.f32 %v8780, %v9314
        %v9353 = vmul.f32 %v8991, %v9318
        %v9354 = vmul.f32 %v8993, %v9322
        %v9355 = vadd.f32 %v9259, %v9323
        %v9356 = vadd.f32 %v9260, %v9324
        %v9357 = vadd.f32 %v9261, %v9325
        %v9358 = vadd.f32 %v9262, %v9326
        %v9359 = vadd.f32 %v9263, %v9327
        %v9360 = vadd.f32 %v9264, %v9328
        %v9361 = vadd.f32 %v9265, %v9329
        %v9362 = vadd.f32 %v9266, %v9330
        %v9363 = vadd.f32 %v9267, %v9331
        %v9364 = vadd.f32 %v9268, %v9332
        %v9365 = vadd.f32 %v9269, %v9333
        %v9366 = vadd.f32 %v9270, %v9334
        %v9367 = vadd.f32 %v9271, %v9335
        %v9368 = vadd.f32 %v9272, %v9336
        %v9369 = vadd.f32 %v9273, %v9337
        %v9370 = vadd.f32 %v9274, %v9338
        %v9371 = vadd.f32 %v9275, %v9339
        %v9372 = vadd.f32 %v9276, %v9340
        %v9373 = vadd.f32 %v9277, %v9341
        %v9374 = vadd.f32 %v9278, %v9342
        %v9375 = vadd.f32 %v9279, %v9343
        %v9376 = vadd.f32 %v9280, %v9344
        %v9377 = vadd.f32 %v9281, %v9345
        %v9378 = vadd.f32 %v9282, %v9346
        %v9379 = vadd.f32 %v9283, %v9347
        %v9380 = vadd.f32 %v9284, %v9348
        %v9381 = vadd.f32 %v9285, %v9349
        %v9382 = vadd.f32 %v9286, %v9350
        %v9383 = vadd.f32 %v9287, %v9351
        %v9384 = vadd.f32 %v9288, %v9352
        %v9385 = vadd.f32 %v9289, %v9353
        %v9386 = vadd.f32 %v9290, %v9354
        %v9387 = vlaneseq
        %v9388 = vshrl.u32 %v9387, 7
        %v9389 = vsub.s32 3, %v9388
        %v9390 = vrot.slane %v9115, %v9389
        %v9391 = vlaneseq
        %v9392 = vshrl.u32 %v9391, 7
        %v9393 = vsub.s32 3, %v9392
        %v9394 = vrot.slane %v9116, %v9393
        %v9395 = vlaneseq
        %v9396 = vshrl.u32 %v9395, 7
        %v9397 = vsub.s32 3, %v9396
        %v9398 = vrot.slane %v9117, %v9397
        %v9399 = vlaneseq
        %v9400 = vshrl.u32 %v9399, 7
        %v9401 = vsub.s32 3, %v9400
        %v9402 = vrot.slane %v9118, %v9401
        %v9403 = vlaneseq
        %v9404 = vshrl.u32 %v9403, 7
        %v9405 = vsub.s32 3, %v9404
        %v9406 = vrot.slane %v9119, %v9405
        %v9407 = vlaneseq
        %v9408 = vshrl.u32 %v9407, 7
        %v9409 = vsub.s32 3, %v9408
        %v9410 = vrot.slane %v9120, %v9409
        %v9411 = vlaneseq
        %v9412 = vshrl.u32 %v9411, 7
        %v9413 = vsub.s32 3, %v9412
        %v9414 = vrot.slane %v9121, %v9413
        %v9415 = vlaneseq
        %v9416 = vshrl.u32 %v9415, 7
        %v9417 = vsub.s32 3, %v9416
        %v9418 = vrot.slane %v9122, %v9417
        %v9419 = vmul.f32 %v8358, %v9390
        %v9420 = vmul.f32 %v8360, %v9394
        %v9421 = vmul.f32 %v8571, %v9398
        %v9422 = vmul.f32 %v8573, %v9402
        %v9423 = vmul.f32 %v8784, %v9406
        %v9424 = vmul.f32 %v8786, %v9410
        %v9425 = vmul.f32 %v8997, %v9414
        %v9426 = vmul.f32 %v8999, %v9418
        %v9427 = vmul.f32 %v8362, %v9390
        %v9428 = vmul.f32 %v8364, %v9394
        %v9429 = vmul.f32 %v8575, %v9398
        %v9430 = vmul.f32 %v8577, %v9402
        %v9431 = vmul.f32 %v8788, %v9406
        %v9432 = vmul.f32 %v8790, %v9410
        %v9433 = vmul.f32 %v9001, %v9414
        %v9434 = vmul.f32 %v9003, %v9418
        %v9435 = vmul.f32 %v8368, %v9390
        %v9436 = vmul.f32 %v8370, %v9394
        %v9437 = vmul.f32 %v8581, %v9398
        %v9438 = vmul.f32 %v8583, %v9402
        %v9439 = vmul.f32 %v8794, %v9406
        %v9440 = vmul.f32 %v8796, %v9410
        %v9441 = vmul.f32 %v9007, %v9414
        %v9442 = vmul.f32 %v9009, %v9418
        %v9443 = vmul.f32 %v8372, %v9390
        %v9444 = vmul.f32 %v8374, %v9394
        %v9445 = vmul.f32 %v8585, %v9398
        %v9446 = vmul.f32 %v8587, %v9402
        %v9447 = vmul.f32 %v8798, %v9406
        %v9448 = vmul.f32 %v8800, %v9410
        %v9449 = vmul.f32 %v9011, %v9414
        %v9450 = vmul.f32 %v9013, %v9418
        %v9451 = vadd.f32 %v9355, %v9419
        %v9452 = vadd.f32 %v9356, %v9420
        %v9453 = vadd.f32 %v9357, %v9421
        %v9454 = vadd.f32 %v9358, %v9422
        %v9455 = vadd.f32 %v9359, %v9423
        %v9456 = vadd.f32 %v9360, %v9424
        %v9457 = vadd.f32 %v9361, %v9425
        %v9458 = vadd.f32 %v9362, %v9426
        %v9459 = vadd.f32 %v9363, %v9427
        %v9460 = vadd.f32 %v9364, %v9428
        %v9461 = vadd.f32 %v9365, %v9429
        %v9462 = vadd.f32 %v9366, %v9430
        %v9463 = vadd.f32 %v9367, %v9431
        %v9464 = vadd.f32 %v9368, %v9432
        %v9465 = vadd.f32 %v9369, %v9433
        %v9466 = vadd.f32 %v9370, %v9434
        %v9467 = vadd.f32 %v9371, %v9435
        %v9468 = vadd.f32 %v9372, %v9436
        %v9469 = vadd.f32 %v9373, %v9437
        %v9470 = vadd.f32 %v9374, %v9438
        %v9471 = vadd.f32 %v9375, %v9439
        %v9472 = vadd.f32 %v9376, %v9440
        %v9473 = vadd.f32 %v9377, %v9441
        %v9474 = vadd.f32 %v9378, %v9442
        %v9475 = vadd.f32 %v9379, %v9443
        %v9476 = vadd.f32 %v9380, %v9444
        %v9477 = vadd.f32 %v9381, %v9445
        %v9478 = vadd.f32 %v9382, %v9446
        %v9479 = vadd.f32 %v9383, %v9447
        %v9480 = vadd.f32 %v9384, %v9448
        %v9481 = vadd.f32 %v9385, %v9449
        %v9482 = vadd.f32 %v9386, %v9450
        %v9483 = vlaneseq
        %v9484 = vshrl.u32 %v9483, 7
        %v9485 = vsub.s32 4, %v9484
        %v9486 = vrot.slane %v9115, %v9485
        %v9487 = vlaneseq
        %v9488 = vshrl.u32 %v9487, 7
        %v9489 = vsub.s32 4, %v9488
        %v9490 = vrot.slane %v9116, %v9489
        %v9491 = vlaneseq
        %v9492 = vshrl.u32 %v9491, 7
        %v9493 = vsub.s32 4, %v9492
        %v9494 = vrot.slane %v9117, %v9493
        %v9495 = vlaneseq
        %v9496 = vshrl.u32 %v9495, 7
        %v9497 = vsub.s32 4, %v9496
        %v9498 = vrot.slane %v9118, %v9497
        %v9499 = vlaneseq
        %v9500 = vshrl.u32 %v9499, 7
        %v9501 = vsub.s32 4, %v9500
        %v9502 = vrot.slane %v9119, %v9501
        %v9503 = vlaneseq
        %v9504 = vshrl.u32 %v9503, 7
        %v9505 = vsub.s32 4, %v9504
        %v9506 = vrot.slane %v9120, %v9505
        %v9507 = vlaneseq
        %v9508 = vshrl.u32 %v9507, 7
        %v9509 = vsub.s32 4, %v9508
        %v9510 = vrot.slane %v9121, %v9509
        %v9511 = vlaneseq
        %v9512 = vshrl.u32 %v9511, 7
        %v9513 = vsub.s32 4, %v9512
        %v9514 = vrot.slane %v9122, %v9513
        %v9515 = vmul.f32 %v8378, %v9486
        %v9516 = vmul.f32 %v8380, %v9490
        %v9517 = vmul.f32 %v8591, %v9494
        %v9518 = vmul.f32 %v8593, %v9498
        %v9519 = vmul.f32 %v8804, %v9502
        %v9520 = vmul.f32 %v8806, %v9506
        %v9521 = vmul.f32 %v9017, %v9510
        %v9522 = vmul.f32 %v9019, %v9514
        %v9523 = vmul.f32 %v8382, %v9486
        %v9524 = vmul.f32 %v8384, %v9490
        %v9525 = vmul.f32 %v8595, %v9494
        %v9526 = vmul.f32 %v8597, %v9498
        %v9527 = vmul.f32 %v8808, %v9502
        %v9528 = vmul.f32 %v8810, %v9506
        %v9529 = vmul.f32 %v9021, %v9510
        %v9530 = vmul.f32 %v9023, %v9514
        %v9531 = vmul.f32 %v8388, %v9486
        %v9532 = vmul.f32 %v8390, %v9490
        %v9533 = vmul.f32 %v8601, %v9494
        %v9534 = vmul.f32 %v8603, %v9498
        %v9535 = vmul.f32 %v8814, %v9502
        %v9536 = vmul.f32 %v8816, %v9506
        %v9537 = vmul.f32 %v9027, %v9510
        %v9538 = vmul.f32 %v9029, %v9514
        %v9539 = vmul.f32 %v8392, %v9486
        %v9540 = vmul.f32 %v8394, %v9490
        %v9541 = vmul.f32 %v8605, %v9494
        %v9542 = vmul.f32 %v8607, %v9498
        %v9543 = vmul.f32 %v8818, %v9502
        %v9544 = vmul.f32 %v8820, %v9506
        %v9545 = vmul.f32 %v9031, %v9510
        %v9546 = vmul.f32 %v9033, %v9514
        %v9547 = vadd.f32 %v9451, %v9515
        %v9548 = vadd.f32 %v9452, %v9516
        %v9549 = vadd.f32 %v9453, %v9517
        %v9550 = vadd.f32 %v9454, %v9518
        %v9551 = vadd.f32 %v9455, %v9519
        %v9552 = vadd.f32 %v9456, %v9520
        %v9553 = vadd.f32 %v9457, %v9521
        %v9554 = vadd.f32 %v9458, %v9522
        %v9555 = vadd.f32 %v9459, %v9523
        %v9556 = vadd.f32 %v9460, %v9524
        %v9557 = vadd.f32 %v9461, %v9525
        %v9558 = vadd.f32 %v9462, %v9526
        %v9559 = vadd.f32 %v9463, %v9527
        %v9560 = vadd.f32 %v9464, %v9528
        %v9561 = vadd.f32 %v9465, %v9529
        %v9562 = vadd.f32 %v9466, %v9530
        %v9563 = vadd.f32 %v9467, %v9531
        %v9564 = vadd.f32 %v9468, %v9532
        %v9565 = vadd.f32 %v9469, %v9533
        %v9566 = vadd.f32 %v9470, %v9534
        %v9567 = vadd.f32 %v9471, %v9535
        %v9568 = vadd.f32 %v9472, %v9536
        %v9569 = vadd.f32 %v9473, %v9537
        %v9570 = vadd.f32 %v9474, %v9538
        %v9571 = vadd.f32 %v9475, %v9539
        %v9572 = vadd.f32 %v9476, %v9540
        %v9573 = vadd.f32 %v9477, %v9541
        %v9574 = vadd.f32 %v9478, %v9542
        %v9575 = vadd.f32 %v9479, %v9543
        %v9576 = vadd.f32 %v9480, %v9544
        %v9577 = vadd.f32 %v9481, %v9545
        %v9578 = vadd.f32 %v9482, %v9546
        %v9579 = vlaneseq
        %v9580 = vshrl.u32 %v9579, 7
        %v9581 = vsub.s32 5, %v9580
        %v9582 = vrot.slane %v9115, %v9581
        %v9583 = vlaneseq
        %v9584 = vshrl.u32 %v9583, 7
        %v9585 = vsub.s32 5, %v9584
        %v9586 = vrot.slane %v9116, %v9585
        %v9587 = vlaneseq
        %v9588 = vshrl.u32 %v9587, 7
        %v9589 = vsub.s32 5, %v9588
        %v9590 = vrot.slane %v9117, %v9589
        %v9591 = vlaneseq
        %v9592 = vshrl.u32 %v9591, 7
        %v9593 = vsub.s32 5, %v9592
        %v9594 = vrot.slane %v9118, %v9593
        %v9595 = vlaneseq
        %v9596 = vshrl.u32 %v9595, 7
        %v9597 = vsub.s32 5, %v9596
        %v9598 = vrot.slane %v9119, %v9597
        %v9599 = vlaneseq
        %v9600 = vshrl.u32 %v9599, 7
        %v9601 = vsub.s32 5, %v9600
        %v9602 = vrot.slane %v9120, %v9601
        %v9603 = vlaneseq
        %v9604 = vshrl.u32 %v9603, 7
        %v9605 = vsub.s32 5, %v9604
        %v9606 = vrot.slane %v9121, %v9605
        %v9607 = vlaneseq
        %v9608 = vshrl.u32 %v9607, 7
        %v9609 = vsub.s32 5, %v9608
        %v9610 = vrot.slane %v9122, %v9609
        %v9611 = vmul.f32 %v8398, %v9582
        %v9612 = vmul.f32 %v8400, %v9586
        %v9613 = vmul.f32 %v8611, %v9590
        %v9614 = vmul.f32 %v8613, %v9594
        %v9615 = vmul.f32 %v8824, %v9598
        %v9616 = vmul.f32 %v8826, %v9602
        %v9617 = vmul.f32 %v9037, %v9606
        %v9618 = vmul.f32 %v9039, %v9610
        %v9619 = vmul.f32 %v8402, %v9582
        %v9620 = vmul.f32 %v8404, %v9586
        %v9621 = vmul.f32 %v8615, %v9590
        %v9622 = vmul.f32 %v8617, %v9594
        %v9623 = vmul.f32 %v8828, %v9598
        %v9624 = vmul.f32 %v8830, %v9602
        %v9625 = vmul.f32 %v9041, %v9606
        %v9626 = vmul.f32 %v9043, %v9610
        %v9627 = vmul.f32 %v8408, %v9582
        %v9628 = vmul.f32 %v8410, %v9586
        %v9629 = vmul.f32 %v8621, %v9590
        %v9630 = vmul.f32 %v8623, %v9594
        %v9631 = vmul.f32 %v8834, %v9598
        %v9632 = vmul.f32 %v8836, %v9602
        %v9633 = vmul.f32 %v9047, %v9606
        %v9634 = vmul.f32 %v9049, %v9610
        %v9635 = vmul.f32 %v8412, %v9582
        %v9636 = vmul.f32 %v8414, %v9586
        %v9637 = vmul.f32 %v8625, %v9590
        %v9638 = vmul.f32 %v8627, %v9594
        %v9639 = vmul.f32 %v8838, %v9598
        %v9640 = vmul.f32 %v8840, %v9602
        %v9641 = vmul.f32 %v9051, %v9606
        %v9642 = vmul.f32 %v9053, %v9610
        %v9643 = vadd.f32 %v9547, %v9611
        %v9644 = vadd.f32 %v9548, %v9612
        %v9645 = vadd.f32 %v9549, %v9613
        %v9646 = vadd.f32 %v9550, %v9614
        %v9647 = vadd.f32 %v9551, %v9615
        %v9648 = vadd.f32 %v9552, %v9616
        %v9649 = vadd.f32 %v9553, %v9617
        %v9650 = vadd.f32 %v9554, %v9618
        %v9651 = vadd.f32 %v9555, %v9619
        %v9652 = vadd.f32 %v9556, %v9620
        %v9653 = vadd.f32 %v9557, %v9621
        %v9654 = vadd.f32 %v9558, %v9622
        %v9655 = vadd.f32 %v9559, %v9623
        %v9656 = vadd.f32 %v9560, %v9624
        %v9657 = vadd.f32 %v9561, %v9625
        %v9658 = vadd.f32 %v9562, %v9626
        %v9659 = vadd.f32 %v9563, %v9627
        %v9660 = vadd.f32 %v9564, %v9628
        %v9661 = vadd.f32 %v9565, %v9629
        %v9662 = vadd.f32 %v9566, %v9630
        %v9663 = vadd.f32 %v9567, %v9631
        %v9664 = vadd.f32 %v9568, %v9632
        %v9665 = vadd.f32 %v9569, %v9633
        %v9666 = vadd.f32 %v9570, %v9634
        %v9667 = vadd.f32 %v9571, %v9635
        %v9668 = vadd.f32 %v9572, %v9636
        %v9669 = vadd.f32 %v9573, %v9637
        %v9670 = vadd.f32 %v9574, %v9638
        %v9671 = vadd.f32 %v9575, %v9639
        %v9672 = vadd.f32 %v9576, %v9640
        %v9673 = vadd.f32 %v9577, %v9641
        %v9674 = vadd.f32 %v9578, %v9642
        %v9675 = vlaneseq
        %v9676 = vshrl.u32 %v9675, 7
        %v9677 = vsub.s32 6, %v9676
        %v9678 = vrot.slane %v9115, %v9677
        %v9679 = vlaneseq
        %v9680 = vshrl.u32 %v9679, 7
        %v9681 = vsub.s32 6, %v9680
        %v9682 = vrot.slane %v9116, %v9681
        %v9683 = vlaneseq
        %v9684 = vshrl.u32 %v9683, 7
        %v9685 = vsub.s32 6, %v9684
        %v9686 = vrot.slane %v9117, %v9685
        %v9687 = vlaneseq
        %v9688 = vshrl.u32 %v9687, 7
        %v9689 = vsub.s32 6, %v9688
        %v9690 = vrot.slane %v9118, %v9689
        %v9691 = vlaneseq
        %v9692 = vshrl.u32 %v9691, 7
        %v9693 = vsub.s32 6, %v9692
        %v9694 = vrot.slane %v9119, %v9693
        %v9695 = vlaneseq
        %v9696 = vshrl.u32 %v9695, 7
        %v9697 = vsub.s32 6, %v9696
        %v9698 = vrot.slane %v9120, %v9697
        %v9699 = vlaneseq
        %v9700 = vshrl.u32 %v9699, 7
        %v9701 = vsub.s32 6, %v9700
        %v9702 = vrot.slane %v9121, %v9701
        %v9703 = vlaneseq
        %v9704 = vshrl.u32 %v9703, 7
        %v9705 = vsub.s32 6, %v9704
        %v9706 = vrot.slane %v9122, %v9705
        %v9707 = vmul.f32 %v8418, %v9678
        %v9708 = vmul.f32 %v8420, %v9682
        %v9709 = vmul.f32 %v8631, %v9686
        %v9710 = vmul.f32 %v8633, %v9690
        %v9711 = vmul.f32 %v8844, %v9694
        %v9712 = vmul.f32 %v8846, %v9698
        %v9713 = vmul.f32 %v9057, %v9702
        %v9714 = vmul.f32 %v9059, %v9706
        %v9715 = vmul.f32 %v8422, %v9678
        %v9716 = vmul.f32 %v8424, %v9682
        %v9717 = vmul.f32 %v8635, %v9686
        %v9718 = vmul.f32 %v8637, %v9690
        %v9719 = vmul.f32 %v8848, %v9694
        %v9720 = vmul.f32 %v8850, %v9698
        %v9721 = vmul.f32 %v9061, %v9702
        %v9722 = vmul.f32 %v9063, %v9706
        %v9723 = vmul.f32 %v8428, %v9678
        %v9724 = vmul.f32 %v8430, %v9682
        %v9725 = vmul.f32 %v8641, %v9686
        %v9726 = vmul.f32 %v8643, %v9690
        %v9727 = vmul.f32 %v8854, %v9694
        %v9728 = vmul.f32 %v8856, %v9698
        %v9729 = vmul.f32 %v9067, %v9702
        %v9730 = vmul.f32 %v9069, %v9706
        %v9731 = vmul.f32 %v8432, %v9678
        %v9732 = vmul.f32 %v8434, %v9682
        %v9733 = vmul.f32 %v8645, %v9686
        %v9734 = vmul.f32 %v8647, %v9690
        %v9735 = vmul.f32 %v8858, %v9694
        %v9736 = vmul.f32 %v8860, %v9698
        %v9737 = vmul.f32 %v9071, %v9702
        %v9738 = vmul.f32 %v9073, %v9706
        %v9739 = vadd.f32 %v9643, %v9707
        %v9740 = vadd.f32 %v9644, %v9708
        %v9741 = vadd.f32 %v9645, %v9709
        %v9742 = vadd.f32 %v9646, %v9710
        %v9743 = vadd.f32 %v9647, %v9711
        %v9744 = vadd.f32 %v9648, %v9712
        %v9745 = vadd.f32 %v9649, %v9713
        %v9746 = vadd.f32 %v9650, %v9714
        %v9747 = vadd.f32 %v9651, %v9715
        %v9748 = vadd.f32 %v9652, %v9716
        %v9749 = vadd.f32 %v9653, %v9717
        %v9750 = vadd.f32 %v9654, %v9718
        %v9751 = vadd.f32 %v9655, %v9719
        %v9752 = vadd.f32 %v9656, %v9720
        %v9753 = vadd.f32 %v9657, %v9721
        %v9754 = vadd.f32 %v9658, %v9722
        %v9755 = vadd.f32 %v9659, %v9723
        %v9756 = vadd.f32 %v9660, %v9724
        %v9757 = vadd.f32 %v9661, %v9725
        %v9758 = vadd.f32 %v9662, %v9726
        %v9759 = vadd.f32 %v9663, %v9727
        %v9760 = vadd.f32 %v9664, %v9728
        %v9761 = vadd.f32 %v9665, %v9729
        %v9762 = vadd.f32 %v9666, %v9730
        %v9763 = vadd.f32 %v9667, %v9731
        %v9764 = vadd.f32 %v9668, %v9732
        %v9765 = vadd.f32 %v9669, %v9733
        %v9766 = vadd.f32 %v9670, %v9734
        %v9767 = vadd.f32 %v9671, %v9735
        %v9768 = vadd.f32 %v9672, %v9736
        %v9769 = vadd.f32 %v9673, %v9737
        %v9770 = vadd.f32 %v9674, %v9738
        %v9771 = vlaneseq
        %v9772 = vshrl.u32 %v9771, 7
        %v9773 = vsub.s32 7, %v9772
        %v9774 = vrot.slane %v9115, %v9773
        %v9775 = vlaneseq
        %v9776 = vshrl.u32 %v9775, 7
        %v9777 = vsub.s32 7, %v9776
        %v9778 = vrot.slane %v9116, %v9777
        %v9779 = vlaneseq
        %v9780 = vshrl.u32 %v9779, 7
        %v9781 = vsub.s32 7, %v9780
        %v9782 = vrot.slane %v9117, %v9781
        %v9783 = vlaneseq
        %v9784 = vshrl.u32 %v9783, 7
        %v9785 = vsub.s32 7, %v9784
        %v9786 = vrot.slane %v9118, %v9785
        %v9787 = vlaneseq
        %v9788 = vshrl.u32 %v9787, 7
        %v9789 = vsub.s32 7, %v9788
        %v9790 = vrot.slane %v9119, %v9789
        %v9791 = vlaneseq
        %v9792 = vshrl.u32 %v9791, 7
        %v9793 = vsub.s32 7, %v9792
        %v9794 = vrot.slane %v9120, %v9793
        %v9795 = vlaneseq
        %v9796 = vshrl.u32 %v9795, 7
        %v9797 = vsub.s32 7, %v9796
        %v9798 = vrot.slane %v9121, %v9797
        %v9799 = vlaneseq
        %v9800 = vshrl.u32 %v9799, 7
        %v9801 = vsub.s32 7, %v9800
        %v9802 = vrot.slane %v9122, %v9801
        %v9803 = vmul.f32 %v8438, %v9774
        %v9804 = vmul.f32 %v8440, %v9778
        %v9805 = vmul.f32 %v8651, %v9782
        %v9806 = vmul.f32 %v8653, %v9786
        %v9807 = vmul.f32 %v8864, %v9790
        %v9808 = vmul.f32 %v8866, %v9794
        %v9809 = vmul.f32 %v9077, %v9798
        %v9810 = vmul.f32 %v9079, %v9802
        %v9811 = vmul.f32 %v8442, %v9774
        %v9812 = vmul.f32 %v8444, %v9778
        %v9813 = vmul.f32 %v8655, %v9782
        %v9814 = vmul.f32 %v8657, %v9786
        %v9815 = vmul.f32 %v8868, %v9790
        %v9816 = vmul.f32 %v8870, %v9794
        %v9817 = vmul.f32 %v9081, %v9798
        %v9818 = vmul.f32 %v9083, %v9802
        %v9819 = vmul.f32 %v8448, %v9774
        %v9820 = vmul.f32 %v8450, %v9778
        %v9821 = vmul.f32 %v8661, %v9782
        %v9822 = vmul.f32 %v8663, %v9786
        %v9823 = vmul.f32 %v8874, %v9790
        %v9824 = vmul.f32 %v8876, %v9794
        %v9825 = vmul.f32 %v9087, %v9798
        %v9826 = vmul.f32 %v9089, %v9802
        %v9827 = vmul.f32 %v8452, %v9774
        %v9828 = vmul.f32 %v8454, %v9778
        %v9829 = vmul.f32 %v8665, %v9782
        %v9830 = vmul.f32 %v8667, %v9786
        %v9831 = vmul.f32 %v8878, %v9790
        %v9832 = vmul.f32 %v8880, %v9794
        %v9833 = vmul.f32 %v9091, %v9798
        %v9834 = vmul.f32 %v9093, %v9802
        %v9835 = vadd.f32 %v9739, %v9803
        %v9836 = vadd.f32 %v9740, %v9804
        %v9837 = vadd.f32 %v9741, %v9805
        %v9838 = vadd.f32 %v9742, %v9806
        %v9839 = vadd.f32 %v9743, %v9807
        %v9840 = vadd.f32 %v9744, %v9808
        %v9841 = vadd.f32 %v9745, %v9809
        %v9842 = vadd.f32 %v9746, %v9810
        %v9843 = vadd.f32 %v9747, %v9811
        %v9844 = vadd.f32 %v9748, %v9812
        %v9845 = vadd.f32 %v9749, %v9813
        %v9846 = vadd.f32 %v9750, %v9814
        %v9847 = vadd.f32 %v9751, %v9815
        %v9848 = vadd.f32 %v9752, %v9816
        %v9849 = vadd.f32 %v9753, %v9817
        %v9850 = vadd.f32 %v9754, %v9818
        %v9851 = vadd.f32 %v9755, %v9819
        %v9852 = vadd.f32 %v9756, %v9820
        %v9853 = vadd.f32 %v9757, %v9821
        %v9854 = vadd.f32 %v9758, %v9822
        %v9855 = vadd.f32 %v9759, %v9823
        %v9856 = vadd.f32 %v9760, %v9824
        %v9857 = vadd.f32 %v9761, %v9825
        %v9858 = vadd.f32 %v9762, %v9826
        %v9859 = vadd.f32 %v9763, %v9827
        %v9860 = vadd.f32 %v9764, %v9828
        %v9861 = vadd.f32 %v9765, %v9829
        %v9862 = vadd.f32 %v9766, %v9830
        %v9863 = vadd.f32 %v9767, %v9831
        %v9864 = vadd.f32 %v9768, %v9832
        %v9865 = vadd.f32 %v9769, %v9833
        %v9866 = vadd.f32 %v9770, %v9834
        %v9867 = vlaneseq
        %v9868 = vshrl.u32 %v9867, 7
        %v9869 = vsub.s32 0, %v9868
        %v9870 = vrot.slane %v9123, %v9869
        %v9871 = vlaneseq
        %v9872 = vshrl.u32 %v9871, 7
        %v9873 = vsub.s32 0, %v9872
        %v9874 = vrot.slane %v9124, %v9873
        %v9875 = vlaneseq
        %v9876 = vshrl.u32 %v9875, 7
        %v9877 = vsub.s32 0, %v9876
        %v9878 = vrot.slane %v9125, %v9877
        %v9879 = vlaneseq
        %v9880 = vshrl.u32 %v9879, 7
        %v9881 = vsub.s32 0, %v9880
        %v9882 = vrot.slane %v9126, %v9881
        %v9883 = vlaneseq
        %v9884 = vshrl.u32 %v9883, 7
        %v9885 = vsub.s32 0, %v9884
        %v9886 = vrot.slane %v9127, %v9885
        %v9887 = vlaneseq
        %v9888 = vshrl.u32 %v9887, 7
        %v9889 = vsub.s32 0, %v9888
        %v9890 = vrot.slane %v9128, %v9889
        %v9891 = vlaneseq
        %v9892 = vshrl.u32 %v9891, 7
        %v9893 = vsub.s32 0, %v9892
        %v9894 = vrot.slane %v9129, %v9893
        %v9895 = vlaneseq
        %v9896 = vshrl.u32 %v9895, 7
        %v9897 = vsub.s32 0, %v9896
        %v9898 = vrot.slane %v9130, %v9897
        %v9899 = vmul.f32 %v8458, %v9870
        %v9900 = vmul.f32 %v8460, %v9874
        %v9901 = vmul.f32 %v8671, %v9878
        %v9902 = vmul.f32 %v8673, %v9882
        %v9903 = vmul.f32 %v8884, %v9886
        %v9904 = vmul.f32 %v8886, %v9890
        %v9905 = vmul.f32 %v9097, %v9894
        %v9906 = vmul.f32 %v9099, %v9898
        %v9907 = vmul.f32 %v8462, %v9870
        %v9908 = vmul.f32 %v8464, %v9874
        %v9909 = vmul.f32 %v8675, %v9878
        %v9910 = vmul.f32 %v8677, %v9882
        %v9911 = vmul.f32 %v8888, %v9886
        %v9912 = vmul.f32 %v8890, %v9890
        %v9913 = vmul.f32 %v9101, %v9894
        %v9914 = vmul.f32 %v9103, %v9898
        %v9915 = vmul.f32 %v8468, %v9870
        %v9916 = vmul.f32 %v8470, %v9874
        %v9917 = vmul.f32 %v8681, %v9878
        %v9918 = vmul.f32 %v8683, %v9882
        %v9919 = vmul.f32 %v8894, %v9886
        %v9920 = vmul.f32 %v8896, %v9890
        %v9921 = vmul.f32 %v9107, %v9894
        %v9922 = vmul.f32 %v9109, %v9898
        %v9923 = vmul.f32 %v8472, %v9870
        %v9924 = vmul.f32 %v8474, %v9874
        %v9925 = vmul.f32 %v8685, %v9878
        %v9926 = vmul.f32 %v8687, %v9882
        %v9927 = vmul.f32 %v8898, %v9886
        %v9928 = vmul.f32 %v8900, %v9890
        %v9929 = vmul.f32 %v9111, %v9894
        %v9930 = vmul.f32 %v9113, %v9898
        %v9931 = vadd.f32 %v9835, %v9899
        %v9932 = vadd.f32 %v9836, %v9900
        %v9933 = vadd.f32 %v9837, %v9901
        %v9934 = vadd.f32 %v9838, %v9902
        %v9935 = vadd.f32 %v9839, %v9903
        %v9936 = vadd.f32 %v9840, %v9904
        %v9937 = vadd.f32 %v9841, %v9905
        %v9938 = vadd.f32 %v9842, %v9906
        %v9939 = vadd.f32 %v9843, %v9907
        %v9940 = vadd.f32 %v9844, %v9908
        %v9941 = vadd.f32 %v9845, %v9909
        %v9942 = vadd.f32 %v9846, %v9910
        %v9943 = vadd.f32 %v9847, %v9911
        %v9944 = vadd.f32 %v9848, %v9912
        %v9945 = vadd.f32 %v9849, %v9913
        %v9946 = vadd.f32 %v9850, %v9914
        %v9947 = vadd.f32 %v9851, %v9915
        %v9948 = vadd.f32 %v9852, %v9916
        %v9949 = vadd.f32 %v9853, %v9917
        %v9950 = vadd.f32 %v9854, %v9918
        %v9951 = vadd.f32 %v9855, %v9919
        %v9952 = vadd.f32 %v9856, %v9920
        %v9953 = vadd.f32 %v9857, %v9921
        %v9954 = vadd.f32 %v9858, %v9922
        %v9955 = vadd.f32 %v9859, %v9923
        %v9956 = vadd.f32 %v9860, %v9924
        %v9957 = vadd.f32 %v9861, %v9925
        %v9958 = vadd.f32 %v9862, %v9926
        %v9959 = vadd.f32 %v9863, %v9927
        %v9960 = vadd.f32 %v9864, %v9928
        %v9961 = vadd.f32 %v9865, %v9929
        %v9962 = vadd.f32 %v9866, %v9930
        %v9963 = vld [vmem:[%s19] sm:$0xff]
        %v9965 = vlaneseq
        %v9966 = vshrl.u32 %v9965, 7
        %v9967 = vsub.s32 0, %v9966
        %v9968 = vrot.slane %v9963, %v9967
        %v9969 = vlaneseq
        %v9970 = vshrl.u32 %v9969, 7
        %v9971 = vsub.s32 1, %v9970
        %v9972 = vrot.slane %v9963, %v9971
        %v9973 = vlaneseq
        %v9974 = vshrl.u32 %v9973, 7
        %v9975 = vsub.s32 2, %v9974
        %v9976 = vrot.slane %v9963, %v9975
        %v9977 = vlaneseq
        %v9978 = vshrl.u32 %v9977, 7
        %v9979 = vsub.s32 3, %v9978
        %v9980 = vrot.slane %v9963, %v9979
        %v9981 = vlaneseq
        %v9982 = vshrl.u32 %v9981, 7
        %v9983 = vsub.s32 4, %v9982
        %v9984 = vrot.slane %v9963, %v9983
        %v9985 = vlaneseq
        %v9986 = vshrl.u32 %v9985, 7
        %v9987 = vsub.s32 5, %v9986
        %v9988 = vrot.slane %v9963, %v9987
        %v9989 = vlaneseq
        %v9990 = vshrl.u32 %v9989, 7
        %v9991 = vsub.s32 6, %v9990
        %v9992 = vrot.slane %v9963, %v9991
        %v9993 = vlaneseq
        %v9994 = vshrl.u32 %v9993, 7
        %v9995 = vsub.s32 7, %v9994
        %v9996 = vrot.slane %v9963, %v9995
        %v10005 = vadd.f32 %v9931, %v9968
        %v10006 = vadd.f32 %v9932, %v9972
        %v10007 = vadd.f32 %v9933, %v9976
        %v10008 = vadd.f32 %v9934, %v9980
        %v10009 = vadd.f32 %v9935, %v9984
        %v10010 = vadd.f32 %v9936, %v9988
        %v10011 = vadd.f32 %v9937, %v9992
        %v10012 = vadd.f32 %v9938, %v9996
        %v10013 = vadd.f32 %v9939, %v9968
        %v10014 = vadd.f32 %v9940, %v9972
        %v10015 = vadd.f32 %v9941, %v9976
        %v10016 = vadd.f32 %v9942, %v9980
        %v10017 = vadd.f32 %v9943, %v9984
        %v10018 = vadd.f32 %v9944, %v9988
        %v10019 = vadd.f32 %v9945, %v9992
        %v10020 = vadd.f32 %v9946, %v9996
        %v10021 = vadd.f32 %v9947, %v9968
        %v10022 = vadd.f32 %v9948, %v9972
        %v10023 = vadd.f32 %v9949, %v9976
        %v10024 = vadd.f32 %v9950, %v9980
        %v10025 = vadd.f32 %v9951, %v9984
        %v10026 = vadd.f32 %v9952, %v9988
        %v10027 = vadd.f32 %v9953, %v9992
        %v10028 = vadd.f32 %v9954, %v9996
        %v10029 = vadd.f32 %v9955, %v9968
        %v10030 = vadd.f32 %v9956, %v9972
        %v10031 = vadd.f32 %v9957, %v9976
        %v10032 = vadd.f32 %v9958, %v9980
        %v10033 = vadd.f32 %v9959, %v9984
        %v10034 = vadd.f32 %v9960, %v9988
        %v10035 = vadd.f32 %v9961, %v9992
        %v10036 = vadd.f32 %v9962, %v9996
        %v10037 = vmax.f32 %v10005, 0.0
        %v10038 = vmax.f32 %v10006, 0.0
        %v10039 = vmax.f32 %v10007, 0.0
        %v10040 = vmax.f32 %v10008, 0.0
        %v10041 = vmax.f32 %v10009, 0.0
        %v10042 = vmax.f32 %v10010, 0.0
        %v10043 = vmax.f32 %v10011, 0.0
        %v10044 = vmax.f32 %v10012, 0.0
        %v10045 = vmax.f32 %v10013, 0.0
        %v10046 = vmax.f32 %v10014, 0.0
        %v10047 = vmax.f32 %v10015, 0.0
        %v10048 = vmax.f32 %v10016, 0.0
        %v10049 = vmax.f32 %v10017, 0.0
        %v10050 = vmax.f32 %v10018, 0.0
        %v10051 = vmax.f32 %v10019, 0.0
        %v10052 = vmax.f32 %v10020, 0.0
        %v10053 = vmax.f32 %v10021, 0.0
        %v10054 = vmax.f32 %v10022, 0.0
        %v10055 = vmax.f32 %v10023, 0.0
        %v10056 = vmax.f32 %v10024, 0.0
        %v10057 = vmax.f32 %v10025, 0.0
        %v10058 = vmax.f32 %v10026, 0.0
        %v10059 = vmax.f32 %v10027, 0.0
        %v10060 = vmax.f32 %v10028, 0.0
        %v10061 = vmax.f32 %v10029, 0.0
        %v10062 = vmax.f32 %v10030, 0.0
        %v10063 = vmax.f32 %v10031, 0.0
        %v10064 = vmax.f32 %v10032, 0.0
        %v10065 = vmax.f32 %v10033, 0.0
        %v10066 = vmax.f32 %v10034, 0.0
        %v10067 = vmax.f32 %v10035, 0.0
        %v10068 = vmax.f32 %v10036, 0.0
        %v10069 = vmin.f32 %v10037, 6.0
        %v10070 = vmin.f32 %v10038, 6.0
        %v10071 = vmin.f32 %v10039, 6.0
        %v10072 = vmin.f32 %v10040, 6.0
        %v10073 = vmin.f32 %v10041, 6.0
        %v10074 = vmin.f32 %v10042, 6.0
        %v10075 = vmin.f32 %v10043, 6.0
        %v10076 = vmin.f32 %v10044, 6.0
        %v10077 = vmin.f32 %v10045, 6.0
        %v10078 = vmin.f32 %v10046, 6.0
        %v10079 = vmin.f32 %v10047, 6.0
        %v10080 = vmin.f32 %v10048, 6.0
        %v10081 = vmin.f32 %v10049, 6.0
        %v10082 = vmin.f32 %v10050, 6.0
        %v10083 = vmin.f32 %v10051, 6.0
        %v10084 = vmin.f32 %v10052, 6.0
        %v10085 = vmin.f32 %v10053, 6.0
        %v10086 = vmin.f32 %v10054, 6.0
        %v10087 = vmin.f32 %v10055, 6.0
        %v10088 = vmin.f32 %v10056, 6.0
        %v10089 = vmin.f32 %v10057, 6.0
        %v10090 = vmin.f32 %v10058, 6.0
        %v10091 = vmin.f32 %v10059, 6.0
        %v10092 = vmin.f32 %v10060, 6.0
        %v10093 = vmin.f32 %v10061, 6.0
        %v10094 = vmin.f32 %v10062, 6.0
        %v10095 = vmin.f32 %v10063, 6.0
        %v10096 = vmin.f32 %v10064, 6.0
        %v10097 = vmin.f32 %v10065, 6.0
        %v10098 = vmin.f32 %v10066, 6.0
        %v10099 = vmin.f32 %v10067, 6.0
        %v10100 = vmin.f32 %v10068, 6.0
        %v10101 = vpack.c.bf16 %v10077, %v10069
        %v10102 = vpack.c.bf16 %v10078, %v10070
        %v10103 = vpack.c.bf16 %v10079, %v10071
        %v10104 = vpack.c.bf16 %v10080, %v10072
        %v10105 = vpack.c.bf16 %v10081, %v10073
        %v10106 = vpack.c.bf16 %v10082, %v10074
        %v10107 = vpack.c.bf16 %v10083, %v10075
        %v10108 = vpack.c.bf16 %v10084, %v10076
        %v10109 = vpack.c.bf16 %v10093, %v10085
        %v10110 = vpack.c.bf16 %v10094, %v10086
        %v10111 = vpack.c.bf16 %v10095, %v10087
        %v10112 = vpack.c.bf16 %v10096, %v10088
        %v10113 = vpack.c.bf16 %v10097, %v10089
        %v10114 = vpack.c.bf16 %v10098, %v10090
        %v10115 = vpack.c.bf16 %v10099, %v10091
        %v10116 = vpack.c.bf16 %v10100, %v10092
        %v10117 = vld [vmem:[%s20] sm:$0xff]
        %v10118 = vld [vmem:[%s20 + $0x8] sm:$0xff]
        %v10119 = vld [vmem:[%s20 + $0x10] sm:$0xff]
        %v10120 = vld [vmem:[%s20 + $0x18] sm:$0xff]
        %v10121 = vld [vmem:[%s20 + $0x20] sm:$0xff]
        %v10122 = vld [vmem:[%s20 + $0x28] sm:$0xff]
        %v10123 = vld [vmem:[%s20 + $0x30] sm:$0xff]
        %v10124 = vld [vmem:[%s20 + $0x38] sm:$0xff]
        %v10125 = vld [vmem:[%s20 + $0x40] sm:$0xff]
        %v10126 = vld [vmem:[%s20 + $0x48] sm:$0xff]
        %v10127 = vld [vmem:[%s20 + $0x50] sm:$0xff]
        %v10128 = vld [vmem:[%s20 + $0x58] sm:$0xff]
        %v10129 = vld [vmem:[%s20 + $0x60] sm:$0xff]
        %v10130 = vld [vmem:[%s20 + $0x68] sm:$0xff]
        %v10131 = vld [vmem:[%s20 + $0x70] sm:$0xff]
        %v10132 = vld [vmem:[%s20 + $0x78] sm:$0xff]
        %v10133 = vld [vmem:[%s20 + $0x80] sm:$0xff]
        %v10134 = vld [vmem:[%s20 + $0x88] sm:$0xff]
        %v10135 = vld [vmem:[%s20 + $0x90] sm:$0xff]
        %v10136 = vld [vmem:[%s20 + $0x98] sm:$0xff]
        %v10137 = vld [vmem:[%s20 + $0xa0] sm:$0xff]
        %v10138 = vld [vmem:[%s20 + $0xa8] sm:$0xff]
        %v10139 = vld [vmem:[%s20 + $0xb0] sm:$0xff]
        %v10140 = vld [vmem:[%s20 + $0xb8] sm:$0xff]
        %v10141 = vld [vmem:[%s20 + $0xc0] sm:$0xff]
        %v10142 = vld [vmem:[%s20 + $0xc8] sm:$0xff]
        %v10143 = vld [vmem:[%s20 + $0xd0] sm:$0xff]
        %v10144 = vld [vmem:[%s20 + $0xd8] sm:$0xff]
        %v10145 = vld [vmem:[%s20 + $0xe0] sm:$0xff]
        %v10146 = vld [vmem:[%s20 + $0xe8] sm:$0xff]
        %v10147 = vld [vmem:[%s20 + $0xf0] sm:$0xff]
        %v10148 = vld [vmem:[%s20 + $0xf8] sm:$0xff]
        %v10149 = vld [vmem:[%s20 + $0x100] sm:$0xff]
        %v10150 = vld [vmem:[%s20 + $0x108] sm:$0xff]
        %v10151 = vld [vmem:[%s20 + $0x110] sm:$0xff]
        %v10152 = vld [vmem:[%s20 + $0x118] sm:$0xff]
        %v10153 = vld [vmem:[%s20 + $0x120] sm:$0xff]
        %v10154 = vld [vmem:[%s20 + $0x128] sm:$0xff]
        %v10155 = vld [vmem:[%s20 + $0x130] sm:$0xff]
        %v10156 = vld [vmem:[%s20 + $0x138] sm:$0xff]
        %v10157 = vld [vmem:[%s20 + $0x140] sm:$0xff]
        %v10158 = vld [vmem:[%s20 + $0x148] sm:$0xff]
        %v10159 = vld [vmem:[%s20 + $0x150] sm:$0xff]
        %v10160 = vld [vmem:[%s20 + $0x158] sm:$0xff]
        %v10161 = vld [vmem:[%s20 + $0x160] sm:$0xff]
        %v10162 = vld [vmem:[%s20 + $0x168] sm:$0xff]
        %v10163 = vld [vmem:[%s20 + $0x170] sm:$0xff]
        %v10164 = vld [vmem:[%s20 + $0x178] sm:$0xff]
        %v10165 = vld [vmem:[%s20 + $0x180] sm:$0xff]
        %v10166 = vld [vmem:[%s20 + $0x188] sm:$0xff]
        %v10167 = vld [vmem:[%s20 + $0x190] sm:$0xff]
        %v10168 = vld [vmem:[%s20 + $0x198] sm:$0xff]
        %v10169 = vld [vmem:[%s20 + $0x1a0] sm:$0xff]
        %v10170 = vld [vmem:[%s20 + $0x1a8] sm:$0xff]
        %v10171 = vld [vmem:[%s20 + $0x1b0] sm:$0xff]
        %v10172 = vld [vmem:[%s20 + $0x1b8] sm:$0xff]
        %v10173 = vld [vmem:[%s20 + $0x1c0] sm:$0xff]
        %v10174 = vld [vmem:[%s20 + $0x1c8] sm:$0xff]
        %v10175 = vld [vmem:[%s20 + $0x1d0] sm:$0xff]
        %v10176 = vld [vmem:[%s20 + $0x1d8] sm:$0xff]
        %v10177 = vld [vmem:[%s20 + $0x1e0] sm:$0xff]
        %v10178 = vld [vmem:[%s20 + $0x1e8] sm:$0xff]
        %v10179 = vld [vmem:[%s20 + $0x1f0] sm:$0xff]
        %v10180 = vld [vmem:[%s20 + $0x1f8] sm:$0xff]
        %v10181 = vld [vmem:[%s20 + $0x200] sm:$0xff]
        %v10182 = vld [vmem:[%s20 + $0x208] sm:$0xff]
        %v10183 = vld [vmem:[%s20 + $0x210] sm:$0xff]
        %v10184 = vld [vmem:[%s20 + $0x218] sm:$0xff]
        %v10185 = vld [vmem:[%s20 + $0x220] sm:$0xff]
        %v10186 = vld [vmem:[%s20 + $0x228] sm:$0xff]
        %v10187 = vld [vmem:[%s20 + $0x230] sm:$0xff]
        %v10188 = vld [vmem:[%s20 + $0x238] sm:$0xff]
        %v10189 = vld [vmem:[%s20 + $0x240] sm:$0xff]
        %v10190 = vld [vmem:[%s20 + $0x248] sm:$0xff]
        %v10191 = vld [vmem:[%s20 + $0x250] sm:$0xff]
        %v10192 = vld [vmem:[%s20 + $0x258] sm:$0xff]
        %v10193 = vld [vmem:[%s20 + $0x260] sm:$0xff]
        %v10194 = vld [vmem:[%s20 + $0x268] sm:$0xff]
        %v10195 = vld [vmem:[%s20 + $0x270] sm:$0xff]
        %v10196 = vld [vmem:[%s20 + $0x278] sm:$0xff]
        %v10197 = vld [vmem:[%s20 + $0x280] sm:$0xff]
        %v10198 = vld [vmem:[%s20 + $0x288] sm:$0xff]
        %v10199 = vld [vmem:[%s20 + $0x290] sm:$0xff]
        %v10200 = vld [vmem:[%s20 + $0x298] sm:$0xff]
        %v10201 = vld [vmem:[%s20 + $0x2a0] sm:$0xff]
        %v10202 = vld [vmem:[%s20 + $0x2a8] sm:$0xff]
        %v10203 = vld [vmem:[%s20 + $0x2b0] sm:$0xff]
        %v10204 = vld [vmem:[%s20 + $0x2b8] sm:$0xff]
        %v10205 = vld [vmem:[%s20 + $0x2c0] sm:$0xff]
        %v10206 = vld [vmem:[%s20 + $0x2c8] sm:$0xff]
        %v10207 = vld [vmem:[%s20 + $0x2d0] sm:$0xff]
        %v10208 = vld [vmem:[%s20 + $0x2d8] sm:$0xff]
        %v10209 = vld [vmem:[%s20 + $0x2e0] sm:$0xff]
        %v10210 = vld [vmem:[%s20 + $0x2e8] sm:$0xff]
        %v10211 = vld [vmem:[%s20 + $0x2f0] sm:$0xff]
        %v10212 = vld [vmem:[%s20 + $0x2f8] sm:$0xff]
        %v10213 = vld [vmem:[%s20 + $0x300] sm:$0xff]
        %v10214 = vld [vmem:[%s20 + $0x308] sm:$0xff]
        %v10215 = vld [vmem:[%s20 + $0x310] sm:$0xff]
        %v10216 = vld [vmem:[%s20 + $0x318] sm:$0xff]
        %v10217 = vld [vmem:[%s20 + $0x320] sm:$0xff]
        %v10218 = vld [vmem:[%s20 + $0x328] sm:$0xff]
        %v10219 = vld [vmem:[%s20 + $0x330] sm:$0xff]
        %v10220 = vld [vmem:[%s20 + $0x338] sm:$0xff]
        %v10221 = vld [vmem:[%s20 + $0x340] sm:$0xff]
        %v10222 = vld [vmem:[%s20 + $0x348] sm:$0xff]
        %v10223 = vld [vmem:[%s20 + $0x350] sm:$0xff]
        %v10224 = vld [vmem:[%s20 + $0x358] sm:$0xff]
        %v10225 = vld [vmem:[%s20 + $0x360] sm:$0xff]
        %v10226 = vld [vmem:[%s20 + $0x368] sm:$0xff]
        %v10227 = vld [vmem:[%s20 + $0x370] sm:$0xff]
        %v10228 = vld [vmem:[%s20 + $0x378] sm:$0xff]
        %v10229 = vld [vmem:[%s20 + $0x380] sm:$0xff]
        %v10230 = vld [vmem:[%s20 + $0x388] sm:$0xff]
        %v10231 = vld [vmem:[%s20 + $0x390] sm:$0xff]
        %v10232 = vld [vmem:[%s20 + $0x398] sm:$0xff]
        %v10233 = vld [vmem:[%s20 + $0x3a0] sm:$0xff]
        %v10234 = vld [vmem:[%s20 + $0x3a8] sm:$0xff]
        %v10235 = vld [vmem:[%s20 + $0x3b0] sm:$0xff]
        %v10236 = vld [vmem:[%s20 + $0x3b8] sm:$0xff]
        %v10237 = vld [vmem:[%s21] sm:$0x3]
        %v10239 = vlaneseq
        %v10240 = vshrl.u32 %v10239, 7
        %v10241 = vsub.s32 0, %v10240
        %v10242 = vrot.slane %v10237, %v10241
        %v10243 = vlaneseq
        %v10244 = vshrl.u32 %v10243, 7
        %v10245 = vsub.s32 1, %v10244
        %v10246 = vrot.slane %v10237, %v10245
        %v10369 = vunpack.c.l.b16 %v10117
        %v10370 = vunpack.c.h.b16 %v10117
        %v10371 = vunpack.c.l.b16 %v10118
        %v10372 = vunpack.c.h.b16 %v10118
        %v10373 = vunpack.c.l.b16 %v10119
        %v10374 = vunpack.c.h.b16 %v10119
        %v10375 = vunpack.c.l.b16 %v10120
        %v10376 = vunpack.c.h.b16 %v10120
        %v10377 = vunpack.c.l.b16 %v10121
        %v10378 = vunpack.c.h.b16 %v10121
        %v10379 = vunpack.c.l.b16 %v10122
        %v10380 = vunpack.c.h.b16 %v10122
        %v10381 = vunpack.c.l.b16 %v10123
        %v10382 = vunpack.c.h.b16 %v10123
        %v10383 = vunpack.c.l.b16 %v10124
        %v10384 = vunpack.c.h.b16 %v10124
        %v10385 = vunpack.c.l.b16 %v10125
        %v10386 = vunpack.c.h.b16 %v10125
        %v10387 = vunpack.c.l.b16 %v10126
        %v10388 = vunpack.c.h.b16 %v10126
        %v10389 = vunpack.c.l.b16 %v10127
        %v10390 = vunpack.c.h.b16 %v10127
        %v10391 = vunpack.c.l.b16 %v10128
        %v10392 = vunpack.c.h.b16 %v10128
        %v10393 = vunpack.c.l.b16 %v10129
        %v10394 = vunpack.c.h.b16 %v10129
        %v10395 = vunpack.c.l.b16 %v10130
        %v10396 = vunpack.c.h.b16 %v10130
        %v10397 = vunpack.c.l.b16 %v10131
        %v10398 = vunpack.c.h.b16 %v10131
        %v10399 = vunpack.c.l.b16 %v10132
        %v10400 = vunpack.c.h.b16 %v10132
        %v10401 = vunpack.c.l.b16 %v10133
        %v10402 = vunpack.c.h.b16 %v10133
        %v10403 = vunpack.c.l.b16 %v10134
        %v10404 = vunpack.c.h.b16 %v10134
        %v10405 = vunpack.c.l.b16 %v10135
        %v10406 = vunpack.c.h.b16 %v10135
        %v10407 = vunpack.c.l.b16 %v10136
        %v10408 = vunpack.c.h.b16 %v10136
        %v10409 = vunpack.c.l.b16 %v10137
        %v10410 = vunpack.c.h.b16 %v10137
        %v10411 = vunpack.c.l.b16 %v10138
        %v10412 = vunpack.c.h.b16 %v10138
        %v10413 = vunpack.c.l.b16 %v10139
        %v10414 = vunpack.c.h.b16 %v10139
        %v10415 = vunpack.c.l.b16 %v10140
        %v10416 = vunpack.c.h.b16 %v10140
        %v10417 = vunpack.c.l.b16 %v10141
        %v10418 = vunpack.c.h.b16 %v10141
        %v10419 = vunpack.c.l.b16 %v10142
        %v10420 = vunpack.c.h.b16 %v10142
        %v10421 = vunpack.c.l.b16 %v10143
        %v10422 = vunpack.c.h.b16 %v10143
        %v10423 = vunpack.c.l.b16 %v10144
        %v10424 = vunpack.c.h.b16 %v10144
        %v10425 = vunpack.c.l.b16 %v10145
        %v10426 = vunpack.c.h.b16 %v10145
        %v10427 = vunpack.c.l.b16 %v10146
        %v10428 = vunpack.c.h.b16 %v10146
        %v10429 = vunpack.c.l.b16 %v10147
        %v10430 = vunpack.c.h.b16 %v10147
        %v10431 = vunpack.c.l.b16 %v10148
        %v10432 = vunpack.c.h.b16 %v10148
        %v10433 = vunpack.c.l.b16 %v10149
        %v10434 = vunpack.c.h.b16 %v10149
        %v10435 = vunpack.c.l.b16 %v10150
        %v10436 = vunpack.c.h.b16 %v10150
        %v10437 = vunpack.c.l.b16 %v10151
        %v10438 = vunpack.c.h.b16 %v10151
        %v10439 = vunpack.c.l.b16 %v10152
        %v10440 = vunpack.c.h.b16 %v10152
        %v10441 = vunpack.c.l.b16 %v10153
        %v10442 = vunpack.c.h.b16 %v10153
        %v10443 = vunpack.c.l.b16 %v10154
        %v10444 = vunpack.c.h.b16 %v10154
        %v10445 = vunpack.c.l.b16 %v10155
        %v10446 = vunpack.c.h.b16 %v10155
        %v10447 = vunpack.c.l.b16 %v10156
        %v10448 = vunpack.c.h.b16 %v10156
        %v10449 = vunpack.c.l.b16 %v10157
        %v10450 = vunpack.c.h.b16 %v10157
        %v10451 = vunpack.c.l.b16 %v10158
        %v10452 = vunpack.c.h.b16 %v10158
        %v10453 = vunpack.c.l.b16 %v10159
        %v10454 = vunpack.c.h.b16 %v10159
        %v10455 = vunpack.c.l.b16 %v10160
        %v10456 = vunpack.c.h.b16 %v10160
        %v10457 = vunpack.c.l.b16 %v10161
        %v10458 = vunpack.c.h.b16 %v10161
        %v10459 = vunpack.c.l.b16 %v10162
        %v10460 = vunpack.c.h.b16 %v10162
        %v10461 = vunpack.c.l.b16 %v10163
        %v10462 = vunpack.c.h.b16 %v10163
        %v10463 = vunpack.c.l.b16 %v10164
        %v10464 = vunpack.c.h.b16 %v10164
        %v10465 = vunpack.c.l.b16 %v10165
        %v10466 = vunpack.c.h.b16 %v10165
        %v10467 = vunpack.c.l.b16 %v10166
        %v10468 = vunpack.c.h.b16 %v10166
        %v10469 = vunpack.c.l.b16 %v10167
        %v10470 = vunpack.c.h.b16 %v10167
        %v10471 = vunpack.c.l.b16 %v10168
        %v10472 = vunpack.c.h.b16 %v10168
        %v10473 = vunpack.c.l.b16 %v10169
        %v10474 = vunpack.c.h.b16 %v10169
        %v10475 = vunpack.c.l.b16 %v10170
        %v10476 = vunpack.c.h.b16 %v10170
        %v10477 = vunpack.c.l.b16 %v10171
        %v10478 = vunpack.c.h.b16 %v10171
        %v10479 = vunpack.c.l.b16 %v10172
        %v10480 = vunpack.c.h.b16 %v10172
        %v10481 = vunpack.c.l.b16 %v10173
        %v10482 = vunpack.c.h.b16 %v10173
        %v10483 = vunpack.c.l.b16 %v10174
        %v10484 = vunpack.c.h.b16 %v10174
        %v10485 = vunpack.c.l.b16 %v10175
        %v10486 = vunpack.c.h.b16 %v10175
        %v10487 = vunpack.c.l.b16 %v10176
        %v10488 = vunpack.c.h.b16 %v10176
        %v10489 = vunpack.c.l.b16 %v10177
        %v10490 = vunpack.c.h.b16 %v10177
        %v10491 = vunpack.c.l.b16 %v10178
        %v10492 = vunpack.c.h.b16 %v10178
        %v10493 = vunpack.c.l.b16 %v10179
        %v10494 = vunpack.c.h.b16 %v10179
        %v10495 = vunpack.c.l.b16 %v10180
        %v10496 = vunpack.c.h.b16 %v10180
        %v10497 = vunpack.c.l.b16 %v10181
        %v10498 = vunpack.c.h.b16 %v10181
        %v10499 = vunpack.c.l.b16 %v10182
        %v10500 = vunpack.c.h.b16 %v10182
        %v10501 = vunpack.c.l.b16 %v10183
        %v10502 = vunpack.c.h.b16 %v10183
        %v10503 = vunpack.c.l.b16 %v10184
        %v10504 = vunpack.c.h.b16 %v10184
        %v10505 = vunpack.c.l.b16 %v10185
        %v10506 = vunpack.c.h.b16 %v10185
        %v10507 = vunpack.c.l.b16 %v10186
        %v10508 = vunpack.c.h.b16 %v10186
        %v10509 = vunpack.c.l.b16 %v10187
        %v10510 = vunpack.c.h.b16 %v10187
        %v10511 = vunpack.c.l.b16 %v10188
        %v10512 = vunpack.c.h.b16 %v10188
        %v10513 = vunpack.c.l.b16 %v10189
        %v10514 = vunpack.c.h.b16 %v10189
        %v10515 = vunpack.c.l.b16 %v10190
        %v10516 = vunpack.c.h.b16 %v10190
        %v10517 = vunpack.c.l.b16 %v10191
        %v10518 = vunpack.c.h.b16 %v10191
        %v10519 = vunpack.c.l.b16 %v10192
        %v10520 = vunpack.c.h.b16 %v10192
        %v10521 = vunpack.c.l.b16 %v10193
        %v10522 = vunpack.c.h.b16 %v10193
        %v10523 = vunpack.c.l.b16 %v10194
        %v10524 = vunpack.c.h.b16 %v10194
        %v10525 = vunpack.c.l.b16 %v10195
        %v10526 = vunpack.c.h.b16 %v10195
        %v10527 = vunpack.c.l.b16 %v10196
        %v10528 = vunpack.c.h.b16 %v10196
        %v10529 = vunpack.c.l.b16 %v10197
        %v10530 = vunpack.c.h.b16 %v10197
        %v10531 = vunpack.c.l.b16 %v10198
        %v10532 = vunpack.c.h.b16 %v10198
        %v10533 = vunpack.c.l.b16 %v10199
        %v10534 = vunpack.c.h.b16 %v10199
        %v10535 = vunpack.c.l.b16 %v10200
        %v10536 = vunpack.c.h.b16 %v10200
        %v10537 = vunpack.c.l.b16 %v10201
        %v10538 = vunpack.c.h.b16 %v10201
        %v10539 = vunpack.c.l.b16 %v10202
        %v10540 = vunpack.c.h.b16 %v10202
        %v10541 = vunpack.c.l.b16 %v10203
        %v10542 = vunpack.c.h.b16 %v10203
        %v10543 = vunpack.c.l.b16 %v10204
        %v10544 = vunpack.c.h.b16 %v10204
        %v10545 = vunpack.c.l.b16 %v10205
        %v10546 = vunpack.c.h.b16 %v10205
        %v10547 = vunpack.c.l.b16 %v10206
        %v10548 = vunpack.c.h.b16 %v10206
        %v10549 = vunpack.c.l.b16 %v10207
        %v10550 = vunpack.c.h.b16 %v10207
        %v10551 = vunpack.c.l.b16 %v10208
        %v10552 = vunpack.c.h.b16 %v10208
        %v10553 = vunpack.c.l.b16 %v10209
        %v10554 = vunpack.c.h.b16 %v10209
        %v10555 = vunpack.c.l.b16 %v10210
        %v10556 = vunpack.c.h.b16 %v10210
        %v10557 = vunpack.c.l.b16 %v10211
        %v10558 = vunpack.c.h.b16 %v10211
        %v10559 = vunpack.c.l.b16 %v10212
        %v10560 = vunpack.c.h.b16 %v10212
        %v10561 = vunpack.c.l.b16 %v10213
        %v10562 = vunpack.c.h.b16 %v10213
        %v10563 = vunpack.c.l.b16 %v10214
        %v10564 = vunpack.c.h.b16 %v10214
        %v10565 = vunpack.c.l.b16 %v10215
        %v10566 = vunpack.c.h.b16 %v10215
        %v10567 = vunpack.c.l.b16 %v10216
        %v10568 = vunpack.c.h.b16 %v10216
        %v10569 = vunpack.c.l.b16 %v10217
        %v10570 = vunpack.c.h.b16 %v10217
        %v10571 = vunpack.c.l.b16 %v10218
        %v10572 = vunpack.c.h.b16 %v10218
        %v10573 = vunpack.c.l.b16 %v10219
        %v10574 = vunpack.c.h.b16 %v10219
        %v10575 = vunpack.c.l.b16 %v10220
        %v10576 = vunpack.c.h.b16 %v10220
        %v10577 = vunpack.c.l.b16 %v10221
        %v10578 = vunpack.c.h.b16 %v10221
        %v10579 = vunpack.c.l.b16 %v10222
        %v10580 = vunpack.c.h.b16 %v10222
        %v10581 = vunpack.c.l.b16 %v10223
        %v10582 = vunpack.c.h.b16 %v10223
        %v10583 = vunpack.c.l.b16 %v10224
        %v10584 = vunpack.c.h.b16 %v10224
        %v10585 = vunpack.c.l.b16 %v10225
        %v10586 = vunpack.c.h.b16 %v10225
        %v10587 = vunpack.c.l.b16 %v10226
        %v10588 = vunpack.c.h.b16 %v10226
        %v10589 = vunpack.c.l.b16 %v10227
        %v10590 = vunpack.c.h.b16 %v10227
        %v10591 = vunpack.c.l.b16 %v10228
        %v10592 = vunpack.c.h.b16 %v10228
        %v10593 = vunpack.c.l.b16 %v10229
        %v10594 = vunpack.c.h.b16 %v10229
        %v10595 = vunpack.c.l.b16 %v10230
        %v10596 = vunpack.c.h.b16 %v10230
        %v10597 = vunpack.c.l.b16 %v10231
        %v10598 = vunpack.c.h.b16 %v10231
        %v10599 = vunpack.c.l.b16 %v10232
        %v10600 = vunpack.c.h.b16 %v10232
        %v10601 = vunpack.c.l.b16 %v10233
        %v10602 = vunpack.c.h.b16 %v10233
        %v10603 = vunpack.c.l.b16 %v10234
        %v10604 = vunpack.c.h.b16 %v10234
        %v10605 = vunpack.c.l.b16 %v10235
        %v10606 = vunpack.c.h.b16 %v10235
        %v10607 = vunpack.c.l.b16 %v10236
        %v10608 = vunpack.c.h.b16 %v10236
        %v10609 = vpack.c.b16 %v10371, %v10369
        %v10610 = vpack.c.b16 %v10372, %v10370
        %v10611 = vpack.c.b16 %v10375, %v10373
        %v10612 = vpack.c.b16 %v10376, %v10374
        %v10613 = vpack.c.b16 %v10379, %v10377
        %v10614 = vpack.c.b16 %v10380, %v10378
        %v10615 = vpack.c.b16 %v10383, %v10381
        %v10616 = vpack.c.b16 %v10384, %v10382
        %v10617 = vpack.c.b16 %v10387, %v10385
        %v10618 = vpack.c.b16 %v10388, %v10386
        %v10619 = vpack.c.b16 %v10391, %v10389
        %v10620 = vpack.c.b16 %v10392, %v10390
        %v10621 = vpack.c.b16 %v10395, %v10393
        %v10622 = vpack.c.b16 %v10396, %v10394
        %v10623 = vpack.c.b16 %v10399, %v10397
        %v10624 = vpack.c.b16 %v10400, %v10398
        %v10625 = vpack.c.b16 %v10403, %v10401
        %v10626 = vpack.c.b16 %v10404, %v10402
        %v10627 = vpack.c.b16 %v10407, %v10405
        %v10628 = vpack.c.b16 %v10408, %v10406
        %v10629 = vpack.c.b16 %v10411, %v10409
        %v10630 = vpack.c.b16 %v10412, %v10410
        %v10631 = vpack.c.b16 %v10415, %v10413
        %v10632 = vpack.c.b16 %v10416, %v10414
        %v10633 = vpack.c.b16 %v10419, %v10417
        %v10634 = vpack.c.b16 %v10420, %v10418
        %v10635 = vpack.c.b16 %v10423, %v10421
        %v10636 = vpack.c.b16 %v10424, %v10422
        %v10637 = vpack.c.b16 %v10427, %v10425
        %v10638 = vpack.c.b16 %v10428, %v10426
        %v10639 = vpack.c.b16 %v10431, %v10429
        %v10640 = vpack.c.b16 %v10432, %v10430
        %v10641 = vpack.c.b16 %v10435, %v10433
        %v10642 = vpack.c.b16 %v10436, %v10434
        %v10643 = vpack.c.b16 %v10439, %v10437
        %v10644 = vpack.c.b16 %v10440, %v10438
        %v10645 = vpack.c.b16 %v10443, %v10441
        %v10646 = vpack.c.b16 %v10444, %v10442
        %v10647 = vpack.c.b16 %v10447, %v10445
        %v10648 = vpack.c.b16 %v10448, %v10446
        %v10649 = vpack.c.b16 %v10451, %v10449
        %v10650 = vpack.c.b16 %v10452, %v10450
        %v10651 = vpack.c.b16 %v10455, %v10453
        %v10652 = vpack.c.b16 %v10456, %v10454
        %v10653 = vpack.c.b16 %v10459, %v10457
        %v10654 = vpack.c.b16 %v10460, %v10458
        %v10655 = vpack.c.b16 %v10463, %v10461
        %v10656 = vpack.c.b16 %v10464, %v10462
        %v10657 = vpack.c.b16 %v10467, %v10465
        %v10658 = vpack.c.b16 %v10468, %v10466
        %v10659 = vpack.c.b16 %v10471, %v10469
        %v10660 = vpack.c.b16 %v10472, %v10470
        %v10661 = vpack.c.b16 %v10475, %v10473
        %v10662 = vpack.c.b16 %v10476, %v10474
        %v10663 = vpack.c.b16 %v10479, %v10477
        %v10664 = vpack.c.b16 %v10480, %v10478
        %v10665 = vpack.c.b16 %v10483, %v10481
        %v10666 = vpack.c.b16 %v10484, %v10482
        %v10667 = vpack.c.b16 %v10487, %v10485
        %v10668 = vpack.c.b16 %v10488, %v10486
        %v10669 = vpack.c.b16 %v10491, %v10489
        %v10670 = vpack.c.b16 %v10492, %v10490
        %v10671 = vpack.c.b16 %v10495, %v10493
        %v10672 = vpack.c.b16 %v10496, %v10494
        %v10673 = vpack.c.b16 %v10499, %v10497
        %v10674 = vpack.c.b16 %v10500, %v10498
        %v10675 = vpack.c.b16 %v10503, %v10501
        %v10676 = vpack.c.b16 %v10504, %v10502
        %v10677 = vpack.c.b16 %v10507, %v10505
        %v10678 = vpack.c.b16 %v10508, %v10506
        %v10679 = vpack.c.b16 %v10511, %v10509
        %v10680 = vpack.c.b16 %v10512, %v10510
        %v10681 = vpack.c.b16 %v10515, %v10513
        %v10682 = vpack.c.b16 %v10516, %v10514
        %v10683 = vpack.c.b16 %v10519, %v10517
        %v10684 = vpack.c.b16 %v10520, %v10518
        %v10685 = vpack.c.b16 %v10523, %v10521
        %v10686 = vpack.c.b16 %v10524, %v10522
        %v10687 = vpack.c.b16 %v10527, %v10525
        %v10688 = vpack.c.b16 %v10528, %v10526
        %v10689 = vpack.c.b16 %v10531, %v10529
        %v10690 = vpack.c.b16 %v10532, %v10530
        %v10691 = vpack.c.b16 %v10535, %v10533
        %v10692 = vpack.c.b16 %v10536, %v10534
        %v10693 = vpack.c.b16 %v10539, %v10537
        %v10694 = vpack.c.b16 %v10540, %v10538
        %v10695 = vpack.c.b16 %v10543, %v10541
        %v10696 = vpack.c.b16 %v10544, %v10542
        %v10697 = vpack.c.b16 %v10547, %v10545
        %v10698 = vpack.c.b16 %v10548, %v10546
        %v10699 = vpack.c.b16 %v10551, %v10549
        %v10700 = vpack.c.b16 %v10552, %v10550
        %v10701 = vpack.c.b16 %v10555, %v10553
        %v10702 = vpack.c.b16 %v10556, %v10554
        %v10703 = vpack.c.b16 %v10559, %v10557
        %v10704 = vpack.c.b16 %v10560, %v10558
        %v10705 = vpack.c.b16 %v10563, %v10561
        %v10706 = vpack.c.b16 %v10564, %v10562
        %v10707 = vpack.c.b16 %v10567, %v10565
        %v10708 = vpack.c.b16 %v10568, %v10566
        %v10709 = vpack.c.b16 %v10571, %v10569
        %v10710 = vpack.c.b16 %v10572, %v10570
        %v10711 = vpack.c.b16 %v10575, %v10573
        %v10712 = vpack.c.b16 %v10576, %v10574
        %v10713 = vpack.c.b16 %v10579, %v10577
        %v10714 = vpack.c.b16 %v10580, %v10578
        %v10715 = vpack.c.b16 %v10583, %v10581
        %v10716 = vpack.c.b16 %v10584, %v10582
        %v10717 = vpack.c.b16 %v10587, %v10585
        %v10718 = vpack.c.b16 %v10588, %v10586
        %v10719 = vpack.c.b16 %v10591, %v10589
        %v10720 = vpack.c.b16 %v10592, %v10590
        %v10721 = vpack.c.b16 %v10595, %v10593
        %v10722 = vpack.c.b16 %v10596, %v10594
        %v10723 = vpack.c.b16 %v10599, %v10597
        %v10724 = vpack.c.b16 %v10600, %v10598
        %v10725 = vpack.c.b16 %v10603, %v10601
        %v10726 = vpack.c.b16 %v10604, %v10602
        %v10727 = vpack.c.b16 %v10607, %v10605
        %v10728 = vpack.c.b16 %v10608, %v10606
        %v10850 = vsel %vm3403, %v10108, 0
        %v10853 = vsel %vm3403, %v10116, 0
        %10855 = vmatprep.subr.bf16.mxu0 %v10610
        %10856 = vmatpush1.bf16.msra.mxu0 %v10609
        %10857 = vmatprep.subr.bf16.mxu0 %v10612
        %10858 = vmatpush1.bf16.msra.mxu0 %v10611
        %10859 = vmatprep.subr.bf16.mxu0 %v10614
        %10860 = vmatpush1.bf16.msra.mxu0 %v10613
        %10861 = vmatprep.subr.bf16.mxu0 %v10616
        %10862 = vmatpush1.bf16.msra.mxu0 %v10615
        %10863 = vmatprep.subr.bf16.mxu0 %v10618
        %10864 = vmatpush1.bf16.msra.mxu0 %v10617
        %10865 = vmatprep.subr.bf16.mxu0 %v10620
        %10866 = vmatpush1.bf16.msra.mxu0 %v10619
        %10867 = vmatprep.subr.bf16.mxu0 %v10622
        %10868 = vmatpush1.bf16.msra.mxu0 %v10621
        %10869 = vmatprep.subr.bf16.mxu0 %v10624
        %10870 = vmatpush1.bf16.msra.mxu0 %v10623
        %10871 = vmatprep.subr.bf16.mxu0 %v10626
        %10872 = vmatpush1.bf16.msra.mxu0 %v10625
        %10873 = vmatprep.subr.bf16.mxu0 %v10628
        %10874 = vmatpush1.bf16.msra.mxu0 %v10627
        %10875 = vmatprep.subr.bf16.mxu0 %v10630
        %10876 = vmatpush1.bf16.msra.mxu0 %v10629
        %10877 = vmatprep.subr.bf16.mxu0 %v10632
        %10878 = vmatpush1.bf16.msra.mxu0 %v10631
        %10879 = vmatprep.subr.bf16.mxu0 %v10634
        %10880 = vmatpush1.bf16.msra.mxu0 %v10633
        %10881 = vmatprep.subr.bf16.mxu0 %v10636
        %10882 = vmatpush1.bf16.msra.mxu0 %v10635
        %10883 = vmatprep.subr.bf16.mxu0 %v10638
        %10884 = vmatpush1.bf16.msra.mxu0 %v10637
        %10885 = vmatprep.subr.bf16.mxu0 %v10640
        %10886 = vmatpush1.bf16.msra.mxu0 %v10639
        %10887 = vmatprep.mubr.bf16.mxu0 %v10102
        %10888 = vmatmul.mubr.bf16.gmra.mrb[0].mxu0 %v10101
        %v10889 = vpop.f32.mrb[0].mxu0
        %v10890 = vadd.f32 %v10242, %v10889
        %v10891 = vpop.f32.mrb[0].mxu0
        %v10892 = vadd.f32 %v10246, %v10891
        %v10893 = vpop.f32.mrb[0].mxu0
        %v10894 = vadd.f32 %v10242, %v10893
        %v10895 = vpop.f32.mrb[0].mxu0
        %v10896 = vadd.f32 %v10246, %v10895
        %10897 = vmatprep.mubr.bf16.mxu0 %v10110
        %10898 = vmatmul.mubr.bf16.gmra.mrb[0].mxu0 %v10109
        %v10899 = vpop.f32.mrb[0].mxu0
        %v10900 = vadd.f32 %v10242, %v10899
        %v10901 = vpop.f32.mrb[0].mxu0
        %v10902 = vadd.f32 %v10246, %v10901
        %v10903 = vpop.f32.mrb[0].mxu0
        %v10904 = vadd.f32 %v10242, %v10903
        %v10905 = vpop.f32.mrb[0].mxu0
        %v10906 = vadd.f32 %v10246, %v10905
        %10907 = vdwg.mxu0
        %10908 = vmatprep.subr.bf16.mxu0 %v10642
        %10909 = vmatpush1.bf16.msra.mxu0 %v10641
        %10910 = vmatprep.subr.bf16.mxu0 %v10644
        %10911 = vmatpush1.bf16.msra.mxu0 %v10643
        %10912 = vmatprep.subr.bf16.mxu0 %v10646
        %10913 = vmatpush1.bf16.msra.mxu0 %v10645
        %10914 = vmatprep.subr.bf16.mxu0 %v10648
        %10915 = vmatpush1.bf16.msra.mxu0 %v10647
        %10916 = vmatprep.subr.bf16.mxu0 %v10650
        %10917 = vmatpush1.bf16.msra.mxu0 %v10649
        %10918 = vmatprep.subr.bf16.mxu0 %v10652
        %10919 = vmatpush1.bf16.msra.mxu0 %v10651
        %10920 = vmatprep.subr.bf16.mxu0 %v10654
        %10921 = vmatpush1.bf16.msra.mxu0 %v10653
        %10922 = vmatprep.subr.bf16.mxu0 %v10656
        %10923 = vmatpush1.bf16.msra.mxu0 %v10655
        %10924 = vmatprep.subr.bf16.mxu0 %v10658
        %10925 = vmatpush1.bf16.msra.mxu0 %v10657
        %10926 = vmatprep.subr.bf16.mxu0 %v10660
        %10927 = vmatpush1.bf16.msra.mxu0 %v10659
        %10928 = vmatprep.subr.bf16.mxu0 %v10662
        %10929 = vmatpush1.bf16.msra.mxu0 %v10661
        %10930 = vmatprep.subr.bf16.mxu0 %v10664
        %10931 = vmatpush1.bf16.msra.mxu0 %v10663
        %10932 = vmatprep.subr.bf16.mxu0 %v10666
        %10933 = vmatpush1.bf16.msra.mxu0 %v10665
        %10934 = vmatprep.subr.bf16.mxu0 %v10668
        %10935 = vmatpush1.bf16.msra.mxu0 %v10667
        %10936 = vmatprep.subr.bf16.mxu0 %v10670
        %10937 = vmatpush1.bf16.msra.mxu0 %v10669
        %10938 = vmatprep.subr.bf16.mxu0 %v10672
        %10939 = vmatpush1.bf16.msra.mxu0 %v10671
        %10940 = vmatprep.mubr.bf16.mxu0 %v10104
        %10941 = vmatmul.mubr.bf16.gmra.mrb[0].mxu0 %v10103
        %v10942 = vpop.f32.mrb[0].mxu0
        %v10943 = vadd.f32 %v10890, %v10942
        %v10944 = vpop.f32.mrb[0].mxu0
        %v10945 = vadd.f32 %v10892, %v10944
        %v10946 = vpop.f32.mrb[0].mxu0
        %v10947 = vadd.f32 %v10894, %v10946
        %v10948 = vpop.f32.mrb[0].mxu0
        %v10949 = vadd.f32 %v10896, %v10948
        %10950 = vmatprep.mubr.bf16.mxu0 %v10112
        %10951 = vmatmul.mubr.bf16.gmra.mrb[0].mxu0 %v10111
        %v10952 = vpop.f32.mrb[0].mxu0
        %v10953 = vadd.f32 %v10900, %v10952
        %v10954 = vpop.f32.mrb[0].mxu0
        %v10955 = vadd.f32 %v10902, %v10954
        %v10956 = vpop.f32.mrb[0].mxu0
        %v10957 = vadd.f32 %v10904, %v10956
        %v10958 = vpop.f32.mrb[0].mxu0
        %v10959 = vadd.f32 %v10906, %v10958
        %10960 = vdwg.mxu0
        %10961 = vmatprep.subr.bf16.mxu0 %v10674
        %10962 = vmatpush1.bf16.msra.mxu0 %v10673
        %10963 = vmatprep.subr.bf16.mxu0 %v10676
        %10964 = vmatpush1.bf16.msra.mxu0 %v10675
        %10965 = vmatprep.subr.bf16.mxu0 %v10678
        %10966 = vmatpush1.bf16.msra.mxu0 %v10677
        %10967 = vmatprep.subr.bf16.mxu0 %v10680
        %10968 = vmatpush1.bf16.msra.mxu0 %v10679
        %10969 = vmatprep.subr.bf16.mxu0 %v10682
        %10970 = vmatpush1.bf16.msra.mxu0 %v10681
        %10971 = vmatprep.subr.bf16.mxu0 %v10684
        %10972 = vmatpush1.bf16.msra.mxu0 %v10683
        %10973 = vmatprep.subr.bf16.mxu0 %v10686
        %10974 = vmatpush1.bf16.msra.mxu0 %v10685
        %10975 = vmatprep.subr.bf16.mxu0 %v10688
        %10976 = vmatpush1.bf16.msra.mxu0 %v10687
        %10977 = vmatprep.subr.bf16.mxu0 %v10690
        %10978 = vmatpush1.bf16.msra.mxu0 %v10689
        %10979 = vmatprep.subr.bf16.mxu0 %v10692
        %10980 = vmatpush1.bf16.msra.mxu0 %v10691
        %10981 = vmatprep.subr.bf16.mxu0 %v10694
        %10982 = vmatpush1.bf16.msra.mxu0 %v10693
        %10983 = vmatprep.subr.bf16.mxu0 %v10696
        %10984 = vmatpush1.bf16.msra.mxu0 %v10695
        %10985 = vmatprep.subr.bf16.mxu0 %v10698
        %10986 = vmatpush1.bf16.msra.mxu0 %v10697
        %10987 = vmatprep.subr.bf16.mxu0 %v10700
        %10988 = vmatpush1.bf16.msra.mxu0 %v10699
        %10989 = vmatprep.subr.bf16.mxu0 %v10702
        %10990 = vmatpush1.bf16.msra.mxu0 %v10701
        %10991 = vmatprep.subr.bf16.mxu0 %v10704
        %10992 = vmatpush1.bf16.msra.mxu0 %v10703
        %10993 = vmatprep.mubr.bf16.mxu0 %v10106
        %10994 = vmatmul.mubr.bf16.gmra.mrb[0].mxu0 %v10105
        %v10995 = vpop.f32.mrb[0].mxu0
        %v10996 = vadd.f32 %v10943, %v10995
        %v10997 = vpop.f32.mrb[0].mxu0
        %v10998 = vadd.f32 %v10945, %v10997
        %v10999 = vpop.f32.mrb[0].mxu0
        %v11000 = vadd.f32 %v10947, %v10999
        %v11001 = vpop.f32.mrb[0].mxu0
        %v11002 = vadd.f32 %v10949, %v11001
        %11003 = vmatprep.mubr.bf16.mxu0 %v10114
        %11004 = vmatmul.mubr.bf16.gmra.mrb[0].mxu0 %v10113
        %v11005 = vpop.f32.mrb[0].mxu0
        %v11006 = vadd.f32 %v10953, %v11005
        %v11007 = vpop.f32.mrb[0].mxu0
        %v11008 = vadd.f32 %v10955, %v11007
        %v11009 = vpop.f32.mrb[0].mxu0
        %v11010 = vadd.f32 %v10957, %v11009
        %v11011 = vpop.f32.mrb[0].mxu0
        %v11012 = vadd.f32 %v10959, %v11011
        %11013 = vdwg.mxu0
        %11014 = vmatprep.subr.bf16.mxu0 %v10706
        %11015 = vmatpush1.bf16.msra.mxu0 %v10705
        %11016 = vmatprep.subr.bf16.mxu0 %v10708
        %11017 = vmatpush1.bf16.msra.mxu0 %v10707
        %11018 = vmatprep.subr.bf16.mxu0 %v10710
        %11019 = vmatpush1.bf16.msra.mxu0 %v10709
        %11020 = vmatprep.subr.bf16.mxu0 %v10712
        %11021 = vmatpush1.bf16.msra.mxu0 %v10711
        %11022 = vmatprep.subr.bf16.mxu0 %v10714
        %11023 = vmatpush1.bf16.msra.mxu0 %v10713
        %11024 = vmatprep.subr.bf16.mxu0 %v10716
        %11025 = vmatpush1.bf16.msra.mxu0 %v10715
        %11026 = vmatprep.subr.bf16.mxu0 %v10718
        %11027 = vmatpush1.bf16.msra.mxu0 %v10717
        %11028 = vmatprep.subr.bf16.mxu0 %v10720
        %11029 = vmatpush1.bf16.msra.mxu0 %v10719
        %11030 = vmatprep.subr.bf16.mxu0 %v10722
        %11031 = vmatpush1.bf16.msra.mxu0 %v10721
        %11032 = vmatprep.subr.bf16.mxu0 %v10724
        %11033 = vmatpush1.bf16.msra.mxu0 %v10723
        %11034 = vmatprep.subr.bf16.mxu0 %v10726
        %11035 = vmatpush1.bf16.msra.mxu0 %v10725
        %11036 = vmatprep.subr.bf16.mxu0 %v10728
        %11037 = vmatpush1.bf16.msra.mxu0 %v10727
        %11038 = vmatprep.subr.bf16.mxu0 0
        %11039 = vmatpush1.bf16.msra.mxu0 0
        %11040 = vmatprep.subr.bf16.mxu0 0
        %11041 = vmatpush1.bf16.msra.mxu0 0
        %11042 = vmatprep.subr.bf16.mxu0 0
        %11043 = vmatpush1.bf16.msra.mxu0 0
        %11044 = vmatprep.subr.bf16.mxu0 0
        %11045 = vmatpush1.bf16.msra.mxu0 0
        %11046 = vmatprep.mubr.bf16.mxu0 %v10850
        %11047 = vmatmul.mubr.bf16.gmra.mrb[0].mxu0 %v10107
        %v11048 = vpop.f32.mrb[0].mxu0
        %v11049 = vadd.f32 %v10996, %v11048
        %v11050 = vpop.f32.mrb[0].mxu0
        %v11051 = vadd.f32 %v10998, %v11050
        %v11052 = vpop.f32.mrb[0].mxu0
        %v11053 = vadd.f32 %v11000, %v11052
        %v11054 = vpop.f32.mrb[0].mxu0
        %v11055 = vadd.f32 %v11002, %v11054
        %11056 = vmatprep.mubr.bf16.mxu0 %v10853
        %11057 = vmatmul.mubr.bf16.gmra.mrb[0].mxu0 %v10115
        %v11058 = vpop.f32.mrb[0].mxu0
        %v11059 = vadd.f32 %v11006, %v11058
        %v11060 = vpop.f32.mrb[0].mxu0
        %v11061 = vadd.f32 %v11008, %v11060
        %v11062 = vpop.f32.mrb[0].mxu0
        %v11063 = vadd.f32 %v11010, %v11062
        %v11064 = vpop.f32.mrb[0].mxu0
        %v11065 = vadd.f32 %v11012, %v11064
        %11066 = vdwg.mxu0
        %v11067 = vadd.f32 %v11049, %v7407
        %v11068 = vadd.f32 %v11051, %v7408
        %v11069 = vadd.f32 %v11053, %v7409
        %v11070 = vadd.f32 %v11055, %v7410
        %v11071 = vadd.f32 %v11059, %v7411
        %v11072 = vadd.f32 %v11061, %v7412
        %v11073 = vadd.f32 %v11063, %v7413
        %v11074 = vadd.f32 %v11065, %v7414
        %v11075 = vpack.c.bf16 %v11069, %v11067
        %v11076 = vpack.c.bf16 %v11070, %v11068
        %v11077 = vpack.c.bf16 %v11073, %v11071
        %v11078 = vpack.c.bf16 %v11074, %v11072
        %v11079 = vld [vmem:[%s22] sm:$0xff]
        %v11080 = vld [vmem:[%s22 + $0x8] sm:$0xff]
        %v11081 = vld [vmem:[%s22 + $0x10] sm:$0xff]
        %v11082 = vld [vmem:[%s22 + $0x18] sm:$0xff]
        %v11083 = vld [vmem:[%s22 + $0x20] sm:$0xff]
        %v11084 = vld [vmem:[%s22 + $0x28] sm:$0xff]
        %v11085 = vld [vmem:[%s22 + $0x30] sm:$0xff]
        %v11086 = vld [vmem:[%s22 + $0x38] sm:$0xff]
        %v11087 = vld [vmem:[%s22 + $0x40] sm:$0xff]
        %v11088 = vld [vmem:[%s22 + $0x48] sm:$0xff]
        %v11089 = vld [vmem:[%s22 + $0x50] sm:$0xff]
        %v11090 = vld [vmem:[%s22 + $0x58] sm:$0xff]
        %v11091 = vld [vmem:[%s22 + $0x60] sm:$0xff]
        %v11092 = vld [vmem:[%s22 + $0x68] sm:$0xff]
        %v11093 = vld [vmem:[%s22 + $0x70] sm:$0xff]
        %v11094 = vld [vmem:[%s22 + $0x78] sm:$0xff]
        %v11095 = vld [vmem:[%s22 + $0x80] sm:$0xff]
        %v11096 = vld [vmem:[%s22 + $0x88] sm:$0xff]
        %v11097 = vld [vmem:[%s22 + $0x90] sm:$0xff]
        %v11098 = vld [vmem:[%s22 + $0x98] sm:$0xff]
        %v11099 = vld [vmem:[%s23] sm:$0x3]
        %v11101 = vlaneseq
        %v11102 = vshrl.u32 %v11101, 7
        %v11103 = vsub.s32 0, %v11102
        %v11104 = vrot.slane %v11099, %v11103
        %v11105 = vlaneseq
        %v11106 = vshrl.u32 %v11105, 7
        %v11107 = vsub.s32 1, %v11106
        %v11108 = vrot.slane %v11099, %v11107
        %v11131 = vunpack.c.l.b16 %v11079
        %v11132 = vunpack.c.h.b16 %v11079
        %v11133 = vunpack.c.l.b16 %v11080
        %v11134 = vunpack.c.h.b16 %v11080
        %v11135 = vunpack.c.l.b16 %v11081
        %v11136 = vunpack.c.h.b16 %v11081
        %v11137 = vunpack.c.l.b16 %v11082
        %v11138 = vunpack.c.h.b16 %v11082
        %v11139 = vunpack.c.l.b16 %v11083
        %v11140 = vunpack.c.h.b16 %v11083
        %v11141 = vunpack.c.l.b16 %v11084
        %v11142 = vunpack.c.h.b16 %v11084
        %v11143 = vunpack.c.l.b16 %v11085
        %v11144 = vunpack.c.h.b16 %v11085
        %v11145 = vunpack.c.l.b16 %v11086
        %v11146 = vunpack.c.h.b16 %v11086
        %v11147 = vunpack.c.l.b16 %v11087
        %v11148 = vunpack.c.h.b16 %v11087
        %v11149 = vunpack.c.l.b16 %v11088
        %v11150 = vunpack.c.h.b16 %v11088
        %v11151 = vunpack.c.l.b16 %v11089
        %v11152 = vunpack.c.h.b16 %v11089
        %v11153 = vunpack.c.l.b16 %v11090
        %v11154 = vunpack.c.h.b16 %v11090
        %v11155 = vunpack.c.l.b16 %v11091
        %v11156 = vunpack.c.h.b16 %v11091
        %v11157 = vunpack.c.l.b16 %v11092
        %v11158 = vunpack.c.h.b16 %v11092
        %v11159 = vunpack.c.l.b16 %v11093
        %v11160 = vunpack.c.h.b16 %v11093
        %v11161 = vunpack.c.l.b16 %v11094
        %v11162 = vunpack.c.h.b16 %v11094
        %v11163 = vunpack.c.l.b16 %v11095
        %v11164 = vunpack.c.h.b16 %v11095
        %v11165 = vunpack.c.l.b16 %v11096
        %v11166 = vunpack.c.h.b16 %v11096
        %v11167 = vunpack.c.l.b16 %v11097
        %v11168 = vunpack.c.h.b16 %v11097
        %v11169 = vunpack.c.l.b16 %v11098
        %v11170 = vunpack.c.h.b16 %v11098
        %v11171 = vpack.c.b16 %v11133, %v11131
        %v11172 = vpack.c.b16 %v11134, %v11132
        %v11173 = vpack.c.b16 %v11137, %v11135
        %v11174 = vpack.c.b16 %v11138, %v11136
        %v11175 = vpack.c.b16 %v11141, %v11139
        %v11176 = vpack.c.b16 %v11142, %v11140
        %v11177 = vpack.c.b16 %v11145, %v11143
        %v11178 = vpack.c.b16 %v11146, %v11144
        %v11179 = vpack.c.b16 %v11149, %v11147
        %v11180 = vpack.c.b16 %v11150, %v11148
        %v11181 = vpack.c.b16 %v11153, %v11151
        %v11182 = vpack.c.b16 %v11154, %v11152
        %v11183 = vpack.c.b16 %v11157, %v11155
        %v11184 = vpack.c.b16 %v11158, %v11156
        %v11185 = vpack.c.b16 %v11161, %v11159
        %v11186 = vpack.c.b16 %v11162, %v11160
        %v11187 = vpack.c.b16 %v11165, %v11163
        %v11188 = vpack.c.b16 %v11166, %v11164
        %v11189 = vpack.c.b16 %v11169, %v11167
        %v11190 = vpack.c.b16 %v11170, %v11168
        %v11212 = vsel %vm4095, %v11076, 0
        %v11215 = vsel %vm4095, %v11078, 0
        %11217 = vmatprep.subr.bf16.mxu0 %v11172
        %11218 = vmatpush1.bf16.msra.mxu0 %v11171
        %11219 = vmatprep.subr.bf16.mxu0 %v11174
        %11220 = vmatpush1.bf16.msra.mxu0 %v11173
        %11221 = vmatprep.subr.bf16.mxu0 %v11176
        %11222 = vmatpush1.bf16.msra.mxu0 %v11175
        %11223 = vmatprep.subr.bf16.mxu0 %v11178
        %11224 = vmatpush1.bf16.msra.mxu0 %v11177
        %11225 = vmatprep.subr.bf16.mxu0 %v11180
        %11226 = vmatpush1.bf16.msra.mxu0 %v11179
        %11227 = vmatprep.subr.bf16.mxu0 %v11182
        %11228 = vmatpush1.bf16.msra.mxu0 %v11181
        %11229 = vmatprep.subr.bf16.mxu0 %v11184
        %11230 = vmatpush1.bf16.msra.mxu0 %v11183
        %11231 = vmatprep.subr.bf16.mxu0 %v11186
        %11232 = vmatpush1.bf16.msra.mxu0 %v11185
        %11233 = vmatprep.subr.bf16.mxu0 %v11188
        %11234 = vmatpush1.bf16.msra.mxu0 %v11187
        %11235 = vmatprep.subr.bf16.mxu0 %v11190
        %11236 = vmatpush1.bf16.msra.mxu0 %v11189
        %11237 = vmatprep.subr.bf16.mxu0 0
        %11238 = vmatpush1.bf16.msra.mxu0 0
        %11239 = vmatprep.subr.bf16.mxu0 0
        %11240 = vmatpush1.bf16.msra.mxu0 0
        %11241 = vmatprep.subr.bf16.mxu0 0
        %11242 = vmatpush1.bf16.msra.mxu0 0
        %11243 = vmatprep.subr.bf16.mxu0 0
        %11244 = vmatpush1.bf16.msra.mxu0 0
        %11245 = vmatprep.subr.bf16.mxu0 0
        %11246 = vmatpush1.bf16.msra.mxu0 0
        %11247 = vmatprep.subr.bf16.mxu0 0
        %11248 = vmatpush1.bf16.msra.mxu0 0
        %11249 = vmatprep.mubr.bf16.mxu0 %v11212
        %11250 = vmatmul.mubr.bf16.gmra.mrb[0].mxu0 %v11075
        %v11251 = vpop.f32.mrb[0].mxu0
        %v11252 = vadd.f32 %v11104, %v11251
        %v11253 = vpop.f32.mrb[0].mxu0
        %v11254 = vadd.f32 %v11108, %v11253
        %v11255 = vpop.f32.mrb[0].mxu0
        %v11256 = vadd.f32 %v11104, %v11255
        %v11257 = vpop.f32.mrb[0].mxu0
        %v11258 = vadd.f32 %v11108, %v11257
        %11259 = vmatprep.mubr.bf16.mxu0 %v11215
        %11260 = vmatmul.mubr.bf16.gmra.mrb[0].mxu0 %v11077
        %v11261 = vpop.f32.mrb[0].mxu0
        %v11262 = vadd.f32 %v11104, %v11261
        %v11263 = vpop.f32.mrb[0].mxu0
        %v11264 = vadd.f32 %v11108, %v11263
        %v11265 = vpop.f32.mrb[0].mxu0
        %v11266 = vadd.f32 %v11104, %v11265
        %v11267 = vpop.f32.mrb[0].mxu0
        %v11268 = vadd.f32 %v11108, %v11267
        %11269 = vdwg.mxu0
        %v11270 = vmax.f32 %v11252, 0.0
        %v11271 = vmax.f32 %v11254, 0.0
        %v11272 = vmax.f32 %v11256, 0.0
        %v11273 = vmax.f32 %v11258, 0.0
        %v11274 = vmax.f32 %v11262, 0.0
        %v11275 = vmax.f32 %v11264, 0.0
        %v11276 = vmax.f32 %v11266, 0.0
        %v11277 = vmax.f32 %v11268, 0.0
        %v11278 = vmin.f32 %v11270, 6.0
        %v11279 = vmin.f32 %v11271, 6.0
        %v11280 = vmin.f32 %v11272, 6.0
        %v11281 = vmin.f32 %v11273, 6.0
        %v11282 = vmin.f32 %v11274, 6.0
        %v11283 = vmin.f32 %v11275, 6.0
        %v11284 = vmin.f32 %v11276, 6.0
        %v11285 = vmin.f32 %v11277, 6.0
        %v11286 = vld [vmem:[%s3] sm:$0x1]
        %v11288 = vsel %vm4520, %v11286, 0
        %vm11290 = vcmask 1040384
        %v11292 = vsel %vm11290, %v11284, 0
        %v11295 = vsel %vm11290, %v11285, 0
        %11297 = vmatprep.subr.mxu0 %v11279
        %11298 = vmatpush1.msra.mxu0 %v11278
        %11299 = vmatprep.subr.mxu0 %v11281
        %11300 = vmatpush1.msra.mxu0 %v11280
        %11301 = vmatprep.subr.mxu0 %v11283
        %11302 = vmatpush1.msra.mxu0 %v11282
        %11303 = vmatprep.subr.mxu0 %v11295
        %11304 = vmatpush1.msra.mxu0 %v11292
        %11305 = vmatprep.subr.mxu0 0.0
        %11306 = vmatpush1.msra.mxu0 0.0
        %11307 = vmatprep.subr.mxu0 0.0
        %11308 = vmatpush1.msra.mxu0 0.0
        %11309 = vmatprep.subr.mxu0 0.0
        %11310 = vmatpush1.msra.mxu0 0.0
        %11311 = vmatprep.subr.mxu0 0.0
        %11312 = vmatpush1.msra.mxu0 0.0
        %11313 = vmatprep.subr.mxu0 0.0
        %11314 = vmatpush1.msra.mxu0 0.0
        %11315 = vmatprep.subr.mxu0 0.0
        %11316 = vmatpush1.msra.mxu0 0.0
        %11317 = vmatprep.subr.mxu0 0.0
        %11318 = vmatpush1.msra.mxu0 0.0
        %11319 = vmatprep.subr.mxu0 0.0
        %11320 = vmatpush1.msra.mxu0 0.0
        %11321 = vmatprep.subr.mxu0 0.0
        %11322 = vmatpush1.msra.mxu0 0.0
        %11323 = vmatprep.subr.mxu0 0.0
        %11324 = vmatpush1.msra.mxu0 0.0
        %11325 = vmatprep.subr.mxu0 0.0
        %11326 = vmatpush1.msra.mxu0 0.0
        %11327 = vmatprep.subr.mxu0 0.0
        %11328 = vmatpush1.msra.mxu0 0.0
        %11329 = vmatprep.subr.mxu0 0.0
        %11330 = vmatpush1.msra.mxu0 0.0
        %11331 = vmatprep.subr.mxu0 0.0
        %11332 = vmatpush1.msra.mxu0 0.0
        %11333 = vmatprep.subr.mxu0 0.0
        %11334 = vmatpush1.msra.mxu0 0.0
        %11335 = vmatprep.subr.mxu0 0.0
        %11336 = vmatpush1.msra.mxu0 0.0
        %11337 = vmatprep.subr.mxu0 0.0
        %11338 = vmatpush1.msra.mxu0 0.0
        %11339 = vmatprep.subr.mxu0 0.0
        %11340 = vmatpush1.msra.mxu0 0.0
        %11341 = vmatprep.subr.mxu0 0.0
        %11342 = vmatpush1.msra.mxu0 0.0
        %11343 = vmatprep.subr.mxu0 0.0
        %11344 = vmatpush1.msra.mxu0 0.0
        %11345 = vmatprep.subr.mxu0 0.0
        %11346 = vmatpush1.msra.mxu0 0.0
        %11347 = vmatprep.subr.mxu0 0.0
        %11348 = vmatpush1.msra.mxu0 0.0
        %11349 = vmatprep.subr.mxu0 0.0
        %11350 = vmatpush1.msra.mxu0 0.0
        %11351 = vmatprep.subr.mxu0 0.0
        %11352 = vmatpush1.msra.mxu0 0.0
        %11353 = vmatprep.subr.mxu0 0.0
        %11354 = vmatpush1.msra.mxu0 0.0
        %11355 = vmatprep.subr.mxu0 0.0
        %11356 = vmatpush1.msra.mxu0 0.0
        %11357 = vmatprep.subr.mxu0 0.0
        %11358 = vmatpush1.msra.mxu0 0.0
        %11359 = vmatprep.subr.mxu0 0.0
        %11360 = vmatpush1.msra.mxu0 0.0
        %11361 = vmatprep.mubr.f32.mxu0 0.0
        %11362 = vmatmul.mubr.f32.gmra.mrb[0].mxu0 %v11288
        %v11363 = vpop.f32.mrb[0].mxu0
        %v11364 = vadd.f32 0.0, %v11363
        %v11365 = vpop.f32.mrb[0].mxu0
        %v11366 = vadd.f32 0.0, %v11365
        %11367 = vdwg.mxu0
        %v11368 = vld [vmem:[%s24] sm:$0xff]
        %v11369 = vld [vmem:[%s24 + $0x8] sm:$0xff]
        %v11370 = vld [vmem:[%s24 + $0x10] sm:$0xff]
        %v11371 = vld [vmem:[%s24 + $0x18] sm:$0xff]
        %v11372 = vld [vmem:[%s24 + $0x20] sm:$0xff]
        %v11373 = vld [vmem:[%s24 + $0x28] sm:$0xff]
        %v11374 = vld [vmem:[%s24 + $0x30] sm:$0xff]
        %v11375 = vld [vmem:[%s24 + $0x38] sm:$0xff]
        %v11376 = vld [vmem:[%s24 + $0x40] sm:$0xff]
        %v11377 = vld [vmem:[%s24 + $0x48] sm:$0xff]
        %v11378 = vld [vmem:[%s24 + $0x50] sm:$0xff]
        %v11379 = vld [vmem:[%s24 + $0x58] sm:$0xff]
        %v11380 = vld [vmem:[%s24 + $0x60] sm:$0xff]
        %v11381 = vld [vmem:[%s24 + $0x68] sm:$0xff]
        %v11382 = vld [vmem:[%s24 + $0x70] sm:$0xff]
        %v11383 = vld [vmem:[%s24 + $0x78] sm:$0xff]
        %v11384 = vld [vmem:[%s24 + $0x80] sm:$0xff]
        %v11385 = vld [vmem:[%s24 + $0x88] sm:$0xff]
        %v11386 = vld [vmem:[%s24 + $0x90] sm:$0xff]
        %v11387 = vld [vmem:[%s24 + $0x98] sm:$0xff]
        %v11388 = vld [vmem:[%s25] sm:$0x1]
        %v11390 = vsel %vm4095, %v11366, 0
        %11392 = vmatprep.subr.mxu0 0.0
        %11393 = vmatpush1.msra.mxu0 %v11368
        %11394 = vmatprep.subr.mxu0 0.0
        %11395 = vmatpush1.msra.mxu0 %v11369
        %11396 = vmatprep.subr.mxu0 0.0
        %11397 = vmatpush1.msra.mxu0 %v11370
        %11398 = vmatprep.subr.mxu0 0.0
        %11399 = vmatpush1.msra.mxu0 %v11371
        %11400 = vmatprep.subr.mxu0 0.0
        %11401 = vmatpush1.msra.mxu0 %v11372
        %11402 = vmatprep.subr.mxu0 0.0
        %11403 = vmatpush1.msra.mxu0 %v11373
        %11404 = vmatprep.subr.mxu0 0.0
        %11405 = vmatpush1.msra.mxu0 %v11374
        %11406 = vmatprep.subr.mxu0 0.0
        %11407 = vmatpush1.msra.mxu0 %v11375
        %11408 = vmatprep.subr.mxu0 0.0
        %11409 = vmatpush1.msra.mxu0 %v11376
        %11410 = vmatprep.subr.mxu0 0.0
        %11411 = vmatpush1.msra.mxu0 %v11377
        %11412 = vmatprep.subr.mxu0 0.0
        %11413 = vmatpush1.msra.mxu0 %v11378
        %11414 = vmatprep.subr.mxu0 0.0
        %11415 = vmatpush1.msra.mxu0 %v11379
        %11416 = vmatprep.subr.mxu0 0.0
        %11417 = vmatpush1.msra.mxu0 %v11380
        %11418 = vmatprep.subr.mxu0 0.0
        %11419 = vmatpush1.msra.mxu0 %v11381
        %11420 = vmatprep.subr.mxu0 0.0
        %11421 = vmatpush1.msra.mxu0 %v11382
        %11422 = vmatprep.subr.mxu0 0.0
        %11423 = vmatpush1.msra.mxu0 %v11383
        %11424 = vmatprep.subr.mxu0 0.0
        %11425 = vmatpush1.msra.mxu0 %v11384
        %11426 = vmatprep.subr.mxu0 0.0
        %11427 = vmatpush1.msra.mxu0 %v11385
        %11428 = vmatprep.subr.mxu0 0.0
        %11429 = vmatpush1.msra.mxu0 %v11386
        %11430 = vmatprep.subr.mxu0 0.0
        %11431 = vmatpush1.msra.mxu0 %v11387
        %11432 = vmatprep.subr.mxu0 0.0
        %11433 = vmatpush1.msra.mxu0 0.0
        %11434 = vmatprep.subr.mxu0 0.0
        %11435 = vmatpush1.msra.mxu0 0.0
        %11436 = vmatprep.subr.mxu0 0.0
        %11437 = vmatpush1.msra.mxu0 0.0
        %11438 = vmatprep.subr.mxu0 0.0
        %11439 = vmatpush1.msra.mxu0 0.0
        %11440 = vmatprep.subr.mxu0 0.0
        %11441 = vmatpush1.msra.mxu0 0.0
        %11442 = vmatprep.subr.mxu0 0.0
        %11443 = vmatpush1.msra.mxu0 0.0
        %11444 = vmatprep.subr.mxu0 0.0
        %11445 = vmatpush1.msra.mxu0 0.0
        %11446 = vmatprep.subr.mxu0 0.0
        %11447 = vmatpush1.msra.mxu0 0.0
        %11448 = vmatprep.subr.mxu0 0.0
        %11449 = vmatpush1.msra.mxu0 0.0
        %11450 = vmatprep.subr.mxu0 0.0
        %11451 = vmatpush1.msra.mxu0 0.0
        %11452 = vmatprep.subr.mxu0 0.0
        %11453 = vmatpush1.msra.mxu0 0.0
        %11454 = vmatprep.subr.mxu0 0.0
        %11455 = vmatpush1.msra.mxu0 0.0
        %11456 = vmatprep.mubr.f32.mxu0 %v11390
        %11457 = vmatmul.mubr.f32.gmra.mrb[0].mxu0 %v11364
        %v11458 = vpop.f32.mrb[0].mxu0
        %v11459 = vadd.f32 %v11388, %v11458
        %v11460 = vpop.f32.mrb[0].mxu0
        %11461 = vdwg.mxu0
        %vm11462 = vcmask 163840
        %11463 = vst.msk [vmem:[%s783] sm:$0x1] %vm11462, %v11459
        %s11464 = sand.u32 %s599, 1
        %s11465 = scalar_lea.sflag [#allocation3], %s11464
        %s11466 = sand.u32 %s599, 1
        %s11467 = scalar_lea.vmem [#allocation2], %s11466
        // Predicated region
        $region125: #{forward.1} parent=123 // pred_check
          %p11468 = pneg %p609
        $region126: #{forward.1} parent=123 // pred_check_branch
          %11470 = sbr.rel (%p11468) target = $region128
        $region127: #{forward.1} parent=123 // pred_region
          %s11472 = ssub.s32 16, 16
          %11473 = vsyncadd %s11465, %s11472
          %s11474 = smul.addr %s40, 16
          %s11475 = scalar_lea.hbm %s26, %s11474
          %s11477 = sshll.u32 %s11467, 4
          %s11478 = int_to_ptr.vmem [resolvable:$true] %s11477
          %11480 = dma.vmem_to_hbm [thread:$0]  %s11478, 16, %s11475, %s11465
        $region128: #{forward.1} parent=123 // pred_fallthru
          _
      $region124: #{forward.1} parent=5 // pred_fallthru
        _
      %p11481 = scmp.le.s32.totalorder 2, %s35
      // Predicated region
      $region129: #{forward.1} parent=5 // pred_check
        %p11482 = pneg %p11481
      $region130: #{forward.1} parent=5 // pred_check_branch
        %11484 = sbr.rel (%p11482) target = $region132
      $region131: #{forward.1} parent=5 // pred_region
        %s11485 = ssub.s32 %s35, 2
        // Predicated region
        $region133: #{forward.1} parent=131 // pred_check
          %p11486 = pneg %p615
        $region134: #{forward.1} parent=131 // pred_check_branch
          %11488 = sbr.rel (%p11486) target = $region136
        $region135: #{forward.1} parent=131 // pred_region
          %s11489 = sand.u32 %s600, 1
          %s11490 = scalar_lea.sflag [#allocation3], %s11489
          %s11491 = sand.u32 %s600, 1
          %s11492 = scalar_lea.vmem [#allocation2], %s11491
          %11493 = dma.done %s11490, 16
        $region136: #{forward.1} parent=131 // pred_fallthru
          _
      $region132: #{forward.1} parent=5 // pred_fallthru
        _
    $region6: #{forward.1} parent=1 // loop_footer
      %s39 = sadd.s32 1, %s35
    $region7: #{forward.1} parent=1 // loop_footer_branch
      %34 = sbr.rel target = $region3
    $region8: #{forward.1} parent=1 // loop_exit
      _
    %11494 = vsyncpa [#allocation3], 1
    %s11495 = scalar_lea.sflag [#allocation3], 1
    %11496 = vsyncpa %s11495, 1

</llo_original>
